<compile_context>
chip_gen: v7x
topology: tpu7x:2x2x1
jax: 0.10.0
libtpu: 0.0.40
codegen_flags: <defaults>
</compile_context>

<pallas_src>
import functools

import jax
import jax.numpy as jnp
from jax import lax
from jax.experimental import pallas as pl
from jax.experimental.pallas import tpu as pltpu


def _vmem_limit_bytes():
    """Per-generation VMEM limit: capacity minus headroom, capped at 64 MiB."""
    try:
        cap = int(pltpu.get_tpu_info().vmem_capacity_bytes)
        return max(min(cap - 16 * 1024 * 1024, 64 * 1024 * 1024),
                   32 * 1024 * 1024)
    except Exception:
        return 48 * 1024 * 1024  # conservative default, safe on every generation


def _basic_block_kernel(x_ref, w1_ref, w2_ref, b_ref, o_ref, mid_ref, *,
                        H, W, P0, k_concat):
    """One batch element per grid step.

    x_ref:   (Rpad, Cin)   bf16  zero-padded input, flattened row-major (NHWC)
    w1_ref:  (9, Cin, Cout) or (3, 3*Cin, Cout)   bf16, BN1 scale folded in
    w2_ref:  (9, Cout, Cout) or (3, 3*Cout, Cout) bf16, BN2 scale folded in
    b_ref:   (2, Cout)     f32   folded BN biases [b1; b2]
    o_ref:   (M, Cout)     output rows, M = H*(W+2) (wrapper trims 2 cols/row)
    mid_ref: (Rpad, Cout)  bf16  VMEM scratch: padded intermediate activation
    """
    Wp = W + 2
    M = H * Wp
    Cout = o_ref.shape[1]
    Rpad = mid_ref.shape[0]
    woff = P0 + Wp + 1            # interior slab start; P0 makes woff % 16 == 0

    # Zero the intermediate's halo rows every step (cheap), so there is no
    # cross-iteration scratch dependence: correct even when the 'parallel'
    # batch axis is sharded across TensorCores (v7x megacore).
    mid_ref[0:woff, :] = jnp.zeros((woff, Cout), mid_ref.dtype)
    mid_ref[woff + M:Rpad, :] = jnp.zeros((Rpad - woff - M, Cout), mid_ref.dtype)

    # Mask for the 2 "garbage" columns per row of the full-width-conv trick
    # (they land on the intermediate's left/right halo and must stay zero).
    col = lax.broadcasted_iota(jnp.int32, (M, 1), 0) % Wp
    valid = col < W

    def conv3x3(src_ref, w_ref):
        acc = None
        for kh in range(3):
            base = P0 + kh * Wp
            if k_concat:
                # Lane-aligned channels: fold the 3 kw taps into the MXU
                # contraction dim (K = 3*Cin) -> 3 matmuls per conv.
                slab = jnp.concatenate(
                    [src_ref[base + kw:base + kw + M, :] for kw in range(3)],
                    axis=1)
                d = jnp.dot(slab, w_ref[kh],
                            preferred_element_type=jnp.float32)
                acc = d if acc is None else acc + d
            else:
                for kw in range(3):
                    d = jnp.dot(src_ref[base + kw:base + kw + M, :],
                                w_ref[kh * 3 + kw],
                                preferred_element_type=jnp.float32)
                    acc = d if acc is None else acc + d
        return acc

    # conv1 (+ folded BN1): bias + relu, mask garbage cols, one aligned store.
    acc = conv3x3(x_ref, w1_ref)
    mid = jnp.where(valid, jnp.maximum(acc + b_ref[0:1, :], 0.0), 0.0)
    mid_ref[woff:woff + M, :] = mid.astype(mid_ref.dtype)

    # conv2 (+ folded BN2): bias + identity residual + relu.
    acc = conv3x3(mid_ref, w2_ref)
    res = x_ref[woff:woff + M, :].astype(jnp.float32)
    o_ref[...] = jnp.maximum(acc + b_ref[1:2, :] + res, 0.0).astype(o_ref.dtype)


def basic_block_forward(x_nchw, w1, g1, be1, m1, v1, w2, g2, be2, m2, v2,
                        eps=1e-5):
    """x_nchw: (N, C, H, W) float32.  w1/w2 in PyTorch layout (Cout, Cin, 3, 3)."""
    N, C, H, W = x_nchw.shape
    Cout = w1.shape[0]
    assert Cout == C, "identity residual requires inplanes == planes"
    # TODO(synk): stride=2 / downsample BasicBlock variants and training-mode
    # BatchNorm (batch statistics) are not implemented; eval-mode BN is folded.

    Wp = W + 2
    R = (H + 2) * Wp                     # rows of the flattened padded image
    M = H * Wp                           # full-width output rows per image
    P0 = (-(Wp + 1)) % 16                # aligns the interior slab (bf16 tile)
    Rpad = -(-(P0 + R + 2) // 16) * 16   # +2 so edge-tap slabs never read OOB

    # NCHW -> NHWC, spatial zero-pad (padding=1), flatten rows, pad, cast bf16.
    x_nhwc = jnp.transpose(x_nchw, (0, 2, 3, 1))
    x_pad = jnp.pad(x_nhwc, ((0, 0), (1, 1), (1, 1), (0, 0)))
    x_flat = jnp.pad(x_pad.reshape(N, R, C),
                     ((0, 0), (P0, Rpad - R - P0), (0, 0))).astype(jnp.bfloat16)

    # Fold eval-mode BatchNorm: scale into the weights, bias kept separately.
    s1 = g1 / jnp.sqrt(v1 + eps)
    s2 = g2 / jnp.sqrt(v2 + eps)
    b1 = be1 - m1 * s1
    b2 = be2 - m2 * s2

    # Tap-into-K concat only when channel slabs are lane-aligned (C % 128 == 0).
    k_concat = (C % 128 == 0)

    def repack(w, s):
        # (Cout, Cin, 3, 3) -> tap-major bf16, BN scale folded on the out axis.
        wk = jnp.transpose(w, (2, 3, 1, 0)) * s            # (3, 3, Cin, Cout)
        cin, cout = w.shape[1], w.shape[0]
        shape = (3, 3 * cin, cout) if k_concat else (9, cin, cout)
        return wk.reshape(shape).astype(jnp.bfloat16)

    w1k = repack(w1, s1)
    w2k = repack(w2, s2)
    biases = jnp.stack([b1, b2]).astype(jnp.float32)       # (2, Cout)

    kernel = functools.partial(_basic_block_kernel, H=H, W=W, P0=P0,
                               k_concat=k_concat)

    out_flat = pl.pallas_call(
        kernel,
        out_shape=jax.ShapeDtypeStruct((N, M, Cout), x_nchw.dtype),
        grid_spec=pltpu.PrefetchScalarGridSpec(
            num_scalar_prefetch=0,
            grid=(N,),
            in_specs=[
                pl.BlockSpec((None, Rpad, C), lambda n: (n, 0, 0)),
                pl.BlockSpec(w1k.shape, lambda n: (0, 0, 0)),
                pl.BlockSpec(w2k.shape, lambda n: (0, 0, 0)),
                pl.BlockSpec((2, Cout), lambda n: (0, 0)),
            ],
            out_specs=pl.BlockSpec((None, M, Cout), lambda n: (n, 0, 0)),
            scratch_shapes=[pltpu.VMEM((Rpad, Cout), jnp.bfloat16)],
        ),
        compiler_params=pltpu.CompilerParams(
            dimension_semantics=("parallel",),
            vmem_limit_bytes=_vmem_limit_bytes()),
    )(x_flat, w1k, w2k, biases)

    # Boundary-only: trim the 2 garbage columns per row, then NHWC -> NCHW.
    out = out_flat.reshape(N, H, Wp, Cout)[:, :, :W, :]
    return jnp.transpose(out, (0, 3, 1, 2))


def _reference_forward(x_nchw, w1, g1, be1, m1, v1, w2, g2, be2, m2, v2,
                       eps=1e-5):
    """Pure-JAX f32 reference (NHWC conv via lax) for correctness checking."""
    x = jnp.transpose(x_nchw, (0, 2, 3, 1))  # NHWC
    dn = ('NHWC', 'HWIO', 'NHWC')

    def conv(x, w):
        w_hwio = jnp.transpose(w, (2, 3, 1, 0))
        return lax.conv_general_dilated(x, w_hwio, (1, 1), 'SAME',
                                        dimension_numbers=dn)

    def bn(x, g, b, m, v):
        return (x - m) / jnp.sqrt(v + eps) * g + b

    out = jnp.maximum(bn(conv(x, w1), g1, be1, m1, v1), 0.0)
    out = bn(conv(out, w2), g2, be2, m2, v2)
    out = jnp.maximum(out + x, 0.0)
    return jnp.transpose(out, (0, 3, 1, 2))


if __name__ == "__main__":
    N, C, H, W = 2, 8, 16, 16  # inplanes == planes == 8, stride=1, no downsample
    key = jax.random.PRNGKey(0)
    keys = jax.random.split(key, 11)

    x = jax.random.normal(keys[0], (N, C, H, W), jnp.float32)

    # conv weights in PyTorch layout (Cout, Cin, 3, 3)
    w1 = jax.random.normal(keys[1], (C, C, 3, 3), jnp.float32) * 0.1
    w2 = jax.random.normal(keys[2], (C, C, 3, 3), jnp.float32) * 0.1

    # BatchNorm parameters (eval mode: use running stats)
    g1 = 1.0 + 0.1 * jax.random.normal(keys[3], (C,), jnp.float32)
    be1 = 0.1 * jax.random.normal(keys[4], (C,), jnp.float32)
    m1 = 0.1 * jax.random.normal(keys[5], (C,), jnp.float32)
    v1 = 1.0 + 0.1 * jnp.abs(jax.random.normal(keys[6], (C,), jnp.float32))
    g2 = 1.0 + 0.1 * jax.random.normal(keys[7], (C,), jnp.float32)
    be2 = 0.1 * jax.random.normal(keys[8], (C,), jnp.float32)
    m2 = 0.1 * jax.random.normal(keys[9], (C,), jnp.float32)
    v2 = 1.0 + 0.1 * jnp.abs(jax.random.normal(keys[10], (C,), jnp.float32))

    out = basic_block_forward(x, w1, g1, be1, m1, v1, w2, g2, be2, m2, v2)
    out = jax.block_until_ready(out)

    ref = _reference_forward(x, w1, g1, be1, m1, v1, w2, g2, be2, m2, v2)
    ref = jax.block_until_ready(ref)

    assert out.shape == (N, C, H, W)
    # bf16 matmul operands / bf16 intermediate with f32 accumulation vs the
    # f32 reference: expect ~1e-2 max and a few 1e-3 mean absolute error.
    err = jnp.abs(out - ref)
    assert jnp.max(err) < 5e-2, f"max err {jnp.max(err)} vs f32 reference"
    assert jnp.mean(err) < 1e-2, f"mean err {jnp.mean(err)} vs f32 reference"
    print("KERNEL_OK")
</pallas_src>

<mosaic_0001>
module attributes {stable_mosaic.version = 11 : i64} {
  func.func @_basic_block_kernel(%arg0: i32, %arg1: memref<1x352x8xbf16, #tpu.memory_space<vmem>>, %arg2: memref<9x8x8xbf16, #tpu.memory_space<vmem>>, %arg3: memref<9x8x8xbf16, #tpu.memory_space<vmem>>, %arg4: memref<2x8xf32, #tpu.memory_space<vmem>>, %arg5: memref<1x288x8xf32, #tpu.memory_space<vmem>>, %arg6: memref<352x8xbf16, #tpu.memory_space<vmem>>) attributes {dimension_semantics = [#tpu.dimension_semantics<parallel>], iteration_bounds = array<i64: 2>, scalar_prefetch = 0 : i64, scratch_operands = 1 : i64, tpu.core_type = #tpu.core_type<tc>, window_params = [{transform_indices = @transform_0, window_bounds = array<i64: 1, 352, 8>}, {pipeline_mode = #tpu.pipeline_mode<synchronous>, transform_indices = @transform_1, window_bounds = array<i64: 9, 8, 8>}, {pipeline_mode = #tpu.pipeline_mode<synchronous>, transform_indices = @transform_2, window_bounds = array<i64: 9, 8, 8>}, {pipeline_mode = #tpu.pipeline_mode<synchronous>, transform_indices = @transform_3, window_bounds = array<i64: 2, 8>}, {transform_indices = @transform_4, window_bounds = array<i64: 1, 288, 8>}]} {
    %cst = arith.constant 0.000000e+00 : bf16
    %0 = vector.broadcast %cst : bf16 to vector<32x8xbf16>
    %c0 = arith.constant 0 : index
    %c0_0 = arith.constant 0 : index
    %1 = vector.load %arg6[%c0, %c0_0] : memref<352x8xbf16, #tpu.memory_space<vmem>>, vector<32x8xbf16>
    tpu.vector_store %arg6[%c0, %c0_0], %0 {strides = array<i32>} : memref<352x8xbf16, #tpu.memory_space<vmem>>, vector<32x8xbf16>,
    %cst_1 = arith.constant 0.000000e+00 : bf16
    %2 = vector.broadcast %cst_1 : bf16 to vector<32x8xbf16>
    %c320 = arith.constant 320 : index
    %c0_2 = arith.constant 0 : index
    %3 = vector.load %arg6[%c320, %c0_2] : memref<352x8xbf16, #tpu.memory_space<vmem>>, vector<32x8xbf16>
    tpu.vector_store %arg6[%c320, %c0_2], %2 {strides = array<i32>} : memref<352x8xbf16, #tpu.memory_space<vmem>>, vector<32x8xbf16>,
    %4 = tpu.iota {dimensions = array<i32: 0>} : vector<288x1xi32>
    %c18_i32 = arith.constant 18 : i32
    %c0_i32 = arith.constant 0 : i32
    %5 = arith.cmpi eq, %c18_i32, %c0_i32 : i32
    %c1_i32 = arith.constant 1 : i32
    %6 = arith.select %5, %c1_i32, %c18_i32 : i32
    %7 = vector.broadcast %6 : i32 to vector<288x1xi32>
    %8 = arith.remsi %4, %7 : vector<288x1xi32>
    %c0_i32_3 = arith.constant 0 : i32
    %9 = vector.broadcast %c0_i32_3 : i32 to vector<288x1xi32>
    %10 = arith.cmpi ne, %8, %9 : vector<288x1xi32>
    %c0_i32_4 = arith.constant 0 : i32
    %11 = vector.broadcast %c0_i32_4 : i32 to vector<288x1xi32>
    %12 = arith.cmpi slt, %8, %11 : vector<288x1xi32>
    %c0_i32_5 = arith.constant 0 : i32
    %13 = arith.cmpi slt, %6, %c0_i32_5 : i32
    %14 = vector.broadcast %13 : i1 to vector<288x1xi1>
    %15 = vector.broadcast %14 : vector<288x1xi1> to vector<288x1xi1>
    %16 = arith.xori %12, %15 : vector<288x1xi1>
    %17 = arith.andi %16, %10 : vector<288x1xi1>
    %18 = vector.broadcast %6 : i32 to vector<288x1xi32>
    %19 = arith.addi %8, %18 : vector<288x1xi32>
    %20 = arith.select %17, %19, %8 : vector<288x1xi1>, vector<288x1xi32>
    %c16_i32 = arith.constant 16 : i32
    %21 = vector.broadcast %c16_i32 : i32 to vector<288x1xi32>
    %22 = arith.cmpi slt, %20, %21 : vector<288x1xi32>
    %c0_6 = arith.constant 0 : index
    %c13 = arith.constant 13 : index
    %c0_7 = arith.constant 0 : index
    %23 = vector.load %arg1[%c0_6, %c13, %c0_7] : memref<1x352x8xbf16, #tpu.memory_space<vmem>>, vector<1x288x8xbf16>
    %24 = vector.shape_cast %23 : vector<1x288x8xbf16> to vector<288x8xbf16>
    %c0_8 = arith.constant 0 : index
    %c0_9 = arith.constant 0 : index
    %c0_10 = arith.constant 0 : index
    %25 = vector.load %arg2[%c0_8, %c0_9, %c0_10] : memref<9x8x8xbf16, #tpu.memory_space<vmem>>, vector<1x8x8xbf16>
    %26 = vector.shape_cast %25 : vector<1x8x8xbf16> to vector<8x8xbf16>
    %cst_11 = arith.constant dense<0.000000e+00> : vector<288x8xf32>
    %27 = tpu.matmul %24, %26, %cst_11 {dimension_numbers = #tpu.dot_dimension_numbers<[1], [0], [0], [1], [0, 0, 1, 1], [], []>} : vector<288x8xbf16>, vector<8x8xbf16>, vector<288x8xf32> -> vector<288x8xf32>
    %c0_12 = arith.constant 0 : index
    %c14 = arith.constant 14 : index
    %c0_13 = arith.constant 0 : index
    %28 = vector.load %arg1[%c0_12, %c14, %c0_13] : memref<1x352x8xbf16, #tpu.memory_space<vmem>>, vector<1x288x8xbf16>
    %29 = vector.shape_cast %28 : vector<1x288x8xbf16> to vector<288x8xbf16>
    %c1 = arith.constant 1 : index
    %c0_14 = arith.constant 0 : index
    %c0_15 = arith.constant 0 : index
    %30 = vector.load %arg2[%c1, %c0_14, %c0_15] : memref<9x8x8xbf16, #tpu.memory_space<vmem>>, vector<1x8x8xbf16>
    %31 = vector.shape_cast %30 : vector<1x8x8xbf16> to vector<8x8xbf16>
    %cst_16 = arith.constant dense<0.000000e+00> : vector<288x8xf32>
    %32 = tpu.matmul %29, %31, %cst_16 {dimension_numbers = #tpu.dot_dimension_numbers<[1], [0], [0], [1], [0, 0, 1, 1], [], []>} : vector<288x8xbf16>, vector<8x8xbf16>, vector<288x8xf32> -> vector<288x8xf32>
    %33 = arith.addf %27, %32 : vector<288x8xf32>
    %c0_17 = arith.constant 0 : index
    %c15 = arith.constant 15 : index
    %c0_18 = arith.constant 0 : index
    %34 = vector.load %arg1[%c0_17, %c15, %c0_18] : memref<1x352x8xbf16, #tpu.memory_space<vmem>>, vector<1x288x8xbf16>
    %35 = vector.shape_cast %34 : vector<1x288x8xbf16> to vector<288x8xbf16>
    %c2 = arith.constant 2 : index
    %c0_19 = arith.constant 0 : index
    %c0_20 = arith.constant 0 : index
    %36 = vector.load %arg2[%c2, %c0_19, %c0_20] : memref<9x8x8xbf16, #tpu.memory_space<vmem>>, vector<1x8x8xbf16>
    %37 = vector.shape_cast %36 : vector<1x8x8xbf16> to vector<8x8xbf16>
    %cst_21 = arith.constant dense<0.000000e+00> : vector<288x8xf32>
    %38 = tpu.matmul %35, %37, %cst_21 {dimension_numbers = #tpu.dot_dimension_numbers<[1], [0], [0], [1], [0, 0, 1, 1], [], []>} : vector<288x8xbf16>, vector<8x8xbf16>, vector<288x8xf32> -> vector<288x8xf32>
    %39 = arith.addf %33, %38 : vector<288x8xf32>
    %c0_22 = arith.constant 0 : index
    %c31 = arith.constant 31 : index
    %c0_23 = arith.constant 0 : index
    %40 = vector.load %arg1[%c0_22, %c31, %c0_23] : memref<1x352x8xbf16, #tpu.memory_space<vmem>>, vector<1x288x8xbf16>
    %41 = vector.shape_cast %40 : vector<1x288x8xbf16> to vector<288x8xbf16>
    %c3 = arith.constant 3 : index
    %c0_24 = arith.constant 0 : index
    %c0_25 = arith.constant 0 : index
    %42 = vector.load %arg2[%c3, %c0_24, %c0_25] : memref<9x8x8xbf16, #tpu.memory_space<vmem>>, vector<1x8x8xbf16>
    %43 = vector.shape_cast %42 : vector<1x8x8xbf16> to vector<8x8xbf16>
    %cst_26 = arith.constant dense<0.000000e+00> : vector<288x8xf32>
    %44 = tpu.matmul %41, %43, %cst_26 {dimension_numbers = #tpu.dot_dimension_numbers<[1], [0], [0], [1], [0, 0, 1, 1], [], []>} : vector<288x8xbf16>, vector<8x8xbf16>, vector<288x8xf32> -> vector<288x8xf32>
    %45 = arith.addf %39, %44 : vector<288x8xf32>
    %c0_27 = arith.constant 0 : index
    %c32 = arith.constant 32 : index
    %c0_28 = arith.constant 0 : index
    %46 = vector.load %arg1[%c0_27, %c32, %c0_28] : memref<1x352x8xbf16, #tpu.memory_space<vmem>>, vector<1x288x8xbf16>
    %47 = vector.shape_cast %46 : vector<1x288x8xbf16> to vector<288x8xbf16>
    %c4 = arith.constant 4 : index
    %c0_29 = arith.constant 0 : index
    %c0_30 = arith.constant 0 : index
    %48 = vector.load %arg2[%c4, %c0_29, %c0_30] : memref<9x8x8xbf16, #tpu.memory_space<vmem>>, vector<1x8x8xbf16>
    %49 = vector.shape_cast %48 : vector<1x8x8xbf16> to vector<8x8xbf16>
    %cst_31 = arith.constant dense<0.000000e+00> : vector<288x8xf32>
    %50 = tpu.matmul %47, %49, %cst_31 {dimension_numbers = #tpu.dot_dimension_numbers<[1], [0], [0], [1], [0, 0, 1, 1], [], []>} : vector<288x8xbf16>, vector<8x8xbf16>, vector<288x8xf32> -> vector<288x8xf32>
    %51 = arith.addf %45, %50 : vector<288x8xf32>
    %c0_32 = arith.constant 0 : index
    %c33 = arith.constant 33 : index
    %c0_33 = arith.constant 0 : index
    %52 = vector.load %arg1[%c0_32, %c33, %c0_33] : memref<1x352x8xbf16, #tpu.memory_space<vmem>>, vector<1x288x8xbf16>
    %53 = vector.shape_cast %52 : vector<1x288x8xbf16> to vector<288x8xbf16>
    %c5 = arith.constant 5 : index
    %c0_34 = arith.constant 0 : index
    %c0_35 = arith.constant 0 : index
    %54 = vector.load %arg2[%c5, %c0_34, %c0_35] : memref<9x8x8xbf16, #tpu.memory_space<vmem>>, vector<1x8x8xbf16>
    %55 = vector.shape_cast %54 : vector<1x8x8xbf16> to vector<8x8xbf16>
    %cst_36 = arith.constant dense<0.000000e+00> : vector<288x8xf32>
    %56 = tpu.matmul %53, %55, %cst_36 {dimension_numbers = #tpu.dot_dimension_numbers<[1], [0], [0], [1], [0, 0, 1, 1], [], []>} : vector<288x8xbf16>, vector<8x8xbf16>, vector<288x8xf32> -> vector<288x8xf32>
    %57 = arith.addf %51, %56 : vector<288x8xf32>
    %c0_37 = arith.constant 0 : index
    %c49 = arith.constant 49 : index
    %c0_38 = arith.constant 0 : index
    %58 = vector.load %arg1[%c0_37, %c49, %c0_38] : memref<1x352x8xbf16, #tpu.memory_space<vmem>>, vector<1x288x8xbf16>
    %59 = vector.shape_cast %58 : vector<1x288x8xbf16> to vector<288x8xbf16>
    %c6 = arith.constant 6 : index
    %c0_39 = arith.constant 0 : index
    %c0_40 = arith.constant 0 : index
    %60 = vector.load %arg2[%c6, %c0_39, %c0_40] : memref<9x8x8xbf16, #tpu.memory_space<vmem>>, vector<1x8x8xbf16>
    %61 = vector.shape_cast %60 : vector<1x8x8xbf16> to vector<8x8xbf16>
    %cst_41 = arith.constant dense<0.000000e+00> : vector<288x8xf32>
    %62 = tpu.matmul %59, %61, %cst_41 {dimension_numbers = #tpu.dot_dimension_numbers<[1], [0], [0], [1], [0, 0, 1, 1], [], []>} : vector<288x8xbf16>, vector<8x8xbf16>, vector<288x8xf32> -> vector<288x8xf32>
    %63 = arith.addf %57, %62 : vector<288x8xf32>
    %c0_42 = arith.constant 0 : index
    %c50 = arith.constant 50 : index
    %c0_43 = arith.constant 0 : index
    %64 = vector.load %arg1[%c0_42, %c50, %c0_43] : memref<1x352x8xbf16, #tpu.memory_space<vmem>>, vector<1x288x8xbf16>
    %65 = vector.shape_cast %64 : vector<1x288x8xbf16> to vector<288x8xbf16>
    %c7 = arith.constant 7 : index
    %c0_44 = arith.constant 0 : index
    %c0_45 = arith.constant 0 : index
    %66 = vector.load %arg2[%c7, %c0_44, %c0_45] : memref<9x8x8xbf16, #tpu.memory_space<vmem>>, vector<1x8x8xbf16>
    %67 = vector.shape_cast %66 : vector<1x8x8xbf16> to vector<8x8xbf16>
    %cst_46 = arith.constant dense<0.000000e+00> : vector<288x8xf32>
    %68 = tpu.matmul %65, %67, %cst_46 {dimension_numbers = #tpu.dot_dimension_numbers<[1], [0], [0], [1], [0, 0, 1, 1], [], []>} : vector<288x8xbf16>, vector<8x8xbf16>, vector<288x8xf32> -> vector<288x8xf32>
    %69 = arith.addf %63, %68 : vector<288x8xf32>
    %c0_47 = arith.constant 0 : index
    %c51 = arith.constant 51 : index
    %c0_48 = arith.constant 0 : index
    %70 = vector.load %arg1[%c0_47, %c51, %c0_48] : memref<1x352x8xbf16, #tpu.memory_space<vmem>>, vector<1x288x8xbf16>
    %71 = vector.shape_cast %70 : vector<1x288x8xbf16> to vector<288x8xbf16>
    %c8 = arith.constant 8 : index
    %c0_49 = arith.constant 0 : index
    %c0_50 = arith.constant 0 : index
    %72 = vector.load %arg2[%c8, %c0_49, %c0_50] : memref<9x8x8xbf16, #tpu.memory_space<vmem>>, vector<1x8x8xbf16>
    %73 = vector.shape_cast %72 : vector<1x8x8xbf16> to vector<8x8xbf16>
    %cst_51 = arith.constant dense<0.000000e+00> : vector<288x8xf32>
    %74 = tpu.matmul %71, %73, %cst_51 {dimension_numbers = #tpu.dot_dimension_numbers<[1], [0], [0], [1], [0, 0, 1, 1], [], []>} : vector<288x8xbf16>, vector<8x8xbf16>, vector<288x8xf32> -> vector<288x8xf32>
    %75 = arith.addf %69, %74 : vector<288x8xf32>
    %c0_52 = arith.constant 0 : index
    %c0_53 = arith.constant 0 : index
    %76 = vector.load %arg4[%c0_52, %c0_53] : memref<2x8xf32, #tpu.memory_space<vmem>>, vector<1x8xf32>
    %77 = vector.broadcast %76 : vector<1x8xf32> to vector<288x8xf32>
    %78 = arith.addf %75, %77 : vector<288x8xf32>
    %cst_54 = arith.constant 0.000000e+00 : f32
    %79 = vector.broadcast %cst_54 : f32 to vector<288x8xf32>
    %80 = arith.maximumf %78, %79 : vector<288x8xf32>
    %cst_55 = arith.constant 0.000000e+00 : f32
    %81 = vector.shape_cast %22 : vector<288x1xi1> to vector<288x1xi1>
    %82 = vector.broadcast %81 : vector<288x1xi1> to vector<288x8xi1>
    %83 = vector.broadcast %cst_55 : f32 to vector<288x8xf32>
    %84 = arith.select %82, %80, %83 : vector<288x8xi1>, vector<288x8xf32>
    %85 = arith.truncf %84 : vector<288x8xf32> to vector<288x8xbf16>
    %c32_56 = arith.constant 32 : index
    %c0_57 = arith.constant 0 : index
    %86 = vector.load %arg6[%c32_56, %c0_57] : memref<352x8xbf16, #tpu.memory_space<vmem>>, vector<288x8xbf16>
    tpu.vector_store %arg6[%c32_56, %c0_57], %85 {strides = array<i32>} : memref<352x8xbf16, #tpu.memory_space<vmem>>, vector<288x8xbf16>,
    %c13_58 = arith.constant 13 : index
    %c0_59 = arith.constant 0 : index
    %87 = vector.load %arg6[%c13_58, %c0_59] : memref<352x8xbf16, #tpu.memory_space<vmem>>, vector<288x8xbf16>
    %c0_60 = arith.constant 0 : index
    %c0_61 = arith.constant 0 : index
    %c0_62 = arith.constant 0 : index
    %88 = vector.load %arg3[%c0_60, %c0_61, %c0_62] : memref<9x8x8xbf16, #tpu.memory_space<vmem>>, vector<1x8x8xbf16>
    %89 = vector.shape_cast %88 : vector<1x8x8xbf16> to vector<8x8xbf16>
    %cst_63 = arith.constant dense<0.000000e+00> : vector<288x8xf32>
    %90 = tpu.matmul %87, %89, %cst_63 {dimension_numbers = #tpu.dot_dimension_numbers<[1], [0], [0], [1], [0, 0, 1, 1], [], []>} : vector<288x8xbf16>, vector<8x8xbf16>, vector<288x8xf32> -> vector<288x8xf32>
    %c14_64 = arith.constant 14 : index
    %c0_65 = arith.constant 0 : index
    %91 = vector.load %arg6[%c14_64, %c0_65] : memref<352x8xbf16, #tpu.memory_space<vmem>>, vector<288x8xbf16>
    %c1_66 = arith.constant 1 : index
    %c0_67 = arith.constant 0 : index
    %c0_68 = arith.constant 0 : index
    %92 = vector.load %arg3[%c1_66, %c0_67, %c0_68] : memref<9x8x8xbf16, #tpu.memory_space<vmem>>, vector<1x8x8xbf16>
    %93 = vector.shape_cast %92 : vector<1x8x8xbf16> to vector<8x8xbf16>
    %cst_69 = arith.constant dense<0.000000e+00> : vector<288x8xf32>
    %94 = tpu.matmul %91, %93, %cst_69 {dimension_numbers = #tpu.dot_dimension_numbers<[1], [0], [0], [1], [0, 0, 1, 1], [], []>} : vector<288x8xbf16>, vector<8x8xbf16>, vector<288x8xf32> -> vector<288x8xf32>
    %95 = arith.addf %90, %94 : vector<288x8xf32>
    %c15_70 = arith.constant 15 : index
    %c0_71 = arith.constant 0 : index
    %96 = vector.load %arg6[%c15_70, %c0_71] : memref<352x8xbf16, #tpu.memory_space<vmem>>, vector<288x8xbf16>
    %c2_72 = arith.constant 2 : index
    %c0_73 = arith.constant 0 : index
    %c0_74 = arith.constant 0 : index
    %97 = vector.load %arg3[%c2_72, %c0_73, %c0_74] : memref<9x8x8xbf16, #tpu.memory_space<vmem>>, vector<1x8x8xbf16>
    %98 = vector.shape_cast %97 : vector<1x8x8xbf16> to vector<8x8xbf16>
    %cst_75 = arith.constant dense<0.000000e+00> : vector<288x8xf32>
    %99 = tpu.matmul %96, %98, %cst_75 {dimension_numbers = #tpu.dot_dimension_numbers<[1], [0], [0], [1], [0, 0, 1, 1], [], []>} : vector<288x8xbf16>, vector<8x8xbf16>, vector<288x8xf32> -> vector<288x8xf32>
    %100 = arith.addf %95, %99 : vector<288x8xf32>
    %c31_76 = arith.constant 31 : index
    %c0_77 = arith.constant 0 : index
    %101 = vector.load %arg6[%c31_76, %c0_77] : memref<352x8xbf16, #tpu.memory_space<vmem>>, vector<288x8xbf16>
    %c3_78 = arith.constant 3 : index
    %c0_79 = arith.constant 0 : index
    %c0_80 = arith.constant 0 : index
    %102 = vector.load %arg3[%c3_78, %c0_79, %c0_80] : memref<9x8x8xbf16, #tpu.memory_space<vmem>>, vector<1x8x8xbf16>
    %103 = vector.shape_cast %102 : vector<1x8x8xbf16> to vector<8x8xbf16>
    %cst_81 = arith.constant dense<0.000000e+00> : vector<288x8xf32>
    %104 = tpu.matmul %101, %103, %cst_81 {dimension_numbers = #tpu.dot_dimension_numbers<[1], [0], [0], [1], [0, 0, 1, 1], [], []>} : vector<288x8xbf16>, vector<8x8xbf16>, vector<288x8xf32> -> vector<288x8xf32>
    %105 = arith.addf %100, %104 : vector<288x8xf32>
    %c32_82 = arith.constant 32 : index
    %c0_83 = arith.constant 0 : index
    %106 = vector.load %arg6[%c32_82, %c0_83] : memref<352x8xbf16, #tpu.memory_space<vmem>>, vector<288x8xbf16>
    %c4_84 = arith.constant 4 : index
    %c0_85 = arith.constant 0 : index
    %c0_86 = arith.constant 0 : index
    %107 = vector.load %arg3[%c4_84, %c0_85, %c0_86] : memref<9x8x8xbf16, #tpu.memory_space<vmem>>, vector<1x8x8xbf16>
    %108 = vector.shape_cast %107 : vector<1x8x8xbf16> to vector<8x8xbf16>
    %cst_87 = arith.constant dense<0.000000e+00> : vector<288x8xf32>
    %109 = tpu.matmul %106, %108, %cst_87 {dimension_numbers = #tpu.dot_dimension_numbers<[1], [0], [0], [1], [0, 0, 1, 1], [], []>} : vector<288x8xbf16>, vector<8x8xbf16>, vector<288x8xf32> -> vector<288x8xf32>
    %110 = arith.addf %105, %109 : vector<288x8xf32>
    %c33_88 = arith.constant 33 : index
    %c0_89 = arith.constant 0 : index
    %111 = vector.load %arg6[%c33_88, %c0_89] : memref<352x8xbf16, #tpu.memory_space<vmem>>, vector<288x8xbf16>
    %c5_90 = arith.constant 5 : index
    %c0_91 = arith.constant 0 : index
    %c0_92 = arith.constant 0 : index
    %112 = vector.load %arg3[%c5_90, %c0_91, %c0_92] : memref<9x8x8xbf16, #tpu.memory_space<vmem>>, vector<1x8x8xbf16>
    %113 = vector.shape_cast %112 : vector<1x8x8xbf16> to vector<8x8xbf16>
    %cst_93 = arith.constant dense<0.000000e+00> : vector<288x8xf32>
    %114 = tpu.matmul %111, %113, %cst_93 {dimension_numbers = #tpu.dot_dimension_numbers<[1], [0], [0], [1], [0, 0, 1, 1], [], []>} : vector<288x8xbf16>, vector<8x8xbf16>, vector<288x8xf32> -> vector<288x8xf32>
    %115 = arith.addf %110, %114 : vector<288x8xf32>
    %c49_94 = arith.constant 49 : index
    %c0_95 = arith.constant 0 : index
    %116 = vector.load %arg6[%c49_94, %c0_95] : memref<352x8xbf16, #tpu.memory_space<vmem>>, vector<288x8xbf16>
    %c6_96 = arith.constant 6 : index
    %c0_97 = arith.constant 0 : index
    %c0_98 = arith.constant 0 : index
    %117 = vector.load %arg3[%c6_96, %c0_97, %c0_98] : memref<9x8x8xbf16, #tpu.memory_space<vmem>>, vector<1x8x8xbf16>
    %118 = vector.shape_cast %117 : vector<1x8x8xbf16> to vector<8x8xbf16>
    %cst_99 = arith.constant dense<0.000000e+00> : vector<288x8xf32>
    %119 = tpu.matmul %116, %118, %cst_99 {dimension_numbers = #tpu.dot_dimension_numbers<[1], [0], [0], [1], [0, 0, 1, 1], [], []>} : vector<288x8xbf16>, vector<8x8xbf16>, vector<288x8xf32> -> vector<288x8xf32>
    %120 = arith.addf %115, %119 : vector<288x8xf32>
    %c50_100 = arith.constant 50 : index
    %c0_101 = arith.constant 0 : index
    %121 = vector.load %arg6[%c50_100, %c0_101] : memref<352x8xbf16, #tpu.memory_space<vmem>>, vector<288x8xbf16>
    %c7_102 = arith.constant 7 : index
    %c0_103 = arith.constant 0 : index
    %c0_104 = arith.constant 0 : index
    %122 = vector.load %arg3[%c7_102, %c0_103, %c0_104] : memref<9x8x8xbf16, #tpu.memory_space<vmem>>, vector<1x8x8xbf16>
    %123 = vector.shape_cast %122 : vector<1x8x8xbf16> to vector<8x8xbf16>
    %cst_105 = arith.constant dense<0.000000e+00> : vector<288x8xf32>
    %124 = tpu.matmul %121, %123, %cst_105 {dimension_numbers = #tpu.dot_dimension_numbers<[1], [0], [0], [1], [0, 0, 1, 1], [], []>} : vector<288x8xbf16>, vector<8x8xbf16>, vector<288x8xf32> -> vector<288x8xf32>
    %125 = arith.addf %120, %124 : vector<288x8xf32>
    %c51_106 = arith.constant 51 : index
    %c0_107 = arith.constant 0 : index
    %126 = vector.load %arg6[%c51_106, %c0_107] : memref<352x8xbf16, #tpu.memory_space<vmem>>, vector<288x8xbf16>
    %c8_108 = arith.constant 8 : index
    %c0_109 = arith.constant 0 : index
    %c0_110 = arith.constant 0 : index
    %127 = vector.load %arg3[%c8_108, %c0_109, %c0_110] : memref<9x8x8xbf16, #tpu.memory_space<vmem>>, vector<1x8x8xbf16>
    %128 = vector.shape_cast %127 : vector<1x8x8xbf16> to vector<8x8xbf16>
    %cst_111 = arith.constant dense<0.000000e+00> : vector<288x8xf32>
    %129 = tpu.matmul %126, %128, %cst_111 {dimension_numbers = #tpu.dot_dimension_numbers<[1], [0], [0], [1], [0, 0, 1, 1], [], []>} : vector<288x8xbf16>, vector<8x8xbf16>, vector<288x8xf32> -> vector<288x8xf32>
    %130 = arith.addf %125, %129 : vector<288x8xf32>
    %c0_112 = arith.constant 0 : index
    %c32_113 = arith.constant 32 : index
    %c0_114 = arith.constant 0 : index
    %131 = vector.load %arg1[%c0_112, %c32_113, %c0_114] : memref<1x352x8xbf16, #tpu.memory_space<vmem>>, vector<1x288x8xbf16>
    %132 = vector.shape_cast %131 : vector<1x288x8xbf16> to vector<288x8xbf16>
    %133 = arith.extf %132 : vector<288x8xbf16> to vector<288x8xf32>
    %c1_115 = arith.constant 1 : index
    %c0_116 = arith.constant 0 : index
    %134 = vector.load %arg4[%c1_115, %c0_116] : memref<2x8xf32, #tpu.memory_space<vmem>>, vector<1x8xf32>
    %135 = vector.broadcast %134 : vector<1x8xf32> to vector<288x8xf32>
    %136 = arith.addf %130, %135 : vector<288x8xf32>
    %137 = arith.addf %136, %133 : vector<288x8xf32>
    %cst_117 = arith.constant 0.000000e+00 : f32
    %138 = vector.broadcast %cst_117 : f32 to vector<288x8xf32>
    %139 = arith.maximumf %137, %138 : vector<288x8xf32>
    %c0_118 = arith.constant 0 : index
    %c0_119 = arith.constant 0 : index
    %c0_120 = arith.constant 0 : index
    %140 = vector.load %arg5[%c0_118, %c0_119, %c0_120] : memref<1x288x8xf32, #tpu.memory_space<vmem>>, vector<1x288x8xf32>
    %141 = vector.shape_cast %140 : vector<1x288x8xf32> to vector<288x8xf32>
    %142 = vector.shape_cast %139 : vector<288x8xf32> to vector<1x288x8xf32>
    tpu.vector_store %arg5[%c0_118, %c0_119, %c0_120], %142 {strides = array<i32>} : memref<1x288x8xf32, #tpu.memory_space<vmem>>, vector<1x288x8xf32>,
    return
  }
  func.func @transform_0(%arg0: i32) -> (i32, i32, i32) {
    %c0_i32 = arith.constant 0 : i32
    %c0_i32_0 = arith.constant 0 : i32
    %c0_i32_1 = arith.constant 0 : i32
    return %arg0, %c0_i32, %c0_i32_0 : i32, i32, i32
  }
  func.func @transform_1(%arg0: i32) -> (i32, i32, i32) {
    %c0_i32 = arith.constant 0 : i32
    %c0_i32_0 = arith.constant 0 : i32
    %c0_i32_1 = arith.constant 0 : i32
    %c0_i32_2 = arith.constant 0 : i32
    return %c0_i32, %c0_i32_0, %c0_i32_1 : i32, i32, i32
  }
  func.func @transform_2(%arg0: i32) -> (i32, i32, i32) {
    %c0_i32 = arith.constant 0 : i32
    %c0_i32_0 = arith.constant 0 : i32
    %c0_i32_1 = arith.constant 0 : i32
    %c0_i32_2 = arith.constant 0 : i32
    return %c0_i32, %c0_i32_0, %c0_i32_1 : i32, i32, i32
  }
  func.func @transform_3(%arg0: i32) -> (i32, i32) {
    %c0_i32 = arith.constant 0 : i32
    %c0_i32_0 = arith.constant 0 : i32
    %c0_i32_1 = arith.constant 0 : i32
    return %c0_i32, %c0_i32_0 : i32, i32
  }
  func.func @transform_4(%arg0: i32) -> (i32, i32, i32) {
    %c0_i32 = arith.constant 0 : i32
    %c0_i32_0 = arith.constant 0 : i32
    %c0_i32_1 = arith.constant 0 : i32
    return %arg0, %c0_i32, %c0_i32_0 : i32, i32, i32
  }
}

</mosaic_0001>

<llo_original>
// kernel: tpu_custom_call.1
$region0: #{tpu_custom_call.1}
  #allocation0 [shape = 'u32[]', space=smem, size = 0x4, offset = 0x4, fixed_abs, tag = 'smem constant byte address 0x4 - core index']
  #allocation1 [shape = 'u32[144,128]{1,0:T(1,128)}', space=vmem, size = 0x12000, scoped, tag = 'internal scratch']
  #allocation2 [shape = 'bf16[352,8]{1,0:T(16,128)(2,1)}', space=vmem, size = 0x16000, scoped, tag = 'scratch operand']
  %s0 = inlined_call_operand.vmem [shape: bf16[2,352,8], index: 0, kind: input, shape index: {}]
  %s1 = inlined_call_operand.vmem [shape: bf16[9,8,8], index: 1, kind: input, shape index: {}]
  %s2 = inlined_call_operand.vmem [shape: bf16[9,8,8], index: 2, kind: input, shape index: {}]
  %s3 = inlined_call_operand.vmem [shape: f32[2,8], index: 3, kind: input, shape index: {}]
  %s4 = inlined_call_operand.vmem [shape: f32[2,288,8], index: 4, kind: output, shape index: {}]
  %s5 = sld [smem:[#allocation0]]
  $region49: #{tpu_custom_call.1} parent=0
    _
  %s7 = ssub.s32 1, %s5
  %s8 = scalar_select 0, %s7, %s5
  loop: start=0, step=1, limit=4
  $region2: #{tpu_custom_call.1} parent=0 // loop_pre_header
    _
  $region3: #{tpu_custom_call.1} parent=0 // loop_header
    %s10 = sphi 0, %s14
    %p11 = scmp.ge.s32.totalorder %s10, 4
    %s20 = sphi 0, %s22
    %s23 = sphi 0, %s20
    %s24 = sphi 0, %s23
    %s40 = sphi 0, %s24
    %s44 = sphi 0, %s44
    %s46 = sphi 0, %s44
    %s47 = sphi 0, %s46
    %s61 = sphi 0, %s47
    %s65 = sphi 0, %s65
    %s67 = sphi 0, %s65
    %s68 = sphi 0, %s67
    %s82 = sphi 0, %s68
    %s86 = sphi 0, %s86
    %s88 = sphi 0, %s86
    %s89 = sphi 0, %s88
    %s103 = sphi 0, %s89
    %s109 = sphi 0, %s111
    %s112 = sphi 0, %s109
    %s113 = sphi 0, %s112
    %s129 = sphi 0, %s113
  $region4: #{tpu_custom_call.1} parent=0 // loop_header_branch
    %13 = sbr.rel (%p11) target = $region8
  $region5: #{tpu_custom_call.1} parent=0 // loop_body
    %s15 = ssub.s32 %s10, 1
    %s16 = ssub.s32 %s10, 2
    %s17 = sadd.s32 %s10, 1
    %s18 = ssub.s32 %s10, %s17
    %p19 = scmp.eq.s32.totalorder %s18, 0
    %s21 = sadd.s32 %s20, 1
    %s22 = scalar_select %p19, %s20, %s21
    %p25 = pneg %p19
    %p26 = scmp.eq.s32.totalorder %s10, 1
    %p27 = por %p25, %p26
    %p28 = scmp.ne.s32.totalorder %s20, %s23
    %p29 = scmp.eq.s32.totalorder %s10, 0
    %p30 = por %p28, %p29
    %p31 = scmp.ne.s32.totalorder %s20, %s23
    %p32 = scmp.eq.s32.totalorder %s15, 1
    %p33 = por %p31, %p32
    %p34 = scmp.ne.s32.totalorder %s23, %s24
    %p35 = scmp.eq.s32.totalorder %s15, 0
    %p36 = por %p34, %p35
    %p37 = scmp.ne.s32.totalorder %s23, %s24
    %p38 = scmp.eq.s32.totalorder %s16, 1
    %p39 = por %p37, %p38
    %p41 = scmp.ne.s32.totalorder %s24, %s40
    %p42 = scmp.eq.s32.totalorder %s16, 0
    %p43 = por %p41, %p42
    %s45 = sadd.s32 %s44, 1
    %p48 = scmp.eq.s32.totalorder %s10, 1
    %p49 = scmp.ne.s32.totalorder %s44, %s46
    %p50 = scmp.eq.s32.totalorder %s10, 0
    %p51 = por %p49, %p50
    %p52 = scmp.ne.s32.totalorder %s44, %s46
    %p53 = scmp.eq.s32.totalorder %s15, 1
    %p54 = por %p52, %p53
    %p55 = scmp.ne.s32.totalorder %s46, %s47
    %p56 = scmp.eq.s32.totalorder %s15, 0
    %p57 = por %p55, %p56
    %p58 = scmp.ne.s32.totalorder %s46, %s47
    %p59 = scmp.eq.s32.totalorder %s16, 1
    %p60 = por %p58, %p59
    %p62 = scmp.ne.s32.totalorder %s47, %s61
    %p63 = scmp.eq.s32.totalorder %s16, 0
    %p64 = por %p62, %p63
    %s66 = sadd.s32 %s65, 1
    %p69 = scmp.eq.s32.totalorder %s10, 1
    %p70 = scmp.ne.s32.totalorder %s65, %s67
    %p71 = scmp.eq.s32.totalorder %s10, 0
    %p72 = por %p70, %p71
    %p73 = scmp.ne.s32.totalorder %s65, %s67
    %p74 = scmp.eq.s32.totalorder %s15, 1
    %p75 = por %p73, %p74
    %p76 = scmp.ne.s32.totalorder %s67, %s68
    %p77 = scmp.eq.s32.totalorder %s15, 0
    %p78 = por %p76, %p77
    %p79 = scmp.ne.s32.totalorder %s67, %s68
    %p80 = scmp.eq.s32.totalorder %s16, 1
    %p81 = por %p79, %p80
    %p83 = scmp.ne.s32.totalorder %s68, %s82
    %p84 = scmp.eq.s32.totalorder %s16, 0
    %p85 = por %p83, %p84
    %s87 = sadd.s32 %s86, 1
    %p90 = scmp.eq.s32.totalorder %s10, 1
    %p91 = scmp.ne.s32.totalorder %s86, %s88
    %p92 = scmp.eq.s32.totalorder %s10, 0
    %p93 = por %p91, %p92
    %p94 = scmp.ne.s32.totalorder %s86, %s88
    %p95 = scmp.eq.s32.totalorder %s15, 1
    %p96 = por %p94, %p95
    %p97 = scmp.ne.s32.totalorder %s88, %s89
    %p98 = scmp.eq.s32.totalorder %s15, 0
    %p99 = por %p97, %p98
    %p100 = scmp.ne.s32.totalorder %s88, %s89
    %p101 = scmp.eq.s32.totalorder %s16, 1
    %p102 = por %p100, %p101
    %p104 = scmp.ne.s32.totalorder %s89, %s103
    %p105 = scmp.eq.s32.totalorder %s16, 0
    %p106 = por %p104, %p105
    %s107 = ssub.s32 %s10, %s17
    %p108 = scmp.eq.s32.totalorder %s107, 0
    %s110 = sadd.s32 %s109, 1
    %s111 = scalar_select %p108, %s109, %s110
    %p114 = pneg %p108
    %p115 = scmp.eq.s32.totalorder %s10, 1
    %p116 = por %p114, %p115
    %p117 = scmp.ne.s32.totalorder %s109, %s112
    %p118 = scmp.eq.s32.totalorder %s10, 0
    %p119 = por %p117, %p118
    %p120 = scmp.ne.s32.totalorder %s109, %s112
    %p121 = scmp.eq.s32.totalorder %s15, 1
    %p122 = por %p120, %p121
    %p123 = scmp.ne.s32.totalorder %s112, %s113
    %p124 = scmp.eq.s32.totalorder %s15, 0
    %p125 = por %p123, %p124
    %p126 = scmp.ne.s32.totalorder %s112, %s113
    %p127 = scmp.eq.s32.totalorder %s16, 1
    %p128 = por %p126, %p127
    %p130 = scmp.ne.s32.totalorder %s113, %s129
    %p131 = scmp.eq.s32.totalorder %s16, 0
    %p132 = por %p130, %p131
    %p133 = scmp.le.s32.totalorder 1, %s10
    %p134 = scmp.lt.s32.totalorder %s10, 3
    %p135 = pnand %p133, %p134
    %p136 = pneg %p135
    // Predicated region
    $region9: #{tpu_custom_call.1} parent=5 // pred_check
      _
    $region10: #{tpu_custom_call.1} parent=5 // pred_check_branch
      %138 = sbr.rel (%p135) target = $region12
    $region11: #{tpu_custom_call.1} parent=5 // pred_region
      %s139 = ssub.s32 %s10, 1
      // Predicated region
      $region13: #{tpu_custom_call.1} parent=11 // pred_check
        %p140 = pneg %p57
      $region14: #{tpu_custom_call.1} parent=11 // pred_check_branch
        %142 = sbr.rel (%p140) target = $region16
      $region15: #{tpu_custom_call.1} parent=11 // pred_region
        _
      $region16: #{tpu_custom_call.1} parent=11 // pred_fallthru
        _
      // Predicated region
      $region17: #{tpu_custom_call.1} parent=11 // pred_check
        %p143 = pneg %p78
      $region18: #{tpu_custom_call.1} parent=11 // pred_check_branch
        %145 = sbr.rel (%p143) target = $region20
      $region19: #{tpu_custom_call.1} parent=11 // pred_region
        _
      $region20: #{tpu_custom_call.1} parent=11 // pred_fallthru
        _
      // Predicated region
      $region21: #{tpu_custom_call.1} parent=11 // pred_check
        %p146 = pneg %p99
      $region22: #{tpu_custom_call.1} parent=11 // pred_check_branch
        %148 = sbr.rel (%p146) target = $region24
      $region23: #{tpu_custom_call.1} parent=11 // pred_region
        _
      $region24: #{tpu_custom_call.1} parent=11 // pred_fallthru
        _
    $region12: #{tpu_custom_call.1} parent=5 // pred_fallthru
      _
    %p149 = scmp.lt.s32.totalorder %s10, 2
    // Predicated region
    $region25: #{tpu_custom_call.1} parent=5 // pred_check
      %p150 = pneg %p149
    $region26: #{tpu_custom_call.1} parent=5 // pred_check_branch
      %152 = sbr.rel (%p150) target = $region28
    $region27: #{tpu_custom_call.1} parent=5 // pred_region
      // Predicated region
      $region29: #{tpu_custom_call.1} parent=27 // pred_check
        %p153 = pneg %p30
      $region30: #{tpu_custom_call.1} parent=27 // pred_check_branch
        %155 = sbr.rel (%p153) target = $region32
      $region31: #{tpu_custom_call.1} parent=27 // pred_region
        %p156 = scmp.lt.s32.totalorder %s10, 1
        %s157 = scalar_select %p156, %s10, 1
        %s158 = smul.addr %s157, 44
        %s159 = smul.addr %s158, 4
        %s160 = scalar_lea.vmem %s0, %s159
      $region32: #{tpu_custom_call.1} parent=27 // pred_fallthru
        _
    $region28: #{tpu_custom_call.1} parent=5 // pred_fallthru
      _
    %p161 = scmp.le.s32.totalorder 1, %s10
    %p162 = scmp.lt.s32.totalorder %s10, 3
    %p163 = pnand %p161, %p162
    %p164 = pneg %p163
    // Predicated region
    $region33: #{tpu_custom_call.1} parent=5 // pred_check
      _
    $region34: #{tpu_custom_call.1} parent=5 // pred_check_branch
      %166 = sbr.rel (%p163) target = $region36
    $region35: #{tpu_custom_call.1} parent=5 // pred_region
      %s167 = ssub.s32 %s10, 1
      %p168 = scmp.lt.s32.totalorder %s15, 1
      %s169 = scalar_select %p168, %s15, 1
      %s170 = smul.addr %s169, 44
      %s171 = smul.addr %s170, 4
      %s172 = scalar_lea.vmem %s0, %s171
      %p173 = pneg %p36
      %p174 = pneg %p33
      %p175 = pneg %p57
      %p176 = pneg %p54
      %p177 = pneg %p78
      %p178 = pneg %p75
      %p179 = pneg %p99
      %p180 = pneg %p96
      %p181 = pneg %p125
      %p182 = pneg %p122
      %p183 = scmp.lt.s32.totalorder %s15, 1
      %s184 = scalar_select %p183, %s15, 1
      %s185 = smul.addr %s184, 36
      %s186 = smul.addr %s185, 8
      %s187 = scalar_lea.vmem %s4, %s186
      %p188 = scmp.lt.s32.totalorder %s15, 1
      %s189 = scalar_select %p188, %s15, 1
      %s190 = smul.addr %s189, 44
      %s191 = smul.addr %s190, 4
      %s192 = scalar_lea.vmem %s0, %s191
      %p193 = scmp.lt.s32.totalorder %s15, 1
      %s194 = scalar_select %p193, %s15, 1
      %s195 = smul.addr %s194, 36
      %s196 = smul.addr %s195, 8
      %s197 = scalar_lea.vmem %s4, %s196
      %vm199 = vcmask 64512
      %200 = vst.msk [vmem:[#allocation2] sm:$0xff] %vm199, 0
      %201 = vst.msk [vmem:[#allocation2 + $0x8] sm:$0xff] %vm199, 0
      %202 = vst.msk [vmem:[#allocation2 + $0xa0] sm:$0xff] %vm199, 0
      %203 = vst.msk [vmem:[#allocation2 + $0xa8] sm:$0xff] %vm199, 0
      %v204 = vlaneseq
      %v205 = vshrl.u32 %v204, 7
      %v206 = vadd.s32 %v205, 8
      %v207 = vadd.s32 %v205, 16
      %v208 = vadd.s32 %v205, 24
      %v209 = vadd.s32 %v205, 32
      %v210 = vadd.s32 %v205, 40
      %v211 = vadd.s32 %v205, 48
      %v212 = vadd.s32 %v205, 56
      %v213 = vadd.s32 %v205, 64
      %v214 = vadd.s32 %v205, 72
      %v215 = vadd.s32 %v205, 80
      %v216 = vadd.s32 %v205, 88
      %v217 = vadd.s32 %v205, 96
      %v218 = vadd.s32 %v205, 104
      %v219 = vadd.s32 %v205, 112
      %v220 = vadd.s32 %v205, 120
      %v221 = vadd.s32 %v205, 128
      %v222 = vadd.s32 %v205, 136
      %v223 = vadd.s32 %v205, 144
      %v224 = vadd.s32 %v205, 152
      %v225 = vadd.s32 %v205, 160
      %v226 = vadd.s32 %v205, 168
      %v227 = vadd.s32 %v205, 176
      %v228 = vadd.s32 %v205, 184
      %v229 = vadd.s32 %v205, 192
      %v230 = vadd.s32 %v205, 200
      %v231 = vadd.s32 %v205, 208
      %v232 = vadd.s32 %v205, 216
      %v233 = vadd.s32 %v205, 224
      %v234 = vadd.s32 %v205, 232
      %v235 = vadd.s32 %v205, 240
      %v236 = vadd.s32 %v205, 248
      %v237 = vadd.s32 %v205, 256
      %v238 = vadd.s32 %v205, 264
      %v239 = vadd.s32 %v205, 272
      %v240 = vadd.s32 %v205, 280
      %vm241 = vcmp.lt.s32.totalorder %v205, 0
      %v242 = vsub.s32 0, %v205
      %v243 = vsel %vm241, %v242, %v205
      %v244 = vmul.u32.u64.compose %v243, 3817748708
      %v245 = vextract.low.u32 %v244
      %v246 = vextract.high.u32 %v244
      %v247 = vshrl.u32 %v246, 4
      %v248 = vmul.u32 %v247, 18
      %v249 = vsub.s32 %v243, %v248
      %v250 = vsub.s32 0, %v249
      %v251 = vsel %vm241, %v250, %v249
      %vm252 = vcmp.lt.s32.totalorder %v206, 0
      %v253 = vsub.s32 0, %v206
      %v254 = vsel %vm252, %v253, %v206
      %v255 = vmul.u32.u64.compose %v254, 3817748708
      %v256 = vextract.low.u32 %v255
      %v257 = vextract.high.u32 %v255
      %v258 = vshrl.u32 %v257, 4
      %v259 = vmul.u32 %v258, 18
      %v260 = vsub.s32 %v254, %v259
      %v261 = vsub.s32 0, %v260
      %v262 = vsel %vm252, %v261, %v260
      %vm263 = vcmp.lt.s32.totalorder %v207, 0
      %v264 = vsub.s32 0, %v207
      %v265 = vsel %vm263, %v264, %v207
      %v266 = vmul.u32.u64.compose %v265, 3817748708
      %v267 = vextract.low.u32 %v266
      %v268 = vextract.high.u32 %v266
      %v269 = vshrl.u32 %v268, 4
      %v270 = vmul.u32 %v269, 18
      %v271 = vsub.s32 %v265, %v270
      %v272 = vsub.s32 0, %v271
      %v273 = vsel %vm263, %v272, %v271
      %vm274 = vcmp.lt.s32.totalorder %v208, 0
      %v275 = vsub.s32 0, %v208
      %v276 = vsel %vm274, %v275, %v208
      %v277 = vmul.u32.u64.compose %v276, 3817748708
      %v278 = vextract.low.u32 %v277
      %v279 = vextract.high.u32 %v277
      %v280 = vshrl.u32 %v279, 4
      %v281 = vmul.u32 %v280, 18
      %v282 = vsub.s32 %v276, %v281
      %v283 = vsub.s32 0, %v282
      %v284 = vsel %vm274, %v283, %v282
      %vm285 = vcmp.lt.s32.totalorder %v209, 0
      %v286 = vsub.s32 0, %v209
      %v287 = vsel %vm285, %v286, %v209
      %v288 = vmul.u32.u64.compose %v287, 3817748708
      %v289 = vextract.low.u32 %v288
      %v290 = vextract.high.u32 %v288
      %v291 = vshrl.u32 %v290, 4
      %v292 = vmul.u32 %v291, 18
      %v293 = vsub.s32 %v287, %v292
      %v294 = vsub.s32 0, %v293
      %v295 = vsel %vm285, %v294, %v293
      %vm296 = vcmp.lt.s32.totalorder %v210, 0
      %v297 = vsub.s32 0, %v210
      %v298 = vsel %vm296, %v297, %v210
      %v299 = vmul.u32.u64.compose %v298, 3817748708
      %v300 = vextract.low.u32 %v299
      %v301 = vextract.high.u32 %v299
      %v302 = vshrl.u32 %v301, 4
      %v303 = vmul.u32 %v302, 18
      %v304 = vsub.s32 %v298, %v303
      %v305 = vsub.s32 0, %v304
      %v306 = vsel %vm296, %v305, %v304
      %vm307 = vcmp.lt.s32.totalorder %v211, 0
      %v308 = vsub.s32 0, %v211
      %v309 = vsel %vm307, %v308, %v211
      %v310 = vmul.u32.u64.compose %v309, 3817748708
      %v311 = vextract.low.u32 %v310
      %v312 = vextract.high.u32 %v310
      %v313 = vshrl.u32 %v312, 4
      %v314 = vmul.u32 %v313, 18
      %v315 = vsub.s32 %v309, %v314
      %v316 = vsub.s32 0, %v315
      %v317 = vsel %vm307, %v316, %v315
      %vm318 = vcmp.lt.s32.totalorder %v212, 0
      %v319 = vsub.s32 0, %v212
      %v320 = vsel %vm318, %v319, %v212
      %v321 = vmul.u32.u64.compose %v320, 3817748708
      %v322 = vextract.low.u32 %v321
      %v323 = vextract.high.u32 %v321
      %v324 = vshrl.u32 %v323, 4
      %v325 = vmul.u32 %v324, 18
      %v326 = vsub.s32 %v320, %v325
      %v327 = vsub.s32 0, %v326
      %v328 = vsel %vm318, %v327, %v326
      %vm329 = vcmp.lt.s32.totalorder %v213, 0
      %v330 = vsub.s32 0, %v213
      %v331 = vsel %vm329, %v330, %v213
      %v332 = vmul.u32.u64.compose %v331, 3817748708
      %v333 = vextract.low.u32 %v332
      %v334 = vextract.high.u32 %v332
      %v335 = vshrl.u32 %v334, 4
      %v336 = vmul.u32 %v335, 18
      %v337 = vsub.s32 %v331, %v336
      %v338 = vsub.s32 0, %v337
      %v339 = vsel %vm329, %v338, %v337
      %vm340 = vcmp.lt.s32.totalorder %v214, 0
      %v341 = vsub.s32 0, %v214
      %v342 = vsel %vm340, %v341, %v214
      %v343 = vmul.u32.u64.compose %v342, 3817748708
      %v344 = vextract.low.u32 %v343
      %v345 = vextract.high.u32 %v343
      %v346 = vshrl.u32 %v345, 4
      %v347 = vmul.u32 %v346, 18
      %v348 = vsub.s32 %v342, %v347
      %v349 = vsub.s32 0, %v348
      %v350 = vsel %vm340, %v349, %v348
      %vm351 = vcmp.lt.s32.totalorder %v215, 0
      %v352 = vsub.s32 0, %v215
      %v353 = vsel %vm351, %v352, %v215
      %v354 = vmul.u32.u64.compose %v353, 3817748708
      %v355 = vextract.low.u32 %v354
      %v356 = vextract.high.u32 %v354
      %v357 = vshrl.u32 %v356, 4
      %v358 = vmul.u32 %v357, 18
      %v359 = vsub.s32 %v353, %v358
      %v360 = vsub.s32 0, %v359
      %v361 = vsel %vm351, %v360, %v359
      %vm362 = vcmp.lt.s32.totalorder %v216, 0
      %v363 = vsub.s32 0, %v216
      %v364 = vsel %vm362, %v363, %v216
      %v365 = vmul.u32.u64.compose %v364, 3817748708
      %v366 = vextract.low.u32 %v365
      %v367 = vextract.high.u32 %v365
      %v368 = vshrl.u32 %v367, 4
      %v369 = vmul.u32 %v368, 18
      %v370 = vsub.s32 %v364, %v369
      %v371 = vsub.s32 0, %v370
      %v372 = vsel %vm362, %v371, %v370
      %vm373 = vcmp.lt.s32.totalorder %v217, 0
      %v374 = vsub.s32 0, %v217
      %v375 = vsel %vm373, %v374, %v217
      %v376 = vmul.u32.u64.compose %v375, 3817748708
      %v377 = vextract.low.u32 %v376
      %v378 = vextract.high.u32 %v376
      %v379 = vshrl.u32 %v378, 4
      %v380 = vmul.u32 %v379, 18
      %v381 = vsub.s32 %v375, %v380
      %v382 = vsub.s32 0, %v381
      %v383 = vsel %vm373, %v382, %v381
      %vm384 = vcmp.lt.s32.totalorder %v218, 0
      %v385 = vsub.s32 0, %v218
      %v386 = vsel %vm384, %v385, %v218
      %v387 = vmul.u32.u64.compose %v386, 3817748708
      %v388 = vextract.low.u32 %v387
      %v389 = vextract.high.u32 %v387
      %v390 = vshrl.u32 %v389, 4
      %v391 = vmul.u32 %v390, 18
      %v392 = vsub.s32 %v386, %v391
      %v393 = vsub.s32 0, %v392
      %v394 = vsel %vm384, %v393, %v392
      %vm395 = vcmp.lt.s32.totalorder %v219, 0
      %v396 = vsub.s32 0, %v219
      %v397 = vsel %vm395, %v396, %v219
      %v398 = vmul.u32.u64.compose %v397, 3817748708
      %v399 = vextract.low.u32 %v398
      %v400 = vextract.high.u32 %v398
      %v401 = vshrl.u32 %v400, 4
      %v402 = vmul.u32 %v401, 18
      %v403 = vsub.s32 %v397, %v402
      %v404 = vsub.s32 0, %v403
      %v405 = vsel %vm395, %v404, %v403
      %vm406 = vcmp.lt.s32.totalorder %v220, 0
      %v407 = vsub.s32 0, %v220
      %v408 = vsel %vm406, %v407, %v220
      %v409 = vmul.u32.u64.compose %v408, 3817748708
      %v410 = vextract.low.u32 %v409
      %v411 = vextract.high.u32 %v409
      %v412 = vshrl.u32 %v411, 4
      %v413 = vmul.u32 %v412, 18
      %v414 = vsub.s32 %v408, %v413
      %v415 = vsub.s32 0, %v414
      %v416 = vsel %vm406, %v415, %v414
      %vm417 = vcmp.lt.s32.totalorder %v221, 0
      %v418 = vsub.s32 0, %v221
      %v419 = vsel %vm417, %v418, %v221
      %v420 = vmul.u32.u64.compose %v419, 3817748708
      %v421 = vextract.low.u32 %v420
      %v422 = vextract.high.u32 %v420
      %v423 = vshrl.u32 %v422, 4
      %v424 = vmul.u32 %v423, 18
      %v425 = vsub.s32 %v419, %v424
      %v426 = vsub.s32 0, %v425
      %v427 = vsel %vm417, %v426, %v425
      %vm428 = vcmp.lt.s32.totalorder %v222, 0
      %v429 = vsub.s32 0, %v222
      %v430 = vsel %vm428, %v429, %v222
      %v431 = vmul.u32.u64.compose %v430, 3817748708
      %v432 = vextract.low.u32 %v431
      %v433 = vextract.high.u32 %v431
      %v434 = vshrl.u32 %v433, 4
      %v435 = vmul.u32 %v434, 18
      %v436 = vsub.s32 %v430, %v435
      %v437 = vsub.s32 0, %v436
      %v438 = vsel %vm428, %v437, %v436
      %vm439 = vcmp.lt.s32.totalorder %v223, 0
      %v440 = vsub.s32 0, %v223
      %v441 = vsel %vm439, %v440, %v223
      %v442 = vmul.u32.u64.compose %v441, 3817748708
      %v443 = vextract.low.u32 %v442
      %v444 = vextract.high.u32 %v442
      %v445 = vshrl.u32 %v444, 4
      %v446 = vmul.u32 %v445, 18
      %v447 = vsub.s32 %v441, %v446
      %v448 = vsub.s32 0, %v447
      %v449 = vsel %vm439, %v448, %v447
      %vm450 = vcmp.lt.s32.totalorder %v224, 0
      %v451 = vsub.s32 0, %v224
      %v452 = vsel %vm450, %v451, %v224
      %v453 = vmul.u32.u64.compose %v452, 3817748708
      %v454 = vextract.low.u32 %v453
      %v455 = vextract.high.u32 %v453
      %v456 = vshrl.u32 %v455, 4
      %v457 = vmul.u32 %v456, 18
      %v458 = vsub.s32 %v452, %v457
      %v459 = vsub.s32 0, %v458
      %v460 = vsel %vm450, %v459, %v458
      %vm461 = vcmp.lt.s32.totalorder %v225, 0
      %v462 = vsub.s32 0, %v225
      %v463 = vsel %vm461, %v462, %v225
      %v464 = vmul.u32.u64.compose %v463, 3817748708
      %v465 = vextract.low.u32 %v464
      %v466 = vextract.high.u32 %v464
      %v467 = vshrl.u32 %v466, 4
      %v468 = vmul.u32 %v467, 18
      %v469 = vsub.s32 %v463, %v468
      %v470 = vsub.s32 0, %v469
      %v471 = vsel %vm461, %v470, %v469
      %vm472 = vcmp.lt.s32.totalorder %v226, 0
      %v473 = vsub.s32 0, %v226
      %v474 = vsel %vm472, %v473, %v226
      %v475 = vmul.u32.u64.compose %v474, 3817748708
      %v476 = vextract.low.u32 %v475
      %v477 = vextract.high.u32 %v475
      %v478 = vshrl.u32 %v477, 4
      %v479 = vmul.u32 %v478, 18
      %v480 = vsub.s32 %v474, %v479
      %v481 = vsub.s32 0, %v480
      %v482 = vsel %vm472, %v481, %v480
      %vm483 = vcmp.lt.s32.totalorder %v227, 0
      %v484 = vsub.s32 0, %v227
      %v485 = vsel %vm483, %v484, %v227
      %v486 = vmul.u32.u64.compose %v485, 3817748708
      %v487 = vextract.low.u32 %v486
      %v488 = vextract.high.u32 %v486
      %v489 = vshrl.u32 %v488, 4
      %v490 = vmul.u32 %v489, 18
      %v491 = vsub.s32 %v485, %v490
      %v492 = vsub.s32 0, %v491
      %v493 = vsel %vm483, %v492, %v491
      %vm494 = vcmp.lt.s32.totalorder %v228, 0
      %v495 = vsub.s32 0, %v228
      %v496 = vsel %vm494, %v495, %v228
      %v497 = vmul.u32.u64.compose %v496, 3817748708
      %v498 = vextract.low.u32 %v497
      %v499 = vextract.high.u32 %v497
      %v500 = vshrl.u32 %v499, 4
      %v501 = vmul.u32 %v500, 18
      %v502 = vsub.s32 %v496, %v501
      %v503 = vsub.s32 0, %v502
      %v504 = vsel %vm494, %v503, %v502
      %vm505 = vcmp.lt.s32.totalorder %v229, 0
      %v506 = vsub.s32 0, %v229
      %v507 = vsel %vm505, %v506, %v229
      %v508 = vmul.u32.u64.compose %v507, 3817748708
      %v509 = vextract.low.u32 %v508
      %v510 = vextract.high.u32 %v508
      %v511 = vshrl.u32 %v510, 4
      %v512 = vmul.u32 %v511, 18
      %v513 = vsub.s32 %v507, %v512
      %v514 = vsub.s32 0, %v513
      %v515 = vsel %vm505, %v514, %v513
      %vm516 = vcmp.lt.s32.totalorder %v230, 0
      %v517 = vsub.s32 0, %v230
      %v518 = vsel %vm516, %v517, %v230
      %v519 = vmul.u32.u64.compose %v518, 3817748708
      %v520 = vextract.low.u32 %v519
      %v521 = vextract.high.u32 %v519
      %v522 = vshrl.u32 %v521, 4
      %v523 = vmul.u32 %v522, 18
      %v524 = vsub.s32 %v518, %v523
      %v525 = vsub.s32 0, %v524
      %v526 = vsel %vm516, %v525, %v524
      %vm527 = vcmp.lt.s32.totalorder %v231, 0
      %v528 = vsub.s32 0, %v231
      %v529 = vsel %vm527, %v528, %v231
      %v530 = vmul.u32.u64.compose %v529, 3817748708
      %v531 = vextract.low.u32 %v530
      %v532 = vextract.high.u32 %v530
      %v533 = vshrl.u32 %v532, 4
      %v534 = vmul.u32 %v533, 18
      %v535 = vsub.s32 %v529, %v534
      %v536 = vsub.s32 0, %v535
      %v537 = vsel %vm527, %v536, %v535
      %vm538 = vcmp.lt.s32.totalorder %v232, 0
      %v539 = vsub.s32 0, %v232
      %v540 = vsel %vm538, %v539, %v232
      %v541 = vmul.u32.u64.compose %v540, 3817748708
      %v542 = vextract.low.u32 %v541
      %v543 = vextract.high.u32 %v541
      %v544 = vshrl.u32 %v543, 4
      %v545 = vmul.u32 %v544, 18
      %v546 = vsub.s32 %v540, %v545
      %v547 = vsub.s32 0, %v546
      %v548 = vsel %vm538, %v547, %v546
      %vm549 = vcmp.lt.s32.totalorder %v233, 0
      %v550 = vsub.s32 0, %v233
      %v551 = vsel %vm549, %v550, %v233
      %v552 = vmul.u32.u64.compose %v551, 3817748708
      %v553 = vextract.low.u32 %v552
      %v554 = vextract.high.u32 %v552
      %v555 = vshrl.u32 %v554, 4
      %v556 = vmul.u32 %v555, 18
      %v557 = vsub.s32 %v551, %v556
      %v558 = vsub.s32 0, %v557
      %v559 = vsel %vm549, %v558, %v557
      %vm560 = vcmp.lt.s32.totalorder %v234, 0
      %v561 = vsub.s32 0, %v234
      %v562 = vsel %vm560, %v561, %v234
      %v563 = vmul.u32.u64.compose %v562, 3817748708
      %v564 = vextract.low.u32 %v563
      %v565 = vextract.high.u32 %v563
      %v566 = vshrl.u32 %v565, 4
      %v567 = vmul.u32 %v566, 18
      %v568 = vsub.s32 %v562, %v567
      %v569 = vsub.s32 0, %v568
      %v570 = vsel %vm560, %v569, %v568
      %vm571 = vcmp.lt.s32.totalorder %v235, 0
      %v572 = vsub.s32 0, %v235
      %v573 = vsel %vm571, %v572, %v235
      %v574 = vmul.u32.u64.compose %v573, 3817748708
      %v575 = vextract.low.u32 %v574
      %v576 = vextract.high.u32 %v574
      %v577 = vshrl.u32 %v576, 4
      %v578 = vmul.u32 %v577, 18
      %v579 = vsub.s32 %v573, %v578
      %v580 = vsub.s32 0, %v579
      %v581 = vsel %vm571, %v580, %v579
      %vm582 = vcmp.lt.s32.totalorder %v236, 0
      %v583 = vsub.s32 0, %v236
      %v584 = vsel %vm582, %v583, %v236
      %v585 = vmul.u32.u64.compose %v584, 3817748708
      %v586 = vextract.low.u32 %v585
      %v587 = vextract.high.u32 %v585
      %v588 = vshrl.u32 %v587, 4
      %v589 = vmul.u32 %v588, 18
      %v590 = vsub.s32 %v584, %v589
      %v591 = vsub.s32 0, %v590
      %v592 = vsel %vm582, %v591, %v590
      %vm593 = vcmp.lt.s32.totalorder %v237, 0
      %v594 = vsub.s32 0, %v237
      %v595 = vsel %vm593, %v594, %v237
      %v596 = vmul.u32.u64.compose %v595, 3817748708
      %v597 = vextract.low.u32 %v596
      %v598 = vextract.high.u32 %v596
      %v599 = vshrl.u32 %v598, 4
      %v600 = vmul.u32 %v599, 18
      %v601 = vsub.s32 %v595, %v600
      %v602 = vsub.s32 0, %v601
      %v603 = vsel %vm593, %v602, %v601
      %vm604 = vcmp.lt.s32.totalorder %v238, 0
      %v605 = vsub.s32 0, %v238
      %v606 = vsel %vm604, %v605, %v238
      %v607 = vmul.u32.u64.compose %v606, 3817748708
      %v608 = vextract.low.u32 %v607
      %v609 = vextract.high.u32 %v607
      %v610 = vshrl.u32 %v609, 4
      %v611 = vmul.u32 %v610, 18
      %v612 = vsub.s32 %v606, %v611
      %v613 = vsub.s32 0, %v612
      %v614 = vsel %vm604, %v613, %v612
      %vm615 = vcmp.lt.s32.totalorder %v239, 0
      %v616 = vsub.s32 0, %v239
      %v617 = vsel %vm615, %v616, %v239
      %v618 = vmul.u32.u64.compose %v617, 3817748708
      %v619 = vextract.low.u32 %v618
      %v620 = vextract.high.u32 %v618
      %v621 = vshrl.u32 %v620, 4
      %v622 = vmul.u32 %v621, 18
      %v623 = vsub.s32 %v617, %v622
      %v624 = vsub.s32 0, %v623
      %v625 = vsel %vm615, %v624, %v623
      %vm626 = vcmp.lt.s32.totalorder %v240, 0
      %v627 = vsub.s32 0, %v240
      %v628 = vsel %vm626, %v627, %v240
      %v629 = vmul.u32.u64.compose %v628, 3817748708
      %v630 = vextract.low.u32 %v629
      %v631 = vextract.high.u32 %v629
      %v632 = vshrl.u32 %v631, 4
      %v633 = vmul.u32 %v632, 18
      %v634 = vsub.s32 %v628, %v633
      %v635 = vsub.s32 0, %v634
      %v636 = vsel %vm626, %v635, %v634
      %vm637 = vcmp.ne.s32.totalorder %v251, 0
      %vm638 = vcmp.ne.s32.totalorder %v262, 0
      %vm639 = vcmp.ne.s32.totalorder %v273, 0
      %vm640 = vcmp.ne.s32.totalorder %v284, 0
      %vm641 = vcmp.ne.s32.totalorder %v295, 0
      %vm642 = vcmp.ne.s32.totalorder %v306, 0
      %vm643 = vcmp.ne.s32.totalorder %v317, 0
      %vm644 = vcmp.ne.s32.totalorder %v328, 0
      %vm645 = vcmp.ne.s32.totalorder %v339, 0
      %vm646 = vcmp.ne.s32.totalorder %v350, 0
      %vm647 = vcmp.ne.s32.totalorder %v361, 0
      %vm648 = vcmp.ne.s32.totalorder %v372, 0
      %vm649 = vcmp.ne.s32.totalorder %v383, 0
      %vm650 = vcmp.ne.s32.totalorder %v394, 0
      %vm651 = vcmp.ne.s32.totalorder %v405, 0
      %vm652 = vcmp.ne.s32.totalorder %v416, 0
      %vm653 = vcmp.ne.s32.totalorder %v427, 0
      %vm654 = vcmp.ne.s32.totalorder %v438, 0
      %vm655 = vcmp.ne.s32.totalorder %v449, 0
      %vm656 = vcmp.ne.s32.totalorder %v460, 0
      %vm657 = vcmp.ne.s32.totalorder %v471, 0
      %vm658 = vcmp.ne.s32.totalorder %v482, 0
      %vm659 = vcmp.ne.s32.totalorder %v493, 0
      %vm660 = vcmp.ne.s32.totalorder %v504, 0
      %vm661 = vcmp.ne.s32.totalorder %v515, 0
      %vm662 = vcmp.ne.s32.totalorder %v526, 0
      %vm663 = vcmp.ne.s32.totalorder %v537, 0
      %vm664 = vcmp.ne.s32.totalorder %v548, 0
      %vm665 = vcmp.ne.s32.totalorder %v559, 0
      %vm666 = vcmp.ne.s32.totalorder %v570, 0
      %vm667 = vcmp.ne.s32.totalorder %v581, 0
      %vm668 = vcmp.ne.s32.totalorder %v592, 0
      %vm669 = vcmp.ne.s32.totalorder %v603, 0
      %vm670 = vcmp.ne.s32.totalorder %v614, 0
      %vm671 = vcmp.ne.s32.totalorder %v625, 0
      %vm672 = vcmp.ne.s32.totalorder %v636, 0
      %vm673 = vcmp.lt.s32.totalorder %v251, 0
      %vm674 = vcmp.lt.s32.totalorder %v262, 0
      %vm675 = vcmp.lt.s32.totalorder %v273, 0
      %vm676 = vcmp.lt.s32.totalorder %v284, 0
      %vm677 = vcmp.lt.s32.totalorder %v295, 0
      %vm678 = vcmp.lt.s32.totalorder %v306, 0
      %vm679 = vcmp.lt.s32.totalorder %v317, 0
      %vm680 = vcmp.lt.s32.totalorder %v328, 0
      %vm681 = vcmp.lt.s32.totalorder %v339, 0
      %vm682 = vcmp.lt.s32.totalorder %v350, 0
      %vm683 = vcmp.lt.s32.totalorder %v361, 0
      %vm684 = vcmp.lt.s32.totalorder %v372, 0
      %vm685 = vcmp.lt.s32.totalorder %v383, 0
      %vm686 = vcmp.lt.s32.totalorder %v394, 0
      %vm687 = vcmp.lt.s32.totalorder %v405, 0
      %vm688 = vcmp.lt.s32.totalorder %v416, 0
      %vm689 = vcmp.lt.s32.totalorder %v427, 0
      %vm690 = vcmp.lt.s32.totalorder %v438, 0
      %vm691 = vcmp.lt.s32.totalorder %v449, 0
      %vm692 = vcmp.lt.s32.totalorder %v460, 0
      %vm693 = vcmp.lt.s32.totalorder %v471, 0
      %vm694 = vcmp.lt.s32.totalorder %v482, 0
      %vm695 = vcmp.lt.s32.totalorder %v493, 0
      %vm696 = vcmp.lt.s32.totalorder %v504, 0
      %vm697 = vcmp.lt.s32.totalorder %v515, 0
      %vm698 = vcmp.lt.s32.totalorder %v526, 0
      %vm699 = vcmp.lt.s32.totalorder %v537, 0
      %vm700 = vcmp.lt.s32.totalorder %v548, 0
      %vm701 = vcmp.lt.s32.totalorder %v559, 0
      %vm702 = vcmp.lt.s32.totalorder %v570, 0
      %vm703 = vcmp.lt.s32.totalorder %v581, 0
      %vm704 = vcmp.lt.s32.totalorder %v592, 0
      %vm705 = vcmp.lt.s32.totalorder %v603, 0
      %vm706 = vcmp.lt.s32.totalorder %v614, 0
      %vm707 = vcmp.lt.s32.totalorder %v625, 0
      %vm708 = vcmp.lt.s32.totalorder %v636, 0
      %vm709 = vmand %vm673, %vm637
      %vm710 = vmand %vm674, %vm638
      %vm711 = vmand %vm675, %vm639
      %vm712 = vmand %vm676, %vm640
      %vm713 = vmand %vm677, %vm641
      %vm714 = vmand %vm678, %vm642
      %vm715 = vmand %vm679, %vm643
      %vm716 = vmand %vm680, %vm644
      %vm717 = vmand %vm681, %vm645
      %vm718 = vmand %vm682, %vm646
      %vm719 = vmand %vm683, %vm647
      %vm720 = vmand %vm684, %vm648
      %vm721 = vmand %vm685, %vm649
      %vm722 = vmand %vm686, %vm650
      %vm723 = vmand %vm687, %vm651
      %vm724 = vmand %vm688, %vm652
      %vm725 = vmand %vm689, %vm653
      %vm726 = vmand %vm690, %vm654
      %vm727 = vmand %vm691, %vm655
      %vm728 = vmand %vm692, %vm656
      %vm729 = vmand %vm693, %vm657
      %vm730 = vmand %vm694, %vm658
      %vm731 = vmand %vm695, %vm659
      %vm732 = vmand %vm696, %vm660
      %vm733 = vmand %vm697, %vm661
      %vm734 = vmand %vm698, %vm662
      %vm735 = vmand %vm699, %vm663
      %vm736 = vmand %vm700, %vm664
      %vm737 = vmand %vm701, %vm665
      %vm738 = vmand %vm702, %vm666
      %vm739 = vmand %vm703, %vm667
      %vm740 = vmand %vm704, %vm668
      %vm741 = vmand %vm705, %vm669
      %vm742 = vmand %vm706, %vm670
      %vm743 = vmand %vm707, %vm671
      %vm744 = vmand %vm708, %vm672
      %v745 = vadd.s32 %v251, 18
      %v746 = vadd.s32 %v262, 18
      %v747 = vadd.s32 %v273, 18
      %v748 = vadd.s32 %v284, 18
      %v749 = vadd.s32 %v295, 18
      %v750 = vadd.s32 %v306, 18
      %v751 = vadd.s32 %v317, 18
      %v752 = vadd.s32 %v328, 18
      %v753 = vadd.s32 %v339, 18
      %v754 = vadd.s32 %v350, 18
      %v755 = vadd.s32 %v361, 18
      %v756 = vadd.s32 %v372, 18
      %v757 = vadd.s32 %v383, 18
      %v758 = vadd.s32 %v394, 18
      %v759 = vadd.s32 %v405, 18
      %v760 = vadd.s32 %v416, 18
      %v761 = vadd.s32 %v427, 18
      %v762 = vadd.s32 %v438, 18
      %v763 = vadd.s32 %v449, 18
      %v764 = vadd.s32 %v460, 18
      %v765 = vadd.s32 %v471, 18
      %v766 = vadd.s32 %v482, 18
      %v767 = vadd.s32 %v493, 18
      %v768 = vadd.s32 %v504, 18
      %v769 = vadd.s32 %v515, 18
      %v770 = vadd.s32 %v526, 18
      %v771 = vadd.s32 %v537, 18
      %v772 = vadd.s32 %v548, 18
      %v773 = vadd.s32 %v559, 18
      %v774 = vadd.s32 %v570, 18
      %v775 = vadd.s32 %v581, 18
      %v776 = vadd.s32 %v592, 18
      %v777 = vadd.s32 %v603, 18
      %v778 = vadd.s32 %v614, 18
      %v779 = vadd.s32 %v625, 18
      %v780 = vadd.s32 %v636, 18
      %v781 = vsel %vm709, %v745, %v251
      %v782 = vsel %vm710, %v746, %v262
      %v783 = vsel %vm711, %v747, %v273
      %v784 = vsel %vm712, %v748, %v284
      %v785 = vsel %vm713, %v749, %v295
      %v786 = vsel %vm714, %v750, %v306
      %v787 = vsel %vm715, %v751, %v317
      %v788 = vsel %vm716, %v752, %v328
      %v789 = vsel %vm717, %v753, %v339
      %v790 = vsel %vm718, %v754, %v350
      %v791 = vsel %vm719, %v755, %v361
      %v792 = vsel %vm720, %v756, %v372
      %v793 = vsel %vm721, %v757, %v383
      %v794 = vsel %vm722, %v758, %v394
      %v795 = vsel %vm723, %v759, %v405
      %v796 = vsel %vm724, %v760, %v416
      %v797 = vsel %vm725, %v761, %v427
      %v798 = vsel %vm726, %v762, %v438
      %v799 = vsel %vm727, %v763, %v449
      %v800 = vsel %vm728, %v764, %v460
      %v801 = vsel %vm729, %v765, %v471
      %v802 = vsel %vm730, %v766, %v482
      %v803 = vsel %vm731, %v767, %v493
      %v804 = vsel %vm732, %v768, %v504
      %v805 = vsel %vm733, %v769, %v515
      %v806 = vsel %vm734, %v770, %v526
      %v807 = vsel %vm735, %v771, %v537
      %v808 = vsel %vm736, %v772, %v548
      %v809 = vsel %vm737, %v773, %v559
      %v810 = vsel %vm738, %v774, %v570
      %v811 = vsel %vm739, %v775, %v581
      %v812 = vsel %vm740, %v776, %v592
      %v813 = vsel %vm741, %v777, %v603
      %v814 = vsel %vm742, %v778, %v614
      %v815 = vsel %vm743, %v779, %v625
      %v816 = vsel %vm744, %v780, %v636
      %vm817 = vcmp.lt.s32.totalorder %v781, 16
      %vm818 = vcmp.lt.s32.totalorder %v782, 16
      %vm819 = vcmp.lt.s32.totalorder %v783, 16
      %vm820 = vcmp.lt.s32.totalorder %v784, 16
      %vm821 = vcmp.lt.s32.totalorder %v785, 16
      %vm822 = vcmp.lt.s32.totalorder %v786, 16
      %vm823 = vcmp.lt.s32.totalorder %v787, 16
      %vm824 = vcmp.lt.s32.totalorder %v788, 16
      %vm825 = vcmp.lt.s32.totalorder %v789, 16
      %vm826 = vcmp.lt.s32.totalorder %v790, 16
      %vm827 = vcmp.lt.s32.totalorder %v791, 16
      %vm828 = vcmp.lt.s32.totalorder %v792, 16
      %vm829 = vcmp.lt.s32.totalorder %v793, 16
      %vm830 = vcmp.lt.s32.totalorder %v794, 16
      %vm831 = vcmp.lt.s32.totalorder %v795, 16
      %vm832 = vcmp.lt.s32.totalorder %v796, 16
      %vm833 = vcmp.lt.s32.totalorder %v797, 16
      %vm834 = vcmp.lt.s32.totalorder %v798, 16
      %vm835 = vcmp.lt.s32.totalorder %v799, 16
      %vm836 = vcmp.lt.s32.totalorder %v800, 16
      %vm837 = vcmp.lt.s32.totalorder %v801, 16
      %vm838 = vcmp.lt.s32.totalorder %v802, 16
      %vm839 = vcmp.lt.s32.totalorder %v803, 16
      %vm840 = vcmp.lt.s32.totalorder %v804, 16
      %vm841 = vcmp.lt.s32.totalorder %v805, 16
      %vm842 = vcmp.lt.s32.totalorder %v806, 16
      %vm843 = vcmp.lt.s32.totalorder %v807, 16
      %vm844 = vcmp.lt.s32.totalorder %v808, 16
      %vm845 = vcmp.lt.s32.totalorder %v809, 16
      %vm846 = vcmp.lt.s32.totalorder %v810, 16
      %vm847 = vcmp.lt.s32.totalorder %v811, 16
      %vm848 = vcmp.lt.s32.totalorder %v812, 16
      %vm849 = vcmp.lt.s32.totalorder %v813, 16
      %vm850 = vcmp.lt.s32.totalorder %v814, 16
      %vm851 = vcmp.lt.s32.totalorder %v815, 16
      %vm852 = vcmp.lt.s32.totalorder %v816, 16
      %v853 = vld [vmem:[%s192 + $0x4] sm:$0xc]
      %v854 = vld [vmem:[%s192 + $0x8] sm:$0xf]
      %v855 = vld [vmem:[%s192 + $0xc] sm:$0xf]
      %v856 = vld [vmem:[%s192 + $0x10] sm:$0xf]
      %v857 = vld [vmem:[%s192 + $0x14] sm:$0xf]
      %v858 = vld [vmem:[%s192 + $0x18] sm:$0xf]
      %v859 = vld [vmem:[%s192 + $0x1c] sm:$0xf]
      %v860 = vld [vmem:[%s192 + $0x20] sm:$0xf]
      %v861 = vld [vmem:[%s192 + $0x24] sm:$0xf]
      %v862 = vld [vmem:[%s192 + $0x28] sm:$0xf]
      %v863 = vld [vmem:[%s192 + $0x2c] sm:$0xf]
      %v864 = vld [vmem:[%s192 + $0x30] sm:$0xf]
      %v865 = vld [vmem:[%s192 + $0x34] sm:$0xf]
      %v866 = vld [vmem:[%s192 + $0x38] sm:$0xf]
      %v867 = vld [vmem:[%s192 + $0x3c] sm:$0xf]
      %v868 = vld [vmem:[%s192 + $0x40] sm:$0xf]
      %v869 = vld [vmem:[%s192 + $0x44] sm:$0xf]
      %v870 = vld [vmem:[%s192 + $0x48] sm:$0xf]
      %v871 = vld [vmem:[%s192 + $0x4c] sm:$0xf]
      %v872 = vld [vmem:[%s192 + $0x50] sm:$0xf]
      %v873 = vld [vmem:[%s192 + $0x54] sm:$0xf]
      %v874 = vld [vmem:[%s192 + $0x58] sm:$0xf]
      %v875 = vld [vmem:[%s192 + $0x5c] sm:$0xf]
      %v876 = vld [vmem:[%s192 + $0x60] sm:$0xf]
      %v877 = vld [vmem:[%s192 + $0x64] sm:$0xf]
      %v878 = vld [vmem:[%s192 + $0x68] sm:$0xf]
      %v879 = vld [vmem:[%s192 + $0x6c] sm:$0xf]
      %v880 = vld [vmem:[%s192 + $0x70] sm:$0xf]
      %v881 = vld [vmem:[%s192 + $0x74] sm:$0xf]
      %v882 = vld [vmem:[%s192 + $0x78] sm:$0xf]
      %v883 = vld [vmem:[%s192 + $0x7c] sm:$0xf]
      %v884 = vld [vmem:[%s192 + $0x80] sm:$0xf]
      %v885 = vld [vmem:[%s192 + $0x84] sm:$0xf]
      %v886 = vld [vmem:[%s192 + $0x88] sm:$0xf]
      %v887 = vld [vmem:[%s192 + $0x8c] sm:$0xf]
      %v888 = vld [vmem:[%s192 + $0x90] sm:$0xf]
      %v889 = vld [vmem:[%s192 + $0x94] sm:$0x7]
      %v890 = vld [vmem:[%s1] sm:$0xf]
      %v891 = vld [vmem:[%s192 + $0x4] sm:$0x8]
      %s892 = scalar_lea.vmem %s1, 4
      %v893 = vld [vmem:[%s892] sm:$0xf]
      %v931 = vunpack.c.l.b16 %v891
      %v932 = vunpack.c.l.b16 %v854
      %v933 = vunpack.c.l.b16 %v855
      %v934 = vunpack.c.l.b16 %v856
      %v935 = vunpack.c.l.b16 %v857
      %v936 = vunpack.c.l.b16 %v858
      %v937 = vunpack.c.l.b16 %v859
      %v938 = vunpack.c.l.b16 %v860
      %v939 = vunpack.c.l.b16 %v861
      %v940 = vunpack.c.l.b16 %v862
      %v941 = vunpack.c.l.b16 %v863
      %v942 = vunpack.c.l.b16 %v864
      %v943 = vunpack.c.l.b16 %v865
      %v944 = vunpack.c.l.b16 %v866
      %v945 = vunpack.c.l.b16 %v867
      %v946 = vunpack.c.l.b16 %v868
      %v947 = vunpack.c.l.b16 %v869
      %v948 = vunpack.c.l.b16 %v870
      %v949 = vunpack.c.l.b16 %v871
      %v950 = vunpack.c.l.b16 %v872
      %v951 = vunpack.c.l.b16 %v873
      %v952 = vunpack.c.l.b16 %v874
      %v953 = vunpack.c.l.b16 %v875
      %v954 = vunpack.c.l.b16 %v876
      %v955 = vunpack.c.l.b16 %v877
      %v956 = vunpack.c.l.b16 %v878
      %v957 = vunpack.c.l.b16 %v879
      %v958 = vunpack.c.l.b16 %v880
      %v959 = vunpack.c.l.b16 %v881
      %v960 = vunpack.c.l.b16 %v882
      %v961 = vunpack.c.l.b16 %v883
      %v962 = vunpack.c.l.b16 %v884
      %v963 = vunpack.c.l.b16 %v885
      %v964 = vunpack.c.l.b16 %v886
      %v965 = vunpack.c.l.b16 %v887
      %v966 = vunpack.c.l.b16 %v888
      %v967 = vunpack.c.l.b16 %v889
      %v968 = vpack.c.b16 %v932, %v931
      %v969 = vpack.c.b16 %v934, %v933
      %v970 = vpack.c.b16 %v936, %v935
      %v971 = vpack.c.b16 %v938, %v937
      %v972 = vpack.c.b16 %v940, %v939
      %v973 = vpack.c.b16 %v942, %v941
      %v974 = vpack.c.b16 %v944, %v943
      %v975 = vpack.c.b16 %v946, %v945
      %v976 = vpack.c.b16 %v948, %v947
      %v977 = vpack.c.b16 %v950, %v949
      %v978 = vpack.c.b16 %v952, %v951
      %v979 = vpack.c.b16 %v954, %v953
      %v980 = vpack.c.b16 %v956, %v955
      %v981 = vpack.c.b16 %v958, %v957
      %v982 = vpack.c.b16 %v960, %v959
      %v983 = vpack.c.b16 %v962, %v961
      %v984 = vpack.c.b16 %v964, %v963
      %v985 = vpack.c.b16 %v966, %v965
      %v986 = vpack.c.b16 %v967, %v967
      %vm987 = vcmask 1044480
      %v988 = vrot.slane %v968, 3
      %v989 = vrot.slane %v969, 3
      %v990 = vsel %vm987, %v988, %v989
      %v991 = vrot.slane %v970, 3
      %v992 = vsel %vm987, %v989, %v991
      %v993 = vrot.slane %v971, 3
      %v994 = vsel %vm987, %v991, %v993
      %v995 = vrot.slane %v972, 3
      %v996 = vsel %vm987, %v993, %v995
      %v997 = vrot.slane %v973, 3
      %v998 = vsel %vm987, %v995, %v997
      %v999 = vrot.slane %v974, 3
      %v1000 = vsel %vm987, %v997, %v999
      %v1001 = vrot.slane %v975, 3
      %v1002 = vsel %vm987, %v999, %v1001
      %v1003 = vrot.slane %v976, 3
      %v1004 = vsel %vm987, %v1001, %v1003
      %v1005 = vrot.slane %v977, 3
      %v1006 = vsel %vm987, %v1003, %v1005
      %v1007 = vrot.slane %v978, 3
      %v1008 = vsel %vm987, %v1005, %v1007
      %v1009 = vrot.slane %v979, 3
      %v1010 = vsel %vm987, %v1007, %v1009
      %v1011 = vrot.slane %v980, 3
      %v1012 = vsel %vm987, %v1009, %v1011
      %v1013 = vrot.slane %v981, 3
      %v1014 = vsel %vm987, %v1011, %v1013
      %v1015 = vrot.slane %v982, 3
      %v1016 = vsel %vm987, %v1013, %v1015
      %v1017 = vrot.slane %v983, 3
      %v1018 = vsel %vm987, %v1015, %v1017
      %v1019 = vrot.slane %v984, 3
      %v1020 = vsel %vm987, %v1017, %v1019
      %v1021 = vrot.slane %v985, 3
      %v1022 = vsel %vm987, %v1019, %v1021
      %v1023 = vrot.slane %v986, 3
      %v1024 = vsel %vm987, %v1021, %v1023
      %v1026 = vsel %vm199, %v990, 0
      %v1029 = vsel %vm199, %v992, 0
      %v1032 = vsel %vm199, %v994, 0
      %v1035 = vsel %vm199, %v996, 0
      %v1038 = vsel %vm199, %v998, 0
      %v1041 = vsel %vm199, %v1000, 0
      %v1044 = vsel %vm199, %v1002, 0
      %v1047 = vsel %vm199, %v1004, 0
      %v1050 = vsel %vm199, %v1006, 0
      %v1053 = vsel %vm199, %v1008, 0
      %v1056 = vsel %vm199, %v1010, 0
      %v1059 = vsel %vm199, %v1012, 0
      %v1062 = vsel %vm199, %v1014, 0
      %v1065 = vsel %vm199, %v1016, 0
      %v1068 = vsel %vm199, %v1018, 0
      %v1071 = vsel %vm199, %v1020, 0
      %v1074 = vsel %vm199, %v1022, 0
      %v1077 = vsel %vm199, %v1024, 0
      %vm1079 = vcmask 1043456
      %v1081 = vsel %vm1079, %v893, 0
      %1083 = vmatprep.subr.bf16.mxu0 0
      %1084 = vmatpush1.bf16.msra.mxu0 %v1081
      %1085 = vmatprep.subr.bf16.mxu0 0
      %1086 = vmatpush1.bf16.msra.mxu0 0
      %1087 = vmatprep.subr.bf16.mxu0 0
      %1088 = vmatpush1.bf16.msra.mxu0 0
      %1089 = vmatprep.subr.bf16.mxu0 0
      %1090 = vmatpush1.bf16.msra.mxu0 0
      %1091 = vmatprep.subr.bf16.mxu0 0
      %1092 = vmatpush1.bf16.msra.mxu0 0
      %1093 = vmatprep.subr.bf16.mxu0 0
      %1094 = vmatpush1.bf16.msra.mxu0 0
      %1095 = vmatprep.subr.bf16.mxu0 0
      %1096 = vmatpush1.bf16.msra.mxu0 0
      %1097 = vmatprep.subr.bf16.mxu0 0
      %1098 = vmatpush1.bf16.msra.mxu0 0
      %1099 = vmatprep.subr.bf16.mxu0 0
      %1100 = vmatpush1.bf16.msra.mxu0 0
      %1101 = vmatprep.subr.bf16.mxu0 0
      %1102 = vmatpush1.bf16.msra.mxu0 0
      %1103 = vmatprep.subr.bf16.mxu0 0
      %1104 = vmatpush1.bf16.msra.mxu0 0
      %1105 = vmatprep.subr.bf16.mxu0 0
      %1106 = vmatpush1.bf16.msra.mxu0 0
      %1107 = vmatprep.subr.bf16.mxu0 0
      %1108 = vmatpush1.bf16.msra.mxu0 0
      %1109 = vmatprep.subr.bf16.mxu0 0
      %1110 = vmatpush1.bf16.msra.mxu0 0
      %1111 = vmatprep.subr.bf16.mxu0 0
      %1112 = vmatpush1.bf16.msra.mxu0 0
      %1113 = vmatprep.subr.bf16.mxu0 0
      %1114 = vmatpush1.bf16.msra.mxu0 0
      %1115 = vmatprep.mubr.bf16.mxu0 0
      %1116 = vmatmul.mubr.bf16.gmra.mrb[0].mxu0 %v1026
      %v1117 = vpop.f32.mrb[0].mxu0
      %v1118 = vadd.f32 0.0, %v1117
      %v1119 = vpop.f32.mrb[0].mxu0
      %v1120 = vpop.f32.mrb[0].mxu0
      %v1121 = vadd.f32 0.0, %v1120
      %v1122 = vpop.f32.mrb[0].mxu0
      %1123 = vmatprep.mubr.bf16.mxu0 0
      %1124 = vmatmul.mubr.bf16.gmra.mrb[0].mxu0 %v1029
      %v1125 = vpop.f32.mrb[0].mxu0
      %v1126 = vadd.f32 0.0, %v1125
      %v1127 = vpop.f32.mrb[0].mxu0
      %v1128 = vpop.f32.mrb[0].mxu0
      %v1129 = vadd.f32 0.0, %v1128
      %v1130 = vpop.f32.mrb[0].mxu0
      %1131 = vmatprep.mubr.bf16.mxu0 0
      %1132 = vmatmul.mubr.bf16.gmra.mrb[0].mxu0 %v1032
      %v1133 = vpop.f32.mrb[0].mxu0
      %v1134 = vadd.f32 0.0, %v1133
      %v1135 = vpop.f32.mrb[0].mxu0
      %v1136 = vpop.f32.mrb[0].mxu0
      %v1137 = vadd.f32 0.0, %v1136
      %v1138 = vpop.f32.mrb[0].mxu0
      %1139 = vmatprep.mubr.bf16.mxu0 0
      %1140 = vmatmul.mubr.bf16.gmra.mrb[0].mxu0 %v1035
      %v1141 = vpop.f32.mrb[0].mxu0
      %v1142 = vadd.f32 0.0, %v1141
      %v1143 = vpop.f32.mrb[0].mxu0
      %v1144 = vpop.f32.mrb[0].mxu0
      %v1145 = vadd.f32 0.0, %v1144
      %v1146 = vpop.f32.mrb[0].mxu0
      %1147 = vmatprep.mubr.bf16.mxu0 0
      %1148 = vmatmul.mubr.bf16.gmra.mrb[0].mxu0 %v1038
      %v1149 = vpop.f32.mrb[0].mxu0
      %v1150 = vadd.f32 0.0, %v1149
      %v1151 = vpop.f32.mrb[0].mxu0
      %v1152 = vpop.f32.mrb[0].mxu0
      %v1153 = vadd.f32 0.0, %v1152
      %v1154 = vpop.f32.mrb[0].mxu0
      %1155 = vmatprep.mubr.bf16.mxu0 0
      %1156 = vmatmul.mubr.bf16.gmra.mrb[0].mxu0 %v1041
      %v1157 = vpop.f32.mrb[0].mxu0
      %v1158 = vadd.f32 0.0, %v1157
      %v1159 = vpop.f32.mrb[0].mxu0
      %v1160 = vpop.f32.mrb[0].mxu0
      %v1161 = vadd.f32 0.0, %v1160
      %v1162 = vpop.f32.mrb[0].mxu0
      %1163 = vmatprep.mubr.bf16.mxu0 0
      %1164 = vmatmul.mubr.bf16.gmra.mrb[0].mxu0 %v1044
      %v1165 = vpop.f32.mrb[0].mxu0
      %v1166 = vadd.f32 0.0, %v1165
      %v1167 = vpop.f32.mrb[0].mxu0
      %v1168 = vpop.f32.mrb[0].mxu0
      %v1169 = vadd.f32 0.0, %v1168
      %v1170 = vpop.f32.mrb[0].mxu0
      %1171 = vmatprep.mubr.bf16.mxu0 0
      %1172 = vmatmul.mubr.bf16.gmra.mrb[0].mxu0 %v1047
      %v1173 = vpop.f32.mrb[0].mxu0
      %v1174 = vadd.f32 0.0, %v1173
      %v1175 = vpop.f32.mrb[0].mxu0
      %v1176 = vpop.f32.mrb[0].mxu0
      %v1177 = vadd.f32 0.0, %v1176
      %v1178 = vpop.f32.mrb[0].mxu0
      %1179 = vmatprep.mubr.bf16.mxu0 0
      %1180 = vmatmul.mubr.bf16.gmra.mrb[0].mxu0 %v1050
      %v1181 = vpop.f32.mrb[0].mxu0
      %v1182 = vadd.f32 0.0, %v1181
      %v1183 = vpop.f32.mrb[0].mxu0
      %v1184 = vpop.f32.mrb[0].mxu0
      %v1185 = vadd.f32 0.0, %v1184
      %v1186 = vpop.f32.mrb[0].mxu0
      %1187 = vmatprep.mubr.bf16.mxu0 0
      %1188 = vmatmul.mubr.bf16.gmra.mrb[0].mxu0 %v1053
      %v1189 = vpop.f32.mrb[0].mxu0
      %v1190 = vadd.f32 0.0, %v1189
      %v1191 = vpop.f32.mrb[0].mxu0
      %v1192 = vpop.f32.mrb[0].mxu0
      %v1193 = vadd.f32 0.0, %v1192
      %v1194 = vpop.f32.mrb[0].mxu0
      %1195 = vmatprep.mubr.bf16.mxu0 0
      %1196 = vmatmul.mubr.bf16.gmra.mrb[0].mxu0 %v1056
      %v1197 = vpop.f32.mrb[0].mxu0
      %v1198 = vadd.f32 0.0, %v1197
      %v1199 = vpop.f32.mrb[0].mxu0
      %v1200 = vpop.f32.mrb[0].mxu0
      %v1201 = vadd.f32 0.0, %v1200
      %v1202 = vpop.f32.mrb[0].mxu0
      %1203 = vmatprep.mubr.bf16.mxu0 0
      %1204 = vmatmul.mubr.bf16.gmra.mrb[0].mxu0 %v1059
      %v1205 = vpop.f32.mrb[0].mxu0
      %v1206 = vadd.f32 0.0, %v1205
      %v1207 = vpop.f32.mrb[0].mxu0
      %v1208 = vpop.f32.mrb[0].mxu0
      %v1209 = vadd.f32 0.0, %v1208
      %v1210 = vpop.f32.mrb[0].mxu0
      %1211 = vmatprep.mubr.bf16.mxu0 0
      %1212 = vmatmul.mubr.bf16.gmra.mrb[0].mxu0 %v1062
      %v1213 = vpop.f32.mrb[0].mxu0
      %v1214 = vadd.f32 0.0, %v1213
      %v1215 = vpop.f32.mrb[0].mxu0
      %v1216 = vpop.f32.mrb[0].mxu0
      %v1217 = vadd.f32 0.0, %v1216
      %v1218 = vpop.f32.mrb[0].mxu0
      %1219 = vmatprep.mubr.bf16.mxu0 0
      %1220 = vmatmul.mubr.bf16.gmra.mrb[0].mxu0 %v1065
      %v1221 = vpop.f32.mrb[0].mxu0
      %v1222 = vadd.f32 0.0, %v1221
      %v1223 = vpop.f32.mrb[0].mxu0
      %v1224 = vpop.f32.mrb[0].mxu0
      %v1225 = vadd.f32 0.0, %v1224
      %v1226 = vpop.f32.mrb[0].mxu0
      %1227 = vmatprep.mubr.bf16.mxu0 0
      %1228 = vmatmul.mubr.bf16.gmra.mrb[0].mxu0 %v1068
      %v1229 = vpop.f32.mrb[0].mxu0
      %v1230 = vadd.f32 0.0, %v1229
      %v1231 = vpop.f32.mrb[0].mxu0
      %v1232 = vpop.f32.mrb[0].mxu0
      %v1233 = vadd.f32 0.0, %v1232
      %v1234 = vpop.f32.mrb[0].mxu0
      %1235 = vmatprep.mubr.bf16.mxu0 0
      %1236 = vmatmul.mubr.bf16.gmra.mrb[0].mxu0 %v1071
      %v1237 = vpop.f32.mrb[0].mxu0
      %v1238 = vadd.f32 0.0, %v1237
      %v1239 = vpop.f32.mrb[0].mxu0
      %v1240 = vpop.f32.mrb[0].mxu0
      %v1241 = vadd.f32 0.0, %v1240
      %v1242 = vpop.f32.mrb[0].mxu0
      %1243 = vmatprep.mubr.bf16.mxu0 0
      %1244 = vmatmul.mubr.bf16.gmra.mrb[0].mxu0 %v1074
      %v1245 = vpop.f32.mrb[0].mxu0
      %v1246 = vadd.f32 0.0, %v1245
      %v1247 = vpop.f32.mrb[0].mxu0
      %v1248 = vpop.f32.mrb[0].mxu0
      %v1249 = vadd.f32 0.0, %v1248
      %v1250 = vpop.f32.mrb[0].mxu0
      %1251 = vmatprep.mubr.bf16.mxu0 0
      %1252 = vmatmul.mubr.bf16.gmra.mrb[0].mxu0 %v1077
      %v1253 = vpop.f32.mrb[0].mxu0
      %v1254 = vadd.f32 0.0, %v1253
      %v1255 = vpop.f32.mrb[0].mxu0
      %v1256 = vpop.f32.mrb[0].mxu0
      %v1257 = vadd.f32 0.0, %v1256
      %v1258 = vpop.f32.mrb[0].mxu0
      %1259 = vdwg.mxu0
      %v1261 = vunpack.c.l.b16 %v853
      %v1262 = vpack.c.b16 %v932, %v1261
      %vm1263 = vsmask.f32 5376
      %v1265 = vshrl.u32 %v1262, 16
      %v1267 = vrot.slane %v1265, 2
      %v1268 = vshll.u32 %v1262, 16
      %v1270 = vrot.slane %v1268, 3
      %v1271 = vor.u32 %v1267, %v1270
      %v1273 = vshrl.u32 %v969, 16
      %v1275 = vrot.slane %v1273, 2
      %v1276 = vshll.u32 %v969, 16
      %v1278 = vrot.slane %v1276, 3
      %v1279 = vor.u32 %v1275, %v1278
      %v1280 = vsel %vm1263, %v1271, %v1279
      %v1282 = vshrl.u32 %v970, 16
      %v1284 = vrot.slane %v1282, 2
      %v1285 = vshll.u32 %v970, 16
      %v1287 = vrot.slane %v1285, 3
      %v1288 = vor.u32 %v1284, %v1287
      %v1289 = vsel %vm1263, %v1279, %v1288
      %v1291 = vshrl.u32 %v971, 16
      %v1293 = vrot.slane %v1291, 2
      %v1294 = vshll.u32 %v971, 16
      %v1296 = vrot.slane %v1294, 3
      %v1297 = vor.u32 %v1293, %v1296
      %v1298 = vsel %vm1263, %v1288, %v1297
      %v1300 = vshrl.u32 %v972, 16
      %v1302 = vrot.slane %v1300, 2
      %v1303 = vshll.u32 %v972, 16
      %v1305 = vrot.slane %v1303, 3
      %v1306 = vor.u32 %v1302, %v1305
      %v1307 = vsel %vm1263, %v1297, %v1306
      %v1309 = vshrl.u32 %v973, 16
      %v1311 = vrot.slane %v1309, 2
      %v1312 = vshll.u32 %v973, 16
      %v1314 = vrot.slane %v1312, 3
      %v1315 = vor.u32 %v1311, %v1314
      %v1316 = vsel %vm1263, %v1306, %v1315
      %v1318 = vshrl.u32 %v974, 16
      %v1320 = vrot.slane %v1318, 2
      %v1321 = vshll.u32 %v974, 16
      %v1323 = vrot.slane %v1321, 3
      %v1324 = vor.u32 %v1320, %v1323
      %v1325 = vsel %vm1263, %v1315, %v1324
      %v1327 = vshrl.u32 %v975, 16
      %v1329 = vrot.slane %v1327, 2
      %v1330 = vshll.u32 %v975, 16
      %v1332 = vrot.slane %v1330, 3
      %v1333 = vor.u32 %v1329, %v1332
      %v1334 = vsel %vm1263, %v1324, %v1333
      %v1336 = vshrl.u32 %v976, 16
      %v1338 = vrot.slane %v1336, 2
      %v1339 = vshll.u32 %v976, 16
      %v1341 = vrot.slane %v1339, 3
      %v1342 = vor.u32 %v1338, %v1341
      %v1343 = vsel %vm1263, %v1333, %v1342
      %v1345 = vshrl.u32 %v977, 16
      %v1347 = vrot.slane %v1345, 2
      %v1348 = vshll.u32 %v977, 16
      %v1350 = vrot.slane %v1348, 3
      %v1351 = vor.u32 %v1347, %v1350
      %v1352 = vsel %vm1263, %v1342, %v1351
      %v1354 = vshrl.u32 %v978, 16
      %v1356 = vrot.slane %v1354, 2
      %v1357 = vshll.u32 %v978, 16
      %v1359 = vrot.slane %v1357, 3
      %v1360 = vor.u32 %v1356, %v1359
      %v1361 = vsel %vm1263, %v1351, %v1360
      %v1363 = vshrl.u32 %v979, 16
      %v1365 = vrot.slane %v1363, 2
      %v1366 = vshll.u32 %v979, 16
      %v1368 = vrot.slane %v1366, 3
      %v1369 = vor.u32 %v1365, %v1368
      %v1370 = vsel %vm1263, %v1360, %v1369
      %v1372 = vshrl.u32 %v980, 16
      %v1374 = vrot.slane %v1372, 2
      %v1375 = vshll.u32 %v980, 16
      %v1377 = vrot.slane %v1375, 3
      %v1378 = vor.u32 %v1374, %v1377
      %v1379 = vsel %vm1263, %v1369, %v1378
      %v1381 = vshrl.u32 %v981, 16
      %v1383 = vrot.slane %v1381, 2
      %v1384 = vshll.u32 %v981, 16
      %v1386 = vrot.slane %v1384, 3
      %v1387 = vor.u32 %v1383, %v1386
      %v1388 = vsel %vm1263, %v1378, %v1387
      %v1390 = vshrl.u32 %v982, 16
      %v1392 = vrot.slane %v1390, 2
      %v1393 = vshll.u32 %v982, 16
      %v1395 = vrot.slane %v1393, 3
      %v1396 = vor.u32 %v1392, %v1395
      %v1397 = vsel %vm1263, %v1387, %v1396
      %v1399 = vshrl.u32 %v983, 16
      %v1401 = vrot.slane %v1399, 2
      %v1402 = vshll.u32 %v983, 16
      %v1404 = vrot.slane %v1402, 3
      %v1405 = vor.u32 %v1401, %v1404
      %v1406 = vsel %vm1263, %v1396, %v1405
      %v1408 = vshrl.u32 %v984, 16
      %v1410 = vrot.slane %v1408, 2
      %v1411 = vshll.u32 %v984, 16
      %v1413 = vrot.slane %v1411, 3
      %v1414 = vor.u32 %v1410, %v1413
      %v1415 = vsel %vm1263, %v1405, %v1414
      %v1417 = vshrl.u32 %v985, 16
      %v1419 = vrot.slane %v1417, 2
      %v1420 = vshll.u32 %v985, 16
      %v1422 = vrot.slane %v1420, 3
      %v1423 = vor.u32 %v1419, %v1422
      %v1424 = vsel %vm1263, %v1414, %v1423
      %v1426 = vshrl.u32 %v986, 16
      %v1428 = vrot.slane %v1426, 2
      %v1429 = vshll.u32 %v986, 16
      %v1431 = vrot.slane %v1429, 3
      %v1432 = vor.u32 %v1428, %v1431
      %v1433 = vsel %vm1263, %v1423, %v1432
      %v1435 = vsel %vm199, %v1280, 0
      %v1438 = vsel %vm199, %v1289, 0
      %v1441 = vsel %vm199, %v1298, 0
      %v1444 = vsel %vm199, %v1307, 0
      %v1447 = vsel %vm199, %v1316, 0
      %v1450 = vsel %vm199, %v1325, 0
      %v1453 = vsel %vm199, %v1334, 0
      %v1456 = vsel %vm199, %v1343, 0
      %v1459 = vsel %vm199, %v1352, 0
      %v1462 = vsel %vm199, %v1361, 0
      %v1465 = vsel %vm199, %v1370, 0
      %v1468 = vsel %vm199, %v1379, 0
      %v1471 = vsel %vm199, %v1388, 0
      %v1474 = vsel %vm199, %v1397, 0
      %v1477 = vsel %vm199, %v1406, 0
      %v1480 = vsel %vm199, %v1415, 0
      %v1483 = vsel %vm199, %v1424, 0
      %v1486 = vsel %vm199, %v1433, 0
      %v1489 = vsel %vm1079, %v890, 0
      %1491 = vmatprep.subr.bf16.mxu0 0
      %1492 = vmatpush1.bf16.msra.mxu0 %v1489
      %1493 = vmatprep.subr.bf16.mxu0 0
      %1494 = vmatpush1.bf16.msra.mxu0 0
      %1495 = vmatprep.subr.bf16.mxu0 0
      %1496 = vmatpush1.bf16.msra.mxu0 0
      %1497 = vmatprep.subr.bf16.mxu0 0
      %1498 = vmatpush1.bf16.msra.mxu0 0
      %1499 = vmatprep.subr.bf16.mxu0 0
      %1500 = vmatpush1.bf16.msra.mxu0 0
      %1501 = vmatprep.subr.bf16.mxu0 0
      %1502 = vmatpush1.bf16.msra.mxu0 0
      %1503 = vmatprep.subr.bf16.mxu0 0
      %1504 = vmatpush1.bf16.msra.mxu0 0
      %1505 = vmatprep.subr.bf16.mxu0 0
      %1506 = vmatpush1.bf16.msra.mxu0 0
      %1507 = vmatprep.subr.bf16.mxu0 0
      %1508 = vmatpush1.bf16.msra.mxu0 0
      %1509 = vmatprep.subr.bf16.mxu0 0
      %1510 = vmatpush1.bf16.msra.mxu0 0
      %1511 = vmatprep.subr.bf16.mxu0 0
      %1512 = vmatpush1.bf16.msra.mxu0 0
      %1513 = vmatprep.subr.bf16.mxu0 0
      %1514 = vmatpush1.bf16.msra.mxu0 0
      %1515 = vmatprep.subr.bf16.mxu0 0
      %1516 = vmatpush1.bf16.msra.mxu0 0
      %1517 = vmatprep.subr.bf16.mxu0 0
      %1518 = vmatpush1.bf16.msra.mxu0 0
      %1519 = vmatprep.subr.bf16.mxu0 0
      %1520 = vmatpush1.bf16.msra.mxu0 0
      %1521 = vmatprep.subr.bf16.mxu0 0
      %1522 = vmatpush1.bf16.msra.mxu0 0
      %1523 = vmatprep.mubr.bf16.mxu0 0
      %1524 = vmatmul.mubr.bf16.gmra.mrb[0].mxu0 %v1435
      %v1525 = vpop.f32.mrb[0].mxu0
      %v1526 = vadd.f32 %v1118, %v1525
      %v1527 = vpop.f32.mrb[0].mxu0
      %v1528 = vpop.f32.mrb[0].mxu0
      %v1529 = vadd.f32 %v1121, %v1528
      %v1530 = vpop.f32.mrb[0].mxu0
      %1531 = vmatprep.mubr.bf16.mxu0 0
      %1532 = vmatmul.mubr.bf16.gmra.mrb[0].mxu0 %v1438
      %v1533 = vpop.f32.mrb[0].mxu0
      %v1534 = vadd.f32 %v1126, %v1533
      %v1535 = vpop.f32.mrb[0].mxu0
      %v1536 = vpop.f32.mrb[0].mxu0
      %v1537 = vadd.f32 %v1129, %v1536
      %v1538 = vpop.f32.mrb[0].mxu0
      %1539 = vmatprep.mubr.bf16.mxu0 0
      %1540 = vmatmul.mubr.bf16.gmra.mrb[0].mxu0 %v1441
      %v1541 = vpop.f32.mrb[0].mxu0
      %v1542 = vadd.f32 %v1134, %v1541
      %v1543 = vpop.f32.mrb[0].mxu0
      %v1544 = vpop.f32.mrb[0].mxu0
      %v1545 = vadd.f32 %v1137, %v1544
      %v1546 = vpop.f32.mrb[0].mxu0
      %1547 = vmatprep.mubr.bf16.mxu0 0
      %1548 = vmatmul.mubr.bf16.gmra.mrb[0].mxu0 %v1444
      %v1549 = vpop.f32.mrb[0].mxu0
      %v1550 = vadd.f32 %v1142, %v1549
      %v1551 = vpop.f32.mrb[0].mxu0
      %v1552 = vpop.f32.mrb[0].mxu0
      %v1553 = vadd.f32 %v1145, %v1552
      %v1554 = vpop.f32.mrb[0].mxu0
      %1555 = vmatprep.mubr.bf16.mxu0 0
      %1556 = vmatmul.mubr.bf16.gmra.mrb[0].mxu0 %v1447
      %v1557 = vpop.f32.mrb[0].mxu0
      %v1558 = vadd.f32 %v1150, %v1557
      %v1559 = vpop.f32.mrb[0].mxu0
      %v1560 = vpop.f32.mrb[0].mxu0
      %v1561 = vadd.f32 %v1153, %v1560
      %v1562 = vpop.f32.mrb[0].mxu0
      %1563 = vmatprep.mubr.bf16.mxu0 0
      %1564 = vmatmul.mubr.bf16.gmra.mrb[0].mxu0 %v1450
      %v1565 = vpop.f32.mrb[0].mxu0
      %v1566 = vadd.f32 %v1158, %v1565
      %v1567 = vpop.f32.mrb[0].mxu0
      %v1568 = vpop.f32.mrb[0].mxu0
      %v1569 = vadd.f32 %v1161, %v1568
      %v1570 = vpop.f32.mrb[0].mxu0
      %1571 = vmatprep.mubr.bf16.mxu0 0
      %1572 = vmatmul.mubr.bf16.gmra.mrb[0].mxu0 %v1453
      %v1573 = vpop.f32.mrb[0].mxu0
      %v1574 = vadd.f32 %v1166, %v1573
      %v1575 = vpop.f32.mrb[0].mxu0
      %v1576 = vpop.f32.mrb[0].mxu0
      %v1577 = vadd.f32 %v1169, %v1576
      %v1578 = vpop.f32.mrb[0].mxu0
      %1579 = vmatprep.mubr.bf16.mxu0 0
      %1580 = vmatmul.mubr.bf16.gmra.mrb[0].mxu0 %v1456
      %v1581 = vpop.f32.mrb[0].mxu0
      %v1582 = vadd.f32 %v1174, %v1581
      %v1583 = vpop.f32.mrb[0].mxu0
      %v1584 = vpop.f32.mrb[0].mxu0
      %v1585 = vadd.f32 %v1177, %v1584
      %v1586 = vpop.f32.mrb[0].mxu0
      %1587 = vmatprep.mubr.bf16.mxu0 0
      %1588 = vmatmul.mubr.bf16.gmra.mrb[0].mxu0 %v1459
      %v1589 = vpop.f32.mrb[0].mxu0
      %v1590 = vadd.f32 %v1182, %v1589
      %v1591 = vpop.f32.mrb[0].mxu0
      %v1592 = vpop.f32.mrb[0].mxu0
      %v1593 = vadd.f32 %v1185, %v1592
      %v1594 = vpop.f32.mrb[0].mxu0
      %1595 = vmatprep.mubr.bf16.mxu0 0
      %1596 = vmatmul.mubr.bf16.gmra.mrb[0].mxu0 %v1462
      %v1597 = vpop.f32.mrb[0].mxu0
      %v1598 = vadd.f32 %v1190, %v1597
      %v1599 = vpop.f32.mrb[0].mxu0
      %v1600 = vpop.f32.mrb[0].mxu0
      %v1601 = vadd.f32 %v1193, %v1600
      %v1602 = vpop.f32.mrb[0].mxu0
      %1603 = vmatprep.mubr.bf16.mxu0 0
      %1604 = vmatmul.mubr.bf16.gmra.mrb[0].mxu0 %v1465
      %v1605 = vpop.f32.mrb[0].mxu0
      %v1606 = vadd.f32 %v1198, %v1605
      %v1607 = vpop.f32.mrb[0].mxu0
      %v1608 = vpop.f32.mrb[0].mxu0
      %v1609 = vadd.f32 %v1201, %v1608
      %v1610 = vpop.f32.mrb[0].mxu0
      %1611 = vmatprep.mubr.bf16.mxu0 0
      %1612 = vmatmul.mubr.bf16.gmra.mrb[0].mxu0 %v1468
      %v1613 = vpop.f32.mrb[0].mxu0
      %v1614 = vadd.f32 %v1206, %v1613
      %v1615 = vpop.f32.mrb[0].mxu0
      %v1616 = vpop.f32.mrb[0].mxu0
      %v1617 = vadd.f32 %v1209, %v1616
      %v1618 = vpop.f32.mrb[0].mxu0
      %1619 = vmatprep.mubr.bf16.mxu0 0
      %1620 = vmatmul.mubr.bf16.gmra.mrb[0].mxu0 %v1471
      %v1621 = vpop.f32.mrb[0].mxu0
      %v1622 = vadd.f32 %v1214, %v1621
      %v1623 = vpop.f32.mrb[0].mxu0
      %v1624 = vpop.f32.mrb[0].mxu0
      %v1625 = vadd.f32 %v1217, %v1624
      %v1626 = vpop.f32.mrb[0].mxu0
      %1627 = vmatprep.mubr.bf16.mxu0 0
      %1628 = vmatmul.mubr.bf16.gmra.mrb[0].mxu0 %v1474
      %v1629 = vpop.f32.mrb[0].mxu0
      %v1630 = vadd.f32 %v1222, %v1629
      %v1631 = vpop.f32.mrb[0].mxu0
      %v1632 = vpop.f32.mrb[0].mxu0
      %v1633 = vadd.f32 %v1225, %v1632
      %v1634 = vpop.f32.mrb[0].mxu0
      %1635 = vmatprep.mubr.bf16.mxu0 0
      %1636 = vmatmul.mubr.bf16.gmra.mrb[0].mxu0 %v1477
      %v1637 = vpop.f32.mrb[0].mxu0
      %v1638 = vadd.f32 %v1230, %v1637
      %v1639 = vpop.f32.mrb[0].mxu0
      %v1640 = vpop.f32.mrb[0].mxu0
      %v1641 = vadd.f32 %v1233, %v1640
      %v1642 = vpop.f32.mrb[0].mxu0
      %1643 = vmatprep.mubr.bf16.mxu0 0
      %1644 = vmatmul.mubr.bf16.gmra.mrb[0].mxu0 %v1480
      %v1645 = vpop.f32.mrb[0].mxu0
      %v1646 = vadd.f32 %v1238, %v1645
      %v1647 = vpop.f32.mrb[0].mxu0
      %v1648 = vpop.f32.mrb[0].mxu0
      %v1649 = vadd.f32 %v1241, %v1648
      %v1650 = vpop.f32.mrb[0].mxu0
      %1651 = vmatprep.mubr.bf16.mxu0 0
      %1652 = vmatmul.mubr.bf16.gmra.mrb[0].mxu0 %v1483
      %v1653 = vpop.f32.mrb[0].mxu0
      %v1654 = vadd.f32 %v1246, %v1653
      %v1655 = vpop.f32.mrb[0].mxu0
      %v1656 = vpop.f32.mrb[0].mxu0
      %v1657 = vadd.f32 %v1249, %v1656
      %v1658 = vpop.f32.mrb[0].mxu0
      %1659 = vmatprep.mubr.bf16.mxu0 0
      %1660 = vmatmul.mubr.bf16.gmra.mrb[0].mxu0 %v1486
      %v1661 = vpop.f32.mrb[0].mxu0
      %v1662 = vadd.f32 %v1254, %v1661
      %v1663 = vpop.f32.mrb[0].mxu0
      %v1664 = vpop.f32.mrb[0].mxu0
      %v1665 = vadd.f32 %v1257, %v1664
      %v1666 = vpop.f32.mrb[0].mxu0
      %1667 = vdwg.mxu0
      %v1668 = vld [vmem:[%s192 + $0x94] sm:$0xf]
      %s1669 = scalar_lea.vmem %s1, 8
      %v1670 = vld [vmem:[%s1669] sm:$0xf]
      %v1672 = vunpack.c.l.b16 %v1668
      %v1673 = vpack.c.b16 %v1672, %v1672
      %vm1674 = vsmask.f32 4352
      %v1676 = vshrl.u32 %v968, 16
      %v1678 = vrot.slane %v1676, 3
      %v1679 = vshll.u32 %v968, 16
      %v1681 = vrot.slane %v1679, 4
      %v1682 = vor.u32 %v1678, %v1681
      %v1683 = vrot.slane %v1273, 3
      %v1684 = vrot.slane %v1276, 4
      %v1685 = vor.u32 %v1683, %v1684
      %v1686 = vsel %vm1674, %v1682, %v1685
      %v1687 = vrot.slane %v1282, 3
      %v1688 = vrot.slane %v1285, 4
      %v1689 = vor.u32 %v1687, %v1688
      %v1690 = vsel %vm1674, %v1685, %v1689
      %v1691 = vrot.slane %v1291, 3
      %v1692 = vrot.slane %v1294, 4
      %v1693 = vor.u32 %v1691, %v1692
      %v1694 = vsel %vm1674, %v1689, %v1693
      %v1695 = vrot.slane %v1300, 3
      %v1696 = vrot.slane %v1303, 4
      %v1697 = vor.u32 %v1695, %v1696
      %v1698 = vsel %vm1674, %v1693, %v1697
      %v1699 = vrot.slane %v1309, 3
      %v1700 = vrot.slane %v1312, 4
      %v1701 = vor.u32 %v1699, %v1700
      %v1702 = vsel %vm1674, %v1697, %v1701
      %v1703 = vrot.slane %v1318, 3
      %v1704 = vrot.slane %v1321, 4
      %v1705 = vor.u32 %v1703, %v1704
      %v1706 = vsel %vm1674, %v1701, %v1705
      %v1707 = vrot.slane %v1327, 3
      %v1708 = vrot.slane %v1330, 4
      %v1709 = vor.u32 %v1707, %v1708
      %v1710 = vsel %vm1674, %v1705, %v1709
      %v1711 = vrot.slane %v1336, 3
      %v1712 = vrot.slane %v1339, 4
      %v1713 = vor.u32 %v1711, %v1712
      %v1714 = vsel %vm1674, %v1709, %v1713
      %v1715 = vrot.slane %v1345, 3
      %v1716 = vrot.slane %v1348, 4
      %v1717 = vor.u32 %v1715, %v1716
      %v1718 = vsel %vm1674, %v1713, %v1717
      %v1719 = vrot.slane %v1354, 3
      %v1720 = vrot.slane %v1357, 4
      %v1721 = vor.u32 %v1719, %v1720
      %v1722 = vsel %vm1674, %v1717, %v1721
      %v1723 = vrot.slane %v1363, 3
      %v1724 = vrot.slane %v1366, 4
      %v1725 = vor.u32 %v1723, %v1724
      %v1726 = vsel %vm1674, %v1721, %v1725
      %v1727 = vrot.slane %v1372, 3
      %v1728 = vrot.slane %v1375, 4
      %v1729 = vor.u32 %v1727, %v1728
      %v1730 = vsel %vm1674, %v1725, %v1729
      %v1731 = vrot.slane %v1381, 3
      %v1732 = vrot.slane %v1384, 4
      %v1733 = vor.u32 %v1731, %v1732
      %v1734 = vsel %vm1674, %v1729, %v1733
      %v1735 = vrot.slane %v1390, 3
      %v1736 = vrot.slane %v1393, 4
      %v1737 = vor.u32 %v1735, %v1736
      %v1738 = vsel %vm1674, %v1733, %v1737
      %v1739 = vrot.slane %v1399, 3
      %v1740 = vrot.slane %v1402, 4
      %v1741 = vor.u32 %v1739, %v1740
      %v1742 = vsel %vm1674, %v1737, %v1741
      %v1743 = vrot.slane %v1408, 3
      %v1744 = vrot.slane %v1411, 4
      %v1745 = vor.u32 %v1743, %v1744
      %v1746 = vsel %vm1674, %v1741, %v1745
      %v1747 = vrot.slane %v1417, 3
      %v1748 = vrot.slane %v1420, 4
      %v1749 = vor.u32 %v1747, %v1748
      %v1750 = vsel %vm1674, %v1745, %v1749
      %v1752 = vshrl.u32 %v1673, 16
      %v1754 = vrot.slane %v1752, 3
      %v1755 = vshll.u32 %v1673, 16
      %v1757 = vrot.slane %v1755, 4
      %v1758 = vor.u32 %v1754, %v1757
      %v1759 = vsel %vm1674, %v1749, %v1758
      %v1761 = vsel %vm199, %v1686, 0
      %v1764 = vsel %vm199, %v1690, 0
      %v1767 = vsel %vm199, %v1694, 0
      %v1770 = vsel %vm199, %v1698, 0
      %v1773 = vsel %vm199, %v1702, 0
      %v1776 = vsel %vm199, %v1706, 0
      %v1779 = vsel %vm199, %v1710, 0
      %v1782 = vsel %vm199, %v1714, 0
      %v1785 = vsel %vm199, %v1718, 0
      %v1788 = vsel %vm199, %v1722, 0
      %v1791 = vsel %vm199, %v1726, 0
      %v1794 = vsel %vm199, %v1730, 0
      %v1797 = vsel %vm199, %v1734, 0
      %v1800 = vsel %vm199, %v1738, 0
      %v1803 = vsel %vm199, %v1742, 0
      %v1806 = vsel %vm199, %v1746, 0
      %v1809 = vsel %vm199, %v1750, 0
      %v1812 = vsel %vm199, %v1759, 0
      %v1815 = vsel %vm1079, %v1670, 0
      %1817 = vmatprep.subr.bf16.mxu0 0
      %1818 = vmatpush1.bf16.msra.mxu0 %v1815
      %1819 = vmatprep.subr.bf16.mxu0 0
      %1820 = vmatpush1.bf16.msra.mxu0 0
      %1821 = vmatprep.subr.bf16.mxu0 0
      %1822 = vmatpush1.bf16.msra.mxu0 0
      %1823 = vmatprep.subr.bf16.mxu0 0
      %1824 = vmatpush1.bf16.msra.mxu0 0
      %1825 = vmatprep.subr.bf16.mxu0 0
      %1826 = vmatpush1.bf16.msra.mxu0 0
      %1827 = vmatprep.subr.bf16.mxu0 0
      %1828 = vmatpush1.bf16.msra.mxu0 0
      %1829 = vmatprep.subr.bf16.mxu0 0
      %1830 = vmatpush1.bf16.msra.mxu0 0
      %1831 = vmatprep.subr.bf16.mxu0 0
      %1832 = vmatpush1.bf16.msra.mxu0 0
      %1833 = vmatprep.subr.bf16.mxu0 0
      %1834 = vmatpush1.bf16.msra.mxu0 0
      %1835 = vmatprep.subr.bf16.mxu0 0
      %1836 = vmatpush1.bf16.msra.mxu0 0
      %1837 = vmatprep.subr.bf16.mxu0 0
      %1838 = vmatpush1.bf16.msra.mxu0 0
      %1839 = vmatprep.subr.bf16.mxu0 0
      %1840 = vmatpush1.bf16.msra.mxu0 0
      %1841 = vmatprep.subr.bf16.mxu0 0
      %1842 = vmatpush1.bf16.msra.mxu0 0
      %1843 = vmatprep.subr.bf16.mxu0 0
      %1844 = vmatpush1.bf16.msra.mxu0 0
      %1845 = vmatprep.subr.bf16.mxu0 0
      %1846 = vmatpush1.bf16.msra.mxu0 0
      %1847 = vmatprep.subr.bf16.mxu0 0
      %1848 = vmatpush1.bf16.msra.mxu0 0
      %1849 = vmatprep.mubr.bf16.mxu0 0
      %1850 = vmatmul.mubr.bf16.gmra.mrb[0].mxu0 %v1761
      %v1851 = vpop.f32.mrb[0].mxu0
      %v1852 = vadd.f32 0.0, %v1851
      %v1853 = vpop.f32.mrb[0].mxu0
      %v1854 = vpop.f32.mrb[0].mxu0
      %v1855 = vadd.f32 0.0, %v1854
      %v1856 = vpop.f32.mrb[0].mxu0
      %1857 = vmatprep.mubr.bf16.mxu0 0
      %1858 = vmatmul.mubr.bf16.gmra.mrb[0].mxu0 %v1764
      %v1859 = vpop.f32.mrb[0].mxu0
      %v1860 = vadd.f32 0.0, %v1859
      %v1861 = vpop.f32.mrb[0].mxu0
      %v1862 = vpop.f32.mrb[0].mxu0
      %v1863 = vadd.f32 0.0, %v1862
      %v1864 = vpop.f32.mrb[0].mxu0
      %1865 = vmatprep.mubr.bf16.mxu0 0
      %1866 = vmatmul.mubr.bf16.gmra.mrb[0].mxu0 %v1767
      %v1867 = vpop.f32.mrb[0].mxu0
      %v1868 = vadd.f32 0.0, %v1867
      %v1869 = vpop.f32.mrb[0].mxu0
      %v1870 = vpop.f32.mrb[0].mxu0
      %v1871 = vadd.f32 0.0, %v1870
      %v1872 = vpop.f32.mrb[0].mxu0
      %1873 = vmatprep.mubr.bf16.mxu0 0
      %1874 = vmatmul.mubr.bf16.gmra.mrb[0].mxu0 %v1770
      %v1875 = vpop.f32.mrb[0].mxu0
      %v1876 = vadd.f32 0.0, %v1875
      %v1877 = vpop.f32.mrb[0].mxu0
      %v1878 = vpop.f32.mrb[0].mxu0
      %v1879 = vadd.f32 0.0, %v1878
      %v1880 = vpop.f32.mrb[0].mxu0
      %1881 = vmatprep.mubr.bf16.mxu0 0
      %1882 = vmatmul.mubr.bf16.gmra.mrb[0].mxu0 %v1773
      %v1883 = vpop.f32.mrb[0].mxu0
      %v1884 = vadd.f32 0.0, %v1883
      %v1885 = vpop.f32.mrb[0].mxu0
      %v1886 = vpop.f32.mrb[0].mxu0
      %v1887 = vadd.f32 0.0, %v1886
      %v1888 = vpop.f32.mrb[0].mxu0
      %1889 = vmatprep.mubr.bf16.mxu0 0
      %1890 = vmatmul.mubr.bf16.gmra.mrb[0].mxu0 %v1776
      %v1891 = vpop.f32.mrb[0].mxu0
      %v1892 = vadd.f32 0.0, %v1891
      %v1893 = vpop.f32.mrb[0].mxu0
      %v1894 = vpop.f32.mrb[0].mxu0
      %v1895 = vadd.f32 0.0, %v1894
      %v1896 = vpop.f32.mrb[0].mxu0
      %1897 = vmatprep.mubr.bf16.mxu0 0
      %1898 = vmatmul.mubr.bf16.gmra.mrb[0].mxu0 %v1779
      %v1899 = vpop.f32.mrb[0].mxu0
      %v1900 = vadd.f32 0.0, %v1899
      %v1901 = vpop.f32.mrb[0].mxu0
      %v1902 = vpop.f32.mrb[0].mxu0
      %v1903 = vadd.f32 0.0, %v1902
      %v1904 = vpop.f32.mrb[0].mxu0
      %1905 = vmatprep.mubr.bf16.mxu0 0
      %1906 = vmatmul.mubr.bf16.gmra.mrb[0].mxu0 %v1782
      %v1907 = vpop.f32.mrb[0].mxu0
      %v1908 = vadd.f32 0.0, %v1907
      %v1909 = vpop.f32.mrb[0].mxu0
      %v1910 = vpop.f32.mrb[0].mxu0
      %v1911 = vadd.f32 0.0, %v1910
      %v1912 = vpop.f32.mrb[0].mxu0
      %1913 = vmatprep.mubr.bf16.mxu0 0
      %1914 = vmatmul.mubr.bf16.gmra.mrb[0].mxu0 %v1785
      %v1915 = vpop.f32.mrb[0].mxu0
      %v1916 = vadd.f32 0.0, %v1915
      %v1917 = vpop.f32.mrb[0].mxu0
      %v1918 = vpop.f32.mrb[0].mxu0
      %v1919 = vadd.f32 0.0, %v1918
      %v1920 = vpop.f32.mrb[0].mxu0
      %1921 = vmatprep.mubr.bf16.mxu0 0
      %1922 = vmatmul.mubr.bf16.gmra.mrb[0].mxu0 %v1788
      %v1923 = vpop.f32.mrb[0].mxu0
      %v1924 = vadd.f32 0.0, %v1923
      %v1925 = vpop.f32.mrb[0].mxu0
      %v1926 = vpop.f32.mrb[0].mxu0
      %v1927 = vadd.f32 0.0, %v1926
      %v1928 = vpop.f32.mrb[0].mxu0
      %1929 = vmatprep.mubr.bf16.mxu0 0
      %1930 = vmatmul.mubr.bf16.gmra.mrb[0].mxu0 %v1791
      %v1931 = vpop.f32.mrb[0].mxu0
      %v1932 = vadd.f32 0.0, %v1931
      %v1933 = vpop.f32.mrb[0].mxu0
      %v1934 = vpop.f32.mrb[0].mxu0
      %v1935 = vadd.f32 0.0, %v1934
      %v1936 = vpop.f32.mrb[0].mxu0
      %1937 = vmatprep.mubr.bf16.mxu0 0
      %1938 = vmatmul.mubr.bf16.gmra.mrb[0].mxu0 %v1794
      %v1939 = vpop.f32.mrb[0].mxu0
      %v1940 = vadd.f32 0.0, %v1939
      %v1941 = vpop.f32.mrb[0].mxu0
      %v1942 = vpop.f32.mrb[0].mxu0
      %v1943 = vadd.f32 0.0, %v1942
      %v1944 = vpop.f32.mrb[0].mxu0
      %1945 = vmatprep.mubr.bf16.mxu0 0
      %1946 = vmatmul.mubr.bf16.gmra.mrb[0].mxu0 %v1797
      %v1947 = vpop.f32.mrb[0].mxu0
      %v1948 = vadd.f32 0.0, %v1947
      %v1949 = vpop.f32.mrb[0].mxu0
      %v1950 = vpop.f32.mrb[0].mxu0
      %v1951 = vadd.f32 0.0, %v1950
      %v1952 = vpop.f32.mrb[0].mxu0
      %1953 = vmatprep.mubr.bf16.mxu0 0
      %1954 = vmatmul.mubr.bf16.gmra.mrb[0].mxu0 %v1800
      %v1955 = vpop.f32.mrb[0].mxu0
      %v1956 = vadd.f32 0.0, %v1955
      %v1957 = vpop.f32.mrb[0].mxu0
      %v1958 = vpop.f32.mrb[0].mxu0
      %v1959 = vadd.f32 0.0, %v1958
      %v1960 = vpop.f32.mrb[0].mxu0
      %1961 = vmatprep.mubr.bf16.mxu0 0
      %1962 = vmatmul.mubr.bf16.gmra.mrb[0].mxu0 %v1803
      %v1963 = vpop.f32.mrb[0].mxu0
      %v1964 = vadd.f32 0.0, %v1963
      %v1965 = vpop.f32.mrb[0].mxu0
      %v1966 = vpop.f32.mrb[0].mxu0
      %v1967 = vadd.f32 0.0, %v1966
      %v1968 = vpop.f32.mrb[0].mxu0
      %1969 = vmatprep.mubr.bf16.mxu0 0
      %1970 = vmatmul.mubr.bf16.gmra.mrb[0].mxu0 %v1806
      %v1971 = vpop.f32.mrb[0].mxu0
      %v1972 = vadd.f32 0.0, %v1971
      %v1973 = vpop.f32.mrb[0].mxu0
      %v1974 = vpop.f32.mrb[0].mxu0
      %v1975 = vadd.f32 0.0, %v1974
      %v1976 = vpop.f32.mrb[0].mxu0
      %1977 = vmatprep.mubr.bf16.mxu0 0
      %1978 = vmatmul.mubr.bf16.gmra.mrb[0].mxu0 %v1809
      %v1979 = vpop.f32.mrb[0].mxu0
      %v1980 = vadd.f32 0.0, %v1979
      %v1981 = vpop.f32.mrb[0].mxu0
      %v1982 = vpop.f32.mrb[0].mxu0
      %v1983 = vadd.f32 0.0, %v1982
      %v1984 = vpop.f32.mrb[0].mxu0
      %1985 = vmatprep.mubr.bf16.mxu0 0
      %1986 = vmatmul.mubr.bf16.gmra.mrb[0].mxu0 %v1812
      %v1987 = vpop.f32.mrb[0].mxu0
      %v1988 = vadd.f32 0.0, %v1987
      %v1989 = vpop.f32.mrb[0].mxu0
      %v1990 = vpop.f32.mrb[0].mxu0
      %v1991 = vadd.f32 0.0, %v1990
      %v1992 = vpop.f32.mrb[0].mxu0
      %1993 = vdwg.mxu0
      %v1994 = vadd.f32 %v1526, %v1852
      %v1995 = vadd.f32 %v1529, %v1855
      %v1996 = vadd.f32 %v1534, %v1860
      %v1997 = vadd.f32 %v1537, %v1863
      %v1998 = vadd.f32 %v1542, %v1868
      %v1999 = vadd.f32 %v1545, %v1871
      %v2000 = vadd.f32 %v1550, %v1876
      %v2001 = vadd.f32 %v1553, %v1879
      %v2002 = vadd.f32 %v1558, %v1884
      %v2003 = vadd.f32 %v1561, %v1887
      %v2004 = vadd.f32 %v1566, %v1892
      %v2005 = vadd.f32 %v1569, %v1895
      %v2006 = vadd.f32 %v1574, %v1900
      %v2007 = vadd.f32 %v1577, %v1903
      %v2008 = vadd.f32 %v1582, %v1908
      %v2009 = vadd.f32 %v1585, %v1911
      %v2010 = vadd.f32 %v1590, %v1916
      %v2011 = vadd.f32 %v1593, %v1919
      %v2012 = vadd.f32 %v1598, %v1924
      %v2013 = vadd.f32 %v1601, %v1927
      %v2014 = vadd.f32 %v1606, %v1932
      %v2015 = vadd.f32 %v1609, %v1935
      %v2016 = vadd.f32 %v1614, %v1940
      %v2017 = vadd.f32 %v1617, %v1943
      %v2018 = vadd.f32 %v1622, %v1948
      %v2019 = vadd.f32 %v1625, %v1951
      %v2020 = vadd.f32 %v1630, %v1956
      %v2021 = vadd.f32 %v1633, %v1959
      %v2022 = vadd.f32 %v1638, %v1964
      %v2023 = vadd.f32 %v1641, %v1967
      %v2024 = vadd.f32 %v1646, %v1972
      %v2025 = vadd.f32 %v1649, %v1975
      %v2026 = vadd.f32 %v1654, %v1980
      %v2027 = vadd.f32 %v1657, %v1983
      %v2028 = vadd.f32 %v1662, %v1988
      %v2029 = vadd.f32 %v1665, %v1991
      %v2030 = vld [vmem:[%s192 + $0xc] sm:$0x8]
      %v2031 = vld [vmem:[%s192 + $0x10] sm:$0xf]
      %v2032 = vld [vmem:[%s192 + $0x14] sm:$0xf]
      %v2033 = vld [vmem:[%s192 + $0x18] sm:$0xf]
      %v2034 = vld [vmem:[%s192 + $0x1c] sm:$0xf]
      %v2035 = vld [vmem:[%s192 + $0x20] sm:$0xf]
      %v2036 = vld [vmem:[%s192 + $0x24] sm:$0xf]
      %v2037 = vld [vmem:[%s192 + $0x28] sm:$0xf]
      %v2038 = vld [vmem:[%s192 + $0x2c] sm:$0xf]
      %v2039 = vld [vmem:[%s192 + $0x30] sm:$0xf]
      %v2040 = vld [vmem:[%s192 + $0x34] sm:$0xf]
      %v2041 = vld [vmem:[%s192 + $0x38] sm:$0xf]
      %v2042 = vld [vmem:[%s192 + $0x3c] sm:$0xf]
      %v2043 = vld [vmem:[%s192 + $0x40] sm:$0xf]
      %v2044 = vld [vmem:[%s192 + $0x44] sm:$0xf]
      %v2045 = vld [vmem:[%s192 + $0x48] sm:$0xf]
      %v2046 = vld [vmem:[%s192 + $0x4c] sm:$0xf]
      %v2047 = vld [vmem:[%s192 + $0x50] sm:$0xf]
      %v2048 = vld [vmem:[%s192 + $0x54] sm:$0xf]
      %v2049 = vld [vmem:[%s192 + $0x58] sm:$0xf]
      %v2050 = vld [vmem:[%s192 + $0x5c] sm:$0xf]
      %v2051 = vld [vmem:[%s192 + $0x60] sm:$0xf]
      %v2052 = vld [vmem:[%s192 + $0x64] sm:$0xf]
      %v2053 = vld [vmem:[%s192 + $0x68] sm:$0xf]
      %v2054 = vld [vmem:[%s192 + $0x6c] sm:$0xf]
      %v2055 = vld [vmem:[%s192 + $0x70] sm:$0xf]
      %v2056 = vld [vmem:[%s192 + $0x74] sm:$0xf]
      %v2057 = vld [vmem:[%s192 + $0x78] sm:$0xf]
      %v2058 = vld [vmem:[%s192 + $0x7c] sm:$0xf]
      %v2059 = vld [vmem:[%s192 + $0x80] sm:$0xf]
      %v2060 = vld [vmem:[%s192 + $0x84] sm:$0xf]
      %v2061 = vld [vmem:[%s192 + $0x88] sm:$0xf]
      %v2062 = vld [vmem:[%s192 + $0x8c] sm:$0xf]
      %v2063 = vld [vmem:[%s192 + $0x90] sm:$0xf]
      %v2064 = vld [vmem:[%s192 + $0x94] sm:$0xf]
      %v2065 = vld [vmem:[%s192 + $0x98] sm:$0xf]
      %v2066 = vld [vmem:[%s192 + $0x9c] sm:$0xf]
      %s2067 = scalar_lea.vmem %s1, 12
      %v2068 = vld [vmem:[%s2067] sm:$0xf]
      %v2106 = vunpack.c.l.b16 %v2030
      %v2107 = vunpack.c.l.b16 %v2031
      %v2108 = vunpack.c.l.b16 %v2032
      %v2109 = vunpack.c.l.b16 %v2033
      %v2110 = vunpack.c.l.b16 %v2034
      %v2111 = vunpack.c.l.b16 %v2035
      %v2112 = vunpack.c.l.b16 %v2036
      %v2113 = vunpack.c.l.b16 %v2037
      %v2114 = vunpack.c.l.b16 %v2038
      %v2115 = vunpack.c.l.b16 %v2039
      %v2116 = vunpack.c.l.b16 %v2040
      %v2117 = vunpack.c.l.b16 %v2041
      %v2118 = vunpack.c.l.b16 %v2042
      %v2119 = vunpack.c.l.b16 %v2043
      %v2120 = vunpack.c.l.b16 %v2044
      %v2121 = vunpack.c.l.b16 %v2045
      %v2122 = vunpack.c.l.b16 %v2046
      %v2123 = vunpack.c.l.b16 %v2047
      %v2124 = vunpack.c.l.b16 %v2048
      %v2125 = vunpack.c.l.b16 %v2049
      %v2126 = vunpack.c.l.b16 %v2050
      %v2127 = vunpack.c.l.b16 %v2051
      %v2128 = vunpack.c.l.b16 %v2052
      %v2129 = vunpack.c.l.b16 %v2053
      %v2130 = vunpack.c.l.b16 %v2054
      %v2131 = vunpack.c.l.b16 %v2055
      %v2132 = vunpack.c.l.b16 %v2056
      %v2133 = vunpack.c.l.b16 %v2057
      %v2134 = vunpack.c.l.b16 %v2058
      %v2135 = vunpack.c.l.b16 %v2059
      %v2136 = vunpack.c.l.b16 %v2060
      %v2137 = vunpack.c.l.b16 %v2061
      %v2138 = vunpack.c.l.b16 %v2062
      %v2139 = vunpack.c.l.b16 %v2063
      %v2140 = vunpack.c.l.b16 %v2064
      %v2141 = vunpack.c.l.b16 %v2065
      %v2142 = vunpack.c.l.b16 %v2066
      %v2143 = vpack.c.b16 %v2107, %v2106
      %v2144 = vpack.c.b16 %v2109, %v2108
      %v2145 = vpack.c.b16 %v2111, %v2110
      %v2146 = vpack.c.b16 %v2113, %v2112
      %v2147 = vpack.c.b16 %v2115, %v2114
      %v2148 = vpack.c.b16 %v2117, %v2116
      %v2149 = vpack.c.b16 %v2119, %v2118
      %v2150 = vpack.c.b16 %v2121, %v2120
      %v2151 = vpack.c.b16 %v2123, %v2122
      %v2152 = vpack.c.b16 %v2125, %v2124
      %v2153 = vpack.c.b16 %v2127, %v2126
      %v2154 = vpack.c.b16 %v2129, %v2128
      %v2155 = vpack.c.b16 %v2131, %v2130
      %v2156 = vpack.c.b16 %v2133, %v2132
      %v2157 = vpack.c.b16 %v2135, %v2134
      %v2158 = vpack.c.b16 %v2137, %v2136
      %v2159 = vpack.c.b16 %v2139, %v2138
      %v2160 = vpack.c.b16 %v2141, %v2140
      %v2161 = vpack.c.b16 %v2142, %v2142
      %v2163 = vshrl.u32 %v2143, 16
      %v2165 = vrot.slane %v2163, 3
      %v2166 = vshll.u32 %v2143, 16
      %v2168 = vrot.slane %v2166, 4
      %v2169 = vor.u32 %v2165, %v2168
      %v2171 = vshrl.u32 %v2144, 16
      %v2173 = vrot.slane %v2171, 3
      %v2174 = vshll.u32 %v2144, 16
      %v2176 = vrot.slane %v2174, 4
      %v2177 = vor.u32 %v2173, %v2176
      %v2178 = vsel %vm1674, %v2169, %v2177
      %v2180 = vshrl.u32 %v2145, 16
      %v2182 = vrot.slane %v2180, 3
      %v2183 = vshll.u32 %v2145, 16
      %v2185 = vrot.slane %v2183, 4
      %v2186 = vor.u32 %v2182, %v2185
      %v2187 = vsel %vm1674, %v2177, %v2186
      %v2189 = vshrl.u32 %v2146, 16
      %v2191 = vrot.slane %v2189, 3
      %v2192 = vshll.u32 %v2146, 16
      %v2194 = vrot.slane %v2192, 4
      %v2195 = vor.u32 %v2191, %v2194
      %v2196 = vsel %vm1674, %v2186, %v2195
      %v2198 = vshrl.u32 %v2147, 16
      %v2200 = vrot.slane %v2198, 3
      %v2201 = vshll.u32 %v2147, 16
      %v2203 = vrot.slane %v2201, 4
      %v2204 = vor.u32 %v2200, %v2203
      %v2205 = vsel %vm1674, %v2195, %v2204
      %v2207 = vshrl.u32 %v2148, 16
      %v2209 = vrot.slane %v2207, 3
      %v2210 = vshll.u32 %v2148, 16
      %v2212 = vrot.slane %v2210, 4
      %v2213 = vor.u32 %v2209, %v2212
      %v2214 = vsel %vm1674, %v2204, %v2213
      %v2216 = vshrl.u32 %v2149, 16
      %v2218 = vrot.slane %v2216, 3
      %v2219 = vshll.u32 %v2149, 16
      %v2221 = vrot.slane %v2219, 4
      %v2222 = vor.u32 %v2218, %v2221
      %v2223 = vsel %vm1674, %v2213, %v2222
      %v2225 = vshrl.u32 %v2150, 16
      %v2227 = vrot.slane %v2225, 3
      %v2228 = vshll.u32 %v2150, 16
      %v2230 = vrot.slane %v2228, 4
      %v2231 = vor.u32 %v2227, %v2230
      %v2232 = vsel %vm1674, %v2222, %v2231
      %v2234 = vshrl.u32 %v2151, 16
      %v2236 = vrot.slane %v2234, 3
      %v2237 = vshll.u32 %v2151, 16
      %v2239 = vrot.slane %v2237, 4
      %v2240 = vor.u32 %v2236, %v2239
      %v2241 = vsel %vm1674, %v2231, %v2240
      %v2243 = vshrl.u32 %v2152, 16
      %v2245 = vrot.slane %v2243, 3
      %v2246 = vshll.u32 %v2152, 16
      %v2248 = vrot.slane %v2246, 4
      %v2249 = vor.u32 %v2245, %v2248
      %v2250 = vsel %vm1674, %v2240, %v2249
      %v2252 = vshrl.u32 %v2153, 16
      %v2254 = vrot.slane %v2252, 3
      %v2255 = vshll.u32 %v2153, 16
      %v2257 = vrot.slane %v2255, 4
      %v2258 = vor.u32 %v2254, %v2257
      %v2259 = vsel %vm1674, %v2249, %v2258
      %v2261 = vshrl.u32 %v2154, 16
      %v2263 = vrot.slane %v2261, 3
      %v2264 = vshll.u32 %v2154, 16
      %v2266 = vrot.slane %v2264, 4
      %v2267 = vor.u32 %v2263, %v2266
      %v2268 = vsel %vm1674, %v2258, %v2267
      %v2270 = vshrl.u32 %v2155, 16
      %v2272 = vrot.slane %v2270, 3
      %v2273 = vshll.u32 %v2155, 16
      %v2275 = vrot.slane %v2273, 4
      %v2276 = vor.u32 %v2272, %v2275
      %v2277 = vsel %vm1674, %v2267, %v2276
      %v2279 = vshrl.u32 %v2156, 16
      %v2281 = vrot.slane %v2279, 3
      %v2282 = vshll.u32 %v2156, 16
      %v2284 = vrot.slane %v2282, 4
      %v2285 = vor.u32 %v2281, %v2284
      %v2286 = vsel %vm1674, %v2276, %v2285
      %v2288 = vshrl.u32 %v2157, 16
      %v2290 = vrot.slane %v2288, 3
      %v2291 = vshll.u32 %v2157, 16
      %v2293 = vrot.slane %v2291, 4
      %v2294 = vor.u32 %v2290, %v2293
      %v2295 = vsel %vm1674, %v2285, %v2294
      %v2297 = vshrl.u32 %v2158, 16
      %v2299 = vrot.slane %v2297, 3
      %v2300 = vshll.u32 %v2158, 16
      %v2302 = vrot.slane %v2300, 4
      %v2303 = vor.u32 %v2299, %v2302
      %v2304 = vsel %vm1674, %v2294, %v2303
      %v2306 = vshrl.u32 %v2159, 16
      %v2308 = vrot.slane %v2306, 3
      %v2309 = vshll.u32 %v2159, 16
      %v2311 = vrot.slane %v2309, 4
      %v2312 = vor.u32 %v2308, %v2311
      %v2313 = vsel %vm1674, %v2303, %v2312
      %v2315 = vshrl.u32 %v2160, 16
      %v2317 = vrot.slane %v2315, 3
      %v2318 = vshll.u32 %v2160, 16
      %v2320 = vrot.slane %v2318, 4
      %v2321 = vor.u32 %v2317, %v2320
      %v2322 = vsel %vm1674, %v2312, %v2321
      %v2324 = vshrl.u32 %v2161, 16
      %v2326 = vrot.slane %v2324, 3
      %v2327 = vshll.u32 %v2161, 16
      %v2329 = vrot.slane %v2327, 4
      %v2330 = vor.u32 %v2326, %v2329
      %v2331 = vsel %vm1674, %v2321, %v2330
      %v2333 = vsel %vm199, %v2178, 0
      %v2336 = vsel %vm199, %v2187, 0
      %v2339 = vsel %vm199, %v2196, 0
      %v2342 = vsel %vm199, %v2205, 0
      %v2345 = vsel %vm199, %v2214, 0
      %v2348 = vsel %vm199, %v2223, 0
      %v2351 = vsel %vm199, %v2232, 0
      %v2354 = vsel %vm199, %v2241, 0
      %v2357 = vsel %vm199, %v2250, 0
      %v2360 = vsel %vm199, %v2259, 0
      %v2363 = vsel %vm199, %v2268, 0
      %v2366 = vsel %vm199, %v2277, 0
      %v2369 = vsel %vm199, %v2286, 0
      %v2372 = vsel %vm199, %v2295, 0
      %v2375 = vsel %vm199, %v2304, 0
      %v2378 = vsel %vm199, %v2313, 0
      %v2381 = vsel %vm199, %v2322, 0
      %v2384 = vsel %vm199, %v2331, 0
      %v2387 = vsel %vm1079, %v2068, 0
      %2389 = vmatprep.subr.bf16.mxu0 0
      %2390 = vmatpush1.bf16.msra.mxu0 %v2387
      %2391 = vmatprep.subr.bf16.mxu0 0
      %2392 = vmatpush1.bf16.msra.mxu0 0
      %2393 = vmatprep.subr.bf16.mxu0 0
      %2394 = vmatpush1.bf16.msra.mxu0 0
      %2395 = vmatprep.subr.bf16.mxu0 0
      %2396 = vmatpush1.bf16.msra.mxu0 0
      %2397 = vmatprep.subr.bf16.mxu0 0
      %2398 = vmatpush1.bf16.msra.mxu0 0
      %2399 = vmatprep.subr.bf16.mxu0 0
      %2400 = vmatpush1.bf16.msra.mxu0 0
      %2401 = vmatprep.subr.bf16.mxu0 0
      %2402 = vmatpush1.bf16.msra.mxu0 0
      %2403 = vmatprep.subr.bf16.mxu0 0
      %2404 = vmatpush1.bf16.msra.mxu0 0
      %2405 = vmatprep.subr.bf16.mxu0 0
      %2406 = vmatpush1.bf16.msra.mxu0 0
      %2407 = vmatprep.subr.bf16.mxu0 0
      %2408 = vmatpush1.bf16.msra.mxu0 0
      %2409 = vmatprep.subr.bf16.mxu0 0
      %2410 = vmatpush1.bf16.msra.mxu0 0
      %2411 = vmatprep.subr.bf16.mxu0 0
      %2412 = vmatpush1.bf16.msra.mxu0 0
      %2413 = vmatprep.subr.bf16.mxu0 0
      %2414 = vmatpush1.bf16.msra.mxu0 0
      %2415 = vmatprep.subr.bf16.mxu0 0
      %2416 = vmatpush1.bf16.msra.mxu0 0
      %2417 = vmatprep.subr.bf16.mxu0 0
      %2418 = vmatpush1.bf16.msra.mxu0 0
      %2419 = vmatprep.subr.bf16.mxu0 0
      %2420 = vmatpush1.bf16.msra.mxu0 0
      %2421 = vmatprep.mubr.bf16.mxu0 0
      %2422 = vmatmul.mubr.bf16.gmra.mrb[0].mxu0 %v2333
      %v2423 = vpop.f32.mrb[0].mxu0
      %v2424 = vadd.f32 0.0, %v2423
      %v2425 = vpop.f32.mrb[0].mxu0
      %v2426 = vpop.f32.mrb[0].mxu0
      %v2427 = vadd.f32 0.0, %v2426
      %v2428 = vpop.f32.mrb[0].mxu0
      %2429 = vmatprep.mubr.bf16.mxu0 0
      %2430 = vmatmul.mubr.bf16.gmra.mrb[0].mxu0 %v2336
      %v2431 = vpop.f32.mrb[0].mxu0
      %v2432 = vadd.f32 0.0, %v2431
      %v2433 = vpop.f32.mrb[0].mxu0
      %v2434 = vpop.f32.mrb[0].mxu0
      %v2435 = vadd.f32 0.0, %v2434
      %v2436 = vpop.f32.mrb[0].mxu0
      %2437 = vmatprep.mubr.bf16.mxu0 0
      %2438 = vmatmul.mubr.bf16.gmra.mrb[0].mxu0 %v2339
      %v2439 = vpop.f32.mrb[0].mxu0
      %v2440 = vadd.f32 0.0, %v2439
      %v2441 = vpop.f32.mrb[0].mxu0
      %v2442 = vpop.f32.mrb[0].mxu0
      %v2443 = vadd.f32 0.0, %v2442
      %v2444 = vpop.f32.mrb[0].mxu0
      %2445 = vmatprep.mubr.bf16.mxu0 0
      %2446 = vmatmul.mubr.bf16.gmra.mrb[0].mxu0 %v2342
      %v2447 = vpop.f32.mrb[0].mxu0
      %v2448 = vadd.f32 0.0, %v2447
      %v2449 = vpop.f32.mrb[0].mxu0
      %v2450 = vpop.f32.mrb[0].mxu0
      %v2451 = vadd.f32 0.0, %v2450
      %v2452 = vpop.f32.mrb[0].mxu0
      %2453 = vmatprep.mubr.bf16.mxu0 0
      %2454 = vmatmul.mubr.bf16.gmra.mrb[0].mxu0 %v2345
      %v2455 = vpop.f32.mrb[0].mxu0
      %v2456 = vadd.f32 0.0, %v2455
      %v2457 = vpop.f32.mrb[0].mxu0
      %v2458 = vpop.f32.mrb[0].mxu0
      %v2459 = vadd.f32 0.0, %v2458
      %v2460 = vpop.f32.mrb[0].mxu0
      %2461 = vmatprep.mubr.bf16.mxu0 0
      %2462 = vmatmul.mubr.bf16.gmra.mrb[0].mxu0 %v2348
      %v2463 = vpop.f32.mrb[0].mxu0
      %v2464 = vadd.f32 0.0, %v2463
      %v2465 = vpop.f32.mrb[0].mxu0
      %v2466 = vpop.f32.mrb[0].mxu0
      %v2467 = vadd.f32 0.0, %v2466
      %v2468 = vpop.f32.mrb[0].mxu0
      %2469 = vmatprep.mubr.bf16.mxu0 0
      %2470 = vmatmul.mubr.bf16.gmra.mrb[0].mxu0 %v2351
      %v2471 = vpop.f32.mrb[0].mxu0
      %v2472 = vadd.f32 0.0, %v2471
      %v2473 = vpop.f32.mrb[0].mxu0
      %v2474 = vpop.f32.mrb[0].mxu0
      %v2475 = vadd.f32 0.0, %v2474
      %v2476 = vpop.f32.mrb[0].mxu0
      %2477 = vmatprep.mubr.bf16.mxu0 0
      %2478 = vmatmul.mubr.bf16.gmra.mrb[0].mxu0 %v2354
      %v2479 = vpop.f32.mrb[0].mxu0
      %v2480 = vadd.f32 0.0, %v2479
      %v2481 = vpop.f32.mrb[0].mxu0
      %v2482 = vpop.f32.mrb[0].mxu0
      %v2483 = vadd.f32 0.0, %v2482
      %v2484 = vpop.f32.mrb[0].mxu0
      %2485 = vmatprep.mubr.bf16.mxu0 0
      %2486 = vmatmul.mubr.bf16.gmra.mrb[0].mxu0 %v2357
      %v2487 = vpop.f32.mrb[0].mxu0
      %v2488 = vadd.f32 0.0, %v2487
      %v2489 = vpop.f32.mrb[0].mxu0
      %v2490 = vpop.f32.mrb[0].mxu0
      %v2491 = vadd.f32 0.0, %v2490
      %v2492 = vpop.f32.mrb[0].mxu0
      %2493 = vmatprep.mubr.bf16.mxu0 0
      %2494 = vmatmul.mubr.bf16.gmra.mrb[0].mxu0 %v2360
      %v2495 = vpop.f32.mrb[0].mxu0
      %v2496 = vadd.f32 0.0, %v2495
      %v2497 = vpop.f32.mrb[0].mxu0
      %v2498 = vpop.f32.mrb[0].mxu0
      %v2499 = vadd.f32 0.0, %v2498
      %v2500 = vpop.f32.mrb[0].mxu0
      %2501 = vmatprep.mubr.bf16.mxu0 0
      %2502 = vmatmul.mubr.bf16.gmra.mrb[0].mxu0 %v2363
      %v2503 = vpop.f32.mrb[0].mxu0
      %v2504 = vadd.f32 0.0, %v2503
      %v2505 = vpop.f32.mrb[0].mxu0
      %v2506 = vpop.f32.mrb[0].mxu0
      %v2507 = vadd.f32 0.0, %v2506
      %v2508 = vpop.f32.mrb[0].mxu0
      %2509 = vmatprep.mubr.bf16.mxu0 0
      %2510 = vmatmul.mubr.bf16.gmra.mrb[0].mxu0 %v2366
      %v2511 = vpop.f32.mrb[0].mxu0
      %v2512 = vadd.f32 0.0, %v2511
      %v2513 = vpop.f32.mrb[0].mxu0
      %v2514 = vpop.f32.mrb[0].mxu0
      %v2515 = vadd.f32 0.0, %v2514
      %v2516 = vpop.f32.mrb[0].mxu0
      %2517 = vmatprep.mubr.bf16.mxu0 0
      %2518 = vmatmul.mubr.bf16.gmra.mrb[0].mxu0 %v2369
      %v2519 = vpop.f32.mrb[0].mxu0
      %v2520 = vadd.f32 0.0, %v2519
      %v2521 = vpop.f32.mrb[0].mxu0
      %v2522 = vpop.f32.mrb[0].mxu0
      %v2523 = vadd.f32 0.0, %v2522
      %v2524 = vpop.f32.mrb[0].mxu0
      %2525 = vmatprep.mubr.bf16.mxu0 0
      %2526 = vmatmul.mubr.bf16.gmra.mrb[0].mxu0 %v2372
      %v2527 = vpop.f32.mrb[0].mxu0
      %v2528 = vadd.f32 0.0, %v2527
      %v2529 = vpop.f32.mrb[0].mxu0
      %v2530 = vpop.f32.mrb[0].mxu0
      %v2531 = vadd.f32 0.0, %v2530
      %v2532 = vpop.f32.mrb[0].mxu0
      %2533 = vmatprep.mubr.bf16.mxu0 0
      %2534 = vmatmul.mubr.bf16.gmra.mrb[0].mxu0 %v2375
      %v2535 = vpop.f32.mrb[0].mxu0
      %v2536 = vadd.f32 0.0, %v2535
      %v2537 = vpop.f32.mrb[0].mxu0
      %v2538 = vpop.f32.mrb[0].mxu0
      %v2539 = vadd.f32 0.0, %v2538
      %v2540 = vpop.f32.mrb[0].mxu0
      %2541 = vmatprep.mubr.bf16.mxu0 0
      %2542 = vmatmul.mubr.bf16.gmra.mrb[0].mxu0 %v2378
      %v2543 = vpop.f32.mrb[0].mxu0
      %v2544 = vadd.f32 0.0, %v2543
      %v2545 = vpop.f32.mrb[0].mxu0
      %v2546 = vpop.f32.mrb[0].mxu0
      %v2547 = vadd.f32 0.0, %v2546
      %v2548 = vpop.f32.mrb[0].mxu0
      %2549 = vmatprep.mubr.bf16.mxu0 0
      %2550 = vmatmul.mubr.bf16.gmra.mrb[0].mxu0 %v2381
      %v2551 = vpop.f32.mrb[0].mxu0
      %v2552 = vadd.f32 0.0, %v2551
      %v2553 = vpop.f32.mrb[0].mxu0
      %v2554 = vpop.f32.mrb[0].mxu0
      %v2555 = vadd.f32 0.0, %v2554
      %v2556 = vpop.f32.mrb[0].mxu0
      %2557 = vmatprep.mubr.bf16.mxu0 0
      %2558 = vmatmul.mubr.bf16.gmra.mrb[0].mxu0 %v2384
      %v2559 = vpop.f32.mrb[0].mxu0
      %v2560 = vadd.f32 0.0, %v2559
      %v2561 = vpop.f32.mrb[0].mxu0
      %v2562 = vpop.f32.mrb[0].mxu0
      %v2563 = vadd.f32 0.0, %v2562
      %v2564 = vpop.f32.mrb[0].mxu0
      %2565 = vdwg.mxu0
      %v2566 = vadd.f32 %v1994, %v2424
      %v2567 = vadd.f32 %v1995, %v2427
      %v2568 = vadd.f32 %v1996, %v2432
      %v2569 = vadd.f32 %v1997, %v2435
      %v2570 = vadd.f32 %v1998, %v2440
      %v2571 = vadd.f32 %v1999, %v2443
      %v2572 = vadd.f32 %v2000, %v2448
      %v2573 = vadd.f32 %v2001, %v2451
      %v2574 = vadd.f32 %v2002, %v2456
      %v2575 = vadd.f32 %v2003, %v2459
      %v2576 = vadd.f32 %v2004, %v2464
      %v2577 = vadd.f32 %v2005, %v2467
      %v2578 = vadd.f32 %v2006, %v2472
      %v2579 = vadd.f32 %v2007, %v2475
      %v2580 = vadd.f32 %v2008, %v2480
      %v2581 = vadd.f32 %v2009, %v2483
      %v2582 = vadd.f32 %v2010, %v2488
      %v2583 = vadd.f32 %v2011, %v2491
      %v2584 = vadd.f32 %v2012, %v2496
      %v2585 = vadd.f32 %v2013, %v2499
      %v2586 = vadd.f32 %v2014, %v2504
      %v2587 = vadd.f32 %v2015, %v2507
      %v2588 = vadd.f32 %v2016, %v2512
      %v2589 = vadd.f32 %v2017, %v2515
      %v2590 = vadd.f32 %v2018, %v2520
      %v2591 = vadd.f32 %v2019, %v2523
      %v2592 = vadd.f32 %v2020, %v2528
      %v2593 = vadd.f32 %v2021, %v2531
      %v2594 = vadd.f32 %v2022, %v2536
      %v2595 = vadd.f32 %v2023, %v2539
      %v2596 = vadd.f32 %v2024, %v2544
      %v2597 = vadd.f32 %v2025, %v2547
      %v2598 = vadd.f32 %v2026, %v2552
      %v2599 = vadd.f32 %v2027, %v2555
      %v2600 = vadd.f32 %v2028, %v2560
      %v2601 = vadd.f32 %v2029, %v2563
      %s2602 = scalar_lea.vmem %s1, 16
      %v2603 = vld [vmem:[%s2602] sm:$0xf]
      %v2604 = vpack.c.b16 %v2108, %v2107
      %v2605 = vpack.c.b16 %v2110, %v2109
      %v2606 = vpack.c.b16 %v2112, %v2111
      %v2607 = vpack.c.b16 %v2114, %v2113
      %v2608 = vpack.c.b16 %v2116, %v2115
      %v2609 = vpack.c.b16 %v2118, %v2117
      %v2610 = vpack.c.b16 %v2120, %v2119
      %v2611 = vpack.c.b16 %v2122, %v2121
      %v2612 = vpack.c.b16 %v2124, %v2123
      %v2613 = vpack.c.b16 %v2126, %v2125
      %v2614 = vpack.c.b16 %v2128, %v2127
      %v2615 = vpack.c.b16 %v2130, %v2129
      %v2616 = vpack.c.b16 %v2132, %v2131
      %v2617 = vpack.c.b16 %v2134, %v2133
      %v2618 = vpack.c.b16 %v2136, %v2135
      %v2619 = vpack.c.b16 %v2138, %v2137
      %v2620 = vpack.c.b16 %v2140, %v2139
      %v2621 = vpack.c.b16 %v2142, %v2141
      %v2623 = vsel %vm199, %v2604, 0
      %v2626 = vsel %vm199, %v2605, 0
      %v2629 = vsel %vm199, %v2606, 0
      %v2632 = vsel %vm199, %v2607, 0
      %v2635 = vsel %vm199, %v2608, 0
      %v2638 = vsel %vm199, %v2609, 0
      %v2641 = vsel %vm199, %v2610, 0
      %v2644 = vsel %vm199, %v2611, 0
      %v2647 = vsel %vm199, %v2612, 0
      %v2650 = vsel %vm199, %v2613, 0
      %v2653 = vsel %vm199, %v2614, 0
      %v2656 = vsel %vm199, %v2615, 0
      %v2659 = vsel %vm199, %v2616, 0
      %v2662 = vsel %vm199, %v2617, 0
      %v2665 = vsel %vm199, %v2618, 0
      %v2668 = vsel %vm199, %v2619, 0
      %v2671 = vsel %vm199, %v2620, 0
      %v2674 = vsel %vm199, %v2621, 0
      %v2677 = vsel %vm1079, %v2603, 0
      %2679 = vmatprep.subr.bf16.mxu0 0
      %2680 = vmatpush1.bf16.msra.mxu0 %v2677
      %2681 = vmatprep.subr.bf16.mxu0 0
      %2682 = vmatpush1.bf16.msra.mxu0 0
      %2683 = vmatprep.subr.bf16.mxu0 0
      %2684 = vmatpush1.bf16.msra.mxu0 0
      %2685 = vmatprep.subr.bf16.mxu0 0
      %2686 = vmatpush1.bf16.msra.mxu0 0
      %2687 = vmatprep.subr.bf16.mxu0 0
      %2688 = vmatpush1.bf16.msra.mxu0 0
      %2689 = vmatprep.subr.bf16.mxu0 0
      %2690 = vmatpush1.bf16.msra.mxu0 0
      %2691 = vmatprep.subr.bf16.mxu0 0
      %2692 = vmatpush1.bf16.msra.mxu0 0
      %2693 = vmatprep.subr.bf16.mxu0 0
      %2694 = vmatpush1.bf16.msra.mxu0 0
      %2695 = vmatprep.subr.bf16.mxu0 0
      %2696 = vmatpush1.bf16.msra.mxu0 0
      %2697 = vmatprep.subr.bf16.mxu0 0
      %2698 = vmatpush1.bf16.msra.mxu0 0
      %2699 = vmatprep.subr.bf16.mxu0 0
      %2700 = vmatpush1.bf16.msra.mxu0 0
      %2701 = vmatprep.subr.bf16.mxu0 0
      %2702 = vmatpush1.bf16.msra.mxu0 0
      %2703 = vmatprep.subr.bf16.mxu0 0
      %2704 = vmatpush1.bf16.msra.mxu0 0
      %2705 = vmatprep.subr.bf16.mxu0 0
      %2706 = vmatpush1.bf16.msra.mxu0 0
      %2707 = vmatprep.subr.bf16.mxu0 0
      %2708 = vmatpush1.bf16.msra.mxu0 0
      %2709 = vmatprep.subr.bf16.mxu0 0
      %2710 = vmatpush1.bf16.msra.mxu0 0
      %2711 = vmatprep.mubr.bf16.mxu0 0
      %2712 = vmatmul.mubr.bf16.gmra.mrb[0].mxu0 %v2623
      %v2713 = vpop.f32.mrb[0].mxu0
      %v2714 = vadd.f32 0.0, %v2713
      %v2715 = vpop.f32.mrb[0].mxu0
      %v2716 = vpop.f32.mrb[0].mxu0
      %v2717 = vadd.f32 0.0, %v2716
      %v2718 = vpop.f32.mrb[0].mxu0
      %2719 = vmatprep.mubr.bf16.mxu0 0
      %2720 = vmatmul.mubr.bf16.gmra.mrb[0].mxu0 %v2626
      %v2721 = vpop.f32.mrb[0].mxu0
      %v2722 = vadd.f32 0.0, %v2721
      %v2723 = vpop.f32.mrb[0].mxu0
      %v2724 = vpop.f32.mrb[0].mxu0
      %v2725 = vadd.f32 0.0, %v2724
      %v2726 = vpop.f32.mrb[0].mxu0
      %2727 = vmatprep.mubr.bf16.mxu0 0
      %2728 = vmatmul.mubr.bf16.gmra.mrb[0].mxu0 %v2629
      %v2729 = vpop.f32.mrb[0].mxu0
      %v2730 = vadd.f32 0.0, %v2729
      %v2731 = vpop.f32.mrb[0].mxu0
      %v2732 = vpop.f32.mrb[0].mxu0
      %v2733 = vadd.f32 0.0, %v2732
      %v2734 = vpop.f32.mrb[0].mxu0
      %2735 = vmatprep.mubr.bf16.mxu0 0
      %2736 = vmatmul.mubr.bf16.gmra.mrb[0].mxu0 %v2632
      %v2737 = vpop.f32.mrb[0].mxu0
      %v2738 = vadd.f32 0.0, %v2737
      %v2739 = vpop.f32.mrb[0].mxu0
      %v2740 = vpop.f32.mrb[0].mxu0
      %v2741 = vadd.f32 0.0, %v2740
      %v2742 = vpop.f32.mrb[0].mxu0
      %2743 = vmatprep.mubr.bf16.mxu0 0
      %2744 = vmatmul.mubr.bf16.gmra.mrb[0].mxu0 %v2635
      %v2745 = vpop.f32.mrb[0].mxu0
      %v2746 = vadd.f32 0.0, %v2745
      %v2747 = vpop.f32.mrb[0].mxu0
      %v2748 = vpop.f32.mrb[0].mxu0
      %v2749 = vadd.f32 0.0, %v2748
      %v2750 = vpop.f32.mrb[0].mxu0
      %2751 = vmatprep.mubr.bf16.mxu0 0
      %2752 = vmatmul.mubr.bf16.gmra.mrb[0].mxu0 %v2638
      %v2753 = vpop.f32.mrb[0].mxu0
      %v2754 = vadd.f32 0.0, %v2753
      %v2755 = vpop.f32.mrb[0].mxu0
      %v2756 = vpop.f32.mrb[0].mxu0
      %v2757 = vadd.f32 0.0, %v2756
      %v2758 = vpop.f32.mrb[0].mxu0
      %2759 = vmatprep.mubr.bf16.mxu0 0
      %2760 = vmatmul.mubr.bf16.gmra.mrb[0].mxu0 %v2641
      %v2761 = vpop.f32.mrb[0].mxu0
      %v2762 = vadd.f32 0.0, %v2761
      %v2763 = vpop.f32.mrb[0].mxu0
      %v2764 = vpop.f32.mrb[0].mxu0
      %v2765 = vadd.f32 0.0, %v2764
      %v2766 = vpop.f32.mrb[0].mxu0
      %2767 = vmatprep.mubr.bf16.mxu0 0
      %2768 = vmatmul.mubr.bf16.gmra.mrb[0].mxu0 %v2644
      %v2769 = vpop.f32.mrb[0].mxu0
      %v2770 = vadd.f32 0.0, %v2769
      %v2771 = vpop.f32.mrb[0].mxu0
      %v2772 = vpop.f32.mrb[0].mxu0
      %v2773 = vadd.f32 0.0, %v2772
      %v2774 = vpop.f32.mrb[0].mxu0
      %2775 = vmatprep.mubr.bf16.mxu0 0
      %2776 = vmatmul.mubr.bf16.gmra.mrb[0].mxu0 %v2647
      %v2777 = vpop.f32.mrb[0].mxu0
      %v2778 = vadd.f32 0.0, %v2777
      %v2779 = vpop.f32.mrb[0].mxu0
      %v2780 = vpop.f32.mrb[0].mxu0
      %v2781 = vadd.f32 0.0, %v2780
      %v2782 = vpop.f32.mrb[0].mxu0
      %2783 = vmatprep.mubr.bf16.mxu0 0
      %2784 = vmatmul.mubr.bf16.gmra.mrb[0].mxu0 %v2650
      %v2785 = vpop.f32.mrb[0].mxu0
      %v2786 = vadd.f32 0.0, %v2785
      %v2787 = vpop.f32.mrb[0].mxu0
      %v2788 = vpop.f32.mrb[0].mxu0
      %v2789 = vadd.f32 0.0, %v2788
      %v2790 = vpop.f32.mrb[0].mxu0
      %2791 = vmatprep.mubr.bf16.mxu0 0
      %2792 = vmatmul.mubr.bf16.gmra.mrb[0].mxu0 %v2653
      %v2793 = vpop.f32.mrb[0].mxu0
      %v2794 = vadd.f32 0.0, %v2793
      %v2795 = vpop.f32.mrb[0].mxu0
      %v2796 = vpop.f32.mrb[0].mxu0
      %v2797 = vadd.f32 0.0, %v2796
      %v2798 = vpop.f32.mrb[0].mxu0
      %2799 = vmatprep.mubr.bf16.mxu0 0
      %2800 = vmatmul.mubr.bf16.gmra.mrb[0].mxu0 %v2656
      %v2801 = vpop.f32.mrb[0].mxu0
      %v2802 = vadd.f32 0.0, %v2801
      %v2803 = vpop.f32.mrb[0].mxu0
      %v2804 = vpop.f32.mrb[0].mxu0
      %v2805 = vadd.f32 0.0, %v2804
      %v2806 = vpop.f32.mrb[0].mxu0
      %2807 = vmatprep.mubr.bf16.mxu0 0
      %2808 = vmatmul.mubr.bf16.gmra.mrb[0].mxu0 %v2659
      %v2809 = vpop.f32.mrb[0].mxu0
      %v2810 = vadd.f32 0.0, %v2809
      %v2811 = vpop.f32.mrb[0].mxu0
      %v2812 = vpop.f32.mrb[0].mxu0
      %v2813 = vadd.f32 0.0, %v2812
      %v2814 = vpop.f32.mrb[0].mxu0
      %2815 = vmatprep.mubr.bf16.mxu0 0
      %2816 = vmatmul.mubr.bf16.gmra.mrb[0].mxu0 %v2662
      %v2817 = vpop.f32.mrb[0].mxu0
      %v2818 = vadd.f32 0.0, %v2817
      %v2819 = vpop.f32.mrb[0].mxu0
      %v2820 = vpop.f32.mrb[0].mxu0
      %v2821 = vadd.f32 0.0, %v2820
      %v2822 = vpop.f32.mrb[0].mxu0
      %2823 = vmatprep.mubr.bf16.mxu0 0
      %2824 = vmatmul.mubr.bf16.gmra.mrb[0].mxu0 %v2665
      %v2825 = vpop.f32.mrb[0].mxu0
      %v2826 = vadd.f32 0.0, %v2825
      %v2827 = vpop.f32.mrb[0].mxu0
      %v2828 = vpop.f32.mrb[0].mxu0
      %v2829 = vadd.f32 0.0, %v2828
      %v2830 = vpop.f32.mrb[0].mxu0
      %2831 = vmatprep.mubr.bf16.mxu0 0
      %2832 = vmatmul.mubr.bf16.gmra.mrb[0].mxu0 %v2668
      %v2833 = vpop.f32.mrb[0].mxu0
      %v2834 = vadd.f32 0.0, %v2833
      %v2835 = vpop.f32.mrb[0].mxu0
      %v2836 = vpop.f32.mrb[0].mxu0
      %v2837 = vadd.f32 0.0, %v2836
      %v2838 = vpop.f32.mrb[0].mxu0
      %2839 = vmatprep.mubr.bf16.mxu0 0
      %2840 = vmatmul.mubr.bf16.gmra.mrb[0].mxu0 %v2671
      %v2841 = vpop.f32.mrb[0].mxu0
      %v2842 = vadd.f32 0.0, %v2841
      %v2843 = vpop.f32.mrb[0].mxu0
      %v2844 = vpop.f32.mrb[0].mxu0
      %v2845 = vadd.f32 0.0, %v2844
      %v2846 = vpop.f32.mrb[0].mxu0
      %2847 = vmatprep.mubr.bf16.mxu0 0
      %2848 = vmatmul.mubr.bf16.gmra.mrb[0].mxu0 %v2674
      %v2849 = vpop.f32.mrb[0].mxu0
      %v2850 = vadd.f32 0.0, %v2849
      %v2851 = vpop.f32.mrb[0].mxu0
      %v2852 = vpop.f32.mrb[0].mxu0
      %v2853 = vadd.f32 0.0, %v2852
      %v2854 = vpop.f32.mrb[0].mxu0
      %2855 = vdwg.mxu0
      %v2856 = vadd.f32 %v2566, %v2714
      %v2857 = vadd.f32 %v2567, %v2717
      %v2858 = vadd.f32 %v2568, %v2722
      %v2859 = vadd.f32 %v2569, %v2725
      %v2860 = vadd.f32 %v2570, %v2730
      %v2861 = vadd.f32 %v2571, %v2733
      %v2862 = vadd.f32 %v2572, %v2738
      %v2863 = vadd.f32 %v2573, %v2741
      %v2864 = vadd.f32 %v2574, %v2746
      %v2865 = vadd.f32 %v2575, %v2749
      %v2866 = vadd.f32 %v2576, %v2754
      %v2867 = vadd.f32 %v2577, %v2757
      %v2868 = vadd.f32 %v2578, %v2762
      %v2869 = vadd.f32 %v2579, %v2765
      %v2870 = vadd.f32 %v2580, %v2770
      %v2871 = vadd.f32 %v2581, %v2773
      %v2872 = vadd.f32 %v2582, %v2778
      %v2873 = vadd.f32 %v2583, %v2781
      %v2874 = vadd.f32 %v2584, %v2786
      %v2875 = vadd.f32 %v2585, %v2789
      %v2876 = vadd.f32 %v2586, %v2794
      %v2877 = vadd.f32 %v2587, %v2797
      %v2878 = vadd.f32 %v2588, %v2802
      %v2879 = vadd.f32 %v2589, %v2805
      %v2880 = vadd.f32 %v2590, %v2810
      %v2881 = vadd.f32 %v2591, %v2813
      %v2882 = vadd.f32 %v2592, %v2818
      %v2883 = vadd.f32 %v2593, %v2821
      %v2884 = vadd.f32 %v2594, %v2826
      %v2885 = vadd.f32 %v2595, %v2829
      %v2886 = vadd.f32 %v2596, %v2834
      %v2887 = vadd.f32 %v2597, %v2837
      %v2888 = vadd.f32 %v2598, %v2842
      %v2889 = vadd.f32 %v2599, %v2845
      %v2890 = vadd.f32 %v2600, %v2850
      %v2891 = vadd.f32 %v2601, %v2853
      %v2892 = vld [vmem:[%s192 + $0x10] sm:$0xf]
      %v2893 = vld [vmem:[%s192 + $0x14] sm:$0xf]
      %v2894 = vld [vmem:[%s192 + $0x18] sm:$0xf]
      %v2895 = vld [vmem:[%s192 + $0x1c] sm:$0xf]
      %v2896 = vld [vmem:[%s192 + $0x20] sm:$0xf]
      %v2897 = vld [vmem:[%s192 + $0x24] sm:$0xf]
      %v2898 = vld [vmem:[%s192 + $0x28] sm:$0xf]
      %v2899 = vld [vmem:[%s192 + $0x2c] sm:$0xf]
      %v2900 = vld [vmem:[%s192 + $0x30] sm:$0xf]
      %v2901 = vld [vmem:[%s192 + $0x34] sm:$0xf]
      %v2902 = vld [vmem:[%s192 + $0x38] sm:$0xf]
      %v2903 = vld [vmem:[%s192 + $0x3c] sm:$0xf]
      %v2904 = vld [vmem:[%s192 + $0x40] sm:$0xf]
      %v2905 = vld [vmem:[%s192 + $0x44] sm:$0xf]
      %v2906 = vld [vmem:[%s192 + $0x48] sm:$0xf]
      %v2907 = vld [vmem:[%s192 + $0x4c] sm:$0xf]
      %v2908 = vld [vmem:[%s192 + $0x50] sm:$0xf]
      %v2909 = vld [vmem:[%s192 + $0x54] sm:$0xf]
      %v2910 = vld [vmem:[%s192 + $0x58] sm:$0xf]
      %v2911 = vld [vmem:[%s192 + $0x5c] sm:$0xf]
      %v2912 = vld [vmem:[%s192 + $0x60] sm:$0xf]
      %v2913 = vld [vmem:[%s192 + $0x64] sm:$0xf]
      %v2914 = vld [vmem:[%s192 + $0x68] sm:$0xf]
      %v2915 = vld [vmem:[%s192 + $0x6c] sm:$0xf]
      %v2916 = vld [vmem:[%s192 + $0x70] sm:$0xf]
      %v2917 = vld [vmem:[%s192 + $0x74] sm:$0xf]
      %v2918 = vld [vmem:[%s192 + $0x78] sm:$0xf]
      %v2919 = vld [vmem:[%s192 + $0x7c] sm:$0xf]
      %v2920 = vld [vmem:[%s192 + $0x80] sm:$0xf]
      %v2921 = vld [vmem:[%s192 + $0x84] sm:$0xf]
      %v2922 = vld [vmem:[%s192 + $0x88] sm:$0xf]
      %v2923 = vld [vmem:[%s192 + $0x8c] sm:$0xf]
      %v2924 = vld [vmem:[%s192 + $0x90] sm:$0xf]
      %v2925 = vld [vmem:[%s192 + $0x94] sm:$0xf]
      %v2926 = vld [vmem:[%s192 + $0x98] sm:$0xf]
      %v2927 = vld [vmem:[%s192 + $0x9c] sm:$0xf]
      %v2928 = vld [vmem:[%s192 + $0xa0] sm:$0x1]
      %s2929 = scalar_lea.vmem %s1, 20
      %v2930 = vld [vmem:[%s2929] sm:$0xf]
      %v2968 = vunpack.c.l.b16 %v2892
      %v2969 = vunpack.c.l.b16 %v2893
      %v2970 = vunpack.c.l.b16 %v2894
      %v2971 = vunpack.c.l.b16 %v2895
      %v2972 = vunpack.c.l.b16 %v2896
      %v2973 = vunpack.c.l.b16 %v2897
      %v2974 = vunpack.c.l.b16 %v2898
      %v2975 = vunpack.c.l.b16 %v2899
      %v2976 = vunpack.c.l.b16 %v2900
      %v2977 = vunpack.c.l.b16 %v2901
      %v2978 = vunpack.c.l.b16 %v2902
      %v2979 = vunpack.c.l.b16 %v2903
      %v2980 = vunpack.c.l.b16 %v2904
      %v2981 = vunpack.c.l.b16 %v2905
      %v2982 = vunpack.c.l.b16 %v2906
      %v2983 = vunpack.c.l.b16 %v2907
      %v2984 = vunpack.c.l.b16 %v2908
      %v2985 = vunpack.c.l.b16 %v2909
      %v2986 = vunpack.c.l.b16 %v2910
      %v2987 = vunpack.c.l.b16 %v2911
      %v2988 = vunpack.c.l.b16 %v2912
      %v2989 = vunpack.c.l.b16 %v2913
      %v2990 = vunpack.c.l.b16 %v2914
      %v2991 = vunpack.c.l.b16 %v2915
      %v2992 = vunpack.c.l.b16 %v2916
      %v2993 = vunpack.c.l.b16 %v2917
      %v2994 = vunpack.c.l.b16 %v2918
      %v2995 = vunpack.c.l.b16 %v2919
      %v2996 = vunpack.c.l.b16 %v2920
      %v2997 = vunpack.c.l.b16 %v2921
      %v2998 = vunpack.c.l.b16 %v2922
      %v2999 = vunpack.c.l.b16 %v2923
      %v3000 = vunpack.c.l.b16 %v2924
      %v3001 = vunpack.c.l.b16 %v2925
      %v3002 = vunpack.c.l.b16 %v2926
      %v3003 = vunpack.c.l.b16 %v2927
      %v3004 = vunpack.c.l.b16 %v2928
      %v3005 = vpack.c.b16 %v2969, %v2968
      %v3006 = vpack.c.b16 %v2971, %v2970
      %v3007 = vpack.c.b16 %v2973, %v2972
      %v3008 = vpack.c.b16 %v2975, %v2974
      %v3009 = vpack.c.b16 %v2977, %v2976
      %v3010 = vpack.c.b16 %v2979, %v2978
      %v3011 = vpack.c.b16 %v2981, %v2980
      %v3012 = vpack.c.b16 %v2983, %v2982
      %v3013 = vpack.c.b16 %v2985, %v2984
      %v3014 = vpack.c.b16 %v2987, %v2986
      %v3015 = vpack.c.b16 %v2989, %v2988
      %v3016 = vpack.c.b16 %v2991, %v2990
      %v3017 = vpack.c.b16 %v2993, %v2992
      %v3018 = vpack.c.b16 %v2995, %v2994
      %v3019 = vpack.c.b16 %v2997, %v2996
      %v3020 = vpack.c.b16 %v2999, %v2998
      %v3021 = vpack.c.b16 %v3001, %v3000
      %v3022 = vpack.c.b16 %v3003, %v3002
      %v3023 = vpack.c.b16 %v3004, %v3004
      %vm3024 = vsmask.f32 7424
      %v3026 = vshrl.u32 %v3005, 16
      %v3028 = vshll.u32 %v3005, 16
      %v3030 = vrot.slane %v3028, 1
      %v3031 = vor.u32 %v3026, %v3030
      %v3033 = vshll.u32 %v3006, 16
      %v3035 = vrot.slane %v3033, 1
      %v3036 = vsel %vm3024, %v3031, %v3035
      %v3037 = vshrl.u32 %v3006, 16
      %v3039 = vor.u32 %v3037, %v3035
      %v3041 = vshll.u32 %v3007, 16
      %v3043 = vrot.slane %v3041, 1
      %v3044 = vsel %vm3024, %v3039, %v3043
      %v3045 = vshrl.u32 %v3007, 16
      %v3047 = vor.u32 %v3045, %v3043
      %v3049 = vshll.u32 %v3008, 16
      %v3051 = vrot.slane %v3049, 1
      %v3052 = vsel %vm3024, %v3047, %v3051
      %v3053 = vshrl.u32 %v3008, 16
      %v3055 = vor.u32 %v3053, %v3051
      %v3057 = vshll.u32 %v3009, 16
      %v3059 = vrot.slane %v3057, 1
      %v3060 = vsel %vm3024, %v3055, %v3059
      %v3061 = vshrl.u32 %v3009, 16
      %v3063 = vor.u32 %v3061, %v3059
      %v3065 = vshll.u32 %v3010, 16
      %v3067 = vrot.slane %v3065, 1
      %v3068 = vsel %vm3024, %v3063, %v3067
      %v3069 = vshrl.u32 %v3010, 16
      %v3071 = vor.u32 %v3069, %v3067
      %v3073 = vshll.u32 %v3011, 16
      %v3075 = vrot.slane %v3073, 1
      %v3076 = vsel %vm3024, %v3071, %v3075
      %v3077 = vshrl.u32 %v3011, 16
      %v3079 = vor.u32 %v3077, %v3075
      %v3081 = vshll.u32 %v3012, 16
      %v3083 = vrot.slane %v3081, 1
      %v3084 = vsel %vm3024, %v3079, %v3083
      %v3085 = vshrl.u32 %v3012, 16
      %v3087 = vor.u32 %v3085, %v3083
      %v3089 = vshll.u32 %v3013, 16
      %v3091 = vrot.slane %v3089, 1
      %v3092 = vsel %vm3024, %v3087, %v3091
      %v3093 = vshrl.u32 %v3013, 16
      %v3095 = vor.u32 %v3093, %v3091
      %v3097 = vshll.u32 %v3014, 16
      %v3099 = vrot.slane %v3097, 1
      %v3100 = vsel %vm3024, %v3095, %v3099
      %v3101 = vshrl.u32 %v3014, 16
      %v3103 = vor.u32 %v3101, %v3099
      %v3105 = vshll.u32 %v3015, 16
      %v3107 = vrot.slane %v3105, 1
      %v3108 = vsel %vm3024, %v3103, %v3107
      %v3109 = vshrl.u32 %v3015, 16
      %v3111 = vor.u32 %v3109, %v3107
      %v3113 = vshll.u32 %v3016, 16
      %v3115 = vrot.slane %v3113, 1
      %v3116 = vsel %vm3024, %v3111, %v3115
      %v3117 = vshrl.u32 %v3016, 16
      %v3119 = vor.u32 %v3117, %v3115
      %v3121 = vshll.u32 %v3017, 16
      %v3123 = vrot.slane %v3121, 1
      %v3124 = vsel %vm3024, %v3119, %v3123
      %v3125 = vshrl.u32 %v3017, 16
      %v3127 = vor.u32 %v3125, %v3123
      %v3129 = vshll.u32 %v3018, 16
      %v3131 = vrot.slane %v3129, 1
      %v3132 = vsel %vm3024, %v3127, %v3131
      %v3133 = vshrl.u32 %v3018, 16
      %v3135 = vor.u32 %v3133, %v3131
      %v3137 = vshll.u32 %v3019, 16
      %v3139 = vrot.slane %v3137, 1
      %v3140 = vsel %vm3024, %v3135, %v3139
      %v3141 = vshrl.u32 %v3019, 16
      %v3143 = vor.u32 %v3141, %v3139
      %v3145 = vshll.u32 %v3020, 16
      %v3147 = vrot.slane %v3145, 1
      %v3148 = vsel %vm3024, %v3143, %v3147
      %v3149 = vshrl.u32 %v3020, 16
      %v3151 = vor.u32 %v3149, %v3147
      %v3153 = vshll.u32 %v3021, 16
      %v3155 = vrot.slane %v3153, 1
      %v3156 = vsel %vm3024, %v3151, %v3155
      %v3157 = vshrl.u32 %v3021, 16
      %v3159 = vor.u32 %v3157, %v3155
      %v3161 = vshll.u32 %v3022, 16
      %v3163 = vrot.slane %v3161, 1
      %v3164 = vsel %vm3024, %v3159, %v3163
      %v3165 = vshrl.u32 %v3022, 16
      %v3167 = vor.u32 %v3165, %v3163
      %v3169 = vshll.u32 %v3023, 16
      %v3171 = vrot.slane %v3169, 1
      %v3172 = vsel %vm3024, %v3167, %v3171
      %v3174 = vsel %vm199, %v3036, 0
      %v3177 = vsel %vm199, %v3044, 0
      %v3180 = vsel %vm199, %v3052, 0
      %v3183 = vsel %vm199, %v3060, 0
      %v3186 = vsel %vm199, %v3068, 0
      %v3189 = vsel %vm199, %v3076, 0
      %v3192 = vsel %vm199, %v3084, 0
      %v3195 = vsel %vm199, %v3092, 0
      %v3198 = vsel %vm199, %v3100, 0
      %v3201 = vsel %vm199, %v3108, 0
      %v3204 = vsel %vm199, %v3116, 0
      %v3207 = vsel %vm199, %v3124, 0
      %v3210 = vsel %vm199, %v3132, 0
      %v3213 = vsel %vm199, %v3140, 0
      %v3216 = vsel %vm199, %v3148, 0
      %v3219 = vsel %vm199, %v3156, 0
      %v3222 = vsel %vm199, %v3164, 0
      %v3225 = vsel %vm199, %v3172, 0
      %v3228 = vsel %vm1079, %v2930, 0
      %3230 = vmatprep.subr.bf16.mxu0 0
      %3231 = vmatpush1.bf16.msra.mxu0 %v3228
      %3232 = vmatprep.subr.bf16.mxu0 0
      %3233 = vmatpush1.bf16.msra.mxu0 0
      %3234 = vmatprep.subr.bf16.mxu0 0
      %3235 = vmatpush1.bf16.msra.mxu0 0
      %3236 = vmatprep.subr.bf16.mxu0 0
      %3237 = vmatpush1.bf16.msra.mxu0 0
      %3238 = vmatprep.subr.bf16.mxu0 0
      %3239 = vmatpush1.bf16.msra.mxu0 0
      %3240 = vmatprep.subr.bf16.mxu0 0
      %3241 = vmatpush1.bf16.msra.mxu0 0
      %3242 = vmatprep.subr.bf16.mxu0 0
      %3243 = vmatpush1.bf16.msra.mxu0 0
      %3244 = vmatprep.subr.bf16.mxu0 0
      %3245 = vmatpush1.bf16.msra.mxu0 0
      %3246 = vmatprep.subr.bf16.mxu0 0
      %3247 = vmatpush1.bf16.msra.mxu0 0
      %3248 = vmatprep.subr.bf16.mxu0 0
      %3249 = vmatpush1.bf16.msra.mxu0 0
      %3250 = vmatprep.subr.bf16.mxu0 0
      %3251 = vmatpush1.bf16.msra.mxu0 0
      %3252 = vmatprep.subr.bf16.mxu0 0
      %3253 = vmatpush1.bf16.msra.mxu0 0
      %3254 = vmatprep.subr.bf16.mxu0 0
      %3255 = vmatpush1.bf16.msra.mxu0 0
      %3256 = vmatprep.subr.bf16.mxu0 0
      %3257 = vmatpush1.bf16.msra.mxu0 0
      %3258 = vmatprep.subr.bf16.mxu0 0
      %3259 = vmatpush1.bf16.msra.mxu0 0
      %3260 = vmatprep.subr.bf16.mxu0 0
      %3261 = vmatpush1.bf16.msra.mxu0 0
      %3262 = vmatprep.mubr.bf16.mxu0 0
      %3263 = vmatmul.mubr.bf16.gmra.mrb[0].mxu0 %v3174
      %v3264 = vpop.f32.mrb[0].mxu0
      %v3265 = vadd.f32 0.0, %v3264
      %v3266 = vpop.f32.mrb[0].mxu0
      %v3267 = vpop.f32.mrb[0].mxu0
      %v3268 = vadd.f32 0.0, %v3267
      %v3269 = vpop.f32.mrb[0].mxu0
      %3270 = vmatprep.mubr.bf16.mxu0 0
      %3271 = vmatmul.mubr.bf16.gmra.mrb[0].mxu0 %v3177
      %v3272 = vpop.f32.mrb[0].mxu0
      %v3273 = vadd.f32 0.0, %v3272
      %v3274 = vpop.f32.mrb[0].mxu0
      %v3275 = vpop.f32.mrb[0].mxu0
      %v3276 = vadd.f32 0.0, %v3275
      %v3277 = vpop.f32.mrb[0].mxu0
      %3278 = vmatprep.mubr.bf16.mxu0 0
      %3279 = vmatmul.mubr.bf16.gmra.mrb[0].mxu0 %v3180
      %v3280 = vpop.f32.mrb[0].mxu0
      %v3281 = vadd.f32 0.0, %v3280
      %v3282 = vpop.f32.mrb[0].mxu0
      %v3283 = vpop.f32.mrb[0].mxu0
      %v3284 = vadd.f32 0.0, %v3283
      %v3285 = vpop.f32.mrb[0].mxu0
      %3286 = vmatprep.mubr.bf16.mxu0 0
      %3287 = vmatmul.mubr.bf16.gmra.mrb[0].mxu0 %v3183
      %v3288 = vpop.f32.mrb[0].mxu0
      %v3289 = vadd.f32 0.0, %v3288
      %v3290 = vpop.f32.mrb[0].mxu0
      %v3291 = vpop.f32.mrb[0].mxu0
      %v3292 = vadd.f32 0.0, %v3291
      %v3293 = vpop.f32.mrb[0].mxu0
      %3294 = vmatprep.mubr.bf16.mxu0 0
      %3295 = vmatmul.mubr.bf16.gmra.mrb[0].mxu0 %v3186
      %v3296 = vpop.f32.mrb[0].mxu0
      %v3297 = vadd.f32 0.0, %v3296
      %v3298 = vpop.f32.mrb[0].mxu0
      %v3299 = vpop.f32.mrb[0].mxu0
      %v3300 = vadd.f32 0.0, %v3299
      %v3301 = vpop.f32.mrb[0].mxu0
      %3302 = vmatprep.mubr.bf16.mxu0 0
      %3303 = vmatmul.mubr.bf16.gmra.mrb[0].mxu0 %v3189
      %v3304 = vpop.f32.mrb[0].mxu0
      %v3305 = vadd.f32 0.0, %v3304
      %v3306 = vpop.f32.mrb[0].mxu0
      %v3307 = vpop.f32.mrb[0].mxu0
      %v3308 = vadd.f32 0.0, %v3307
      %v3309 = vpop.f32.mrb[0].mxu0
      %3310 = vmatprep.mubr.bf16.mxu0 0
      %3311 = vmatmul.mubr.bf16.gmra.mrb[0].mxu0 %v3192
      %v3312 = vpop.f32.mrb[0].mxu0
      %v3313 = vadd.f32 0.0, %v3312
      %v3314 = vpop.f32.mrb[0].mxu0
      %v3315 = vpop.f32.mrb[0].mxu0
      %v3316 = vadd.f32 0.0, %v3315
      %v3317 = vpop.f32.mrb[0].mxu0
      %3318 = vmatprep.mubr.bf16.mxu0 0
      %3319 = vmatmul.mubr.bf16.gmra.mrb[0].mxu0 %v3195
      %v3320 = vpop.f32.mrb[0].mxu0
      %v3321 = vadd.f32 0.0, %v3320
      %v3322 = vpop.f32.mrb[0].mxu0
      %v3323 = vpop.f32.mrb[0].mxu0
      %v3324 = vadd.f32 0.0, %v3323
      %v3325 = vpop.f32.mrb[0].mxu0
      %3326 = vmatprep.mubr.bf16.mxu0 0
      %3327 = vmatmul.mubr.bf16.gmra.mrb[0].mxu0 %v3198
      %v3328 = vpop.f32.mrb[0].mxu0
      %v3329 = vadd.f32 0.0, %v3328
      %v3330 = vpop.f32.mrb[0].mxu0
      %v3331 = vpop.f32.mrb[0].mxu0
      %v3332 = vadd.f32 0.0, %v3331
      %v3333 = vpop.f32.mrb[0].mxu0
      %3334 = vmatprep.mubr.bf16.mxu0 0
      %3335 = vmatmul.mubr.bf16.gmra.mrb[0].mxu0 %v3201
      %v3336 = vpop.f32.mrb[0].mxu0
      %v3337 = vadd.f32 0.0, %v3336
      %v3338 = vpop.f32.mrb[0].mxu0
      %v3339 = vpop.f32.mrb[0].mxu0
      %v3340 = vadd.f32 0.0, %v3339
      %v3341 = vpop.f32.mrb[0].mxu0
      %3342 = vmatprep.mubr.bf16.mxu0 0
      %3343 = vmatmul.mubr.bf16.gmra.mrb[0].mxu0 %v3204
      %v3344 = vpop.f32.mrb[0].mxu0
      %v3345 = vadd.f32 0.0, %v3344
      %v3346 = vpop.f32.mrb[0].mxu0
      %v3347 = vpop.f32.mrb[0].mxu0
      %v3348 = vadd.f32 0.0, %v3347
      %v3349 = vpop.f32.mrb[0].mxu0
      %3350 = vmatprep.mubr.bf16.mxu0 0
      %3351 = vmatmul.mubr.bf16.gmra.mrb[0].mxu0 %v3207
      %v3352 = vpop.f32.mrb[0].mxu0
      %v3353 = vadd.f32 0.0, %v3352
      %v3354 = vpop.f32.mrb[0].mxu0
      %v3355 = vpop.f32.mrb[0].mxu0
      %v3356 = vadd.f32 0.0, %v3355
      %v3357 = vpop.f32.mrb[0].mxu0
      %3358 = vmatprep.mubr.bf16.mxu0 0
      %3359 = vmatmul.mubr.bf16.gmra.mrb[0].mxu0 %v3210
      %v3360 = vpop.f32.mrb[0].mxu0
      %v3361 = vadd.f32 0.0, %v3360
      %v3362 = vpop.f32.mrb[0].mxu0
      %v3363 = vpop.f32.mrb[0].mxu0
      %v3364 = vadd.f32 0.0, %v3363
      %v3365 = vpop.f32.mrb[0].mxu0
      %3366 = vmatprep.mubr.bf16.mxu0 0
      %3367 = vmatmul.mubr.bf16.gmra.mrb[0].mxu0 %v3213
      %v3368 = vpop.f32.mrb[0].mxu0
      %v3369 = vadd.f32 0.0, %v3368
      %v3370 = vpop.f32.mrb[0].mxu0
      %v3371 = vpop.f32.mrb[0].mxu0
      %v3372 = vadd.f32 0.0, %v3371
      %v3373 = vpop.f32.mrb[0].mxu0
      %3374 = vmatprep.mubr.bf16.mxu0 0
      %3375 = vmatmul.mubr.bf16.gmra.mrb[0].mxu0 %v3216
      %v3376 = vpop.f32.mrb[0].mxu0
      %v3377 = vadd.f32 0.0, %v3376
      %v3378 = vpop.f32.mrb[0].mxu0
      %v3379 = vpop.f32.mrb[0].mxu0
      %v3380 = vadd.f32 0.0, %v3379
      %v3381 = vpop.f32.mrb[0].mxu0
      %3382 = vmatprep.mubr.bf16.mxu0 0
      %3383 = vmatmul.mubr.bf16.gmra.mrb[0].mxu0 %v3219
      %v3384 = vpop.f32.mrb[0].mxu0
      %v3385 = vadd.f32 0.0, %v3384
      %v3386 = vpop.f32.mrb[0].mxu0
      %v3387 = vpop.f32.mrb[0].mxu0
      %v3388 = vadd.f32 0.0, %v3387
      %v3389 = vpop.f32.mrb[0].mxu0
      %3390 = vmatprep.mubr.bf16.mxu0 0
      %3391 = vmatmul.mubr.bf16.gmra.mrb[0].mxu0 %v3222
      %v3392 = vpop.f32.mrb[0].mxu0
      %v3393 = vadd.f32 0.0, %v3392
      %v3394 = vpop.f32.mrb[0].mxu0
      %v3395 = vpop.f32.mrb[0].mxu0
      %v3396 = vadd.f32 0.0, %v3395
      %v3397 = vpop.f32.mrb[0].mxu0
      %3398 = vmatprep.mubr.bf16.mxu0 0
      %3399 = vmatmul.mubr.bf16.gmra.mrb[0].mxu0 %v3225
      %v3400 = vpop.f32.mrb[0].mxu0
      %v3401 = vadd.f32 0.0, %v3400
      %v3402 = vpop.f32.mrb[0].mxu0
      %v3403 = vpop.f32.mrb[0].mxu0
      %v3404 = vadd.f32 0.0, %v3403
      %v3405 = vpop.f32.mrb[0].mxu0
      %3406 = vdwg.mxu0
      %v3407 = vadd.f32 %v2856, %v3265
      %v3408 = vadd.f32 %v2857, %v3268
      %v3409 = vadd.f32 %v2858, %v3273
      %v3410 = vadd.f32 %v2859, %v3276
      %v3411 = vadd.f32 %v2860, %v3281
      %v3412 = vadd.f32 %v2861, %v3284
      %v3413 = vadd.f32 %v2862, %v3289
      %v3414 = vadd.f32 %v2863, %v3292
      %v3415 = vadd.f32 %v2864, %v3297
      %v3416 = vadd.f32 %v2865, %v3300
      %v3417 = vadd.f32 %v2866, %v3305
      %v3418 = vadd.f32 %v2867, %v3308
      %v3419 = vadd.f32 %v2868, %v3313
      %v3420 = vadd.f32 %v2869, %v3316
      %v3421 = vadd.f32 %v2870, %v3321
      %v3422 = vadd.f32 %v2871, %v3324
      %v3423 = vadd.f32 %v2872, %v3329
      %v3424 = vadd.f32 %v2873, %v3332
      %v3425 = vadd.f32 %v2874, %v3337
      %v3426 = vadd.f32 %v2875, %v3340
      %v3427 = vadd.f32 %v2876, %v3345
      %v3428 = vadd.f32 %v2877, %v3348
      %v3429 = vadd.f32 %v2878, %v3353
      %v3430 = vadd.f32 %v2879, %v3356
      %v3431 = vadd.f32 %v2880, %v3361
      %v3432 = vadd.f32 %v2881, %v3364
      %v3433 = vadd.f32 %v2882, %v3369
      %v3434 = vadd.f32 %v2883, %v3372
      %v3435 = vadd.f32 %v2884, %v3377
      %v3436 = vadd.f32 %v2885, %v3380
      %v3437 = vadd.f32 %v2886, %v3385
      %v3438 = vadd.f32 %v2887, %v3388
      %v3439 = vadd.f32 %v2888, %v3393
      %v3440 = vadd.f32 %v2889, %v3396
      %v3441 = vadd.f32 %v2890, %v3401
      %v3442 = vadd.f32 %v2891, %v3404
      %v3443 = vld [vmem:[%s192 + $0x18] sm:$0xf]
      %v3444 = vld [vmem:[%s192 + $0x1c] sm:$0xf]
      %v3445 = vld [vmem:[%s192 + $0x20] sm:$0xf]
      %v3446 = vld [vmem:[%s192 + $0x24] sm:$0xf]
      %v3447 = vld [vmem:[%s192 + $0x28] sm:$0xf]
      %v3448 = vld [vmem:[%s192 + $0x2c] sm:$0xf]
      %v3449 = vld [vmem:[%s192 + $0x30] sm:$0xf]
      %v3450 = vld [vmem:[%s192 + $0x34] sm:$0xf]
      %v3451 = vld [vmem:[%s192 + $0x38] sm:$0xf]
      %v3452 = vld [vmem:[%s192 + $0x3c] sm:$0xf]
      %v3453 = vld [vmem:[%s192 + $0x40] sm:$0xf]
      %v3454 = vld [vmem:[%s192 + $0x44] sm:$0xf]
      %v3455 = vld [vmem:[%s192 + $0x48] sm:$0xf]
      %v3456 = vld [vmem:[%s192 + $0x4c] sm:$0xf]
      %v3457 = vld [vmem:[%s192 + $0x50] sm:$0xf]
      %v3458 = vld [vmem:[%s192 + $0x54] sm:$0xf]
      %v3459 = vld [vmem:[%s192 + $0x58] sm:$0xf]
      %v3460 = vld [vmem:[%s192 + $0x5c] sm:$0xf]
      %v3461 = vld [vmem:[%s192 + $0x60] sm:$0xf]
      %v3462 = vld [vmem:[%s192 + $0x64] sm:$0xf]
      %v3463 = vld [vmem:[%s192 + $0x68] sm:$0xf]
      %v3464 = vld [vmem:[%s192 + $0x6c] sm:$0xf]
      %v3465 = vld [vmem:[%s192 + $0x70] sm:$0xf]
      %v3466 = vld [vmem:[%s192 + $0x74] sm:$0xf]
      %v3467 = vld [vmem:[%s192 + $0x78] sm:$0xf]
      %v3468 = vld [vmem:[%s192 + $0x7c] sm:$0xf]
      %v3469 = vld [vmem:[%s192 + $0x80] sm:$0xf]
      %v3470 = vld [vmem:[%s192 + $0x84] sm:$0xf]
      %v3471 = vld [vmem:[%s192 + $0x88] sm:$0xf]
      %v3472 = vld [vmem:[%s192 + $0x8c] sm:$0xf]
      %v3473 = vld [vmem:[%s192 + $0x90] sm:$0xf]
      %v3474 = vld [vmem:[%s192 + $0x94] sm:$0xf]
      %v3475 = vld [vmem:[%s192 + $0x98] sm:$0xf]
      %v3476 = vld [vmem:[%s192 + $0x9c] sm:$0xf]
      %v3477 = vld [vmem:[%s192 + $0xa0] sm:$0xf]
      %v3478 = vld [vmem:[%s192 + $0xa4] sm:$0xf]
      %v3479 = vld [vmem:[%s192 + $0xa8] sm:$0x1]
      %s3480 = scalar_lea.vmem %s1, 24
      %v3481 = vld [vmem:[%s3480] sm:$0xf]
      %v3519 = vunpack.c.l.b16 %v3443
      %v3520 = vunpack.c.l.b16 %v3444
      %v3521 = vunpack.c.l.b16 %v3445
      %v3522 = vunpack.c.l.b16 %v3446
      %v3523 = vunpack.c.l.b16 %v3447
      %v3524 = vunpack.c.l.b16 %v3448
      %v3525 = vunpack.c.l.b16 %v3449
      %v3526 = vunpack.c.l.b16 %v3450
      %v3527 = vunpack.c.l.b16 %v3451
      %v3528 = vunpack.c.l.b16 %v3452
      %v3529 = vunpack.c.l.b16 %v3453
      %v3530 = vunpack.c.l.b16 %v3454
      %v3531 = vunpack.c.l.b16 %v3455
      %v3532 = vunpack.c.l.b16 %v3456
      %v3533 = vunpack.c.l.b16 %v3457
      %v3534 = vunpack.c.l.b16 %v3458
      %v3535 = vunpack.c.l.b16 %v3459
      %v3536 = vunpack.c.l.b16 %v3460
      %v3537 = vunpack.c.l.b16 %v3461
      %v3538 = vunpack.c.l.b16 %v3462
      %v3539 = vunpack.c.l.b16 %v3463
      %v3540 = vunpack.c.l.b16 %v3464
      %v3541 = vunpack.c.l.b16 %v3465
      %v3542 = vunpack.c.l.b16 %v3466
      %v3543 = vunpack.c.l.b16 %v3467
      %v3544 = vunpack.c.l.b16 %v3468
      %v3545 = vunpack.c.l.b16 %v3469
      %v3546 = vunpack.c.l.b16 %v3470
      %v3547 = vunpack.c.l.b16 %v3471
      %v3548 = vunpack.c.l.b16 %v3472
      %v3549 = vunpack.c.l.b16 %v3473
      %v3550 = vunpack.c.l.b16 %v3474
      %v3551 = vunpack.c.l.b16 %v3475
      %v3552 = vunpack.c.l.b16 %v3476
      %v3553 = vunpack.c.l.b16 %v3477
      %v3554 = vunpack.c.l.b16 %v3478
      %v3555 = vunpack.c.l.b16 %v3479
      %v3556 = vpack.c.b16 %v3520, %v3519
      %v3557 = vpack.c.b16 %v3522, %v3521
      %v3558 = vpack.c.b16 %v3524, %v3523
      %v3559 = vpack.c.b16 %v3526, %v3525
      %v3560 = vpack.c.b16 %v3528, %v3527
      %v3561 = vpack.c.b16 %v3530, %v3529
      %v3562 = vpack.c.b16 %v3532, %v3531
      %v3563 = vpack.c.b16 %v3534, %v3533
      %v3564 = vpack.c.b16 %v3536, %v3535
      %v3565 = vpack.c.b16 %v3538, %v3537
      %v3566 = vpack.c.b16 %v3540, %v3539
      %v3567 = vpack.c.b16 %v3542, %v3541
      %v3568 = vpack.c.b16 %v3544, %v3543
      %v3569 = vpack.c.b16 %v3546, %v3545
      %v3570 = vpack.c.b16 %v3548, %v3547
      %v3571 = vpack.c.b16 %v3550, %v3549
      %v3572 = vpack.c.b16 %v3552, %v3551
      %v3573 = vpack.c.b16 %v3554, %v3553
      %v3574 = vpack.c.b16 %v3555, %v3555
      %v3576 = vshrl.u32 %v3556, 16
      %v3578 = vshll.u32 %v3556, 16
      %v3580 = vrot.slane %v3578, 1
      %v3581 = vor.u32 %v3576, %v3580
      %v3583 = vshll.u32 %v3557, 16
      %v3585 = vrot.slane %v3583, 1
      %v3586 = vsel %vm3024, %v3581, %v3585
      %v3587 = vshrl.u32 %v3557, 16
      %v3589 = vor.u32 %v3587, %v3585
      %v3591 = vshll.u32 %v3558, 16
      %v3593 = vrot.slane %v3591, 1
      %v3594 = vsel %vm3024, %v3589, %v3593
      %v3595 = vshrl.u32 %v3558, 16
      %v3597 = vor.u32 %v3595, %v3593
      %v3599 = vshll.u32 %v3559, 16
      %v3601 = vrot.slane %v3599, 1
      %v3602 = vsel %vm3024, %v3597, %v3601
      %v3603 = vshrl.u32 %v3559, 16
      %v3605 = vor.u32 %v3603, %v3601
      %v3607 = vshll.u32 %v3560, 16
      %v3609 = vrot.slane %v3607, 1
      %v3610 = vsel %vm3024, %v3605, %v3609
      %v3611 = vshrl.u32 %v3560, 16
      %v3613 = vor.u32 %v3611, %v3609
      %v3615 = vshll.u32 %v3561, 16
      %v3617 = vrot.slane %v3615, 1
      %v3618 = vsel %vm3024, %v3613, %v3617
      %v3619 = vshrl.u32 %v3561, 16
      %v3621 = vor.u32 %v3619, %v3617
      %v3623 = vshll.u32 %v3562, 16
      %v3625 = vrot.slane %v3623, 1
      %v3626 = vsel %vm3024, %v3621, %v3625
      %v3627 = vshrl.u32 %v3562, 16
      %v3629 = vor.u32 %v3627, %v3625
      %v3631 = vshll.u32 %v3563, 16
      %v3633 = vrot.slane %v3631, 1
      %v3634 = vsel %vm3024, %v3629, %v3633
      %v3635 = vshrl.u32 %v3563, 16
      %v3637 = vor.u32 %v3635, %v3633
      %v3639 = vshll.u32 %v3564, 16
      %v3641 = vrot.slane %v3639, 1
      %v3642 = vsel %vm3024, %v3637, %v3641
      %v3643 = vshrl.u32 %v3564, 16
      %v3645 = vor.u32 %v3643, %v3641
      %v3647 = vshll.u32 %v3565, 16
      %v3649 = vrot.slane %v3647, 1
      %v3650 = vsel %vm3024, %v3645, %v3649
      %v3651 = vshrl.u32 %v3565, 16
      %v3653 = vor.u32 %v3651, %v3649
      %v3655 = vshll.u32 %v3566, 16
      %v3657 = vrot.slane %v3655, 1
      %v3658 = vsel %vm3024, %v3653, %v3657
      %v3659 = vshrl.u32 %v3566, 16
      %v3661 = vor.u32 %v3659, %v3657
      %v3663 = vshll.u32 %v3567, 16
      %v3665 = vrot.slane %v3663, 1
      %v3666 = vsel %vm3024, %v3661, %v3665
      %v3667 = vshrl.u32 %v3567, 16
      %v3669 = vor.u32 %v3667, %v3665
      %v3671 = vshll.u32 %v3568, 16
      %v3673 = vrot.slane %v3671, 1
      %v3674 = vsel %vm3024, %v3669, %v3673
      %v3675 = vshrl.u32 %v3568, 16
      %v3677 = vor.u32 %v3675, %v3673
      %v3679 = vshll.u32 %v3569, 16
      %v3681 = vrot.slane %v3679, 1
      %v3682 = vsel %vm3024, %v3677, %v3681
      %v3683 = vshrl.u32 %v3569, 16
      %v3685 = vor.u32 %v3683, %v3681
      %v3687 = vshll.u32 %v3570, 16
      %v3689 = vrot.slane %v3687, 1
      %v3690 = vsel %vm3024, %v3685, %v3689
      %v3691 = vshrl.u32 %v3570, 16
      %v3693 = vor.u32 %v3691, %v3689
      %v3695 = vshll.u32 %v3571, 16
      %v3697 = vrot.slane %v3695, 1
      %v3698 = vsel %vm3024, %v3693, %v3697
      %v3699 = vshrl.u32 %v3571, 16
      %v3701 = vor.u32 %v3699, %v3697
      %v3703 = vshll.u32 %v3572, 16
      %v3705 = vrot.slane %v3703, 1
      %v3706 = vsel %vm3024, %v3701, %v3705
      %v3707 = vshrl.u32 %v3572, 16
      %v3709 = vor.u32 %v3707, %v3705
      %v3711 = vshll.u32 %v3573, 16
      %v3713 = vrot.slane %v3711, 1
      %v3714 = vsel %vm3024, %v3709, %v3713
      %v3715 = vshrl.u32 %v3573, 16
      %v3717 = vor.u32 %v3715, %v3713
      %v3719 = vshll.u32 %v3574, 16
      %v3721 = vrot.slane %v3719, 1
      %v3722 = vsel %vm3024, %v3717, %v3721
      %v3724 = vsel %vm199, %v3586, 0
      %v3727 = vsel %vm199, %v3594, 0
      %v3730 = vsel %vm199, %v3602, 0
      %v3733 = vsel %vm199, %v3610, 0
      %v3736 = vsel %vm199, %v3618, 0
      %v3739 = vsel %vm199, %v3626, 0
      %v3742 = vsel %vm199, %v3634, 0
      %v3745 = vsel %vm199, %v3642, 0
      %v3748 = vsel %vm199, %v3650, 0
      %v3751 = vsel %vm199, %v3658, 0
      %v3754 = vsel %vm199, %v3666, 0
      %v3757 = vsel %vm199, %v3674, 0
      %v3760 = vsel %vm199, %v3682, 0
      %v3763 = vsel %vm199, %v3690, 0
      %v3766 = vsel %vm199, %v3698, 0
      %v3769 = vsel %vm199, %v3706, 0
      %v3772 = vsel %vm199, %v3714, 0
      %v3775 = vsel %vm199, %v3722, 0
      %v3778 = vsel %vm1079, %v3481, 0
      %3780 = vmatprep.subr.bf16.mxu0 0
      %3781 = vmatpush1.bf16.msra.mxu0 %v3778
      %3782 = vmatprep.subr.bf16.mxu0 0
      %3783 = vmatpush1.bf16.msra.mxu0 0
      %3784 = vmatprep.subr.bf16.mxu0 0
      %3785 = vmatpush1.bf16.msra.mxu0 0
      %3786 = vmatprep.subr.bf16.mxu0 0
      %3787 = vmatpush1.bf16.msra.mxu0 0
      %3788 = vmatprep.subr.bf16.mxu0 0
      %3789 = vmatpush1.bf16.msra.mxu0 0
      %3790 = vmatprep.subr.bf16.mxu0 0
      %3791 = vmatpush1.bf16.msra.mxu0 0
      %3792 = vmatprep.subr.bf16.mxu0 0
      %3793 = vmatpush1.bf16.msra.mxu0 0
      %3794 = vmatprep.subr.bf16.mxu0 0
      %3795 = vmatpush1.bf16.msra.mxu0 0
      %3796 = vmatprep.subr.bf16.mxu0 0
      %3797 = vmatpush1.bf16.msra.mxu0 0
      %3798 = vmatprep.subr.bf16.mxu0 0
      %3799 = vmatpush1.bf16.msra.mxu0 0
      %3800 = vmatprep.subr.bf16.mxu0 0
      %3801 = vmatpush1.bf16.msra.mxu0 0
      %3802 = vmatprep.subr.bf16.mxu0 0
      %3803 = vmatpush1.bf16.msra.mxu0 0
      %3804 = vmatprep.subr.bf16.mxu0 0
      %3805 = vmatpush1.bf16.msra.mxu0 0
      %3806 = vmatprep.subr.bf16.mxu0 0
      %3807 = vmatpush1.bf16.msra.mxu0 0
      %3808 = vmatprep.subr.bf16.mxu0 0
      %3809 = vmatpush1.bf16.msra.mxu0 0
      %3810 = vmatprep.subr.bf16.mxu0 0
      %3811 = vmatpush1.bf16.msra.mxu0 0
      %3812 = vmatprep.mubr.bf16.mxu0 0
      %3813 = vmatmul.mubr.bf16.gmra.mrb[0].mxu0 %v3724
      %v3814 = vpop.f32.mrb[0].mxu0
      %v3815 = vadd.f32 0.0, %v3814
      %v3816 = vpop.f32.mrb[0].mxu0
      %v3817 = vpop.f32.mrb[0].mxu0
      %v3818 = vadd.f32 0.0, %v3817
      %v3819 = vpop.f32.mrb[0].mxu0
      %3820 = vmatprep.mubr.bf16.mxu0 0
      %3821 = vmatmul.mubr.bf16.gmra.mrb[0].mxu0 %v3727
      %v3822 = vpop.f32.mrb[0].mxu0
      %v3823 = vadd.f32 0.0, %v3822
      %v3824 = vpop.f32.mrb[0].mxu0
      %v3825 = vpop.f32.mrb[0].mxu0
      %v3826 = vadd.f32 0.0, %v3825
      %v3827 = vpop.f32.mrb[0].mxu0
      %3828 = vmatprep.mubr.bf16.mxu0 0
      %3829 = vmatmul.mubr.bf16.gmra.mrb[0].mxu0 %v3730
      %v3830 = vpop.f32.mrb[0].mxu0
      %v3831 = vadd.f32 0.0, %v3830
      %v3832 = vpop.f32.mrb[0].mxu0
      %v3833 = vpop.f32.mrb[0].mxu0
      %v3834 = vadd.f32 0.0, %v3833
      %v3835 = vpop.f32.mrb[0].mxu0
      %3836 = vmatprep.mubr.bf16.mxu0 0
      %3837 = vmatmul.mubr.bf16.gmra.mrb[0].mxu0 %v3733
      %v3838 = vpop.f32.mrb[0].mxu0
      %v3839 = vadd.f32 0.0, %v3838
      %v3840 = vpop.f32.mrb[0].mxu0
      %v3841 = vpop.f32.mrb[0].mxu0
      %v3842 = vadd.f32 0.0, %v3841
      %v3843 = vpop.f32.mrb[0].mxu0
      %3844 = vmatprep.mubr.bf16.mxu0 0
      %3845 = vmatmul.mubr.bf16.gmra.mrb[0].mxu0 %v3736
      %v3846 = vpop.f32.mrb[0].mxu0
      %v3847 = vadd.f32 0.0, %v3846
      %v3848 = vpop.f32.mrb[0].mxu0
      %v3849 = vpop.f32.mrb[0].mxu0
      %v3850 = vadd.f32 0.0, %v3849
      %v3851 = vpop.f32.mrb[0].mxu0
      %3852 = vmatprep.mubr.bf16.mxu0 0
      %3853 = vmatmul.mubr.bf16.gmra.mrb[0].mxu0 %v3739
      %v3854 = vpop.f32.mrb[0].mxu0
      %v3855 = vadd.f32 0.0, %v3854
      %v3856 = vpop.f32.mrb[0].mxu0
      %v3857 = vpop.f32.mrb[0].mxu0
      %v3858 = vadd.f32 0.0, %v3857
      %v3859 = vpop.f32.mrb[0].mxu0
      %3860 = vmatprep.mubr.bf16.mxu0 0
      %3861 = vmatmul.mubr.bf16.gmra.mrb[0].mxu0 %v3742
      %v3862 = vpop.f32.mrb[0].mxu0
      %v3863 = vadd.f32 0.0, %v3862
      %v3864 = vpop.f32.mrb[0].mxu0
      %v3865 = vpop.f32.mrb[0].mxu0
      %v3866 = vadd.f32 0.0, %v3865
      %v3867 = vpop.f32.mrb[0].mxu0
      %3868 = vmatprep.mubr.bf16.mxu0 0
      %3869 = vmatmul.mubr.bf16.gmra.mrb[0].mxu0 %v3745
      %v3870 = vpop.f32.mrb[0].mxu0
      %v3871 = vadd.f32 0.0, %v3870
      %v3872 = vpop.f32.mrb[0].mxu0
      %v3873 = vpop.f32.mrb[0].mxu0
      %v3874 = vadd.f32 0.0, %v3873
      %v3875 = vpop.f32.mrb[0].mxu0
      %3876 = vmatprep.mubr.bf16.mxu0 0
      %3877 = vmatmul.mubr.bf16.gmra.mrb[0].mxu0 %v3748
      %v3878 = vpop.f32.mrb[0].mxu0
      %v3879 = vadd.f32 0.0, %v3878
      %v3880 = vpop.f32.mrb[0].mxu0
      %v3881 = vpop.f32.mrb[0].mxu0
      %v3882 = vadd.f32 0.0, %v3881
      %v3883 = vpop.f32.mrb[0].mxu0
      %3884 = vmatprep.mubr.bf16.mxu0 0
      %3885 = vmatmul.mubr.bf16.gmra.mrb[0].mxu0 %v3751
      %v3886 = vpop.f32.mrb[0].mxu0
      %v3887 = vadd.f32 0.0, %v3886
      %v3888 = vpop.f32.mrb[0].mxu0
      %v3889 = vpop.f32.mrb[0].mxu0
      %v3890 = vadd.f32 0.0, %v3889
      %v3891 = vpop.f32.mrb[0].mxu0
      %3892 = vmatprep.mubr.bf16.mxu0 0
      %3893 = vmatmul.mubr.bf16.gmra.mrb[0].mxu0 %v3754
      %v3894 = vpop.f32.mrb[0].mxu0
      %v3895 = vadd.f32 0.0, %v3894
      %v3896 = vpop.f32.mrb[0].mxu0
      %v3897 = vpop.f32.mrb[0].mxu0
      %v3898 = vadd.f32 0.0, %v3897
      %v3899 = vpop.f32.mrb[0].mxu0
      %3900 = vmatprep.mubr.bf16.mxu0 0
      %3901 = vmatmul.mubr.bf16.gmra.mrb[0].mxu0 %v3757
      %v3902 = vpop.f32.mrb[0].mxu0
      %v3903 = vadd.f32 0.0, %v3902
      %v3904 = vpop.f32.mrb[0].mxu0
      %v3905 = vpop.f32.mrb[0].mxu0
      %v3906 = vadd.f32 0.0, %v3905
      %v3907 = vpop.f32.mrb[0].mxu0
      %3908 = vmatprep.mubr.bf16.mxu0 0
      %3909 = vmatmul.mubr.bf16.gmra.mrb[0].mxu0 %v3760
      %v3910 = vpop.f32.mrb[0].mxu0
      %v3911 = vadd.f32 0.0, %v3910
      %v3912 = vpop.f32.mrb[0].mxu0
      %v3913 = vpop.f32.mrb[0].mxu0
      %v3914 = vadd.f32 0.0, %v3913
      %v3915 = vpop.f32.mrb[0].mxu0
      %3916 = vmatprep.mubr.bf16.mxu0 0
      %3917 = vmatmul.mubr.bf16.gmra.mrb[0].mxu0 %v3763
      %v3918 = vpop.f32.mrb[0].mxu0
      %v3919 = vadd.f32 0.0, %v3918
      %v3920 = vpop.f32.mrb[0].mxu0
      %v3921 = vpop.f32.mrb[0].mxu0
      %v3922 = vadd.f32 0.0, %v3921
      %v3923 = vpop.f32.mrb[0].mxu0
      %3924 = vmatprep.mubr.bf16.mxu0 0
      %3925 = vmatmul.mubr.bf16.gmra.mrb[0].mxu0 %v3766
      %v3926 = vpop.f32.mrb[0].mxu0
      %v3927 = vadd.f32 0.0, %v3926
      %v3928 = vpop.f32.mrb[0].mxu0
      %v3929 = vpop.f32.mrb[0].mxu0
      %v3930 = vadd.f32 0.0, %v3929
      %v3931 = vpop.f32.mrb[0].mxu0
      %3932 = vmatprep.mubr.bf16.mxu0 0
      %3933 = vmatmul.mubr.bf16.gmra.mrb[0].mxu0 %v3769
      %v3934 = vpop.f32.mrb[0].mxu0
      %v3935 = vadd.f32 0.0, %v3934
      %v3936 = vpop.f32.mrb[0].mxu0
      %v3937 = vpop.f32.mrb[0].mxu0
      %v3938 = vadd.f32 0.0, %v3937
      %v3939 = vpop.f32.mrb[0].mxu0
      %3940 = vmatprep.mubr.bf16.mxu0 0
      %3941 = vmatmul.mubr.bf16.gmra.mrb[0].mxu0 %v3772
      %v3942 = vpop.f32.mrb[0].mxu0
      %v3943 = vadd.f32 0.0, %v3942
      %v3944 = vpop.f32.mrb[0].mxu0
      %v3945 = vpop.f32.mrb[0].mxu0
      %v3946 = vadd.f32 0.0, %v3945
      %v3947 = vpop.f32.mrb[0].mxu0
      %3948 = vmatprep.mubr.bf16.mxu0 0
      %3949 = vmatmul.mubr.bf16.gmra.mrb[0].mxu0 %v3775
      %v3950 = vpop.f32.mrb[0].mxu0
      %v3951 = vadd.f32 0.0, %v3950
      %v3952 = vpop.f32.mrb[0].mxu0
      %v3953 = vpop.f32.mrb[0].mxu0
      %v3954 = vadd.f32 0.0, %v3953
      %v3955 = vpop.f32.mrb[0].mxu0
      %3956 = vdwg.mxu0
      %v3957 = vadd.f32 %v3407, %v3815
      %v3958 = vadd.f32 %v3408, %v3818
      %v3959 = vadd.f32 %v3409, %v3823
      %v3960 = vadd.f32 %v3410, %v3826
      %v3961 = vadd.f32 %v3411, %v3831
      %v3962 = vadd.f32 %v3412, %v3834
      %v3963 = vadd.f32 %v3413, %v3839
      %v3964 = vadd.f32 %v3414, %v3842
      %v3965 = vadd.f32 %v3415, %v3847
      %v3966 = vadd.f32 %v3416, %v3850
      %v3967 = vadd.f32 %v3417, %v3855
      %v3968 = vadd.f32 %v3418, %v3858
      %v3969 = vadd.f32 %v3419, %v3863
      %v3970 = vadd.f32 %v3420, %v3866
      %v3971 = vadd.f32 %v3421, %v3871
      %v3972 = vadd.f32 %v3422, %v3874
      %v3973 = vadd.f32 %v3423, %v3879
      %v3974 = vadd.f32 %v3424, %v3882
      %v3975 = vadd.f32 %v3425, %v3887
      %v3976 = vadd.f32 %v3426, %v3890
      %v3977 = vadd.f32 %v3427, %v3895
      %v3978 = vadd.f32 %v3428, %v3898
      %v3979 = vadd.f32 %v3429, %v3903
      %v3980 = vadd.f32 %v3430, %v3906
      %v3981 = vadd.f32 %v3431, %v3911
      %v3982 = vadd.f32 %v3432, %v3914
      %v3983 = vadd.f32 %v3433, %v3919
      %v3984 = vadd.f32 %v3434, %v3922
      %v3985 = vadd.f32 %v3435, %v3927
      %v3986 = vadd.f32 %v3436, %v3930
      %v3987 = vadd.f32 %v3437, %v3935
      %v3988 = vadd.f32 %v3438, %v3938
      %v3989 = vadd.f32 %v3439, %v3943
      %v3990 = vadd.f32 %v3440, %v3946
      %v3991 = vadd.f32 %v3441, %v3951
      %v3992 = vadd.f32 %v3442, %v3954
      %v3993 = vld [vmem:[%s192 + $0x18] sm:$0xe]
      %s3994 = scalar_lea.vmem %s1, 28
      %v3995 = vld [vmem:[%s3994] sm:$0xf]
      %v3997 = vunpack.c.l.b16 %v3993
      %v3998 = vpack.c.b16 %v3520, %v3997
      %vm3999 = vcmask 1046528
      %v4000 = vrot.slane %v3998, 1
      %v4001 = vrot.slane %v3557, 1
      %v4002 = vsel %vm3999, %v4000, %v4001
      %v4003 = vrot.slane %v3558, 1
      %v4004 = vsel %vm3999, %v4001, %v4003
      %v4005 = vrot.slane %v3559, 1
      %v4006 = vsel %vm3999, %v4003, %v4005
      %v4007 = vrot.slane %v3560, 1
      %v4008 = vsel %vm3999, %v4005, %v4007
      %v4009 = vrot.slane %v3561, 1
      %v4010 = vsel %vm3999, %v4007, %v4009
      %v4011 = vrot.slane %v3562, 1
      %v4012 = vsel %vm3999, %v4009, %v4011
      %v4013 = vrot.slane %v3563, 1
      %v4014 = vsel %vm3999, %v4011, %v4013
      %v4015 = vrot.slane %v3564, 1
      %v4016 = vsel %vm3999, %v4013, %v4015
      %v4017 = vrot.slane %v3565, 1
      %v4018 = vsel %vm3999, %v4015, %v4017
      %v4019 = vrot.slane %v3566, 1
      %v4020 = vsel %vm3999, %v4017, %v4019
      %v4021 = vrot.slane %v3567, 1
      %v4022 = vsel %vm3999, %v4019, %v4021
      %v4023 = vrot.slane %v3568, 1
      %v4024 = vsel %vm3999, %v4021, %v4023
      %v4025 = vrot.slane %v3569, 1
      %v4026 = vsel %vm3999, %v4023, %v4025
      %v4027 = vrot.slane %v3570, 1
      %v4028 = vsel %vm3999, %v4025, %v4027
      %v4029 = vrot.slane %v3571, 1
      %v4030 = vsel %vm3999, %v4027, %v4029
      %v4031 = vrot.slane %v3572, 1
      %v4032 = vsel %vm3999, %v4029, %v4031
      %v4033 = vrot.slane %v3573, 1
      %v4034 = vsel %vm3999, %v4031, %v4033
      %v4035 = vrot.slane %v3574, 1
      %v4036 = vsel %vm3999, %v4033, %v4035
      %v4038 = vsel %vm199, %v4002, 0
      %v4041 = vsel %vm199, %v4004, 0
      %v4044 = vsel %vm199, %v4006, 0
      %v4047 = vsel %vm199, %v4008, 0
      %v4050 = vsel %vm199, %v4010, 0
      %v4053 = vsel %vm199, %v4012, 0
      %v4056 = vsel %vm199, %v4014, 0
      %v4059 = vsel %vm199, %v4016, 0
      %v4062 = vsel %vm199, %v4018, 0
      %v4065 = vsel %vm199, %v4020, 0
      %v4068 = vsel %vm199, %v4022, 0
      %v4071 = vsel %vm199, %v4024, 0
      %v4074 = vsel %vm199, %v4026, 0
      %v4077 = vsel %vm199, %v4028, 0
      %v4080 = vsel %vm199, %v4030, 0
      %v4083 = vsel %vm199, %v4032, 0
      %v4086 = vsel %vm199, %v4034, 0
      %v4089 = vsel %vm199, %v4036, 0
      %v4092 = vsel %vm1079, %v3995, 0
      %4094 = vmatprep.subr.bf16.mxu0 0
      %4095 = vmatpush1.bf16.msra.mxu0 %v4092
      %4096 = vmatprep.subr.bf16.mxu0 0
      %4097 = vmatpush1.bf16.msra.mxu0 0
      %4098 = vmatprep.subr.bf16.mxu0 0
      %4099 = vmatpush1.bf16.msra.mxu0 0
      %4100 = vmatprep.subr.bf16.mxu0 0
      %4101 = vmatpush1.bf16.msra.mxu0 0
      %4102 = vmatprep.subr.bf16.mxu0 0
      %4103 = vmatpush1.bf16.msra.mxu0 0
      %4104 = vmatprep.subr.bf16.mxu0 0
      %4105 = vmatpush1.bf16.msra.mxu0 0
      %4106 = vmatprep.subr.bf16.mxu0 0
      %4107 = vmatpush1.bf16.msra.mxu0 0
      %4108 = vmatprep.subr.bf16.mxu0 0
      %4109 = vmatpush1.bf16.msra.mxu0 0
      %4110 = vmatprep.subr.bf16.mxu0 0
      %4111 = vmatpush1.bf16.msra.mxu0 0
      %4112 = vmatprep.subr.bf16.mxu0 0
      %4113 = vmatpush1.bf16.msra.mxu0 0
      %4114 = vmatprep.subr.bf16.mxu0 0
      %4115 = vmatpush1.bf16.msra.mxu0 0
      %4116 = vmatprep.subr.bf16.mxu0 0
      %4117 = vmatpush1.bf16.msra.mxu0 0
      %4118 = vmatprep.subr.bf16.mxu0 0
      %4119 = vmatpush1.bf16.msra.mxu0 0
      %4120 = vmatprep.subr.bf16.mxu0 0
      %4121 = vmatpush1.bf16.msra.mxu0 0
      %4122 = vmatprep.subr.bf16.mxu0 0
      %4123 = vmatpush1.bf16.msra.mxu0 0
      %4124 = vmatprep.subr.bf16.mxu0 0
      %4125 = vmatpush1.bf16.msra.mxu0 0
      %4126 = vmatprep.mubr.bf16.mxu0 0
      %4127 = vmatmul.mubr.bf16.gmra.mrb[0].mxu0 %v4038
      %v4128 = vpop.f32.mrb[0].mxu0
      %v4129 = vadd.f32 0.0, %v4128
      %v4130 = vpop.f32.mrb[0].mxu0
      %v4131 = vpop.f32.mrb[0].mxu0
      %v4132 = vadd.f32 0.0, %v4131
      %v4133 = vpop.f32.mrb[0].mxu0
      %4134 = vmatprep.mubr.bf16.mxu0 0
      %4135 = vmatmul.mubr.bf16.gmra.mrb[0].mxu0 %v4041
      %v4136 = vpop.f32.mrb[0].mxu0
      %v4137 = vadd.f32 0.0, %v4136
      %v4138 = vpop.f32.mrb[0].mxu0
      %v4139 = vpop.f32.mrb[0].mxu0
      %v4140 = vadd.f32 0.0, %v4139
      %v4141 = vpop.f32.mrb[0].mxu0
      %4142 = vmatprep.mubr.bf16.mxu0 0
      %4143 = vmatmul.mubr.bf16.gmra.mrb[0].mxu0 %v4044
      %v4144 = vpop.f32.mrb[0].mxu0
      %v4145 = vadd.f32 0.0, %v4144
      %v4146 = vpop.f32.mrb[0].mxu0
      %v4147 = vpop.f32.mrb[0].mxu0
      %v4148 = vadd.f32 0.0, %v4147
      %v4149 = vpop.f32.mrb[0].mxu0
      %4150 = vmatprep.mubr.bf16.mxu0 0
      %4151 = vmatmul.mubr.bf16.gmra.mrb[0].mxu0 %v4047
      %v4152 = vpop.f32.mrb[0].mxu0
      %v4153 = vadd.f32 0.0, %v4152
      %v4154 = vpop.f32.mrb[0].mxu0
      %v4155 = vpop.f32.mrb[0].mxu0
      %v4156 = vadd.f32 0.0, %v4155
      %v4157 = vpop.f32.mrb[0].mxu0
      %4158 = vmatprep.mubr.bf16.mxu0 0
      %4159 = vmatmul.mubr.bf16.gmra.mrb[0].mxu0 %v4050
      %v4160 = vpop.f32.mrb[0].mxu0
      %v4161 = vadd.f32 0.0, %v4160
      %v4162 = vpop.f32.mrb[0].mxu0
      %v4163 = vpop.f32.mrb[0].mxu0
      %v4164 = vadd.f32 0.0, %v4163
      %v4165 = vpop.f32.mrb[0].mxu0
      %4166 = vmatprep.mubr.bf16.mxu0 0
      %4167 = vmatmul.mubr.bf16.gmra.mrb[0].mxu0 %v4053
      %v4168 = vpop.f32.mrb[0].mxu0
      %v4169 = vadd.f32 0.0, %v4168
      %v4170 = vpop.f32.mrb[0].mxu0
      %v4171 = vpop.f32.mrb[0].mxu0
      %v4172 = vadd.f32 0.0, %v4171
      %v4173 = vpop.f32.mrb[0].mxu0
      %4174 = vmatprep.mubr.bf16.mxu0 0
      %4175 = vmatmul.mubr.bf16.gmra.mrb[0].mxu0 %v4056
      %v4176 = vpop.f32.mrb[0].mxu0
      %v4177 = vadd.f32 0.0, %v4176
      %v4178 = vpop.f32.mrb[0].mxu0
      %v4179 = vpop.f32.mrb[0].mxu0
      %v4180 = vadd.f32 0.0, %v4179
      %v4181 = vpop.f32.mrb[0].mxu0
      %4182 = vmatprep.mubr.bf16.mxu0 0
      %4183 = vmatmul.mubr.bf16.gmra.mrb[0].mxu0 %v4059
      %v4184 = vpop.f32.mrb[0].mxu0
      %v4185 = vadd.f32 0.0, %v4184
      %v4186 = vpop.f32.mrb[0].mxu0
      %v4187 = vpop.f32.mrb[0].mxu0
      %v4188 = vadd.f32 0.0, %v4187
      %v4189 = vpop.f32.mrb[0].mxu0
      %4190 = vmatprep.mubr.bf16.mxu0 0
      %4191 = vmatmul.mubr.bf16.gmra.mrb[0].mxu0 %v4062
      %v4192 = vpop.f32.mrb[0].mxu0
      %v4193 = vadd.f32 0.0, %v4192
      %v4194 = vpop.f32.mrb[0].mxu0
      %v4195 = vpop.f32.mrb[0].mxu0
      %v4196 = vadd.f32 0.0, %v4195
      %v4197 = vpop.f32.mrb[0].mxu0
      %4198 = vmatprep.mubr.bf16.mxu0 0
      %4199 = vmatmul.mubr.bf16.gmra.mrb[0].mxu0 %v4065
      %v4200 = vpop.f32.mrb[0].mxu0
      %v4201 = vadd.f32 0.0, %v4200
      %v4202 = vpop.f32.mrb[0].mxu0
      %v4203 = vpop.f32.mrb[0].mxu0
      %v4204 = vadd.f32 0.0, %v4203
      %v4205 = vpop.f32.mrb[0].mxu0
      %4206 = vmatprep.mubr.bf16.mxu0 0
      %4207 = vmatmul.mubr.bf16.gmra.mrb[0].mxu0 %v4068
      %v4208 = vpop.f32.mrb[0].mxu0
      %v4209 = vadd.f32 0.0, %v4208
      %v4210 = vpop.f32.mrb[0].mxu0
      %v4211 = vpop.f32.mrb[0].mxu0
      %v4212 = vadd.f32 0.0, %v4211
      %v4213 = vpop.f32.mrb[0].mxu0
      %4214 = vmatprep.mubr.bf16.mxu0 0
      %4215 = vmatmul.mubr.bf16.gmra.mrb[0].mxu0 %v4071
      %v4216 = vpop.f32.mrb[0].mxu0
      %v4217 = vadd.f32 0.0, %v4216
      %v4218 = vpop.f32.mrb[0].mxu0
      %v4219 = vpop.f32.mrb[0].mxu0
      %v4220 = vadd.f32 0.0, %v4219
      %v4221 = vpop.f32.mrb[0].mxu0
      %4222 = vmatprep.mubr.bf16.mxu0 0
      %4223 = vmatmul.mubr.bf16.gmra.mrb[0].mxu0 %v4074
      %v4224 = vpop.f32.mrb[0].mxu0
      %v4225 = vadd.f32 0.0, %v4224
      %v4226 = vpop.f32.mrb[0].mxu0
      %v4227 = vpop.f32.mrb[0].mxu0
      %v4228 = vadd.f32 0.0, %v4227
      %v4229 = vpop.f32.mrb[0].mxu0
      %4230 = vmatprep.mubr.bf16.mxu0 0
      %4231 = vmatmul.mubr.bf16.gmra.mrb[0].mxu0 %v4077
      %v4232 = vpop.f32.mrb[0].mxu0
      %v4233 = vadd.f32 0.0, %v4232
      %v4234 = vpop.f32.mrb[0].mxu0
      %v4235 = vpop.f32.mrb[0].mxu0
      %v4236 = vadd.f32 0.0, %v4235
      %v4237 = vpop.f32.mrb[0].mxu0
      %4238 = vmatprep.mubr.bf16.mxu0 0
      %4239 = vmatmul.mubr.bf16.gmra.mrb[0].mxu0 %v4080
      %v4240 = vpop.f32.mrb[0].mxu0
      %v4241 = vadd.f32 0.0, %v4240
      %v4242 = vpop.f32.mrb[0].mxu0
      %v4243 = vpop.f32.mrb[0].mxu0
      %v4244 = vadd.f32 0.0, %v4243
      %v4245 = vpop.f32.mrb[0].mxu0
      %4246 = vmatprep.mubr.bf16.mxu0 0
      %4247 = vmatmul.mubr.bf16.gmra.mrb[0].mxu0 %v4083
      %v4248 = vpop.f32.mrb[0].mxu0
      %v4249 = vadd.f32 0.0, %v4248
      %v4250 = vpop.f32.mrb[0].mxu0
      %v4251 = vpop.f32.mrb[0].mxu0
      %v4252 = vadd.f32 0.0, %v4251
      %v4253 = vpop.f32.mrb[0].mxu0
      %4254 = vmatprep.mubr.bf16.mxu0 0
      %4255 = vmatmul.mubr.bf16.gmra.mrb[0].mxu0 %v4086
      %v4256 = vpop.f32.mrb[0].mxu0
      %v4257 = vadd.f32 0.0, %v4256
      %v4258 = vpop.f32.mrb[0].mxu0
      %v4259 = vpop.f32.mrb[0].mxu0
      %v4260 = vadd.f32 0.0, %v4259
      %v4261 = vpop.f32.mrb[0].mxu0
      %4262 = vmatprep.mubr.bf16.mxu0 0
      %4263 = vmatmul.mubr.bf16.gmra.mrb[0].mxu0 %v4089
      %v4264 = vpop.f32.mrb[0].mxu0
      %v4265 = vadd.f32 0.0, %v4264
      %v4266 = vpop.f32.mrb[0].mxu0
      %v4267 = vpop.f32.mrb[0].mxu0
      %v4268 = vadd.f32 0.0, %v4267
      %v4269 = vpop.f32.mrb[0].mxu0
      %4270 = vdwg.mxu0
      %v4271 = vadd.f32 %v3957, %v4129
      %v4272 = vadd.f32 %v3958, %v4132
      %v4273 = vadd.f32 %v3959, %v4137
      %v4274 = vadd.f32 %v3960, %v4140
      %v4275 = vadd.f32 %v3961, %v4145
      %v4276 = vadd.f32 %v3962, %v4148
      %v4277 = vadd.f32 %v3963, %v4153
      %v4278 = vadd.f32 %v3964, %v4156
      %v4279 = vadd.f32 %v3965, %v4161
      %v4280 = vadd.f32 %v3966, %v4164
      %v4281 = vadd.f32 %v3967, %v4169
      %v4282 = vadd.f32 %v3968, %v4172
      %v4283 = vadd.f32 %v3969, %v4177
      %v4284 = vadd.f32 %v3970, %v4180
      %v4285 = vadd.f32 %v3971, %v4185
      %v4286 = vadd.f32 %v3972, %v4188
      %v4287 = vadd.f32 %v3973, %v4193
      %v4288 = vadd.f32 %v3974, %v4196
      %v4289 = vadd.f32 %v3975, %v4201
      %v4290 = vadd.f32 %v3976, %v4204
      %v4291 = vadd.f32 %v3977, %v4209
      %v4292 = vadd.f32 %v3978, %v4212
      %v4293 = vadd.f32 %v3979, %v4217
      %v4294 = vadd.f32 %v3980, %v4220
      %v4295 = vadd.f32 %v3981, %v4225
      %v4296 = vadd.f32 %v3982, %v4228
      %v4297 = vadd.f32 %v3983, %v4233
      %v4298 = vadd.f32 %v3984, %v4236
      %v4299 = vadd.f32 %v3985, %v4241
      %v4300 = vadd.f32 %v3986, %v4244
      %v4301 = vadd.f32 %v3987, %v4249
      %v4302 = vadd.f32 %v3988, %v4252
      %v4303 = vadd.f32 %v3989, %v4257
      %v4304 = vadd.f32 %v3990, %v4260
      %v4305 = vadd.f32 %v3991, %v4265
      %v4306 = vadd.f32 %v3992, %v4268
      %v4307 = vld [vmem:[%s192 + $0xa8] sm:$0x3]
      %s4308 = scalar_lea.vmem %s1, 32
      %v4309 = vld [vmem:[%s4308] sm:$0xf]
      %v4311 = vunpack.c.l.b16 %v4307
      %v4312 = vpack.c.b16 %v4311, %v4311
      %vm4313 = vsmask.f32 6400
      %v4315 = vshrl.u32 %v3998, 16
      %v4317 = vrot.slane %v4315, 1
      %v4318 = vshll.u32 %v3998, 16
      %v4320 = vrot.slane %v4318, 2
      %v4321 = vor.u32 %v4317, %v4320
      %v4322 = vrot.slane %v3587, 1
      %v4323 = vrot.slane %v3583, 2
      %v4324 = vor.u32 %v4322, %v4323
      %v4325 = vsel %vm4313, %v4321, %v4324
      %v4326 = vrot.slane %v3595, 1
      %v4327 = vrot.slane %v3591, 2
      %v4328 = vor.u32 %v4326, %v4327
      %v4329 = vsel %vm4313, %v4324, %v4328
      %v4330 = vrot.slane %v3603, 1
      %v4331 = vrot.slane %v3599, 2
      %v4332 = vor.u32 %v4330, %v4331
      %v4333 = vsel %vm4313, %v4328, %v4332
      %v4334 = vrot.slane %v3611, 1
      %v4335 = vrot.slane %v3607, 2
      %v4336 = vor.u32 %v4334, %v4335
      %v4337 = vsel %vm4313, %v4332, %v4336
      %v4338 = vrot.slane %v3619, 1
      %v4339 = vrot.slane %v3615, 2
      %v4340 = vor.u32 %v4338, %v4339
      %v4341 = vsel %vm4313, %v4336, %v4340
      %v4342 = vrot.slane %v3627, 1
      %v4343 = vrot.slane %v3623, 2
      %v4344 = vor.u32 %v4342, %v4343
      %v4345 = vsel %vm4313, %v4340, %v4344
      %v4346 = vrot.slane %v3635, 1
      %v4347 = vrot.slane %v3631, 2
      %v4348 = vor.u32 %v4346, %v4347
      %v4349 = vsel %vm4313, %v4344, %v4348
      %v4350 = vrot.slane %v3643, 1
      %v4351 = vrot.slane %v3639, 2
      %v4352 = vor.u32 %v4350, %v4351
      %v4353 = vsel %vm4313, %v4348, %v4352
      %v4354 = vrot.slane %v3651, 1
      %v4355 = vrot.slane %v3647, 2
      %v4356 = vor.u32 %v4354, %v4355
      %v4357 = vsel %vm4313, %v4352, %v4356
      %v4358 = vrot.slane %v3659, 1
      %v4359 = vrot.slane %v3655, 2
      %v4360 = vor.u32 %v4358, %v4359
      %v4361 = vsel %vm4313, %v4356, %v4360
      %v4362 = vrot.slane %v3667, 1
      %v4363 = vrot.slane %v3663, 2
      %v4364 = vor.u32 %v4362, %v4363
      %v4365 = vsel %vm4313, %v4360, %v4364
      %v4366 = vrot.slane %v3675, 1
      %v4367 = vrot.slane %v3671, 2
      %v4368 = vor.u32 %v4366, %v4367
      %v4369 = vsel %vm4313, %v4364, %v4368
      %v4370 = vrot.slane %v3683, 1
      %v4371 = vrot.slane %v3679, 2
      %v4372 = vor.u32 %v4370, %v4371
      %v4373 = vsel %vm4313, %v4368, %v4372
      %v4374 = vrot.slane %v3691, 1
      %v4375 = vrot.slane %v3687, 2
      %v4376 = vor.u32 %v4374, %v4375
      %v4377 = vsel %vm4313, %v4372, %v4376
      %v4378 = vrot.slane %v3699, 1
      %v4379 = vrot.slane %v3695, 2
      %v4380 = vor.u32 %v4378, %v4379
      %v4381 = vsel %vm4313, %v4376, %v4380
      %v4382 = vrot.slane %v3707, 1
      %v4383 = vrot.slane %v3703, 2
      %v4384 = vor.u32 %v4382, %v4383
      %v4385 = vsel %vm4313, %v4380, %v4384
      %v4386 = vrot.slane %v3715, 1
      %v4387 = vrot.slane %v3711, 2
      %v4388 = vor.u32 %v4386, %v4387
      %v4389 = vsel %vm4313, %v4384, %v4388
      %v4391 = vshrl.u32 %v4312, 16
      %v4393 = vrot.slane %v4391, 1
      %v4394 = vshll.u32 %v4312, 16
      %v4396 = vrot.slane %v4394, 2
      %v4397 = vor.u32 %v4393, %v4396
      %v4398 = vsel %vm4313, %v4388, %v4397
      %v4400 = vsel %vm199, %v4325, 0
      %v4403 = vsel %vm199, %v4329, 0
      %v4406 = vsel %vm199, %v4333, 0
      %v4409 = vsel %vm199, %v4337, 0
      %v4412 = vsel %vm199, %v4341, 0
      %v4415 = vsel %vm199, %v4345, 0
      %v4418 = vsel %vm199, %v4349, 0
      %v4421 = vsel %vm199, %v4353, 0
      %v4424 = vsel %vm199, %v4357, 0
      %v4427 = vsel %vm199, %v4361, 0
      %v4430 = vsel %vm199, %v4365, 0
      %v4433 = vsel %vm199, %v4369, 0
      %v4436 = vsel %vm199, %v4373, 0
      %v4439 = vsel %vm199, %v4377, 0
      %v4442 = vsel %vm199, %v4381, 0
      %v4445 = vsel %vm199, %v4385, 0
      %v4448 = vsel %vm199, %v4389, 0
      %v4451 = vsel %vm199, %v4398, 0
      %v4454 = vsel %vm1079, %v4309, 0
      %4456 = vmatprep.subr.bf16.mxu0 0
      %4457 = vmatpush1.bf16.msra.mxu0 %v4454
      %4458 = vmatprep.subr.bf16.mxu0 0
      %4459 = vmatpush1.bf16.msra.mxu0 0
      %4460 = vmatprep.subr.bf16.mxu0 0
      %4461 = vmatpush1.bf16.msra.mxu0 0
      %4462 = vmatprep.subr.bf16.mxu0 0
      %4463 = vmatpush1.bf16.msra.mxu0 0
      %4464 = vmatprep.subr.bf16.mxu0 0
      %4465 = vmatpush1.bf16.msra.mxu0 0
      %4466 = vmatprep.subr.bf16.mxu0 0
      %4467 = vmatpush1.bf16.msra.mxu0 0
      %4468 = vmatprep.subr.bf16.mxu0 0
      %4469 = vmatpush1.bf16.msra.mxu0 0
      %4470 = vmatprep.subr.bf16.mxu0 0
      %4471 = vmatpush1.bf16.msra.mxu0 0
      %4472 = vmatprep.subr.bf16.mxu0 0
      %4473 = vmatpush1.bf16.msra.mxu0 0
      %4474 = vmatprep.subr.bf16.mxu0 0
      %4475 = vmatpush1.bf16.msra.mxu0 0
      %4476 = vmatprep.subr.bf16.mxu0 0
      %4477 = vmatpush1.bf16.msra.mxu0 0
      %4478 = vmatprep.subr.bf16.mxu0 0
      %4479 = vmatpush1.bf16.msra.mxu0 0
      %4480 = vmatprep.subr.bf16.mxu0 0
      %4481 = vmatpush1.bf16.msra.mxu0 0
      %4482 = vmatprep.subr.bf16.mxu0 0
      %4483 = vmatpush1.bf16.msra.mxu0 0
      %4484 = vmatprep.subr.bf16.mxu0 0
      %4485 = vmatpush1.bf16.msra.mxu0 0
      %4486 = vmatprep.subr.bf16.mxu0 0
      %4487 = vmatpush1.bf16.msra.mxu0 0
      %4488 = vmatprep.mubr.bf16.mxu0 0
      %4489 = vmatmul.mubr.bf16.gmra.mrb[0].mxu0 %v4400
      %v4490 = vpop.f32.mrb[0].mxu0
      %v4491 = vadd.f32 0.0, %v4490
      %v4492 = vpop.f32.mrb[0].mxu0
      %v4493 = vpop.f32.mrb[0].mxu0
      %v4494 = vadd.f32 0.0, %v4493
      %v4495 = vpop.f32.mrb[0].mxu0
      %4496 = vmatprep.mubr.bf16.mxu0 0
      %4497 = vmatmul.mubr.bf16.gmra.mrb[0].mxu0 %v4403
      %v4498 = vpop.f32.mrb[0].mxu0
      %v4499 = vadd.f32 0.0, %v4498
      %v4500 = vpop.f32.mrb[0].mxu0
      %v4501 = vpop.f32.mrb[0].mxu0
      %v4502 = vadd.f32 0.0, %v4501
      %v4503 = vpop.f32.mrb[0].mxu0
      %4504 = vmatprep.mubr.bf16.mxu0 0
      %4505 = vmatmul.mubr.bf16.gmra.mrb[0].mxu0 %v4406
      %v4506 = vpop.f32.mrb[0].mxu0
      %v4507 = vadd.f32 0.0, %v4506
      %v4508 = vpop.f32.mrb[0].mxu0
      %v4509 = vpop.f32.mrb[0].mxu0
      %v4510 = vadd.f32 0.0, %v4509
      %v4511 = vpop.f32.mrb[0].mxu0
      %4512 = vmatprep.mubr.bf16.mxu0 0
      %4513 = vmatmul.mubr.bf16.gmra.mrb[0].mxu0 %v4409
      %v4514 = vpop.f32.mrb[0].mxu0
      %v4515 = vadd.f32 0.0, %v4514
      %v4516 = vpop.f32.mrb[0].mxu0
      %v4517 = vpop.f32.mrb[0].mxu0
      %v4518 = vadd.f32 0.0, %v4517
      %v4519 = vpop.f32.mrb[0].mxu0
      %4520 = vmatprep.mubr.bf16.mxu0 0
      %4521 = vmatmul.mubr.bf16.gmra.mrb[0].mxu0 %v4412
      %v4522 = vpop.f32.mrb[0].mxu0
      %v4523 = vadd.f32 0.0, %v4522
      %v4524 = vpop.f32.mrb[0].mxu0
      %v4525 = vpop.f32.mrb[0].mxu0
      %v4526 = vadd.f32 0.0, %v4525
      %v4527 = vpop.f32.mrb[0].mxu0
      %4528 = vmatprep.mubr.bf16.mxu0 0
      %4529 = vmatmul.mubr.bf16.gmra.mrb[0].mxu0 %v4415
      %v4530 = vpop.f32.mrb[0].mxu0
      %v4531 = vadd.f32 0.0, %v4530
      %v4532 = vpop.f32.mrb[0].mxu0
      %v4533 = vpop.f32.mrb[0].mxu0
      %v4534 = vadd.f32 0.0, %v4533
      %v4535 = vpop.f32.mrb[0].mxu0
      %4536 = vmatprep.mubr.bf16.mxu0 0
      %4537 = vmatmul.mubr.bf16.gmra.mrb[0].mxu0 %v4418
      %v4538 = vpop.f32.mrb[0].mxu0
      %v4539 = vadd.f32 0.0, %v4538
      %v4540 = vpop.f32.mrb[0].mxu0
      %v4541 = vpop.f32.mrb[0].mxu0
      %v4542 = vadd.f32 0.0, %v4541
      %v4543 = vpop.f32.mrb[0].mxu0
      %4544 = vmatprep.mubr.bf16.mxu0 0
      %4545 = vmatmul.mubr.bf16.gmra.mrb[0].mxu0 %v4421
      %v4546 = vpop.f32.mrb[0].mxu0
      %v4547 = vadd.f32 0.0, %v4546
      %v4548 = vpop.f32.mrb[0].mxu0
      %v4549 = vpop.f32.mrb[0].mxu0
      %v4550 = vadd.f32 0.0, %v4549
      %v4551 = vpop.f32.mrb[0].mxu0
      %4552 = vmatprep.mubr.bf16.mxu0 0
      %4553 = vmatmul.mubr.bf16.gmra.mrb[0].mxu0 %v4424
      %v4554 = vpop.f32.mrb[0].mxu0
      %v4555 = vadd.f32 0.0, %v4554
      %v4556 = vpop.f32.mrb[0].mxu0
      %v4557 = vpop.f32.mrb[0].mxu0
      %v4558 = vadd.f32 0.0, %v4557
      %v4559 = vpop.f32.mrb[0].mxu0
      %4560 = vmatprep.mubr.bf16.mxu0 0
      %4561 = vmatmul.mubr.bf16.gmra.mrb[0].mxu0 %v4427
      %v4562 = vpop.f32.mrb[0].mxu0
      %v4563 = vadd.f32 0.0, %v4562
      %v4564 = vpop.f32.mrb[0].mxu0
      %v4565 = vpop.f32.mrb[0].mxu0
      %v4566 = vadd.f32 0.0, %v4565
      %v4567 = vpop.f32.mrb[0].mxu0
      %4568 = vmatprep.mubr.bf16.mxu0 0
      %4569 = vmatmul.mubr.bf16.gmra.mrb[0].mxu0 %v4430
      %v4570 = vpop.f32.mrb[0].mxu0
      %v4571 = vadd.f32 0.0, %v4570
      %v4572 = vpop.f32.mrb[0].mxu0
      %v4573 = vpop.f32.mrb[0].mxu0
      %v4574 = vadd.f32 0.0, %v4573
      %v4575 = vpop.f32.mrb[0].mxu0
      %4576 = vmatprep.mubr.bf16.mxu0 0
      %4577 = vmatmul.mubr.bf16.gmra.mrb[0].mxu0 %v4433
      %v4578 = vpop.f32.mrb[0].mxu0
      %v4579 = vadd.f32 0.0, %v4578
      %v4580 = vpop.f32.mrb[0].mxu0
      %v4581 = vpop.f32.mrb[0].mxu0
      %v4582 = vadd.f32 0.0, %v4581
      %v4583 = vpop.f32.mrb[0].mxu0
      %4584 = vmatprep.mubr.bf16.mxu0 0
      %4585 = vmatmul.mubr.bf16.gmra.mrb[0].mxu0 %v4436
      %v4586 = vpop.f32.mrb[0].mxu0
      %v4587 = vadd.f32 0.0, %v4586
      %v4588 = vpop.f32.mrb[0].mxu0
      %v4589 = vpop.f32.mrb[0].mxu0
      %v4590 = vadd.f32 0.0, %v4589
      %v4591 = vpop.f32.mrb[0].mxu0
      %4592 = vmatprep.mubr.bf16.mxu0 0
      %4593 = vmatmul.mubr.bf16.gmra.mrb[0].mxu0 %v4439
      %v4594 = vpop.f32.mrb[0].mxu0
      %v4595 = vadd.f32 0.0, %v4594
      %v4596 = vpop.f32.mrb[0].mxu0
      %v4597 = vpop.f32.mrb[0].mxu0
      %v4598 = vadd.f32 0.0, %v4597
      %v4599 = vpop.f32.mrb[0].mxu0
      %4600 = vmatprep.mubr.bf16.mxu0 0
      %4601 = vmatmul.mubr.bf16.gmra.mrb[0].mxu0 %v4442
      %v4602 = vpop.f32.mrb[0].mxu0
      %v4603 = vadd.f32 0.0, %v4602
      %v4604 = vpop.f32.mrb[0].mxu0
      %v4605 = vpop.f32.mrb[0].mxu0
      %v4606 = vadd.f32 0.0, %v4605
      %v4607 = vpop.f32.mrb[0].mxu0
      %4608 = vmatprep.mubr.bf16.mxu0 0
      %4609 = vmatmul.mubr.bf16.gmra.mrb[0].mxu0 %v4445
      %v4610 = vpop.f32.mrb[0].mxu0
      %v4611 = vadd.f32 0.0, %v4610
      %v4612 = vpop.f32.mrb[0].mxu0
      %v4613 = vpop.f32.mrb[0].mxu0
      %v4614 = vadd.f32 0.0, %v4613
      %v4615 = vpop.f32.mrb[0].mxu0
      %4616 = vmatprep.mubr.bf16.mxu0 0
      %4617 = vmatmul.mubr.bf16.gmra.mrb[0].mxu0 %v4448
      %v4618 = vpop.f32.mrb[0].mxu0
      %v4619 = vadd.f32 0.0, %v4618
      %v4620 = vpop.f32.mrb[0].mxu0
      %v4621 = vpop.f32.mrb[0].mxu0
      %v4622 = vadd.f32 0.0, %v4621
      %v4623 = vpop.f32.mrb[0].mxu0
      %4624 = vmatprep.mubr.bf16.mxu0 0
      %4625 = vmatmul.mubr.bf16.gmra.mrb[0].mxu0 %v4451
      %v4626 = vpop.f32.mrb[0].mxu0
      %v4627 = vadd.f32 0.0, %v4626
      %v4628 = vpop.f32.mrb[0].mxu0
      %v4629 = vpop.f32.mrb[0].mxu0
      %v4630 = vadd.f32 0.0, %v4629
      %v4631 = vpop.f32.mrb[0].mxu0
      %4632 = vdwg.mxu0
      %v4633 = vadd.f32 %v4271, %v4491
      %v4634 = vadd.f32 %v4272, %v4494
      %v4635 = vadd.f32 %v4273, %v4499
      %v4636 = vadd.f32 %v4274, %v4502
      %v4637 = vadd.f32 %v4275, %v4507
      %v4638 = vadd.f32 %v4276, %v4510
      %v4639 = vadd.f32 %v4277, %v4515
      %v4640 = vadd.f32 %v4278, %v4518
      %v4641 = vadd.f32 %v4279, %v4523
      %v4642 = vadd.f32 %v4280, %v4526
      %v4643 = vadd.f32 %v4281, %v4531
      %v4644 = vadd.f32 %v4282, %v4534
      %v4645 = vadd.f32 %v4283, %v4539
      %v4646 = vadd.f32 %v4284, %v4542
      %v4647 = vadd.f32 %v4285, %v4547
      %v4648 = vadd.f32 %v4286, %v4550
      %v4649 = vadd.f32 %v4287, %v4555
      %v4650 = vadd.f32 %v4288, %v4558
      %v4651 = vadd.f32 %v4289, %v4563
      %v4652 = vadd.f32 %v4290, %v4566
      %v4653 = vadd.f32 %v4291, %v4571
      %v4654 = vadd.f32 %v4292, %v4574
      %v4655 = vadd.f32 %v4293, %v4579
      %v4656 = vadd.f32 %v4294, %v4582
      %v4657 = vadd.f32 %v4295, %v4587
      %v4658 = vadd.f32 %v4296, %v4590
      %v4659 = vadd.f32 %v4297, %v4595
      %v4660 = vadd.f32 %v4298, %v4598
      %v4661 = vadd.f32 %v4299, %v4603
      %v4662 = vadd.f32 %v4300, %v4606
      %v4663 = vadd.f32 %v4301, %v4611
      %v4664 = vadd.f32 %v4302, %v4614
      %v4665 = vadd.f32 %v4303, %v4619
      %v4666 = vadd.f32 %v4304, %v4622
      %v4667 = vadd.f32 %v4305, %v4627
      %v4668 = vadd.f32 %v4306, %v4630
      %v4669 = vld [vmem:[%s3] sm:$0x1]
      %v4670 = vlaneseq
      %v4671 = vshrl.u32 %v4670, 7
      %v4672 = vsub.s32 0, %v4671
      %v4673 = vrot.slane %v4669, %v4672
      %v4674 = vadd.f32 %v4633, %v4673
      %v4675 = vadd.f32 %v4634, %v4673
      %v4676 = vadd.f32 %v4635, %v4673
      %v4677 = vadd.f32 %v4636, %v4673
      %v4678 = vadd.f32 %v4637, %v4673
      %v4679 = vadd.f32 %v4638, %v4673
      %v4680 = vadd.f32 %v4639, %v4673
      %v4681 = vadd.f32 %v4640, %v4673
      %v4682 = vadd.f32 %v4641, %v4673
      %v4683 = vadd.f32 %v4642, %v4673
      %v4684 = vadd.f32 %v4643, %v4673
      %v4685 = vadd.f32 %v4644, %v4673
      %v4686 = vadd.f32 %v4645, %v4673
      %v4687 = vadd.f32 %v4646, %v4673
      %v4688 = vadd.f32 %v4647, %v4673
      %v4689 = vadd.f32 %v4648, %v4673
      %v4690 = vadd.f32 %v4649, %v4673
      %v4691 = vadd.f32 %v4650, %v4673
      %v4692 = vadd.f32 %v4651, %v4673
      %v4693 = vadd.f32 %v4652, %v4673
      %v4694 = vadd.f32 %v4653, %v4673
      %v4695 = vadd.f32 %v4654, %v4673
      %v4696 = vadd.f32 %v4655, %v4673
      %v4697 = vadd.f32 %v4656, %v4673
      %v4698 = vadd.f32 %v4657, %v4673
      %v4699 = vadd.f32 %v4658, %v4673
      %v4700 = vadd.f32 %v4659, %v4673
      %v4701 = vadd.f32 %v4660, %v4673
      %v4702 = vadd.f32 %v4661, %v4673
      %v4703 = vadd.f32 %v4662, %v4673
      %v4704 = vadd.f32 %v4663, %v4673
      %v4705 = vadd.f32 %v4664, %v4673
      %v4706 = vadd.f32 %v4665, %v4673
      %v4707 = vadd.f32 %v4666, %v4673
      %v4708 = vadd.f32 %v4667, %v4673
      %v4709 = vadd.f32 %v4668, %v4673
      %v4710 = vmax.f32 %v4674, 0.0
      %v4711 = vmax.f32 %v4675, 0.0
      %v4712 = vmax.f32 %v4676, 0.0
      %v4713 = vmax.f32 %v4677, 0.0
      %v4714 = vmax.f32 %v4678, 0.0
      %v4715 = vmax.f32 %v4679, 0.0
      %v4716 = vmax.f32 %v4680, 0.0
      %v4717 = vmax.f32 %v4681, 0.0
      %v4718 = vmax.f32 %v4682, 0.0
      %v4719 = vmax.f32 %v4683, 0.0
      %v4720 = vmax.f32 %v4684, 0.0
      %v4721 = vmax.f32 %v4685, 0.0
      %v4722 = vmax.f32 %v4686, 0.0
      %v4723 = vmax.f32 %v4687, 0.0
      %v4724 = vmax.f32 %v4688, 0.0
      %v4725 = vmax.f32 %v4689, 0.0
      %v4726 = vmax.f32 %v4690, 0.0
      %v4727 = vmax.f32 %v4691, 0.0
      %v4728 = vmax.f32 %v4692, 0.0
      %v4729 = vmax.f32 %v4693, 0.0
      %v4730 = vmax.f32 %v4694, 0.0
      %v4731 = vmax.f32 %v4695, 0.0
      %v4732 = vmax.f32 %v4696, 0.0
      %v4733 = vmax.f32 %v4697, 0.0
      %v4734 = vmax.f32 %v4698, 0.0
      %v4735 = vmax.f32 %v4699, 0.0
      %v4736 = vmax.f32 %v4700, 0.0
      %v4737 = vmax.f32 %v4701, 0.0
      %v4738 = vmax.f32 %v4702, 0.0
      %v4739 = vmax.f32 %v4703, 0.0
      %v4740 = vmax.f32 %v4704, 0.0
      %v4741 = vmax.f32 %v4705, 0.0
      %v4742 = vmax.f32 %v4706, 0.0
      %v4743 = vmax.f32 %v4707, 0.0
      %v4744 = vmax.f32 %v4708, 0.0
      %v4745 = vmax.f32 %v4709, 0.0
      %v4746 = vsel %vm817, 1, 0
      %v4747 = vsel %vm818, 1, 0
      %v4748 = vsel %vm819, 1, 0
      %v4749 = vsel %vm820, 1, 0
      %v4750 = vsel %vm821, 1, 0
      %v4751 = vsel %vm822, 1, 0
      %v4752 = vsel %vm823, 1, 0
      %v4753 = vsel %vm824, 1, 0
      %v4754 = vsel %vm825, 1, 0
      %v4755 = vsel %vm826, 1, 0
      %v4756 = vsel %vm827, 1, 0
      %v4757 = vsel %vm828, 1, 0
      %v4758 = vsel %vm829, 1, 0
      %v4759 = vsel %vm830, 1, 0
      %v4760 = vsel %vm831, 1, 0
      %v4761 = vsel %vm832, 1, 0
      %v4762 = vsel %vm833, 1, 0
      %v4763 = vsel %vm834, 1, 0
      %v4764 = vsel %vm835, 1, 0
      %v4765 = vsel %vm836, 1, 0
      %v4766 = vsel %vm837, 1, 0
      %v4767 = vsel %vm838, 1, 0
      %v4768 = vsel %vm839, 1, 0
      %v4769 = vsel %vm840, 1, 0
      %v4770 = vsel %vm841, 1, 0
      %v4771 = vsel %vm842, 1, 0
      %v4772 = vsel %vm843, 1, 0
      %v4773 = vsel %vm844, 1, 0
      %v4774 = vsel %vm845, 1, 0
      %v4775 = vsel %vm846, 1, 0
      %v4776 = vsel %vm847, 1, 0
      %v4777 = vsel %vm848, 1, 0
      %v4778 = vsel %vm849, 1, 0
      %v4779 = vsel %vm850, 1, 0
      %v4780 = vsel %vm851, 1, 0
      %v4781 = vsel %vm852, 1, 0
      %vm4782 = vcmp.eq.s32.totalorder %v4746, 1
      %vm4783 = vcmp.eq.s32.totalorder %v4747, 1
      %vm4784 = vcmp.eq.s32.totalorder %v4748, 1
      %vm4785 = vcmp.eq.s32.totalorder %v4749, 1
      %vm4786 = vcmp.eq.s32.totalorder %v4750, 1
      %vm4787 = vcmp.eq.s32.totalorder %v4751, 1
      %vm4788 = vcmp.eq.s32.totalorder %v4752, 1
      %vm4789 = vcmp.eq.s32.totalorder %v4753, 1
      %vm4790 = vcmp.eq.s32.totalorder %v4754, 1
      %vm4791 = vcmp.eq.s32.totalorder %v4755, 1
      %vm4792 = vcmp.eq.s32.totalorder %v4756, 1
      %vm4793 = vcmp.eq.s32.totalorder %v4757, 1
      %vm4794 = vcmp.eq.s32.totalorder %v4758, 1
      %vm4795 = vcmp.eq.s32.totalorder %v4759, 1
      %vm4796 = vcmp.eq.s32.totalorder %v4760, 1
      %vm4797 = vcmp.eq.s32.totalorder %v4761, 1
      %vm4798 = vcmp.eq.s32.totalorder %v4762, 1
      %vm4799 = vcmp.eq.s32.totalorder %v4763, 1
      %vm4800 = vcmp.eq.s32.totalorder %v4764, 1
      %vm4801 = vcmp.eq.s32.totalorder %v4765, 1
      %vm4802 = vcmp.eq.s32.totalorder %v4766, 1
      %vm4803 = vcmp.eq.s32.totalorder %v4767, 1
      %vm4804 = vcmp.eq.s32.totalorder %v4768, 1
      %vm4805 = vcmp.eq.s32.totalorder %v4769, 1
      %vm4806 = vcmp.eq.s32.totalorder %v4770, 1
      %vm4807 = vcmp.eq.s32.totalorder %v4771, 1
      %vm4808 = vcmp.eq.s32.totalorder %v4772, 1
      %vm4809 = vcmp.eq.s32.totalorder %v4773, 1
      %vm4810 = vcmp.eq.s32.totalorder %v4774, 1
      %vm4811 = vcmp.eq.s32.totalorder %v4775, 1
      %vm4812 = vcmp.eq.s32.totalorder %v4776, 1
      %vm4813 = vcmp.eq.s32.totalorder %v4777, 1
      %vm4814 = vcmp.eq.s32.totalorder %v4778, 1
      %vm4815 = vcmp.eq.s32.totalorder %v4779, 1
      %vm4816 = vcmp.eq.s32.totalorder %v4780, 1
      %vm4817 = vcmp.eq.s32.totalorder %v4781, 1
      %v4818 = vsel %vm4782, %v4710, 0.0
      %v4819 = vsel %vm4783, %v4711, 0.0
      %v4820 = vsel %vm4784, %v4712, 0.0
      %v4821 = vsel %vm4785, %v4713, 0.0
      %v4822 = vsel %vm4786, %v4714, 0.0
      %v4823 = vsel %vm4787, %v4715, 0.0
      %v4824 = vsel %vm4788, %v4716, 0.0
      %v4825 = vsel %vm4789, %v4717, 0.0
      %v4826 = vsel %vm4790, %v4718, 0.0
      %v4827 = vsel %vm4791, %v4719, 0.0
      %v4828 = vsel %vm4792, %v4720, 0.0
      %v4829 = vsel %vm4793, %v4721, 0.0
      %v4830 = vsel %vm4794, %v4722, 0.0
      %v4831 = vsel %vm4795, %v4723, 0.0
      %v4832 = vsel %vm4796, %v4724, 0.0
      %v4833 = vsel %vm4797, %v4725, 0.0
      %v4834 = vsel %vm4798, %v4726, 0.0
      %v4835 = vsel %vm4799, %v4727, 0.0
      %v4836 = vsel %vm4800, %v4728, 0.0
      %v4837 = vsel %vm4801, %v4729, 0.0
      %v4838 = vsel %vm4802, %v4730, 0.0
      %v4839 = vsel %vm4803, %v4731, 0.0
      %v4840 = vsel %vm4804, %v4732, 0.0
      %v4841 = vsel %vm4805, %v4733, 0.0
      %v4842 = vsel %vm4806, %v4734, 0.0
      %v4843 = vsel %vm4807, %v4735, 0.0
      %v4844 = vsel %vm4808, %v4736, 0.0
      %v4845 = vsel %vm4809, %v4737, 0.0
      %v4846 = vsel %vm4810, %v4738, 0.0
      %v4847 = vsel %vm4811, %v4739, 0.0
      %v4848 = vsel %vm4812, %v4740, 0.0
      %v4849 = vsel %vm4813, %v4741, 0.0
      %v4850 = vsel %vm4814, %v4742, 0.0
      %v4851 = vsel %vm4815, %v4743, 0.0
      %v4852 = vsel %vm4816, %v4744, 0.0
      %v4853 = vsel %vm4817, %v4745, 0.0
      %v4854 = vpack.c.bf16 %v4819, %v4818
      %v4855 = vpack.c.bf16 %v4821, %v4820
      %v4856 = vpack.c.bf16 %v4823, %v4822
      %v4857 = vpack.c.bf16 %v4825, %v4824
      %v4858 = vpack.c.bf16 %v4827, %v4826
      %v4859 = vpack.c.bf16 %v4829, %v4828
      %v4860 = vpack.c.bf16 %v4831, %v4830
      %v4861 = vpack.c.bf16 %v4833, %v4832
      %v4862 = vpack.c.bf16 %v4835, %v4834
      %v4863 = vpack.c.bf16 %v4837, %v4836
      %v4864 = vpack.c.bf16 %v4839, %v4838
      %v4865 = vpack.c.bf16 %v4841, %v4840
      %v4866 = vpack.c.bf16 %v4843, %v4842
      %v4867 = vpack.c.bf16 %v4845, %v4844
      %v4868 = vpack.c.bf16 %v4847, %v4846
      %v4869 = vpack.c.bf16 %v4849, %v4848
      %v4870 = vpack.c.bf16 %v4851, %v4850
      %v4871 = vpack.c.bf16 %v4853, %v4852
      %4872 = vst.msk [vmem:[#allocation2 + $0x10] sm:$0xff] %vm199, %v4854
      %4873 = vst.msk [vmem:[#allocation2 + $0x18] sm:$0xff] %vm199, %v4855
      %4874 = vst.msk [vmem:[#allocation2 + $0x20] sm:$0xff] %vm199, %v4856
      %4875 = vst.msk [vmem:[#allocation2 + $0x28] sm:$0xff] %vm199, %v4857
      %4876 = vst.msk [vmem:[#allocation2 + $0x30] sm:$0xff] %vm199, %v4858
      %4877 = vst.msk [vmem:[#allocation2 + $0x38] sm:$0xff] %vm199, %v4859
      %4878 = vst.msk [vmem:[#allocation2 + $0x40] sm:$0xff] %vm199, %v4860
      %4879 = vst.msk [vmem:[#allocation2 + $0x48] sm:$0xff] %vm199, %v4861
      %4880 = vst.msk [vmem:[#allocation2 + $0x50] sm:$0xff] %vm199, %v4862
      %4881 = vst.msk [vmem:[#allocation2 + $0x58] sm:$0xff] %vm199, %v4863
      %4882 = vst.msk [vmem:[#allocation2 + $0x60] sm:$0xff] %vm199, %v4864
      %4883 = vst.msk [vmem:[#allocation2 + $0x68] sm:$0xff] %vm199, %v4865
      %4884 = vst.msk [vmem:[#allocation2 + $0x70] sm:$0xff] %vm199, %v4866
      %4885 = vst.msk [vmem:[#allocation2 + $0x78] sm:$0xff] %vm199, %v4867
      %4886 = vst.msk [vmem:[#allocation2 + $0x80] sm:$0xff] %vm199, %v4868
      %4887 = vst.msk [vmem:[#allocation2 + $0x88] sm:$0xff] %vm199, %v4869
      %4888 = vst.msk [vmem:[#allocation2 + $0x90] sm:$0xff] %vm199, %v4870
      %4889 = vst.msk [vmem:[#allocation2 + $0x98] sm:$0xff] %vm199, %v4871
      %v4890 = vld [vmem:[#allocation2] sm:$0xc0]
      %v4891 = vld [vmem:[#allocation2 + $0x8] sm:$0xff]
      %v4892 = vld [vmem:[#allocation2 + $0x10] sm:$0xff]
      %v4893 = vld [vmem:[#allocation2 + $0x18] sm:$0xff]
      %v4894 = vld [vmem:[#allocation2 + $0x20] sm:$0xff]
      %v4895 = vld [vmem:[#allocation2 + $0x28] sm:$0xff]
      %v4896 = vld [vmem:[#allocation2 + $0x30] sm:$0xff]
      %v4897 = vld [vmem:[#allocation2 + $0x38] sm:$0xff]
      %v4898 = vld [vmem:[#allocation2 + $0x40] sm:$0xff]
      %v4899 = vld [vmem:[#allocation2 + $0x48] sm:$0xff]
      %v4900 = vld [vmem:[#allocation2 + $0x50] sm:$0xff]
      %v4901 = vld [vmem:[#allocation2 + $0x58] sm:$0xff]
      %v4902 = vld [vmem:[#allocation2 + $0x60] sm:$0xff]
      %v4903 = vld [vmem:[#allocation2 + $0x68] sm:$0xff]
      %v4904 = vld [vmem:[#allocation2 + $0x70] sm:$0xff]
      %v4905 = vld [vmem:[#allocation2 + $0x78] sm:$0xff]
      %v4906 = vld [vmem:[#allocation2 + $0x80] sm:$0xff]
      %v4907 = vld [vmem:[#allocation2 + $0x88] sm:$0xff]
      %v4908 = vld [vmem:[#allocation2 + $0x90] sm:$0x7f]
      %v4909 = vld [vmem:[%s2] sm:$0xf]
      %v4910 = vld [vmem:[#allocation2] sm:$0x80]
      %s4911 = scalar_lea.vmem %s2, 4
      %v4912 = vld [vmem:[%s4911] sm:$0xf]
      %vm4932 = vcmask 1040384
      %v4933 = vrot.slane %v4910, 7
      %v4934 = vrot.slane %v4891, 7
      %v4935 = vsel %vm4932, %v4933, %v4934
      %v4936 = vrot.slane %v4892, 7
      %v4937 = vsel %vm4932, %v4934, %v4936
      %v4938 = vrot.slane %v4893, 7
      %v4939 = vsel %vm4932, %v4936, %v4938
      %v4940 = vrot.slane %v4894, 7
      %v4941 = vsel %vm4932, %v4938, %v4940
      %v4942 = vrot.slane %v4895, 7
      %v4943 = vsel %vm4932, %v4940, %v4942
      %v4944 = vrot.slane %v4896, 7
      %v4945 = vsel %vm4932, %v4942, %v4944
      %v4946 = vrot.slane %v4897, 7
      %v4947 = vsel %vm4932, %v4944, %v4946
      %v4948 = vrot.slane %v4898, 7
      %v4949 = vsel %vm4932, %v4946, %v4948
      %v4950 = vrot.slane %v4899, 7
      %v4951 = vsel %vm4932, %v4948, %v4950
      %v4952 = vrot.slane %v4900, 7
      %v4953 = vsel %vm4932, %v4950, %v4952
      %v4954 = vrot.slane %v4901, 7
      %v4955 = vsel %vm4932, %v4952, %v4954
      %v4956 = vrot.slane %v4902, 7
      %v4957 = vsel %vm4932, %v4954, %v4956
      %v4958 = vrot.slane %v4903, 7
      %v4959 = vsel %vm4932, %v4956, %v4958
      %v4960 = vrot.slane %v4904, 7
      %v4961 = vsel %vm4932, %v4958, %v4960
      %v4962 = vrot.slane %v4905, 7
      %v4963 = vsel %vm4932, %v4960, %v4962
      %v4964 = vrot.slane %v4906, 7
      %v4965 = vsel %vm4932, %v4962, %v4964
      %v4966 = vrot.slane %v4907, 7
      %v4967 = vsel %vm4932, %v4964, %v4966
      %v4968 = vrot.slane %v4908, 7
      %v4969 = vsel %vm4932, %v4966, %v4968
      %v4971 = vsel %vm199, %v4935, 0
      %v4974 = vsel %vm199, %v4937, 0
      %v4977 = vsel %vm199, %v4939, 0
      %v4980 = vsel %vm199, %v4941, 0
      %v4983 = vsel %vm199, %v4943, 0
      %v4986 = vsel %vm199, %v4945, 0
      %v4989 = vsel %vm199, %v4947, 0
      %v4992 = vsel %vm199, %v4949, 0
      %v4995 = vsel %vm199, %v4951, 0
      %v4998 = vsel %vm199, %v4953, 0
      %v5001 = vsel %vm199, %v4955, 0
      %v5004 = vsel %vm199, %v4957, 0
      %v5007 = vsel %vm199, %v4959, 0
      %v5010 = vsel %vm199, %v4961, 0
      %v5013 = vsel %vm199, %v4963, 0
      %v5016 = vsel %vm199, %v4965, 0
      %v5019 = vsel %vm199, %v4967, 0
      %v5022 = vsel %vm199, %v4969, 0
      %v5025 = vsel %vm1079, %v4912, 0
      %5027 = vmatprep.subr.bf16.mxu0 0
      %5028 = vmatpush1.bf16.msra.mxu0 %v5025
      %5029 = vmatprep.subr.bf16.mxu0 0
      %5030 = vmatpush1.bf16.msra.mxu0 0
      %5031 = vmatprep.subr.bf16.mxu0 0
      %5032 = vmatpush1.bf16.msra.mxu0 0
      %5033 = vmatprep.subr.bf16.mxu0 0
      %5034 = vmatpush1.bf16.msra.mxu0 0
      %5035 = vmatprep.subr.bf16.mxu0 0
      %5036 = vmatpush1.bf16.msra.mxu0 0
      %5037 = vmatprep.subr.bf16.mxu0 0
      %5038 = vmatpush1.bf16.msra.mxu0 0
      %5039 = vmatprep.subr.bf16.mxu0 0
      %5040 = vmatpush1.bf16.msra.mxu0 0
      %5041 = vmatprep.subr.bf16.mxu0 0
      %5042 = vmatpush1.bf16.msra.mxu0 0
      %5043 = vmatprep.subr.bf16.mxu0 0
      %5044 = vmatpush1.bf16.msra.mxu0 0
      %5045 = vmatprep.subr.bf16.mxu0 0
      %5046 = vmatpush1.bf16.msra.mxu0 0
      %5047 = vmatprep.subr.bf16.mxu0 0
      %5048 = vmatpush1.bf16.msra.mxu0 0
      %5049 = vmatprep.subr.bf16.mxu0 0
      %5050 = vmatpush1.bf16.msra.mxu0 0
      %5051 = vmatprep.subr.bf16.mxu0 0
      %5052 = vmatpush1.bf16.msra.mxu0 0
      %5053 = vmatprep.subr.bf16.mxu0 0
      %5054 = vmatpush1.bf16.msra.mxu0 0
      %5055 = vmatprep.subr.bf16.mxu0 0
      %5056 = vmatpush1.bf16.msra.mxu0 0
      %5057 = vmatprep.subr.bf16.mxu0 0
      %5058 = vmatpush1.bf16.msra.mxu0 0
      %5059 = vmatprep.mubr.bf16.mxu0 0
      %5060 = vmatmul.mubr.bf16.gmra.mrb[0].mxu0 %v4971
      %v5061 = vpop.f32.mrb[0].mxu0
      %v5062 = vadd.f32 0.0, %v5061
      %v5063 = vpop.f32.mrb[0].mxu0
      %v5064 = vpop.f32.mrb[0].mxu0
      %v5065 = vadd.f32 0.0, %v5064
      %v5066 = vpop.f32.mrb[0].mxu0
      %5067 = vmatprep.mubr.bf16.mxu0 0
      %5068 = vmatmul.mubr.bf16.gmra.mrb[0].mxu0 %v4974
      %v5069 = vpop.f32.mrb[0].mxu0
      %v5070 = vadd.f32 0.0, %v5069
      %v5071 = vpop.f32.mrb[0].mxu0
      %v5072 = vpop.f32.mrb[0].mxu0
      %v5073 = vadd.f32 0.0, %v5072
      %v5074 = vpop.f32.mrb[0].mxu0
      %5075 = vmatprep.mubr.bf16.mxu0 0
      %5076 = vmatmul.mubr.bf16.gmra.mrb[0].mxu0 %v4977
      %v5077 = vpop.f32.mrb[0].mxu0
      %v5078 = vadd.f32 0.0, %v5077
      %v5079 = vpop.f32.mrb[0].mxu0
      %v5080 = vpop.f32.mrb[0].mxu0
      %v5081 = vadd.f32 0.0, %v5080
      %v5082 = vpop.f32.mrb[0].mxu0
      %5083 = vmatprep.mubr.bf16.mxu0 0
      %5084 = vmatmul.mubr.bf16.gmra.mrb[0].mxu0 %v4980
      %v5085 = vpop.f32.mrb[0].mxu0
      %v5086 = vadd.f32 0.0, %v5085
      %v5087 = vpop.f32.mrb[0].mxu0
      %v5088 = vpop.f32.mrb[0].mxu0
      %v5089 = vadd.f32 0.0, %v5088
      %v5090 = vpop.f32.mrb[0].mxu0
      %5091 = vmatprep.mubr.bf16.mxu0 0
      %5092 = vmatmul.mubr.bf16.gmra.mrb[0].mxu0 %v4983
      %v5093 = vpop.f32.mrb[0].mxu0
      %v5094 = vadd.f32 0.0, %v5093
      %v5095 = vpop.f32.mrb[0].mxu0
      %v5096 = vpop.f32.mrb[0].mxu0
      %v5097 = vadd.f32 0.0, %v5096
      %v5098 = vpop.f32.mrb[0].mxu0
      %5099 = vmatprep.mubr.bf16.mxu0 0
      %5100 = vmatmul.mubr.bf16.gmra.mrb[0].mxu0 %v4986
      %v5101 = vpop.f32.mrb[0].mxu0
      %v5102 = vadd.f32 0.0, %v5101
      %v5103 = vpop.f32.mrb[0].mxu0
      %v5104 = vpop.f32.mrb[0].mxu0
      %v5105 = vadd.f32 0.0, %v5104
      %v5106 = vpop.f32.mrb[0].mxu0
      %5107 = vmatprep.mubr.bf16.mxu0 0
      %5108 = vmatmul.mubr.bf16.gmra.mrb[0].mxu0 %v4989
      %v5109 = vpop.f32.mrb[0].mxu0
      %v5110 = vadd.f32 0.0, %v5109
      %v5111 = vpop.f32.mrb[0].mxu0
      %v5112 = vpop.f32.mrb[0].mxu0
      %v5113 = vadd.f32 0.0, %v5112
      %v5114 = vpop.f32.mrb[0].mxu0
      %5115 = vmatprep.mubr.bf16.mxu0 0
      %5116 = vmatmul.mubr.bf16.gmra.mrb[0].mxu0 %v4992
      %v5117 = vpop.f32.mrb[0].mxu0
      %v5118 = vadd.f32 0.0, %v5117
      %v5119 = vpop.f32.mrb[0].mxu0
      %v5120 = vpop.f32.mrb[0].mxu0
      %v5121 = vadd.f32 0.0, %v5120
      %v5122 = vpop.f32.mrb[0].mxu0
      %5123 = vmatprep.mubr.bf16.mxu0 0
      %5124 = vmatmul.mubr.bf16.gmra.mrb[0].mxu0 %v4995
      %v5125 = vpop.f32.mrb[0].mxu0
      %v5126 = vadd.f32 0.0, %v5125
      %v5127 = vpop.f32.mrb[0].mxu0
      %v5128 = vpop.f32.mrb[0].mxu0
      %v5129 = vadd.f32 0.0, %v5128
      %v5130 = vpop.f32.mrb[0].mxu0
      %5131 = vmatprep.mubr.bf16.mxu0 0
      %5132 = vmatmul.mubr.bf16.gmra.mrb[0].mxu0 %v4998
      %v5133 = vpop.f32.mrb[0].mxu0
      %v5134 = vadd.f32 0.0, %v5133
      %v5135 = vpop.f32.mrb[0].mxu0
      %v5136 = vpop.f32.mrb[0].mxu0
      %v5137 = vadd.f32 0.0, %v5136
      %v5138 = vpop.f32.mrb[0].mxu0
      %5139 = vmatprep.mubr.bf16.mxu0 0
      %5140 = vmatmul.mubr.bf16.gmra.mrb[0].mxu0 %v5001
      %v5141 = vpop.f32.mrb[0].mxu0
      %v5142 = vadd.f32 0.0, %v5141
      %v5143 = vpop.f32.mrb[0].mxu0
      %v5144 = vpop.f32.mrb[0].mxu0
      %v5145 = vadd.f32 0.0, %v5144
      %v5146 = vpop.f32.mrb[0].mxu0
      %5147 = vmatprep.mubr.bf16.mxu0 0
      %5148 = vmatmul.mubr.bf16.gmra.mrb[0].mxu0 %v5004
      %v5149 = vpop.f32.mrb[0].mxu0
      %v5150 = vadd.f32 0.0, %v5149
      %v5151 = vpop.f32.mrb[0].mxu0
      %v5152 = vpop.f32.mrb[0].mxu0
      %v5153 = vadd.f32 0.0, %v5152
      %v5154 = vpop.f32.mrb[0].mxu0
      %5155 = vmatprep.mubr.bf16.mxu0 0
      %5156 = vmatmul.mubr.bf16.gmra.mrb[0].mxu0 %v5007
      %v5157 = vpop.f32.mrb[0].mxu0
      %v5158 = vadd.f32 0.0, %v5157
      %v5159 = vpop.f32.mrb[0].mxu0
      %v5160 = vpop.f32.mrb[0].mxu0
      %v5161 = vadd.f32 0.0, %v5160
      %v5162 = vpop.f32.mrb[0].mxu0
      %5163 = vmatprep.mubr.bf16.mxu0 0
      %5164 = vmatmul.mubr.bf16.gmra.mrb[0].mxu0 %v5010
      %v5165 = vpop.f32.mrb[0].mxu0
      %v5166 = vadd.f32 0.0, %v5165
      %v5167 = vpop.f32.mrb[0].mxu0
      %v5168 = vpop.f32.mrb[0].mxu0
      %v5169 = vadd.f32 0.0, %v5168
      %v5170 = vpop.f32.mrb[0].mxu0
      %5171 = vmatprep.mubr.bf16.mxu0 0
      %5172 = vmatmul.mubr.bf16.gmra.mrb[0].mxu0 %v5013
      %v5173 = vpop.f32.mrb[0].mxu0
      %v5174 = vadd.f32 0.0, %v5173
      %v5175 = vpop.f32.mrb[0].mxu0
      %v5176 = vpop.f32.mrb[0].mxu0
      %v5177 = vadd.f32 0.0, %v5176
      %v5178 = vpop.f32.mrb[0].mxu0
      %5179 = vmatprep.mubr.bf16.mxu0 0
      %5180 = vmatmul.mubr.bf16.gmra.mrb[0].mxu0 %v5016
      %v5181 = vpop.f32.mrb[0].mxu0
      %v5182 = vadd.f32 0.0, %v5181
      %v5183 = vpop.f32.mrb[0].mxu0
      %v5184 = vpop.f32.mrb[0].mxu0
      %v5185 = vadd.f32 0.0, %v5184
      %v5186 = vpop.f32.mrb[0].mxu0
      %5187 = vmatprep.mubr.bf16.mxu0 0
      %5188 = vmatmul.mubr.bf16.gmra.mrb[0].mxu0 %v5019
      %v5189 = vpop.f32.mrb[0].mxu0
      %v5190 = vadd.f32 0.0, %v5189
      %v5191 = vpop.f32.mrb[0].mxu0
      %v5192 = vpop.f32.mrb[0].mxu0
      %v5193 = vadd.f32 0.0, %v5192
      %v5194 = vpop.f32.mrb[0].mxu0
      %5195 = vmatprep.mubr.bf16.mxu0 0
      %5196 = vmatmul.mubr.bf16.gmra.mrb[0].mxu0 %v5022
      %v5197 = vpop.f32.mrb[0].mxu0
      %v5198 = vadd.f32 0.0, %v5197
      %v5199 = vpop.f32.mrb[0].mxu0
      %v5200 = vpop.f32.mrb[0].mxu0
      %v5201 = vadd.f32 0.0, %v5200
      %v5202 = vpop.f32.mrb[0].mxu0
      %5203 = vdwg.mxu0
      %vm5204 = vsmask.f32 1280
      %v5206 = vshrl.u32 %v4890, 16
      %v5208 = vrot.slane %v5206, 6
      %v5209 = vshll.u32 %v4890, 16
      %v5211 = vrot.slane %v5209, 7
      %v5212 = vor.u32 %v5208, %v5211
      %v5214 = vshrl.u32 %v4891, 16
      %v5216 = vrot.slane %v5214, 6
      %v5217 = vshll.u32 %v4891, 16
      %v5219 = vrot.slane %v5217, 7
      %v5220 = vor.u32 %v5216, %v5219
      %v5221 = vsel %vm5204, %v5212, %v5220
      %v5223 = vshrl.u32 %v4892, 16
      %v5225 = vrot.slane %v5223, 6
      %v5226 = vshll.u32 %v4892, 16
      %v5228 = vrot.slane %v5226, 7
      %v5229 = vor.u32 %v5225, %v5228
      %v5230 = vsel %vm5204, %v5220, %v5229
      %v5232 = vshrl.u32 %v4893, 16
      %v5234 = vrot.slane %v5232, 6
      %v5235 = vshll.u32 %v4893, 16
      %v5237 = vrot.slane %v5235, 7
      %v5238 = vor.u32 %v5234, %v5237
      %v5239 = vsel %vm5204, %v5229, %v5238
      %v5241 = vshrl.u32 %v4894, 16
      %v5243 = vrot.slane %v5241, 6
      %v5244 = vshll.u32 %v4894, 16
      %v5246 = vrot.slane %v5244, 7
      %v5247 = vor.u32 %v5243, %v5246
      %v5248 = vsel %vm5204, %v5238, %v5247
      %v5250 = vshrl.u32 %v4895, 16
      %v5252 = vrot.slane %v5250, 6
      %v5253 = vshll.u32 %v4895, 16
      %v5255 = vrot.slane %v5253, 7
      %v5256 = vor.u32 %v5252, %v5255
      %v5257 = vsel %vm5204, %v5247, %v5256
      %v5259 = vshrl.u32 %v4896, 16
      %v5261 = vrot.slane %v5259, 6
      %v5262 = vshll.u32 %v4896, 16
      %v5264 = vrot.slane %v5262, 7
      %v5265 = vor.u32 %v5261, %v5264
      %v5266 = vsel %vm5204, %v5256, %v5265
      %v5268 = vshrl.u32 %v4897, 16
      %v5270 = vrot.slane %v5268, 6
      %v5271 = vshll.u32 %v4897, 16
      %v5273 = vrot.slane %v5271, 7
      %v5274 = vor.u32 %v5270, %v5273
      %v5275 = vsel %vm5204, %v5265, %v5274
      %v5277 = vshrl.u32 %v4898, 16
      %v5279 = vrot.slane %v5277, 6
      %v5280 = vshll.u32 %v4898, 16
      %v5282 = vrot.slane %v5280, 7
      %v5283 = vor.u32 %v5279, %v5282
      %v5284 = vsel %vm5204, %v5274, %v5283
      %v5286 = vshrl.u32 %v4899, 16
      %v5288 = vrot.slane %v5286, 6
      %v5289 = vshll.u32 %v4899, 16
      %v5291 = vrot.slane %v5289, 7
      %v5292 = vor.u32 %v5288, %v5291
      %v5293 = vsel %vm5204, %v5283, %v5292
      %v5295 = vshrl.u32 %v4900, 16
      %v5297 = vrot.slane %v5295, 6
      %v5298 = vshll.u32 %v4900, 16
      %v5300 = vrot.slane %v5298, 7
      %v5301 = vor.u32 %v5297, %v5300
      %v5302 = vsel %vm5204, %v5292, %v5301
      %v5304 = vshrl.u32 %v4901, 16
      %v5306 = vrot.slane %v5304, 6
      %v5307 = vshll.u32 %v4901, 16
      %v5309 = vrot.slane %v5307, 7
      %v5310 = vor.u32 %v5306, %v5309
      %v5311 = vsel %vm5204, %v5301, %v5310
      %v5313 = vshrl.u32 %v4902, 16
      %v5315 = vrot.slane %v5313, 6
      %v5316 = vshll.u32 %v4902, 16
      %v5318 = vrot.slane %v5316, 7
      %v5319 = vor.u32 %v5315, %v5318
      %v5320 = vsel %vm5204, %v5310, %v5319
      %v5322 = vshrl.u32 %v4903, 16
      %v5324 = vrot.slane %v5322, 6
      %v5325 = vshll.u32 %v4903, 16
      %v5327 = vrot.slane %v5325, 7
      %v5328 = vor.u32 %v5324, %v5327
      %v5329 = vsel %vm5204, %v5319, %v5328
      %v5331 = vshrl.u32 %v4904, 16
      %v5333 = vrot.slane %v5331, 6
      %v5334 = vshll.u32 %v4904, 16
      %v5336 = vrot.slane %v5334, 7
      %v5337 = vor.u32 %v5333, %v5336
      %v5338 = vsel %vm5204, %v5328, %v5337
      %v5340 = vshrl.u32 %v4905, 16
      %v5342 = vrot.slane %v5340, 6
      %v5343 = vshll.u32 %v4905, 16
      %v5345 = vrot.slane %v5343, 7
      %v5346 = vor.u32 %v5342, %v5345
      %v5347 = vsel %vm5204, %v5337, %v5346
      %v5349 = vshrl.u32 %v4906, 16
      %v5351 = vrot.slane %v5349, 6
      %v5352 = vshll.u32 %v4906, 16
      %v5354 = vrot.slane %v5352, 7
      %v5355 = vor.u32 %v5351, %v5354
      %v5356 = vsel %vm5204, %v5346, %v5355
      %v5358 = vshrl.u32 %v4907, 16
      %v5360 = vrot.slane %v5358, 6
      %v5361 = vshll.u32 %v4907, 16
      %v5363 = vrot.slane %v5361, 7
      %v5364 = vor.u32 %v5360, %v5363
      %v5365 = vsel %vm5204, %v5355, %v5364
      %v5367 = vshrl.u32 %v4908, 16
      %v5369 = vrot.slane %v5367, 6
      %v5370 = vshll.u32 %v4908, 16
      %v5372 = vrot.slane %v5370, 7
      %v5373 = vor.u32 %v5369, %v5372
      %v5374 = vsel %vm5204, %v5364, %v5373
      %v5376 = vsel %vm199, %v5221, 0
      %v5379 = vsel %vm199, %v5230, 0
      %v5382 = vsel %vm199, %v5239, 0
      %v5385 = vsel %vm199, %v5248, 0
      %v5388 = vsel %vm199, %v5257, 0
      %v5391 = vsel %vm199, %v5266, 0
      %v5394 = vsel %vm199, %v5275, 0
      %v5397 = vsel %vm199, %v5284, 0
      %v5400 = vsel %vm199, %v5293, 0
      %v5403 = vsel %vm199, %v5302, 0
      %v5406 = vsel %vm199, %v5311, 0
      %v5409 = vsel %vm199, %v5320, 0
      %v5412 = vsel %vm199, %v5329, 0
      %v5415 = vsel %vm199, %v5338, 0
      %v5418 = vsel %vm199, %v5347, 0
      %v5421 = vsel %vm199, %v5356, 0
      %v5424 = vsel %vm199, %v5365, 0
      %v5427 = vsel %vm199, %v5374, 0
      %v5430 = vsel %vm1079, %v4909, 0
      %5432 = vmatprep.subr.bf16.mxu0 0
      %5433 = vmatpush1.bf16.msra.mxu0 %v5430
      %5434 = vmatprep.subr.bf16.mxu0 0
      %5435 = vmatpush1.bf16.msra.mxu0 0
      %5436 = vmatprep.subr.bf16.mxu0 0
      %5437 = vmatpush1.bf16.msra.mxu0 0
      %5438 = vmatprep.subr.bf16.mxu0 0
      %5439 = vmatpush1.bf16.msra.mxu0 0
      %5440 = vmatprep.subr.bf16.mxu0 0
      %5441 = vmatpush1.bf16.msra.mxu0 0
      %5442 = vmatprep.subr.bf16.mxu0 0
      %5443 = vmatpush1.bf16.msra.mxu0 0
      %5444 = vmatprep.subr.bf16.mxu0 0
      %5445 = vmatpush1.bf16.msra.mxu0 0
      %5446 = vmatprep.subr.bf16.mxu0 0
      %5447 = vmatpush1.bf16.msra.mxu0 0
      %5448 = vmatprep.subr.bf16.mxu0 0
      %5449 = vmatpush1.bf16.msra.mxu0 0
      %5450 = vmatprep.subr.bf16.mxu0 0
      %5451 = vmatpush1.bf16.msra.mxu0 0
      %5452 = vmatprep.subr.bf16.mxu0 0
      %5453 = vmatpush1.bf16.msra.mxu0 0
      %5454 = vmatprep.subr.bf16.mxu0 0
      %5455 = vmatpush1.bf16.msra.mxu0 0
      %5456 = vmatprep.subr.bf16.mxu0 0
      %5457 = vmatpush1.bf16.msra.mxu0 0
      %5458 = vmatprep.subr.bf16.mxu0 0
      %5459 = vmatpush1.bf16.msra.mxu0 0
      %5460 = vmatprep.subr.bf16.mxu0 0
      %5461 = vmatpush1.bf16.msra.mxu0 0
      %5462 = vmatprep.subr.bf16.mxu0 0
      %5463 = vmatpush1.bf16.msra.mxu0 0
      %5464 = vmatprep.mubr.bf16.mxu0 0
      %5465 = vmatmul.mubr.bf16.gmra.mrb[0].mxu0 %v5376
      %v5466 = vpop.f32.mrb[0].mxu0
      %v5467 = vadd.f32 %v5062, %v5466
      %v5468 = vpop.f32.mrb[0].mxu0
      %v5469 = vpop.f32.mrb[0].mxu0
      %v5470 = vadd.f32 %v5065, %v5469
      %v5471 = vpop.f32.mrb[0].mxu0
      %5472 = vmatprep.mubr.bf16.mxu0 0
      %5473 = vmatmul.mubr.bf16.gmra.mrb[0].mxu0 %v5379
      %v5474 = vpop.f32.mrb[0].mxu0
      %v5475 = vadd.f32 %v5070, %v5474
      %v5476 = vpop.f32.mrb[0].mxu0
      %v5477 = vpop.f32.mrb[0].mxu0
      %v5478 = vadd.f32 %v5073, %v5477
      %v5479 = vpop.f32.mrb[0].mxu0
      %5480 = vmatprep.mubr.bf16.mxu0 0
      %5481 = vmatmul.mubr.bf16.gmra.mrb[0].mxu0 %v5382
      %v5482 = vpop.f32.mrb[0].mxu0
      %v5483 = vadd.f32 %v5078, %v5482
      %v5484 = vpop.f32.mrb[0].mxu0
      %v5485 = vpop.f32.mrb[0].mxu0
      %v5486 = vadd.f32 %v5081, %v5485
      %v5487 = vpop.f32.mrb[0].mxu0
      %5488 = vmatprep.mubr.bf16.mxu0 0
      %5489 = vmatmul.mubr.bf16.gmra.mrb[0].mxu0 %v5385
      %v5490 = vpop.f32.mrb[0].mxu0
      %v5491 = vadd.f32 %v5086, %v5490
      %v5492 = vpop.f32.mrb[0].mxu0
      %v5493 = vpop.f32.mrb[0].mxu0
      %v5494 = vadd.f32 %v5089, %v5493
      %v5495 = vpop.f32.mrb[0].mxu0
      %5496 = vmatprep.mubr.bf16.mxu0 0
      %5497 = vmatmul.mubr.bf16.gmra.mrb[0].mxu0 %v5388
      %v5498 = vpop.f32.mrb[0].mxu0
      %v5499 = vadd.f32 %v5094, %v5498
      %v5500 = vpop.f32.mrb[0].mxu0
      %v5501 = vpop.f32.mrb[0].mxu0
      %v5502 = vadd.f32 %v5097, %v5501
      %v5503 = vpop.f32.mrb[0].mxu0
      %5504 = vmatprep.mubr.bf16.mxu0 0
      %5505 = vmatmul.mubr.bf16.gmra.mrb[0].mxu0 %v5391
      %v5506 = vpop.f32.mrb[0].mxu0
      %v5507 = vadd.f32 %v5102, %v5506
      %v5508 = vpop.f32.mrb[0].mxu0
      %v5509 = vpop.f32.mrb[0].mxu0
      %v5510 = vadd.f32 %v5105, %v5509
      %v5511 = vpop.f32.mrb[0].mxu0
      %5512 = vmatprep.mubr.bf16.mxu0 0
      %5513 = vmatmul.mubr.bf16.gmra.mrb[0].mxu0 %v5394
      %v5514 = vpop.f32.mrb[0].mxu0
      %v5515 = vadd.f32 %v5110, %v5514
      %v5516 = vpop.f32.mrb[0].mxu0
      %v5517 = vpop.f32.mrb[0].mxu0
      %v5518 = vadd.f32 %v5113, %v5517
      %v5519 = vpop.f32.mrb[0].mxu0
      %5520 = vmatprep.mubr.bf16.mxu0 0
      %5521 = vmatmul.mubr.bf16.gmra.mrb[0].mxu0 %v5397
      %v5522 = vpop.f32.mrb[0].mxu0
      %v5523 = vadd.f32 %v5118, %v5522
      %v5524 = vpop.f32.mrb[0].mxu0
      %v5525 = vpop.f32.mrb[0].mxu0
      %v5526 = vadd.f32 %v5121, %v5525
      %v5527 = vpop.f32.mrb[0].mxu0
      %5528 = vmatprep.mubr.bf16.mxu0 0
      %5529 = vmatmul.mubr.bf16.gmra.mrb[0].mxu0 %v5400
      %v5530 = vpop.f32.mrb[0].mxu0
      %v5531 = vadd.f32 %v5126, %v5530
      %v5532 = vpop.f32.mrb[0].mxu0
      %v5533 = vpop.f32.mrb[0].mxu0
      %v5534 = vadd.f32 %v5129, %v5533
      %v5535 = vpop.f32.mrb[0].mxu0
      %5536 = vmatprep.mubr.bf16.mxu0 0
      %5537 = vmatmul.mubr.bf16.gmra.mrb[0].mxu0 %v5403
      %v5538 = vpop.f32.mrb[0].mxu0
      %v5539 = vadd.f32 %v5134, %v5538
      %v5540 = vpop.f32.mrb[0].mxu0
      %v5541 = vpop.f32.mrb[0].mxu0
      %v5542 = vadd.f32 %v5137, %v5541
      %v5543 = vpop.f32.mrb[0].mxu0
      %5544 = vmatprep.mubr.bf16.mxu0 0
      %5545 = vmatmul.mubr.bf16.gmra.mrb[0].mxu0 %v5406
      %v5546 = vpop.f32.mrb[0].mxu0
      %v5547 = vadd.f32 %v5142, %v5546
      %v5548 = vpop.f32.mrb[0].mxu0
      %v5549 = vpop.f32.mrb[0].mxu0
      %v5550 = vadd.f32 %v5145, %v5549
      %v5551 = vpop.f32.mrb[0].mxu0
      %5552 = vmatprep.mubr.bf16.mxu0 0
      %5553 = vmatmul.mubr.bf16.gmra.mrb[0].mxu0 %v5409
      %v5554 = vpop.f32.mrb[0].mxu0
      %v5555 = vadd.f32 %v5150, %v5554
      %v5556 = vpop.f32.mrb[0].mxu0
      %v5557 = vpop.f32.mrb[0].mxu0
      %v5558 = vadd.f32 %v5153, %v5557
      %v5559 = vpop.f32.mrb[0].mxu0
      %5560 = vmatprep.mubr.bf16.mxu0 0
      %5561 = vmatmul.mubr.bf16.gmra.mrb[0].mxu0 %v5412
      %v5562 = vpop.f32.mrb[0].mxu0
      %v5563 = vadd.f32 %v5158, %v5562
      %v5564 = vpop.f32.mrb[0].mxu0
      %v5565 = vpop.f32.mrb[0].mxu0
      %v5566 = vadd.f32 %v5161, %v5565
      %v5567 = vpop.f32.mrb[0].mxu0
      %5568 = vmatprep.mubr.bf16.mxu0 0
      %5569 = vmatmul.mubr.bf16.gmra.mrb[0].mxu0 %v5415
      %v5570 = vpop.f32.mrb[0].mxu0
      %v5571 = vadd.f32 %v5166, %v5570
      %v5572 = vpop.f32.mrb[0].mxu0
      %v5573 = vpop.f32.mrb[0].mxu0
      %v5574 = vadd.f32 %v5169, %v5573
      %v5575 = vpop.f32.mrb[0].mxu0
      %5576 = vmatprep.mubr.bf16.mxu0 0
      %5577 = vmatmul.mubr.bf16.gmra.mrb[0].mxu0 %v5418
      %v5578 = vpop.f32.mrb[0].mxu0
      %v5579 = vadd.f32 %v5174, %v5578
      %v5580 = vpop.f32.mrb[0].mxu0
      %v5581 = vpop.f32.mrb[0].mxu0
      %v5582 = vadd.f32 %v5177, %v5581
      %v5583 = vpop.f32.mrb[0].mxu0
      %5584 = vmatprep.mubr.bf16.mxu0 0
      %5585 = vmatmul.mubr.bf16.gmra.mrb[0].mxu0 %v5421
      %v5586 = vpop.f32.mrb[0].mxu0
      %v5587 = vadd.f32 %v5182, %v5586
      %v5588 = vpop.f32.mrb[0].mxu0
      %v5589 = vpop.f32.mrb[0].mxu0
      %v5590 = vadd.f32 %v5185, %v5589
      %v5591 = vpop.f32.mrb[0].mxu0
      %5592 = vmatprep.mubr.bf16.mxu0 0
      %5593 = vmatmul.mubr.bf16.gmra.mrb[0].mxu0 %v5424
      %v5594 = vpop.f32.mrb[0].mxu0
      %v5595 = vadd.f32 %v5190, %v5594
      %v5596 = vpop.f32.mrb[0].mxu0
      %v5597 = vpop.f32.mrb[0].mxu0
      %v5598 = vadd.f32 %v5193, %v5597
      %v5599 = vpop.f32.mrb[0].mxu0
      %5600 = vmatprep.mubr.bf16.mxu0 0
      %5601 = vmatmul.mubr.bf16.gmra.mrb[0].mxu0 %v5427
      %v5602 = vpop.f32.mrb[0].mxu0
      %v5603 = vadd.f32 %v5198, %v5602
      %v5604 = vpop.f32.mrb[0].mxu0
      %v5605 = vpop.f32.mrb[0].mxu0
      %v5606 = vadd.f32 %v5201, %v5605
      %v5607 = vpop.f32.mrb[0].mxu0
      %5608 = vdwg.mxu0
      %v5609 = vld [vmem:[#allocation2 + $0x90] sm:$0xff]
      %s5610 = scalar_lea.vmem %s2, 8
      %v5611 = vld [vmem:[%s5610] sm:$0xf]
      %vm5612 = vsmask.f32 256
      %v5614 = vshrl.u32 %v4910, 16
      %v5616 = vrot.slane %v5614, 7
      %v5617 = vrot.slane %v5214, 7
      %v5618 = vor.u32 %v5617, %v5217
      %v5619 = vsel %vm5612, %v5616, %v5618
      %v5620 = vrot.slane %v5223, 7
      %v5621 = vor.u32 %v5620, %v5226
      %v5622 = vsel %vm5612, %v5617, %v5621
      %v5623 = vrot.slane %v5232, 7
      %v5624 = vor.u32 %v5623, %v5235
      %v5625 = vsel %vm5612, %v5620, %v5624
      %v5626 = vrot.slane %v5241, 7
      %v5627 = vor.u32 %v5626, %v5244
      %v5628 = vsel %vm5612, %v5623, %v5627
      %v5629 = vrot.slane %v5250, 7
      %v5630 = vor.u32 %v5629, %v5253
      %v5631 = vsel %vm5612, %v5626, %v5630
      %v5632 = vrot.slane %v5259, 7
      %v5633 = vor.u32 %v5632, %v5262
      %v5634 = vsel %vm5612, %v5629, %v5633
      %v5635 = vrot.slane %v5268, 7
      %v5636 = vor.u32 %v5635, %v5271
      %v5637 = vsel %vm5612, %v5632, %v5636
      %v5638 = vrot.slane %v5277, 7
      %v5639 = vor.u32 %v5638, %v5280
      %v5640 = vsel %vm5612, %v5635, %v5639
      %v5641 = vrot.slane %v5286, 7
      %v5642 = vor.u32 %v5641, %v5289
      %v5643 = vsel %vm5612, %v5638, %v5642
      %v5644 = vrot.slane %v5295, 7
      %v5645 = vor.u32 %v5644, %v5298
      %v5646 = vsel %vm5612, %v5641, %v5645
      %v5647 = vrot.slane %v5304, 7
      %v5648 = vor.u32 %v5647, %v5307
      %v5649 = vsel %vm5612, %v5644, %v5648
      %v5650 = vrot.slane %v5313, 7
      %v5651 = vor.u32 %v5650, %v5316
      %v5652 = vsel %vm5612, %v5647, %v5651
      %v5653 = vrot.slane %v5322, 7
      %v5654 = vor.u32 %v5653, %v5325
      %v5655 = vsel %vm5612, %v5650, %v5654
      %v5656 = vrot.slane %v5331, 7
      %v5657 = vor.u32 %v5656, %v5334
      %v5658 = vsel %vm5612, %v5653, %v5657
      %v5659 = vrot.slane %v5340, 7
      %v5660 = vor.u32 %v5659, %v5343
      %v5661 = vsel %vm5612, %v5656, %v5660
      %v5662 = vrot.slane %v5349, 7
      %v5663 = vor.u32 %v5662, %v5352
      %v5664 = vsel %vm5612, %v5659, %v5663
      %v5665 = vrot.slane %v5358, 7
      %v5666 = vor.u32 %v5665, %v5361
      %v5667 = vsel %vm5612, %v5662, %v5666
      %v5669 = vshrl.u32 %v5609, 16
      %v5671 = vrot.slane %v5669, 7
      %v5672 = vshll.u32 %v5609, 16
      %v5674 = vor.u32 %v5671, %v5672
      %v5675 = vsel %vm5612, %v5665, %v5674
      %v5677 = vsel %vm199, %v5619, 0
      %v5680 = vsel %vm199, %v5622, 0
      %v5683 = vsel %vm199, %v5625, 0
      %v5686 = vsel %vm199, %v5628, 0
      %v5689 = vsel %vm199, %v5631, 0
      %v5692 = vsel %vm199, %v5634, 0
      %v5695 = vsel %vm199, %v5637, 0
      %v5698 = vsel %vm199, %v5640, 0
      %v5701 = vsel %vm199, %v5643, 0
      %v5704 = vsel %vm199, %v5646, 0
      %v5707 = vsel %vm199, %v5649, 0
      %v5710 = vsel %vm199, %v5652, 0
      %v5713 = vsel %vm199, %v5655, 0
      %v5716 = vsel %vm199, %v5658, 0
      %v5719 = vsel %vm199, %v5661, 0
      %v5722 = vsel %vm199, %v5664, 0
      %v5725 = vsel %vm199, %v5667, 0
      %v5728 = vsel %vm199, %v5675, 0
      %v5731 = vsel %vm1079, %v5611, 0
      %5733 = vmatprep.subr.bf16.mxu0 0
      %5734 = vmatpush1.bf16.msra.mxu0 %v5731
      %5735 = vmatprep.subr.bf16.mxu0 0
      %5736 = vmatpush1.bf16.msra.mxu0 0
      %5737 = vmatprep.subr.bf16.mxu0 0
      %5738 = vmatpush1.bf16.msra.mxu0 0
      %5739 = vmatprep.subr.bf16.mxu0 0
      %5740 = vmatpush1.bf16.msra.mxu0 0
      %5741 = vmatprep.subr.bf16.mxu0 0
      %5742 = vmatpush1.bf16.msra.mxu0 0
      %5743 = vmatprep.subr.bf16.mxu0 0
      %5744 = vmatpush1.bf16.msra.mxu0 0
      %5745 = vmatprep.subr.bf16.mxu0 0
      %5746 = vmatpush1.bf16.msra.mxu0 0
      %5747 = vmatprep.subr.bf16.mxu0 0
      %5748 = vmatpush1.bf16.msra.mxu0 0
      %5749 = vmatprep.subr.bf16.mxu0 0
      %5750 = vmatpush1.bf16.msra.mxu0 0
      %5751 = vmatprep.subr.bf16.mxu0 0
      %5752 = vmatpush1.bf16.msra.mxu0 0
      %5753 = vmatprep.subr.bf16.mxu0 0
      %5754 = vmatpush1.bf16.msra.mxu0 0
      %5755 = vmatprep.subr.bf16.mxu0 0
      %5756 = vmatpush1.bf16.msra.mxu0 0
      %5757 = vmatprep.subr.bf16.mxu0 0
      %5758 = vmatpush1.bf16.msra.mxu0 0
      %5759 = vmatprep.subr.bf16.mxu0 0
      %5760 = vmatpush1.bf16.msra.mxu0 0
      %5761 = vmatprep.subr.bf16.mxu0 0
      %5762 = vmatpush1.bf16.msra.mxu0 0
      %5763 = vmatprep.subr.bf16.mxu0 0
      %5764 = vmatpush1.bf16.msra.mxu0 0
      %5765 = vmatprep.mubr.bf16.mxu0 0
      %5766 = vmatmul.mubr.bf16.gmra.mrb[0].mxu0 %v5677
      %v5767 = vpop.f32.mrb[0].mxu0
      %v5768 = vadd.f32 0.0, %v5767
      %v5769 = vpop.f32.mrb[0].mxu0
      %v5770 = vpop.f32.mrb[0].mxu0
      %v5771 = vadd.f32 0.0, %v5770
      %v5772 = vpop.f32.mrb[0].mxu0
      %5773 = vmatprep.mubr.bf16.mxu0 0
      %5774 = vmatmul.mubr.bf16.gmra.mrb[0].mxu0 %v5680
      %v5775 = vpop.f32.mrb[0].mxu0
      %v5776 = vadd.f32 0.0, %v5775
      %v5777 = vpop.f32.mrb[0].mxu0
      %v5778 = vpop.f32.mrb[0].mxu0
      %v5779 = vadd.f32 0.0, %v5778
      %v5780 = vpop.f32.mrb[0].mxu0
      %5781 = vmatprep.mubr.bf16.mxu0 0
      %5782 = vmatmul.mubr.bf16.gmra.mrb[0].mxu0 %v5683
      %v5783 = vpop.f32.mrb[0].mxu0
      %v5784 = vadd.f32 0.0, %v5783
      %v5785 = vpop.f32.mrb[0].mxu0
      %v5786 = vpop.f32.mrb[0].mxu0
      %v5787 = vadd.f32 0.0, %v5786
      %v5788 = vpop.f32.mrb[0].mxu0
      %5789 = vmatprep.mubr.bf16.mxu0 0
      %5790 = vmatmul.mubr.bf16.gmra.mrb[0].mxu0 %v5686
      %v5791 = vpop.f32.mrb[0].mxu0
      %v5792 = vadd.f32 0.0, %v5791
      %v5793 = vpop.f32.mrb[0].mxu0
      %v5794 = vpop.f32.mrb[0].mxu0
      %v5795 = vadd.f32 0.0, %v5794
      %v5796 = vpop.f32.mrb[0].mxu0
      %5797 = vmatprep.mubr.bf16.mxu0 0
      %5798 = vmatmul.mubr.bf16.gmra.mrb[0].mxu0 %v5689
      %v5799 = vpop.f32.mrb[0].mxu0
      %v5800 = vadd.f32 0.0, %v5799
      %v5801 = vpop.f32.mrb[0].mxu0
      %v5802 = vpop.f32.mrb[0].mxu0
      %v5803 = vadd.f32 0.0, %v5802
      %v5804 = vpop.f32.mrb[0].mxu0
      %5805 = vmatprep.mubr.bf16.mxu0 0
      %5806 = vmatmul.mubr.bf16.gmra.mrb[0].mxu0 %v5692
      %v5807 = vpop.f32.mrb[0].mxu0
      %v5808 = vadd.f32 0.0, %v5807
      %v5809 = vpop.f32.mrb[0].mxu0
      %v5810 = vpop.f32.mrb[0].mxu0
      %v5811 = vadd.f32 0.0, %v5810
      %v5812 = vpop.f32.mrb[0].mxu0
      %5813 = vmatprep.mubr.bf16.mxu0 0
      %5814 = vmatmul.mubr.bf16.gmra.mrb[0].mxu0 %v5695
      %v5815 = vpop.f32.mrb[0].mxu0
      %v5816 = vadd.f32 0.0, %v5815
      %v5817 = vpop.f32.mrb[0].mxu0
      %v5818 = vpop.f32.mrb[0].mxu0
      %v5819 = vadd.f32 0.0, %v5818
      %v5820 = vpop.f32.mrb[0].mxu0
      %5821 = vmatprep.mubr.bf16.mxu0 0
      %5822 = vmatmul.mubr.bf16.gmra.mrb[0].mxu0 %v5698
      %v5823 = vpop.f32.mrb[0].mxu0
      %v5824 = vadd.f32 0.0, %v5823
      %v5825 = vpop.f32.mrb[0].mxu0
      %v5826 = vpop.f32.mrb[0].mxu0
      %v5827 = vadd.f32 0.0, %v5826
      %v5828 = vpop.f32.mrb[0].mxu0
      %5829 = vmatprep.mubr.bf16.mxu0 0
      %5830 = vmatmul.mubr.bf16.gmra.mrb[0].mxu0 %v5701
      %v5831 = vpop.f32.mrb[0].mxu0
      %v5832 = vadd.f32 0.0, %v5831
      %v5833 = vpop.f32.mrb[0].mxu0
      %v5834 = vpop.f32.mrb[0].mxu0
      %v5835 = vadd.f32 0.0, %v5834
      %v5836 = vpop.f32.mrb[0].mxu0
      %5837 = vmatprep.mubr.bf16.mxu0 0
      %5838 = vmatmul.mubr.bf16.gmra.mrb[0].mxu0 %v5704
      %v5839 = vpop.f32.mrb[0].mxu0
      %v5840 = vadd.f32 0.0, %v5839
      %v5841 = vpop.f32.mrb[0].mxu0
      %v5842 = vpop.f32.mrb[0].mxu0
      %v5843 = vadd.f32 0.0, %v5842
      %v5844 = vpop.f32.mrb[0].mxu0
      %5845 = vmatprep.mubr.bf16.mxu0 0
      %5846 = vmatmul.mubr.bf16.gmra.mrb[0].mxu0 %v5707
      %v5847 = vpop.f32.mrb[0].mxu0
      %v5848 = vadd.f32 0.0, %v5847
      %v5849 = vpop.f32.mrb[0].mxu0
      %v5850 = vpop.f32.mrb[0].mxu0
      %v5851 = vadd.f32 0.0, %v5850
      %v5852 = vpop.f32.mrb[0].mxu0
      %5853 = vmatprep.mubr.bf16.mxu0 0
      %5854 = vmatmul.mubr.bf16.gmra.mrb[0].mxu0 %v5710
      %v5855 = vpop.f32.mrb[0].mxu0
      %v5856 = vadd.f32 0.0, %v5855
      %v5857 = vpop.f32.mrb[0].mxu0
      %v5858 = vpop.f32.mrb[0].mxu0
      %v5859 = vadd.f32 0.0, %v5858
      %v5860 = vpop.f32.mrb[0].mxu0
      %5861 = vmatprep.mubr.bf16.mxu0 0
      %5862 = vmatmul.mubr.bf16.gmra.mrb[0].mxu0 %v5713
      %v5863 = vpop.f32.mrb[0].mxu0
      %v5864 = vadd.f32 0.0, %v5863
      %v5865 = vpop.f32.mrb[0].mxu0
      %v5866 = vpop.f32.mrb[0].mxu0
      %v5867 = vadd.f32 0.0, %v5866
      %v5868 = vpop.f32.mrb[0].mxu0
      %5869 = vmatprep.mubr.bf16.mxu0 0
      %5870 = vmatmul.mubr.bf16.gmra.mrb[0].mxu0 %v5716
      %v5871 = vpop.f32.mrb[0].mxu0
      %v5872 = vadd.f32 0.0, %v5871
      %v5873 = vpop.f32.mrb[0].mxu0
      %v5874 = vpop.f32.mrb[0].mxu0
      %v5875 = vadd.f32 0.0, %v5874
      %v5876 = vpop.f32.mrb[0].mxu0
      %5877 = vmatprep.mubr.bf16.mxu0 0
      %5878 = vmatmul.mubr.bf16.gmra.mrb[0].mxu0 %v5719
      %v5879 = vpop.f32.mrb[0].mxu0
      %v5880 = vadd.f32 0.0, %v5879
      %v5881 = vpop.f32.mrb[0].mxu0
      %v5882 = vpop.f32.mrb[0].mxu0
      %v5883 = vadd.f32 0.0, %v5882
      %v5884 = vpop.f32.mrb[0].mxu0
      %5885 = vmatprep.mubr.bf16.mxu0 0
      %5886 = vmatmul.mubr.bf16.gmra.mrb[0].mxu0 %v5722
      %v5887 = vpop.f32.mrb[0].mxu0
      %v5888 = vadd.f32 0.0, %v5887
      %v5889 = vpop.f32.mrb[0].mxu0
      %v5890 = vpop.f32.mrb[0].mxu0
      %v5891 = vadd.f32 0.0, %v5890
      %v5892 = vpop.f32.mrb[0].mxu0
      %5893 = vmatprep.mubr.bf16.mxu0 0
      %5894 = vmatmul.mubr.bf16.gmra.mrb[0].mxu0 %v5725
      %v5895 = vpop.f32.mrb[0].mxu0
      %v5896 = vadd.f32 0.0, %v5895
      %v5897 = vpop.f32.mrb[0].mxu0
      %v5898 = vpop.f32.mrb[0].mxu0
      %v5899 = vadd.f32 0.0, %v5898
      %v5900 = vpop.f32.mrb[0].mxu0
      %5901 = vmatprep.mubr.bf16.mxu0 0
      %5902 = vmatmul.mubr.bf16.gmra.mrb[0].mxu0 %v5728
      %v5903 = vpop.f32.mrb[0].mxu0
      %v5904 = vadd.f32 0.0, %v5903
      %v5905 = vpop.f32.mrb[0].mxu0
      %v5906 = vpop.f32.mrb[0].mxu0
      %v5907 = vadd.f32 0.0, %v5906
      %v5908 = vpop.f32.mrb[0].mxu0
      %5909 = vdwg.mxu0
      %v5910 = vadd.f32 %v5467, %v5768
      %v5911 = vadd.f32 %v5470, %v5771
      %v5912 = vadd.f32 %v5475, %v5776
      %v5913 = vadd.f32 %v5478, %v5779
      %v5914 = vadd.f32 %v5483, %v5784
      %v5915 = vadd.f32 %v5486, %v5787
      %v5916 = vadd.f32 %v5491, %v5792
      %v5917 = vadd.f32 %v5494, %v5795
      %v5918 = vadd.f32 %v5499, %v5800
      %v5919 = vadd.f32 %v5502, %v5803
      %v5920 = vadd.f32 %v5507, %v5808
      %v5921 = vadd.f32 %v5510, %v5811
      %v5922 = vadd.f32 %v5515, %v5816
      %v5923 = vadd.f32 %v5518, %v5819
      %v5924 = vadd.f32 %v5523, %v5824
      %v5925 = vadd.f32 %v5526, %v5827
      %v5926 = vadd.f32 %v5531, %v5832
      %v5927 = vadd.f32 %v5534, %v5835
      %v5928 = vadd.f32 %v5539, %v5840
      %v5929 = vadd.f32 %v5542, %v5843
      %v5930 = vadd.f32 %v5547, %v5848
      %v5931 = vadd.f32 %v5550, %v5851
      %v5932 = vadd.f32 %v5555, %v5856
      %v5933 = vadd.f32 %v5558, %v5859
      %v5934 = vadd.f32 %v5563, %v5864
      %v5935 = vadd.f32 %v5566, %v5867
      %v5936 = vadd.f32 %v5571, %v5872
      %v5937 = vadd.f32 %v5574, %v5875
      %v5938 = vadd.f32 %v5579, %v5880
      %v5939 = vadd.f32 %v5582, %v5883
      %v5940 = vadd.f32 %v5587, %v5888
      %v5941 = vadd.f32 %v5590, %v5891
      %v5942 = vadd.f32 %v5595, %v5896
      %v5943 = vadd.f32 %v5598, %v5899
      %v5944 = vadd.f32 %v5603, %v5904
      %v5945 = vadd.f32 %v5606, %v5907
      %v5946 = vld [vmem:[#allocation2 + $0x8] sm:$0x80]
      %v5947 = vld [vmem:[#allocation2 + $0x10] sm:$0xff]
      %v5948 = vld [vmem:[#allocation2 + $0x18] sm:$0xff]
      %v5949 = vld [vmem:[#allocation2 + $0x20] sm:$0xff]
      %v5950 = vld [vmem:[#allocation2 + $0x28] sm:$0xff]
      %v5951 = vld [vmem:[#allocation2 + $0x30] sm:$0xff]
      %v5952 = vld [vmem:[#allocation2 + $0x38] sm:$0xff]
      %v5953 = vld [vmem:[#allocation2 + $0x40] sm:$0xff]
      %v5954 = vld [vmem:[#allocation2 + $0x48] sm:$0xff]
      %v5955 = vld [vmem:[#allocation2 + $0x50] sm:$0xff]
      %v5956 = vld [vmem:[#allocation2 + $0x58] sm:$0xff]
      %v5957 = vld [vmem:[#allocation2 + $0x60] sm:$0xff]
      %v5958 = vld [vmem:[#allocation2 + $0x68] sm:$0xff]
      %v5959 = vld [vmem:[#allocation2 + $0x70] sm:$0xff]
      %v5960 = vld [vmem:[#allocation2 + $0x78] sm:$0xff]
      %v5961 = vld [vmem:[#allocation2 + $0x80] sm:$0xff]
      %v5962 = vld [vmem:[#allocation2 + $0x88] sm:$0xff]
      %v5963 = vld [vmem:[#allocation2 + $0x90] sm:$0xff]
      %v5964 = vld [vmem:[#allocation2 + $0x98] sm:$0xff]
      %s5965 = scalar_lea.vmem %s2, 12
      %v5966 = vld [vmem:[%s5965] sm:$0xf]
      %v5968 = vshrl.u32 %v5946, 16
      %v5970 = vrot.slane %v5968, 7
      %v5972 = vshrl.u32 %v5947, 16
      %v5974 = vrot.slane %v5972, 7
      %v5975 = vshll.u32 %v5947, 16
      %v5977 = vor.u32 %v5974, %v5975
      %v5978 = vsel %vm5612, %v5970, %v5977
      %v5980 = vshrl.u32 %v5948, 16
      %v5982 = vrot.slane %v5980, 7
      %v5983 = vshll.u32 %v5948, 16
      %v5985 = vor.u32 %v5982, %v5983
      %v5986 = vsel %vm5612, %v5974, %v5985
      %v5988 = vshrl.u32 %v5949, 16
      %v5990 = vrot.slane %v5988, 7
      %v5991 = vshll.u32 %v5949, 16
      %v5993 = vor.u32 %v5990, %v5991
      %v5994 = vsel %vm5612, %v5982, %v5993
      %v5996 = vshrl.u32 %v5950, 16
      %v5998 = vrot.slane %v5996, 7
      %v5999 = vshll.u32 %v5950, 16
      %v6001 = vor.u32 %v5998, %v5999
      %v6002 = vsel %vm5612, %v5990, %v6001
      %v6004 = vshrl.u32 %v5951, 16
      %v6006 = vrot.slane %v6004, 7
      %v6007 = vshll.u32 %v5951, 16
      %v6009 = vor.u32 %v6006, %v6007
      %v6010 = vsel %vm5612, %v5998, %v6009
      %v6012 = vshrl.u32 %v5952, 16
      %v6014 = vrot.slane %v6012, 7
      %v6015 = vshll.u32 %v5952, 16
      %v6017 = vor.u32 %v6014, %v6015
      %v6018 = vsel %vm5612, %v6006, %v6017
      %v6020 = vshrl.u32 %v5953, 16
      %v6022 = vrot.slane %v6020, 7
      %v6023 = vshll.u32 %v5953, 16
      %v6025 = vor.u32 %v6022, %v6023
      %v6026 = vsel %vm5612, %v6014, %v6025
      %v6028 = vshrl.u32 %v5954, 16
      %v6030 = vrot.slane %v6028, 7
      %v6031 = vshll.u32 %v5954, 16
      %v6033 = vor.u32 %v6030, %v6031
      %v6034 = vsel %vm5612, %v6022, %v6033
      %v6036 = vshrl.u32 %v5955, 16
      %v6038 = vrot.slane %v6036, 7
      %v6039 = vshll.u32 %v5955, 16
      %v6041 = vor.u32 %v6038, %v6039
      %v6042 = vsel %vm5612, %v6030, %v6041
      %v6044 = vshrl.u32 %v5956, 16
      %v6046 = vrot.slane %v6044, 7
      %v6047 = vshll.u32 %v5956, 16
      %v6049 = vor.u32 %v6046, %v6047
      %v6050 = vsel %vm5612, %v6038, %v6049
      %v6052 = vshrl.u32 %v5957, 16
      %v6054 = vrot.slane %v6052, 7
      %v6055 = vshll.u32 %v5957, 16
      %v6057 = vor.u32 %v6054, %v6055
      %v6058 = vsel %vm5612, %v6046, %v6057
      %v6060 = vshrl.u32 %v5958, 16
      %v6062 = vrot.slane %v6060, 7
      %v6063 = vshll.u32 %v5958, 16
      %v6065 = vor.u32 %v6062, %v6063
      %v6066 = vsel %vm5612, %v6054, %v6065
      %v6068 = vshrl.u32 %v5959, 16
      %v6070 = vrot.slane %v6068, 7
      %v6071 = vshll.u32 %v5959, 16
      %v6073 = vor.u32 %v6070, %v6071
      %v6074 = vsel %vm5612, %v6062, %v6073
      %v6076 = vshrl.u32 %v5960, 16
      %v6078 = vrot.slane %v6076, 7
      %v6079 = vshll.u32 %v5960, 16
      %v6081 = vor.u32 %v6078, %v6079
      %v6082 = vsel %vm5612, %v6070, %v6081
      %v6084 = vshrl.u32 %v5961, 16
      %v6086 = vrot.slane %v6084, 7
      %v6087 = vshll.u32 %v5961, 16
      %v6089 = vor.u32 %v6086, %v6087
      %v6090 = vsel %vm5612, %v6078, %v6089
      %v6092 = vshrl.u32 %v5962, 16
      %v6094 = vrot.slane %v6092, 7
      %v6095 = vshll.u32 %v5962, 16
      %v6097 = vor.u32 %v6094, %v6095
      %v6098 = vsel %vm5612, %v6086, %v6097
      %v6100 = vshrl.u32 %v5963, 16
      %v6102 = vrot.slane %v6100, 7
      %v6103 = vshll.u32 %v5963, 16
      %v6105 = vor.u32 %v6102, %v6103
      %v6106 = vsel %vm5612, %v6094, %v6105
      %v6108 = vshrl.u32 %v5964, 16
      %v6110 = vrot.slane %v6108, 7
      %v6111 = vshll.u32 %v5964, 16
      %v6113 = vor.u32 %v6110, %v6111
      %v6114 = vsel %vm5612, %v6102, %v6113
      %v6116 = vsel %vm199, %v5978, 0
      %v6119 = vsel %vm199, %v5986, 0
      %v6122 = vsel %vm199, %v5994, 0
      %v6125 = vsel %vm199, %v6002, 0
      %v6128 = vsel %vm199, %v6010, 0
      %v6131 = vsel %vm199, %v6018, 0
      %v6134 = vsel %vm199, %v6026, 0
      %v6137 = vsel %vm199, %v6034, 0
      %v6140 = vsel %vm199, %v6042, 0
      %v6143 = vsel %vm199, %v6050, 0
      %v6146 = vsel %vm199, %v6058, 0
      %v6149 = vsel %vm199, %v6066, 0
      %v6152 = vsel %vm199, %v6074, 0
      %v6155 = vsel %vm199, %v6082, 0
      %v6158 = vsel %vm199, %v6090, 0
      %v6161 = vsel %vm199, %v6098, 0
      %v6164 = vsel %vm199, %v6106, 0
      %v6167 = vsel %vm199, %v6114, 0
      %v6170 = vsel %vm1079, %v5966, 0
      %6172 = vmatprep.subr.bf16.mxu0 0
      %6173 = vmatpush1.bf16.msra.mxu0 %v6170
      %6174 = vmatprep.subr.bf16.mxu0 0
      %6175 = vmatpush1.bf16.msra.mxu0 0
      %6176 = vmatprep.subr.bf16.mxu0 0
      %6177 = vmatpush1.bf16.msra.mxu0 0
      %6178 = vmatprep.subr.bf16.mxu0 0
      %6179 = vmatpush1.bf16.msra.mxu0 0
      %6180 = vmatprep.subr.bf16.mxu0 0
      %6181 = vmatpush1.bf16.msra.mxu0 0
      %6182 = vmatprep.subr.bf16.mxu0 0
      %6183 = vmatpush1.bf16.msra.mxu0 0
      %6184 = vmatprep.subr.bf16.mxu0 0
      %6185 = vmatpush1.bf16.msra.mxu0 0
      %6186 = vmatprep.subr.bf16.mxu0 0
      %6187 = vmatpush1.bf16.msra.mxu0 0
      %6188 = vmatprep.subr.bf16.mxu0 0
      %6189 = vmatpush1.bf16.msra.mxu0 0
      %6190 = vmatprep.subr.bf16.mxu0 0
      %6191 = vmatpush1.bf16.msra.mxu0 0
      %6192 = vmatprep.subr.bf16.mxu0 0
      %6193 = vmatpush1.bf16.msra.mxu0 0
      %6194 = vmatprep.subr.bf16.mxu0 0
      %6195 = vmatpush1.bf16.msra.mxu0 0
      %6196 = vmatprep.subr.bf16.mxu0 0
      %6197 = vmatpush1.bf16.msra.mxu0 0
      %6198 = vmatprep.subr.bf16.mxu0 0
      %6199 = vmatpush1.bf16.msra.mxu0 0
      %6200 = vmatprep.subr.bf16.mxu0 0
      %6201 = vmatpush1.bf16.msra.mxu0 0
      %6202 = vmatprep.subr.bf16.mxu0 0
      %6203 = vmatpush1.bf16.msra.mxu0 0
      %6204 = vmatprep.mubr.bf16.mxu0 0
      %6205 = vmatmul.mubr.bf16.gmra.mrb[0].mxu0 %v6116
      %v6206 = vpop.f32.mrb[0].mxu0
      %v6207 = vadd.f32 0.0, %v6206
      %v6208 = vpop.f32.mrb[0].mxu0
      %v6209 = vpop.f32.mrb[0].mxu0
      %v6210 = vadd.f32 0.0, %v6209
      %v6211 = vpop.f32.mrb[0].mxu0
      %6212 = vmatprep.mubr.bf16.mxu0 0
      %6213 = vmatmul.mubr.bf16.gmra.mrb[0].mxu0 %v6119
      %v6214 = vpop.f32.mrb[0].mxu0
      %v6215 = vadd.f32 0.0, %v6214
      %v6216 = vpop.f32.mrb[0].mxu0
      %v6217 = vpop.f32.mrb[0].mxu0
      %v6218 = vadd.f32 0.0, %v6217
      %v6219 = vpop.f32.mrb[0].mxu0
      %6220 = vmatprep.mubr.bf16.mxu0 0
      %6221 = vmatmul.mubr.bf16.gmra.mrb[0].mxu0 %v6122
      %v6222 = vpop.f32.mrb[0].mxu0
      %v6223 = vadd.f32 0.0, %v6222
      %v6224 = vpop.f32.mrb[0].mxu0
      %v6225 = vpop.f32.mrb[0].mxu0
      %v6226 = vadd.f32 0.0, %v6225
      %v6227 = vpop.f32.mrb[0].mxu0
      %6228 = vmatprep.mubr.bf16.mxu0 0
      %6229 = vmatmul.mubr.bf16.gmra.mrb[0].mxu0 %v6125
      %v6230 = vpop.f32.mrb[0].mxu0
      %v6231 = vadd.f32 0.0, %v6230
      %v6232 = vpop.f32.mrb[0].mxu0
      %v6233 = vpop.f32.mrb[0].mxu0
      %v6234 = vadd.f32 0.0, %v6233
      %v6235 = vpop.f32.mrb[0].mxu0
      %6236 = vmatprep.mubr.bf16.mxu0 0
      %6237 = vmatmul.mubr.bf16.gmra.mrb[0].mxu0 %v6128
      %v6238 = vpop.f32.mrb[0].mxu0
      %v6239 = vadd.f32 0.0, %v6238
      %v6240 = vpop.f32.mrb[0].mxu0
      %v6241 = vpop.f32.mrb[0].mxu0
      %v6242 = vadd.f32 0.0, %v6241
      %v6243 = vpop.f32.mrb[0].mxu0
      %6244 = vmatprep.mubr.bf16.mxu0 0
      %6245 = vmatmul.mubr.bf16.gmra.mrb[0].mxu0 %v6131
      %v6246 = vpop.f32.mrb[0].mxu0
      %v6247 = vadd.f32 0.0, %v6246
      %v6248 = vpop.f32.mrb[0].mxu0
      %v6249 = vpop.f32.mrb[0].mxu0
      %v6250 = vadd.f32 0.0, %v6249
      %v6251 = vpop.f32.mrb[0].mxu0
      %6252 = vmatprep.mubr.bf16.mxu0 0
      %6253 = vmatmul.mubr.bf16.gmra.mrb[0].mxu0 %v6134
      %v6254 = vpop.f32.mrb[0].mxu0
      %v6255 = vadd.f32 0.0, %v6254
      %v6256 = vpop.f32.mrb[0].mxu0
      %v6257 = vpop.f32.mrb[0].mxu0
      %v6258 = vadd.f32 0.0, %v6257
      %v6259 = vpop.f32.mrb[0].mxu0
      %6260 = vmatprep.mubr.bf16.mxu0 0
      %6261 = vmatmul.mubr.bf16.gmra.mrb[0].mxu0 %v6137
      %v6262 = vpop.f32.mrb[0].mxu0
      %v6263 = vadd.f32 0.0, %v6262
      %v6264 = vpop.f32.mrb[0].mxu0
      %v6265 = vpop.f32.mrb[0].mxu0
      %v6266 = vadd.f32 0.0, %v6265
      %v6267 = vpop.f32.mrb[0].mxu0
      %6268 = vmatprep.mubr.bf16.mxu0 0
      %6269 = vmatmul.mubr.bf16.gmra.mrb[0].mxu0 %v6140
      %v6270 = vpop.f32.mrb[0].mxu0
      %v6271 = vadd.f32 0.0, %v6270
      %v6272 = vpop.f32.mrb[0].mxu0
      %v6273 = vpop.f32.mrb[0].mxu0
      %v6274 = vadd.f32 0.0, %v6273
      %v6275 = vpop.f32.mrb[0].mxu0
      %6276 = vmatprep.mubr.bf16.mxu0 0
      %6277 = vmatmul.mubr.bf16.gmra.mrb[0].mxu0 %v6143
      %v6278 = vpop.f32.mrb[0].mxu0
      %v6279 = vadd.f32 0.0, %v6278
      %v6280 = vpop.f32.mrb[0].mxu0
      %v6281 = vpop.f32.mrb[0].mxu0
      %v6282 = vadd.f32 0.0, %v6281
      %v6283 = vpop.f32.mrb[0].mxu0
      %6284 = vmatprep.mubr.bf16.mxu0 0
      %6285 = vmatmul.mubr.bf16.gmra.mrb[0].mxu0 %v6146
      %v6286 = vpop.f32.mrb[0].mxu0
      %v6287 = vadd.f32 0.0, %v6286
      %v6288 = vpop.f32.mrb[0].mxu0
      %v6289 = vpop.f32.mrb[0].mxu0
      %v6290 = vadd.f32 0.0, %v6289
      %v6291 = vpop.f32.mrb[0].mxu0
      %6292 = vmatprep.mubr.bf16.mxu0 0
      %6293 = vmatmul.mubr.bf16.gmra.mrb[0].mxu0 %v6149
      %v6294 = vpop.f32.mrb[0].mxu0
      %v6295 = vadd.f32 0.0, %v6294
      %v6296 = vpop.f32.mrb[0].mxu0
      %v6297 = vpop.f32.mrb[0].mxu0
      %v6298 = vadd.f32 0.0, %v6297
      %v6299 = vpop.f32.mrb[0].mxu0
      %6300 = vmatprep.mubr.bf16.mxu0 0
      %6301 = vmatmul.mubr.bf16.gmra.mrb[0].mxu0 %v6152
      %v6302 = vpop.f32.mrb[0].mxu0
      %v6303 = vadd.f32 0.0, %v6302
      %v6304 = vpop.f32.mrb[0].mxu0
      %v6305 = vpop.f32.mrb[0].mxu0
      %v6306 = vadd.f32 0.0, %v6305
      %v6307 = vpop.f32.mrb[0].mxu0
      %6308 = vmatprep.mubr.bf16.mxu0 0
      %6309 = vmatmul.mubr.bf16.gmra.mrb[0].mxu0 %v6155
      %v6310 = vpop.f32.mrb[0].mxu0
      %v6311 = vadd.f32 0.0, %v6310
      %v6312 = vpop.f32.mrb[0].mxu0
      %v6313 = vpop.f32.mrb[0].mxu0
      %v6314 = vadd.f32 0.0, %v6313
      %v6315 = vpop.f32.mrb[0].mxu0
      %6316 = vmatprep.mubr.bf16.mxu0 0
      %6317 = vmatmul.mubr.bf16.gmra.mrb[0].mxu0 %v6158
      %v6318 = vpop.f32.mrb[0].mxu0
      %v6319 = vadd.f32 0.0, %v6318
      %v6320 = vpop.f32.mrb[0].mxu0
      %v6321 = vpop.f32.mrb[0].mxu0
      %v6322 = vadd.f32 0.0, %v6321
      %v6323 = vpop.f32.mrb[0].mxu0
      %6324 = vmatprep.mubr.bf16.mxu0 0
      %6325 = vmatmul.mubr.bf16.gmra.mrb[0].mxu0 %v6161
      %v6326 = vpop.f32.mrb[0].mxu0
      %v6327 = vadd.f32 0.0, %v6326
      %v6328 = vpop.f32.mrb[0].mxu0
      %v6329 = vpop.f32.mrb[0].mxu0
      %v6330 = vadd.f32 0.0, %v6329
      %v6331 = vpop.f32.mrb[0].mxu0
      %6332 = vmatprep.mubr.bf16.mxu0 0
      %6333 = vmatmul.mubr.bf16.gmra.mrb[0].mxu0 %v6164
      %v6334 = vpop.f32.mrb[0].mxu0
      %v6335 = vadd.f32 0.0, %v6334
      %v6336 = vpop.f32.mrb[0].mxu0
      %v6337 = vpop.f32.mrb[0].mxu0
      %v6338 = vadd.f32 0.0, %v6337
      %v6339 = vpop.f32.mrb[0].mxu0
      %6340 = vmatprep.mubr.bf16.mxu0 0
      %6341 = vmatmul.mubr.bf16.gmra.mrb[0].mxu0 %v6167
      %v6342 = vpop.f32.mrb[0].mxu0
      %v6343 = vadd.f32 0.0, %v6342
      %v6344 = vpop.f32.mrb[0].mxu0
      %v6345 = vpop.f32.mrb[0].mxu0
      %v6346 = vadd.f32 0.0, %v6345
      %v6347 = vpop.f32.mrb[0].mxu0
      %6348 = vdwg.mxu0
      %v6349 = vadd.f32 %v5910, %v6207
      %v6350 = vadd.f32 %v5911, %v6210
      %v6351 = vadd.f32 %v5912, %v6215
      %v6352 = vadd.f32 %v5913, %v6218
      %v6353 = vadd.f32 %v5914, %v6223
      %v6354 = vadd.f32 %v5915, %v6226
      %v6355 = vadd.f32 %v5916, %v6231
      %v6356 = vadd.f32 %v5917, %v6234
      %v6357 = vadd.f32 %v5918, %v6239
      %v6358 = vadd.f32 %v5919, %v6242
      %v6359 = vadd.f32 %v5920, %v6247
      %v6360 = vadd.f32 %v5921, %v6250
      %v6361 = vadd.f32 %v5922, %v6255
      %v6362 = vadd.f32 %v5923, %v6258
      %v6363 = vadd.f32 %v5924, %v6263
      %v6364 = vadd.f32 %v5925, %v6266
      %v6365 = vadd.f32 %v5926, %v6271
      %v6366 = vadd.f32 %v5927, %v6274
      %v6367 = vadd.f32 %v5928, %v6279
      %v6368 = vadd.f32 %v5929, %v6282
      %v6369 = vadd.f32 %v5930, %v6287
      %v6370 = vadd.f32 %v5931, %v6290
      %v6371 = vadd.f32 %v5932, %v6295
      %v6372 = vadd.f32 %v5933, %v6298
      %v6373 = vadd.f32 %v5934, %v6303
      %v6374 = vadd.f32 %v5935, %v6306
      %v6375 = vadd.f32 %v5936, %v6311
      %v6376 = vadd.f32 %v5937, %v6314
      %v6377 = vadd.f32 %v5938, %v6319
      %v6378 = vadd.f32 %v5939, %v6322
      %v6379 = vadd.f32 %v5940, %v6327
      %v6380 = vadd.f32 %v5941, %v6330
      %v6381 = vadd.f32 %v5942, %v6335
      %v6382 = vadd.f32 %v5943, %v6338
      %v6383 = vadd.f32 %v5944, %v6343
      %v6384 = vadd.f32 %v5945, %v6346
      %s6385 = scalar_lea.vmem %s2, 16
      %v6386 = vld [vmem:[%s6385] sm:$0xf]
      %v6387 = vsel %vm199, %v5947, 0
      %v6389 = vsel %vm199, %v5948, 0
      %v6391 = vsel %vm199, %v5949, 0
      %v6393 = vsel %vm199, %v5950, 0
      %v6395 = vsel %vm199, %v5951, 0
      %v6397 = vsel %vm199, %v5952, 0
      %v6399 = vsel %vm199, %v5953, 0
      %v6401 = vsel %vm199, %v5954, 0
      %v6403 = vsel %vm199, %v5955, 0
      %v6405 = vsel %vm199, %v5956, 0
      %v6407 = vsel %vm199, %v5957, 0
      %v6409 = vsel %vm199, %v5958, 0
      %v6411 = vsel %vm199, %v5959, 0
      %v6413 = vsel %vm199, %v5960, 0
      %v6415 = vsel %vm199, %v5961, 0
      %v6417 = vsel %vm199, %v5962, 0
      %v6419 = vsel %vm199, %v5963, 0
      %v6421 = vsel %vm199, %v5964, 0
      %v6424 = vsel %vm1079, %v6386, 0
      %6426 = vmatprep.subr.bf16.mxu0 0
      %6427 = vmatpush1.bf16.msra.mxu0 %v6424
      %6428 = vmatprep.subr.bf16.mxu0 0
      %6429 = vmatpush1.bf16.msra.mxu0 0
      %6430 = vmatprep.subr.bf16.mxu0 0
      %6431 = vmatpush1.bf16.msra.mxu0 0
      %6432 = vmatprep.subr.bf16.mxu0 0
      %6433 = vmatpush1.bf16.msra.mxu0 0
      %6434 = vmatprep.subr.bf16.mxu0 0
      %6435 = vmatpush1.bf16.msra.mxu0 0
      %6436 = vmatprep.subr.bf16.mxu0 0
      %6437 = vmatpush1.bf16.msra.mxu0 0
      %6438 = vmatprep.subr.bf16.mxu0 0
      %6439 = vmatpush1.bf16.msra.mxu0 0
      %6440 = vmatprep.subr.bf16.mxu0 0
      %6441 = vmatpush1.bf16.msra.mxu0 0
      %6442 = vmatprep.subr.bf16.mxu0 0
      %6443 = vmatpush1.bf16.msra.mxu0 0
      %6444 = vmatprep.subr.bf16.mxu0 0
      %6445 = vmatpush1.bf16.msra.mxu0 0
      %6446 = vmatprep.subr.bf16.mxu0 0
      %6447 = vmatpush1.bf16.msra.mxu0 0
      %6448 = vmatprep.subr.bf16.mxu0 0
      %6449 = vmatpush1.bf16.msra.mxu0 0
      %6450 = vmatprep.subr.bf16.mxu0 0
      %6451 = vmatpush1.bf16.msra.mxu0 0
      %6452 = vmatprep.subr.bf16.mxu0 0
      %6453 = vmatpush1.bf16.msra.mxu0 0
      %6454 = vmatprep.subr.bf16.mxu0 0
      %6455 = vmatpush1.bf16.msra.mxu0 0
      %6456 = vmatprep.subr.bf16.mxu0 0
      %6457 = vmatpush1.bf16.msra.mxu0 0
      %6458 = vmatprep.mubr.bf16.mxu0 0
      %6459 = vmatmul.mubr.bf16.gmra.mrb[0].mxu0 %v6387
      %v6460 = vpop.f32.mrb[0].mxu0
      %v6461 = vadd.f32 0.0, %v6460
      %v6462 = vpop.f32.mrb[0].mxu0
      %v6463 = vpop.f32.mrb[0].mxu0
      %v6464 = vadd.f32 0.0, %v6463
      %v6465 = vpop.f32.mrb[0].mxu0
      %6466 = vmatprep.mubr.bf16.mxu0 0
      %6467 = vmatmul.mubr.bf16.gmra.mrb[0].mxu0 %v6389
      %v6468 = vpop.f32.mrb[0].mxu0
      %v6469 = vadd.f32 0.0, %v6468
      %v6470 = vpop.f32.mrb[0].mxu0
      %v6471 = vpop.f32.mrb[0].mxu0
      %v6472 = vadd.f32 0.0, %v6471
      %v6473 = vpop.f32.mrb[0].mxu0
      %6474 = vmatprep.mubr.bf16.mxu0 0
      %6475 = vmatmul.mubr.bf16.gmra.mrb[0].mxu0 %v6391
      %v6476 = vpop.f32.mrb[0].mxu0
      %v6477 = vadd.f32 0.0, %v6476
      %v6478 = vpop.f32.mrb[0].mxu0
      %v6479 = vpop.f32.mrb[0].mxu0
      %v6480 = vadd.f32 0.0, %v6479
      %v6481 = vpop.f32.mrb[0].mxu0
      %6482 = vmatprep.mubr.bf16.mxu0 0
      %6483 = vmatmul.mubr.bf16.gmra.mrb[0].mxu0 %v6393
      %v6484 = vpop.f32.mrb[0].mxu0
      %v6485 = vadd.f32 0.0, %v6484
      %v6486 = vpop.f32.mrb[0].mxu0
      %v6487 = vpop.f32.mrb[0].mxu0
      %v6488 = vadd.f32 0.0, %v6487
      %v6489 = vpop.f32.mrb[0].mxu0
      %6490 = vmatprep.mubr.bf16.mxu0 0
      %6491 = vmatmul.mubr.bf16.gmra.mrb[0].mxu0 %v6395
      %v6492 = vpop.f32.mrb[0].mxu0
      %v6493 = vadd.f32 0.0, %v6492
      %v6494 = vpop.f32.mrb[0].mxu0
      %v6495 = vpop.f32.mrb[0].mxu0
      %v6496 = vadd.f32 0.0, %v6495
      %v6497 = vpop.f32.mrb[0].mxu0
      %6498 = vmatprep.mubr.bf16.mxu0 0
      %6499 = vmatmul.mubr.bf16.gmra.mrb[0].mxu0 %v6397
      %v6500 = vpop.f32.mrb[0].mxu0
      %v6501 = vadd.f32 0.0, %v6500
      %v6502 = vpop.f32.mrb[0].mxu0
      %v6503 = vpop.f32.mrb[0].mxu0
      %v6504 = vadd.f32 0.0, %v6503
      %v6505 = vpop.f32.mrb[0].mxu0
      %6506 = vmatprep.mubr.bf16.mxu0 0
      %6507 = vmatmul.mubr.bf16.gmra.mrb[0].mxu0 %v6399
      %v6508 = vpop.f32.mrb[0].mxu0
      %v6509 = vadd.f32 0.0, %v6508
      %v6510 = vpop.f32.mrb[0].mxu0
      %v6511 = vpop.f32.mrb[0].mxu0
      %v6512 = vadd.f32 0.0, %v6511
      %v6513 = vpop.f32.mrb[0].mxu0
      %6514 = vmatprep.mubr.bf16.mxu0 0
      %6515 = vmatmul.mubr.bf16.gmra.mrb[0].mxu0 %v6401
      %v6516 = vpop.f32.mrb[0].mxu0
      %v6517 = vadd.f32 0.0, %v6516
      %v6518 = vpop.f32.mrb[0].mxu0
      %v6519 = vpop.f32.mrb[0].mxu0
      %v6520 = vadd.f32 0.0, %v6519
      %v6521 = vpop.f32.mrb[0].mxu0
      %6522 = vmatprep.mubr.bf16.mxu0 0
      %6523 = vmatmul.mubr.bf16.gmra.mrb[0].mxu0 %v6403
      %v6524 = vpop.f32.mrb[0].mxu0
      %v6525 = vadd.f32 0.0, %v6524
      %v6526 = vpop.f32.mrb[0].mxu0
      %v6527 = vpop.f32.mrb[0].mxu0
      %v6528 = vadd.f32 0.0, %v6527
      %v6529 = vpop.f32.mrb[0].mxu0
      %6530 = vmatprep.mubr.bf16.mxu0 0
      %6531 = vmatmul.mubr.bf16.gmra.mrb[0].mxu0 %v6405
      %v6532 = vpop.f32.mrb[0].mxu0
      %v6533 = vadd.f32 0.0, %v6532
      %v6534 = vpop.f32.mrb[0].mxu0
      %v6535 = vpop.f32.mrb[0].mxu0
      %v6536 = vadd.f32 0.0, %v6535
      %v6537 = vpop.f32.mrb[0].mxu0
      %6538 = vmatprep.mubr.bf16.mxu0 0
      %6539 = vmatmul.mubr.bf16.gmra.mrb[0].mxu0 %v6407
      %v6540 = vpop.f32.mrb[0].mxu0
      %v6541 = vadd.f32 0.0, %v6540
      %v6542 = vpop.f32.mrb[0].mxu0
      %v6543 = vpop.f32.mrb[0].mxu0
      %v6544 = vadd.f32 0.0, %v6543
      %v6545 = vpop.f32.mrb[0].mxu0
      %6546 = vmatprep.mubr.bf16.mxu0 0
      %6547 = vmatmul.mubr.bf16.gmra.mrb[0].mxu0 %v6409
      %v6548 = vpop.f32.mrb[0].mxu0
      %v6549 = vadd.f32 0.0, %v6548
      %v6550 = vpop.f32.mrb[0].mxu0
      %v6551 = vpop.f32.mrb[0].mxu0
      %v6552 = vadd.f32 0.0, %v6551
      %v6553 = vpop.f32.mrb[0].mxu0
      %6554 = vmatprep.mubr.bf16.mxu0 0
      %6555 = vmatmul.mubr.bf16.gmra.mrb[0].mxu0 %v6411
      %v6556 = vpop.f32.mrb[0].mxu0
      %v6557 = vadd.f32 0.0, %v6556
      %v6558 = vpop.f32.mrb[0].mxu0
      %v6559 = vpop.f32.mrb[0].mxu0
      %v6560 = vadd.f32 0.0, %v6559
      %v6561 = vpop.f32.mrb[0].mxu0
      %6562 = vmatprep.mubr.bf16.mxu0 0
      %6563 = vmatmul.mubr.bf16.gmra.mrb[0].mxu0 %v6413
      %v6564 = vpop.f32.mrb[0].mxu0
      %v6565 = vadd.f32 0.0, %v6564
      %v6566 = vpop.f32.mrb[0].mxu0
      %v6567 = vpop.f32.mrb[0].mxu0
      %v6568 = vadd.f32 0.0, %v6567
      %v6569 = vpop.f32.mrb[0].mxu0
      %6570 = vmatprep.mubr.bf16.mxu0 0
      %6571 = vmatmul.mubr.bf16.gmra.mrb[0].mxu0 %v6415
      %v6572 = vpop.f32.mrb[0].mxu0
      %v6573 = vadd.f32 0.0, %v6572
      %v6574 = vpop.f32.mrb[0].mxu0
      %v6575 = vpop.f32.mrb[0].mxu0
      %v6576 = vadd.f32 0.0, %v6575
      %v6577 = vpop.f32.mrb[0].mxu0
      %6578 = vmatprep.mubr.bf16.mxu0 0
      %6579 = vmatmul.mubr.bf16.gmra.mrb[0].mxu0 %v6417
      %v6580 = vpop.f32.mrb[0].mxu0
      %v6581 = vadd.f32 0.0, %v6580
      %v6582 = vpop.f32.mrb[0].mxu0
      %v6583 = vpop.f32.mrb[0].mxu0
      %v6584 = vadd.f32 0.0, %v6583
      %v6585 = vpop.f32.mrb[0].mxu0
      %6586 = vmatprep.mubr.bf16.mxu0 0
      %6587 = vmatmul.mubr.bf16.gmra.mrb[0].mxu0 %v6419
      %v6588 = vpop.f32.mrb[0].mxu0
      %v6589 = vadd.f32 0.0, %v6588
      %v6590 = vpop.f32.mrb[0].mxu0
      %v6591 = vpop.f32.mrb[0].mxu0
      %v6592 = vadd.f32 0.0, %v6591
      %v6593 = vpop.f32.mrb[0].mxu0
      %6594 = vmatprep.mubr.bf16.mxu0 0
      %6595 = vmatmul.mubr.bf16.gmra.mrb[0].mxu0 %v6421
      %v6596 = vpop.f32.mrb[0].mxu0
      %v6597 = vadd.f32 0.0, %v6596
      %v6598 = vpop.f32.mrb[0].mxu0
      %v6599 = vpop.f32.mrb[0].mxu0
      %v6600 = vadd.f32 0.0, %v6599
      %v6601 = vpop.f32.mrb[0].mxu0
      %6602 = vdwg.mxu0
      %v6603 = vadd.f32 %v6349, %v6461
      %v6604 = vadd.f32 %v6350, %v6464
      %v6605 = vadd.f32 %v6351, %v6469
      %v6606 = vadd.f32 %v6352, %v6472
      %v6607 = vadd.f32 %v6353, %v6477
      %v6608 = vadd.f32 %v6354, %v6480
      %v6609 = vadd.f32 %v6355, %v6485
      %v6610 = vadd.f32 %v6356, %v6488
      %v6611 = vadd.f32 %v6357, %v6493
      %v6612 = vadd.f32 %v6358, %v6496
      %v6613 = vadd.f32 %v6359, %v6501
      %v6614 = vadd.f32 %v6360, %v6504
      %v6615 = vadd.f32 %v6361, %v6509
      %v6616 = vadd.f32 %v6362, %v6512
      %v6617 = vadd.f32 %v6363, %v6517
      %v6618 = vadd.f32 %v6364, %v6520
      %v6619 = vadd.f32 %v6365, %v6525
      %v6620 = vadd.f32 %v6366, %v6528
      %v6621 = vadd.f32 %v6367, %v6533
      %v6622 = vadd.f32 %v6368, %v6536
      %v6623 = vadd.f32 %v6369, %v6541
      %v6624 = vadd.f32 %v6370, %v6544
      %v6625 = vadd.f32 %v6371, %v6549
      %v6626 = vadd.f32 %v6372, %v6552
      %v6627 = vadd.f32 %v6373, %v6557
      %v6628 = vadd.f32 %v6374, %v6560
      %v6629 = vadd.f32 %v6375, %v6565
      %v6630 = vadd.f32 %v6376, %v6568
      %v6631 = vadd.f32 %v6377, %v6573
      %v6632 = vadd.f32 %v6378, %v6576
      %v6633 = vadd.f32 %v6379, %v6581
      %v6634 = vadd.f32 %v6380, %v6584
      %v6635 = vadd.f32 %v6381, %v6589
      %v6636 = vadd.f32 %v6382, %v6592
      %v6637 = vadd.f32 %v6383, %v6597
      %v6638 = vadd.f32 %v6384, %v6600
      %v6639 = vld [vmem:[#allocation2 + $0x10] sm:$0xff]
      %v6640 = vld [vmem:[#allocation2 + $0x18] sm:$0xff]
      %v6641 = vld [vmem:[#allocation2 + $0x20] sm:$0xff]
      %v6642 = vld [vmem:[#allocation2 + $0x28] sm:$0xff]
      %v6643 = vld [vmem:[#allocation2 + $0x30] sm:$0xff]
      %v6644 = vld [vmem:[#allocation2 + $0x38] sm:$0xff]
      %v6645 = vld [vmem:[#allocation2 + $0x40] sm:$0xff]
      %v6646 = vld [vmem:[#allocation2 + $0x48] sm:$0xff]
      %v6647 = vld [vmem:[#allocation2 + $0x50] sm:$0xff]
      %v6648 = vld [vmem:[#allocation2 + $0x58] sm:$0xff]
      %v6649 = vld [vmem:[#allocation2 + $0x60] sm:$0xff]
      %v6650 = vld [vmem:[#allocation2 + $0x68] sm:$0xff]
      %v6651 = vld [vmem:[#allocation2 + $0x70] sm:$0xff]
      %v6652 = vld [vmem:[#allocation2 + $0x78] sm:$0xff]
      %v6653 = vld [vmem:[#allocation2 + $0x80] sm:$0xff]
      %v6654 = vld [vmem:[#allocation2 + $0x88] sm:$0xff]
      %v6655 = vld [vmem:[#allocation2 + $0x90] sm:$0xff]
      %v6656 = vld [vmem:[#allocation2 + $0x98] sm:$0xff]
      %v6657 = vld [vmem:[#allocation2 + $0xa0] sm:$0x1]
      %s6658 = scalar_lea.vmem %s2, 20
      %v6659 = vld [vmem:[%s6658] sm:$0xf]
      %v6661 = vshrl.u32 %v6639, 16
      %v6663 = vshll.u32 %v6639, 16
      %v6665 = vrot.slane %v6663, 1
      %v6666 = vor.u32 %v6661, %v6665
      %v6668 = vshll.u32 %v6640, 16
      %v6670 = vrot.slane %v6668, 1
      %v6671 = vsel %vm3024, %v6666, %v6670
      %v6672 = vshrl.u32 %v6640, 16
      %v6674 = vor.u32 %v6672, %v6670
      %v6676 = vshll.u32 %v6641, 16
      %v6678 = vrot.slane %v6676, 1
      %v6679 = vsel %vm3024, %v6674, %v6678
      %v6680 = vshrl.u32 %v6641, 16
      %v6682 = vor.u32 %v6680, %v6678
      %v6684 = vshll.u32 %v6642, 16
      %v6686 = vrot.slane %v6684, 1
      %v6687 = vsel %vm3024, %v6682, %v6686
      %v6688 = vshrl.u32 %v6642, 16
      %v6690 = vor.u32 %v6688, %v6686
      %v6692 = vshll.u32 %v6643, 16
      %v6694 = vrot.slane %v6692, 1
      %v6695 = vsel %vm3024, %v6690, %v6694
      %v6696 = vshrl.u32 %v6643, 16
      %v6698 = vor.u32 %v6696, %v6694
      %v6700 = vshll.u32 %v6644, 16
      %v6702 = vrot.slane %v6700, 1
      %v6703 = vsel %vm3024, %v6698, %v6702
      %v6704 = vshrl.u32 %v6644, 16
      %v6706 = vor.u32 %v6704, %v6702
      %v6708 = vshll.u32 %v6645, 16
      %v6710 = vrot.slane %v6708, 1
      %v6711 = vsel %vm3024, %v6706, %v6710
      %v6712 = vshrl.u32 %v6645, 16
      %v6714 = vor.u32 %v6712, %v6710
      %v6716 = vshll.u32 %v6646, 16
      %v6718 = vrot.slane %v6716, 1
      %v6719 = vsel %vm3024, %v6714, %v6718
      %v6720 = vshrl.u32 %v6646, 16
      %v6722 = vor.u32 %v6720, %v6718
      %v6724 = vshll.u32 %v6647, 16
      %v6726 = vrot.slane %v6724, 1
      %v6727 = vsel %vm3024, %v6722, %v6726
      %v6728 = vshrl.u32 %v6647, 16
      %v6730 = vor.u32 %v6728, %v6726
      %v6732 = vshll.u32 %v6648, 16
      %v6734 = vrot.slane %v6732, 1
      %v6735 = vsel %vm3024, %v6730, %v6734
      %v6736 = vshrl.u32 %v6648, 16
      %v6738 = vor.u32 %v6736, %v6734
      %v6740 = vshll.u32 %v6649, 16
      %v6742 = vrot.slane %v6740, 1
      %v6743 = vsel %vm3024, %v6738, %v6742
      %v6744 = vshrl.u32 %v6649, 16
      %v6746 = vor.u32 %v6744, %v6742
      %v6748 = vshll.u32 %v6650, 16
      %v6750 = vrot.slane %v6748, 1
      %v6751 = vsel %vm3024, %v6746, %v6750
      %v6752 = vshrl.u32 %v6650, 16
      %v6754 = vor.u32 %v6752, %v6750
      %v6756 = vshll.u32 %v6651, 16
      %v6758 = vrot.slane %v6756, 1
      %v6759 = vsel %vm3024, %v6754, %v6758
      %v6760 = vshrl.u32 %v6651, 16
      %v6762 = vor.u32 %v6760, %v6758
      %v6764 = vshll.u32 %v6652, 16
      %v6766 = vrot.slane %v6764, 1
      %v6767 = vsel %vm3024, %v6762, %v6766
      %v6768 = vshrl.u32 %v6652, 16
      %v6770 = vor.u32 %v6768, %v6766
      %v6772 = vshll.u32 %v6653, 16
      %v6774 = vrot.slane %v6772, 1
      %v6775 = vsel %vm3024, %v6770, %v6774
      %v6776 = vshrl.u32 %v6653, 16
      %v6778 = vor.u32 %v6776, %v6774
      %v6780 = vshll.u32 %v6654, 16
      %v6782 = vrot.slane %v6780, 1
      %v6783 = vsel %vm3024, %v6778, %v6782
      %v6784 = vshrl.u32 %v6654, 16
      %v6786 = vor.u32 %v6784, %v6782
      %v6788 = vshll.u32 %v6655, 16
      %v6790 = vrot.slane %v6788, 1
      %v6791 = vsel %vm3024, %v6786, %v6790
      %v6792 = vshrl.u32 %v6655, 16
      %v6794 = vor.u32 %v6792, %v6790
      %v6796 = vshll.u32 %v6656, 16
      %v6798 = vrot.slane %v6796, 1
      %v6799 = vsel %vm3024, %v6794, %v6798
      %v6800 = vshrl.u32 %v6656, 16
      %v6802 = vor.u32 %v6800, %v6798
      %v6804 = vshll.u32 %v6657, 16
      %v6806 = vrot.slane %v6804, 1
      %v6807 = vsel %vm3024, %v6802, %v6806
      %v6809 = vsel %vm199, %v6671, 0
      %v6812 = vsel %vm199, %v6679, 0
      %v6815 = vsel %vm199, %v6687, 0
      %v6818 = vsel %vm199, %v6695, 0
      %v6821 = vsel %vm199, %v6703, 0
      %v6824 = vsel %vm199, %v6711, 0
      %v6827 = vsel %vm199, %v6719, 0
      %v6830 = vsel %vm199, %v6727, 0
      %v6833 = vsel %vm199, %v6735, 0
      %v6836 = vsel %vm199, %v6743, 0
      %v6839 = vsel %vm199, %v6751, 0
      %v6842 = vsel %vm199, %v6759, 0
      %v6845 = vsel %vm199, %v6767, 0
      %v6848 = vsel %vm199, %v6775, 0
      %v6851 = vsel %vm199, %v6783, 0
      %v6854 = vsel %vm199, %v6791, 0
      %v6857 = vsel %vm199, %v6799, 0
      %v6860 = vsel %vm199, %v6807, 0
      %v6863 = vsel %vm1079, %v6659, 0
      %6865 = vmatprep.subr.bf16.mxu0 0
      %6866 = vmatpush1.bf16.msra.mxu0 %v6863
      %6867 = vmatprep.subr.bf16.mxu0 0
      %6868 = vmatpush1.bf16.msra.mxu0 0
      %6869 = vmatprep.subr.bf16.mxu0 0
      %6870 = vmatpush1.bf16.msra.mxu0 0
      %6871 = vmatprep.subr.bf16.mxu0 0
      %6872 = vmatpush1.bf16.msra.mxu0 0
      %6873 = vmatprep.subr.bf16.mxu0 0
      %6874 = vmatpush1.bf16.msra.mxu0 0
      %6875 = vmatprep.subr.bf16.mxu0 0
      %6876 = vmatpush1.bf16.msra.mxu0 0
      %6877 = vmatprep.subr.bf16.mxu0 0
      %6878 = vmatpush1.bf16.msra.mxu0 0
      %6879 = vmatprep.subr.bf16.mxu0 0
      %6880 = vmatpush1.bf16.msra.mxu0 0
      %6881 = vmatprep.subr.bf16.mxu0 0
      %6882 = vmatpush1.bf16.msra.mxu0 0
      %6883 = vmatprep.subr.bf16.mxu0 0
      %6884 = vmatpush1.bf16.msra.mxu0 0
      %6885 = vmatprep.subr.bf16.mxu0 0
      %6886 = vmatpush1.bf16.msra.mxu0 0
      %6887 = vmatprep.subr.bf16.mxu0 0
      %6888 = vmatpush1.bf16.msra.mxu0 0
      %6889 = vmatprep.subr.bf16.mxu0 0
      %6890 = vmatpush1.bf16.msra.mxu0 0
      %6891 = vmatprep.subr.bf16.mxu0 0
      %6892 = vmatpush1.bf16.msra.mxu0 0
      %6893 = vmatprep.subr.bf16.mxu0 0
      %6894 = vmatpush1.bf16.msra.mxu0 0
      %6895 = vmatprep.subr.bf16.mxu0 0
      %6896 = vmatpush1.bf16.msra.mxu0 0
      %6897 = vmatprep.mubr.bf16.mxu0 0
      %6898 = vmatmul.mubr.bf16.gmra.mrb[0].mxu0 %v6809
      %v6899 = vpop.f32.mrb[0].mxu0
      %v6900 = vadd.f32 0.0, %v6899
      %v6901 = vpop.f32.mrb[0].mxu0
      %v6902 = vpop.f32.mrb[0].mxu0
      %v6903 = vadd.f32 0.0, %v6902
      %v6904 = vpop.f32.mrb[0].mxu0
      %6905 = vmatprep.mubr.bf16.mxu0 0
      %6906 = vmatmul.mubr.bf16.gmra.mrb[0].mxu0 %v6812
      %v6907 = vpop.f32.mrb[0].mxu0
      %v6908 = vadd.f32 0.0, %v6907
      %v6909 = vpop.f32.mrb[0].mxu0
      %v6910 = vpop.f32.mrb[0].mxu0
      %v6911 = vadd.f32 0.0, %v6910
      %v6912 = vpop.f32.mrb[0].mxu0
      %6913 = vmatprep.mubr.bf16.mxu0 0
      %6914 = vmatmul.mubr.bf16.gmra.mrb[0].mxu0 %v6815
      %v6915 = vpop.f32.mrb[0].mxu0
      %v6916 = vadd.f32 0.0, %v6915
      %v6917 = vpop.f32.mrb[0].mxu0
      %v6918 = vpop.f32.mrb[0].mxu0
      %v6919 = vadd.f32 0.0, %v6918
      %v6920 = vpop.f32.mrb[0].mxu0
      %6921 = vmatprep.mubr.bf16.mxu0 0
      %6922 = vmatmul.mubr.bf16.gmra.mrb[0].mxu0 %v6818
      %v6923 = vpop.f32.mrb[0].mxu0
      %v6924 = vadd.f32 0.0, %v6923
      %v6925 = vpop.f32.mrb[0].mxu0
      %v6926 = vpop.f32.mrb[0].mxu0
      %v6927 = vadd.f32 0.0, %v6926
      %v6928 = vpop.f32.mrb[0].mxu0
      %6929 = vmatprep.mubr.bf16.mxu0 0
      %6930 = vmatmul.mubr.bf16.gmra.mrb[0].mxu0 %v6821
      %v6931 = vpop.f32.mrb[0].mxu0
      %v6932 = vadd.f32 0.0, %v6931
      %v6933 = vpop.f32.mrb[0].mxu0
      %v6934 = vpop.f32.mrb[0].mxu0
      %v6935 = vadd.f32 0.0, %v6934
      %v6936 = vpop.f32.mrb[0].mxu0
      %6937 = vmatprep.mubr.bf16.mxu0 0
      %6938 = vmatmul.mubr.bf16.gmra.mrb[0].mxu0 %v6824
      %v6939 = vpop.f32.mrb[0].mxu0
      %v6940 = vadd.f32 0.0, %v6939
      %v6941 = vpop.f32.mrb[0].mxu0
      %v6942 = vpop.f32.mrb[0].mxu0
      %v6943 = vadd.f32 0.0, %v6942
      %v6944 = vpop.f32.mrb[0].mxu0
      %6945 = vmatprep.mubr.bf16.mxu0 0
      %6946 = vmatmul.mubr.bf16.gmra.mrb[0].mxu0 %v6827
      %v6947 = vpop.f32.mrb[0].mxu0
      %v6948 = vadd.f32 0.0, %v6947
      %v6949 = vpop.f32.mrb[0].mxu0
      %v6950 = vpop.f32.mrb[0].mxu0
      %v6951 = vadd.f32 0.0, %v6950
      %v6952 = vpop.f32.mrb[0].mxu0
      %6953 = vmatprep.mubr.bf16.mxu0 0
      %6954 = vmatmul.mubr.bf16.gmra.mrb[0].mxu0 %v6830
      %v6955 = vpop.f32.mrb[0].mxu0
      %v6956 = vadd.f32 0.0, %v6955
      %v6957 = vpop.f32.mrb[0].mxu0
      %v6958 = vpop.f32.mrb[0].mxu0
      %v6959 = vadd.f32 0.0, %v6958
      %v6960 = vpop.f32.mrb[0].mxu0
      %6961 = vmatprep.mubr.bf16.mxu0 0
      %6962 = vmatmul.mubr.bf16.gmra.mrb[0].mxu0 %v6833
      %v6963 = vpop.f32.mrb[0].mxu0
      %v6964 = vadd.f32 0.0, %v6963
      %v6965 = vpop.f32.mrb[0].mxu0
      %v6966 = vpop.f32.mrb[0].mxu0
      %v6967 = vadd.f32 0.0, %v6966
      %v6968 = vpop.f32.mrb[0].mxu0
      %6969 = vmatprep.mubr.bf16.mxu0 0
      %6970 = vmatmul.mubr.bf16.gmra.mrb[0].mxu0 %v6836
      %v6971 = vpop.f32.mrb[0].mxu0
      %v6972 = vadd.f32 0.0, %v6971
      %v6973 = vpop.f32.mrb[0].mxu0
      %v6974 = vpop.f32.mrb[0].mxu0
      %v6975 = vadd.f32 0.0, %v6974
      %v6976 = vpop.f32.mrb[0].mxu0
      %6977 = vmatprep.mubr.bf16.mxu0 0
      %6978 = vmatmul.mubr.bf16.gmra.mrb[0].mxu0 %v6839
      %v6979 = vpop.f32.mrb[0].mxu0
      %v6980 = vadd.f32 0.0, %v6979
      %v6981 = vpop.f32.mrb[0].mxu0
      %v6982 = vpop.f32.mrb[0].mxu0
      %v6983 = vadd.f32 0.0, %v6982
      %v6984 = vpop.f32.mrb[0].mxu0
      %6985 = vmatprep.mubr.bf16.mxu0 0
      %6986 = vmatmul.mubr.bf16.gmra.mrb[0].mxu0 %v6842
      %v6987 = vpop.f32.mrb[0].mxu0
      %v6988 = vadd.f32 0.0, %v6987
      %v6989 = vpop.f32.mrb[0].mxu0
      %v6990 = vpop.f32.mrb[0].mxu0
      %v6991 = vadd.f32 0.0, %v6990
      %v6992 = vpop.f32.mrb[0].mxu0
      %6993 = vmatprep.mubr.bf16.mxu0 0
      %6994 = vmatmul.mubr.bf16.gmra.mrb[0].mxu0 %v6845
      %v6995 = vpop.f32.mrb[0].mxu0
      %v6996 = vadd.f32 0.0, %v6995
      %v6997 = vpop.f32.mrb[0].mxu0
      %v6998 = vpop.f32.mrb[0].mxu0
      %v6999 = vadd.f32 0.0, %v6998
      %v7000 = vpop.f32.mrb[0].mxu0
      %7001 = vmatprep.mubr.bf16.mxu0 0
      %7002 = vmatmul.mubr.bf16.gmra.mrb[0].mxu0 %v6848
      %v7003 = vpop.f32.mrb[0].mxu0
      %v7004 = vadd.f32 0.0, %v7003
      %v7005 = vpop.f32.mrb[0].mxu0
      %v7006 = vpop.f32.mrb[0].mxu0
      %v7007 = vadd.f32 0.0, %v7006
      %v7008 = vpop.f32.mrb[0].mxu0
      %7009 = vmatprep.mubr.bf16.mxu0 0
      %7010 = vmatmul.mubr.bf16.gmra.mrb[0].mxu0 %v6851
      %v7011 = vpop.f32.mrb[0].mxu0
      %v7012 = vadd.f32 0.0, %v7011
      %v7013 = vpop.f32.mrb[0].mxu0
      %v7014 = vpop.f32.mrb[0].mxu0
      %v7015 = vadd.f32 0.0, %v7014
      %v7016 = vpop.f32.mrb[0].mxu0
      %7017 = vmatprep.mubr.bf16.mxu0 0
      %7018 = vmatmul.mubr.bf16.gmra.mrb[0].mxu0 %v6854
      %v7019 = vpop.f32.mrb[0].mxu0
      %v7020 = vadd.f32 0.0, %v7019
      %v7021 = vpop.f32.mrb[0].mxu0
      %v7022 = vpop.f32.mrb[0].mxu0
      %v7023 = vadd.f32 0.0, %v7022
      %v7024 = vpop.f32.mrb[0].mxu0
      %7025 = vmatprep.mubr.bf16.mxu0 0
      %7026 = vmatmul.mubr.bf16.gmra.mrb[0].mxu0 %v6857
      %v7027 = vpop.f32.mrb[0].mxu0
      %v7028 = vadd.f32 0.0, %v7027
      %v7029 = vpop.f32.mrb[0].mxu0
      %v7030 = vpop.f32.mrb[0].mxu0
      %v7031 = vadd.f32 0.0, %v7030
      %v7032 = vpop.f32.mrb[0].mxu0
      %7033 = vmatprep.mubr.bf16.mxu0 0
      %7034 = vmatmul.mubr.bf16.gmra.mrb[0].mxu0 %v6860
      %v7035 = vpop.f32.mrb[0].mxu0
      %v7036 = vadd.f32 0.0, %v7035
      %v7037 = vpop.f32.mrb[0].mxu0
      %v7038 = vpop.f32.mrb[0].mxu0
      %v7039 = vadd.f32 0.0, %v7038
      %v7040 = vpop.f32.mrb[0].mxu0
      %7041 = vdwg.mxu0
      %v7042 = vadd.f32 %v6603, %v6900
      %v7043 = vadd.f32 %v6604, %v6903
      %v7044 = vadd.f32 %v6605, %v6908
      %v7045 = vadd.f32 %v6606, %v6911
      %v7046 = vadd.f32 %v6607, %v6916
      %v7047 = vadd.f32 %v6608, %v6919
      %v7048 = vadd.f32 %v6609, %v6924
      %v7049 = vadd.f32 %v6610, %v6927
      %v7050 = vadd.f32 %v6611, %v6932
      %v7051 = vadd.f32 %v6612, %v6935
      %v7052 = vadd.f32 %v6613, %v6940
      %v7053 = vadd.f32 %v6614, %v6943
      %v7054 = vadd.f32 %v6615, %v6948
      %v7055 = vadd.f32 %v6616, %v6951
      %v7056 = vadd.f32 %v6617, %v6956
      %v7057 = vadd.f32 %v6618, %v6959
      %v7058 = vadd.f32 %v6619, %v6964
      %v7059 = vadd.f32 %v6620, %v6967
      %v7060 = vadd.f32 %v6621, %v6972
      %v7061 = vadd.f32 %v6622, %v6975
      %v7062 = vadd.f32 %v6623, %v6980
      %v7063 = vadd.f32 %v6624, %v6983
      %v7064 = vadd.f32 %v6625, %v6988
      %v7065 = vadd.f32 %v6626, %v6991
      %v7066 = vadd.f32 %v6627, %v6996
      %v7067 = vadd.f32 %v6628, %v6999
      %v7068 = vadd.f32 %v6629, %v7004
      %v7069 = vadd.f32 %v6630, %v7007
      %v7070 = vadd.f32 %v6631, %v7012
      %v7071 = vadd.f32 %v6632, %v7015
      %v7072 = vadd.f32 %v6633, %v7020
      %v7073 = vadd.f32 %v6634, %v7023
      %v7074 = vadd.f32 %v6635, %v7028
      %v7075 = vadd.f32 %v6636, %v7031
      %v7076 = vadd.f32 %v6637, %v7036
      %v7077 = vadd.f32 %v6638, %v7039
      %v7078 = vld [vmem:[#allocation2 + $0x18] sm:$0xff]
      %v7079 = vld [vmem:[#allocation2 + $0x20] sm:$0xff]
      %v7080 = vld [vmem:[#allocation2 + $0x28] sm:$0xff]
      %v7081 = vld [vmem:[#allocation2 + $0x30] sm:$0xff]
      %v7082 = vld [vmem:[#allocation2 + $0x38] sm:$0xff]
      %v7083 = vld [vmem:[#allocation2 + $0x40] sm:$0xff]
      %v7084 = vld [vmem:[#allocation2 + $0x48] sm:$0xff]
      %v7085 = vld [vmem:[#allocation2 + $0x50] sm:$0xff]
      %v7086 = vld [vmem:[#allocation2 + $0x58] sm:$0xff]
      %v7087 = vld [vmem:[#allocation2 + $0x60] sm:$0xff]
      %v7088 = vld [vmem:[#allocation2 + $0x68] sm:$0xff]
      %v7089 = vld [vmem:[#allocation2 + $0x70] sm:$0xff]
      %v7090 = vld [vmem:[#allocation2 + $0x78] sm:$0xff]
      %v7091 = vld [vmem:[#allocation2 + $0x80] sm:$0xff]
      %v7092 = vld [vmem:[#allocation2 + $0x88] sm:$0xff]
      %v7093 = vld [vmem:[#allocation2 + $0x90] sm:$0xff]
      %v7094 = vld [vmem:[#allocation2 + $0x98] sm:$0xff]
      %v7095 = vld [vmem:[#allocation2 + $0xa0] sm:$0xff]
      %v7096 = vld [vmem:[#allocation2 + $0xa8] sm:$0x1]
      %s7097 = scalar_lea.vmem %s2, 24
      %v7098 = vld [vmem:[%s7097] sm:$0xf]
      %v7100 = vshrl.u32 %v7078, 16
      %v7102 = vshll.u32 %v7078, 16
      %v7104 = vrot.slane %v7102, 1
      %v7105 = vor.u32 %v7100, %v7104
      %v7107 = vshll.u32 %v7079, 16
      %v7109 = vrot.slane %v7107, 1
      %v7110 = vsel %vm3024, %v7105, %v7109
      %v7111 = vshrl.u32 %v7079, 16
      %v7113 = vor.u32 %v7111, %v7109
      %v7115 = vshll.u32 %v7080, 16
      %v7117 = vrot.slane %v7115, 1
      %v7118 = vsel %vm3024, %v7113, %v7117
      %v7119 = vshrl.u32 %v7080, 16
      %v7121 = vor.u32 %v7119, %v7117
      %v7123 = vshll.u32 %v7081, 16
      %v7125 = vrot.slane %v7123, 1
      %v7126 = vsel %vm3024, %v7121, %v7125
      %v7127 = vshrl.u32 %v7081, 16
      %v7129 = vor.u32 %v7127, %v7125
      %v7131 = vshll.u32 %v7082, 16
      %v7133 = vrot.slane %v7131, 1
      %v7134 = vsel %vm3024, %v7129, %v7133
      %v7135 = vshrl.u32 %v7082, 16
      %v7137 = vor.u32 %v7135, %v7133
      %v7139 = vshll.u32 %v7083, 16
      %v7141 = vrot.slane %v7139, 1
      %v7142 = vsel %vm3024, %v7137, %v7141
      %v7143 = vshrl.u32 %v7083, 16
      %v7145 = vor.u32 %v7143, %v7141
      %v7147 = vshll.u32 %v7084, 16
      %v7149 = vrot.slane %v7147, 1
      %v7150 = vsel %vm3024, %v7145, %v7149
      %v7151 = vshrl.u32 %v7084, 16
      %v7153 = vor.u32 %v7151, %v7149
      %v7155 = vshll.u32 %v7085, 16
      %v7157 = vrot.slane %v7155, 1
      %v7158 = vsel %vm3024, %v7153, %v7157
      %v7159 = vshrl.u32 %v7085, 16
      %v7161 = vor.u32 %v7159, %v7157
      %v7163 = vshll.u32 %v7086, 16
      %v7165 = vrot.slane %v7163, 1
      %v7166 = vsel %vm3024, %v7161, %v7165
      %v7167 = vshrl.u32 %v7086, 16
      %v7169 = vor.u32 %v7167, %v7165
      %v7171 = vshll.u32 %v7087, 16
      %v7173 = vrot.slane %v7171, 1
      %v7174 = vsel %vm3024, %v7169, %v7173
      %v7175 = vshrl.u32 %v7087, 16
      %v7177 = vor.u32 %v7175, %v7173
      %v7179 = vshll.u32 %v7088, 16
      %v7181 = vrot.slane %v7179, 1
      %v7182 = vsel %vm3024, %v7177, %v7181
      %v7183 = vshrl.u32 %v7088, 16
      %v7185 = vor.u32 %v7183, %v7181
      %v7187 = vshll.u32 %v7089, 16
      %v7189 = vrot.slane %v7187, 1
      %v7190 = vsel %vm3024, %v7185, %v7189
      %v7191 = vshrl.u32 %v7089, 16
      %v7193 = vor.u32 %v7191, %v7189
      %v7195 = vshll.u32 %v7090, 16
      %v7197 = vrot.slane %v7195, 1
      %v7198 = vsel %vm3024, %v7193, %v7197
      %v7199 = vshrl.u32 %v7090, 16
      %v7201 = vor.u32 %v7199, %v7197
      %v7203 = vshll.u32 %v7091, 16
      %v7205 = vrot.slane %v7203, 1
      %v7206 = vsel %vm3024, %v7201, %v7205
      %v7207 = vshrl.u32 %v7091, 16
      %v7209 = vor.u32 %v7207, %v7205
      %v7211 = vshll.u32 %v7092, 16
      %v7213 = vrot.slane %v7211, 1
      %v7214 = vsel %vm3024, %v7209, %v7213
      %v7215 = vshrl.u32 %v7092, 16
      %v7217 = vor.u32 %v7215, %v7213
      %v7219 = vshll.u32 %v7093, 16
      %v7221 = vrot.slane %v7219, 1
      %v7222 = vsel %vm3024, %v7217, %v7221
      %v7223 = vshrl.u32 %v7093, 16
      %v7225 = vor.u32 %v7223, %v7221
      %v7227 = vshll.u32 %v7094, 16
      %v7229 = vrot.slane %v7227, 1
      %v7230 = vsel %vm3024, %v7225, %v7229
      %v7231 = vshrl.u32 %v7094, 16
      %v7233 = vor.u32 %v7231, %v7229
      %v7235 = vshll.u32 %v7095, 16
      %v7237 = vrot.slane %v7235, 1
      %v7238 = vsel %vm3024, %v7233, %v7237
      %v7239 = vshrl.u32 %v7095, 16
      %v7241 = vor.u32 %v7239, %v7237
      %v7243 = vshll.u32 %v7096, 16
      %v7245 = vrot.slane %v7243, 1
      %v7246 = vsel %vm3024, %v7241, %v7245
      %v7248 = vsel %vm199, %v7110, 0
      %v7251 = vsel %vm199, %v7118, 0
      %v7254 = vsel %vm199, %v7126, 0
      %v7257 = vsel %vm199, %v7134, 0
      %v7260 = vsel %vm199, %v7142, 0
      %v7263 = vsel %vm199, %v7150, 0
      %v7266 = vsel %vm199, %v7158, 0
      %v7269 = vsel %vm199, %v7166, 0
      %v7272 = vsel %vm199, %v7174, 0
      %v7275 = vsel %vm199, %v7182, 0
      %v7278 = vsel %vm199, %v7190, 0
      %v7281 = vsel %vm199, %v7198, 0
      %v7284 = vsel %vm199, %v7206, 0
      %v7287 = vsel %vm199, %v7214, 0
      %v7290 = vsel %vm199, %v7222, 0
      %v7293 = vsel %vm199, %v7230, 0
      %v7296 = vsel %vm199, %v7238, 0
      %v7299 = vsel %vm199, %v7246, 0
      %v7302 = vsel %vm1079, %v7098, 0
      %7304 = vmatprep.subr.bf16.mxu0 0
      %7305 = vmatpush1.bf16.msra.mxu0 %v7302
      %7306 = vmatprep.subr.bf16.mxu0 0
      %7307 = vmatpush1.bf16.msra.mxu0 0
      %7308 = vmatprep.subr.bf16.mxu0 0
      %7309 = vmatpush1.bf16.msra.mxu0 0
      %7310 = vmatprep.subr.bf16.mxu0 0
      %7311 = vmatpush1.bf16.msra.mxu0 0
      %7312 = vmatprep.subr.bf16.mxu0 0
      %7313 = vmatpush1.bf16.msra.mxu0 0
      %7314 = vmatprep.subr.bf16.mxu0 0
      %7315 = vmatpush1.bf16.msra.mxu0 0
      %7316 = vmatprep.subr.bf16.mxu0 0
      %7317 = vmatpush1.bf16.msra.mxu0 0
      %7318 = vmatprep.subr.bf16.mxu0 0
      %7319 = vmatpush1.bf16.msra.mxu0 0
      %7320 = vmatprep.subr.bf16.mxu0 0
      %7321 = vmatpush1.bf16.msra.mxu0 0
      %7322 = vmatprep.subr.bf16.mxu0 0
      %7323 = vmatpush1.bf16.msra.mxu0 0
      %7324 = vmatprep.subr.bf16.mxu0 0
      %7325 = vmatpush1.bf16.msra.mxu0 0
      %7326 = vmatprep.subr.bf16.mxu0 0
      %7327 = vmatpush1.bf16.msra.mxu0 0
      %7328 = vmatprep.subr.bf16.mxu0 0
      %7329 = vmatpush1.bf16.msra.mxu0 0
      %7330 = vmatprep.subr.bf16.mxu0 0
      %7331 = vmatpush1.bf16.msra.mxu0 0
      %7332 = vmatprep.subr.bf16.mxu0 0
      %7333 = vmatpush1.bf16.msra.mxu0 0
      %7334 = vmatprep.subr.bf16.mxu0 0
      %7335 = vmatpush1.bf16.msra.mxu0 0
      %7336 = vmatprep.mubr.bf16.mxu0 0
      %7337 = vmatmul.mubr.bf16.gmra.mrb[0].mxu0 %v7248
      %v7338 = vpop.f32.mrb[0].mxu0
      %v7339 = vadd.f32 0.0, %v7338
      %v7340 = vpop.f32.mrb[0].mxu0
      %v7341 = vpop.f32.mrb[0].mxu0
      %v7342 = vadd.f32 0.0, %v7341
      %v7343 = vpop.f32.mrb[0].mxu0
      %7344 = vmatprep.mubr.bf16.mxu0 0
      %7345 = vmatmul.mubr.bf16.gmra.mrb[0].mxu0 %v7251
      %v7346 = vpop.f32.mrb[0].mxu0
      %v7347 = vadd.f32 0.0, %v7346
      %v7348 = vpop.f32.mrb[0].mxu0
      %v7349 = vpop.f32.mrb[0].mxu0
      %v7350 = vadd.f32 0.0, %v7349
      %v7351 = vpop.f32.mrb[0].mxu0
      %7352 = vmatprep.mubr.bf16.mxu0 0
      %7353 = vmatmul.mubr.bf16.gmra.mrb[0].mxu0 %v7254
      %v7354 = vpop.f32.mrb[0].mxu0
      %v7355 = vadd.f32 0.0, %v7354
      %v7356 = vpop.f32.mrb[0].mxu0
      %v7357 = vpop.f32.mrb[0].mxu0
      %v7358 = vadd.f32 0.0, %v7357
      %v7359 = vpop.f32.mrb[0].mxu0
      %7360 = vmatprep.mubr.bf16.mxu0 0
      %7361 = vmatmul.mubr.bf16.gmra.mrb[0].mxu0 %v7257
      %v7362 = vpop.f32.mrb[0].mxu0
      %v7363 = vadd.f32 0.0, %v7362
      %v7364 = vpop.f32.mrb[0].mxu0
      %v7365 = vpop.f32.mrb[0].mxu0
      %v7366 = vadd.f32 0.0, %v7365
      %v7367 = vpop.f32.mrb[0].mxu0
      %7368 = vmatprep.mubr.bf16.mxu0 0
      %7369 = vmatmul.mubr.bf16.gmra.mrb[0].mxu0 %v7260
      %v7370 = vpop.f32.mrb[0].mxu0
      %v7371 = vadd.f32 0.0, %v7370
      %v7372 = vpop.f32.mrb[0].mxu0
      %v7373 = vpop.f32.mrb[0].mxu0
      %v7374 = vadd.f32 0.0, %v7373
      %v7375 = vpop.f32.mrb[0].mxu0
      %7376 = vmatprep.mubr.bf16.mxu0 0
      %7377 = vmatmul.mubr.bf16.gmra.mrb[0].mxu0 %v7263
      %v7378 = vpop.f32.mrb[0].mxu0
      %v7379 = vadd.f32 0.0, %v7378
      %v7380 = vpop.f32.mrb[0].mxu0
      %v7381 = vpop.f32.mrb[0].mxu0
      %v7382 = vadd.f32 0.0, %v7381
      %v7383 = vpop.f32.mrb[0].mxu0
      %7384 = vmatprep.mubr.bf16.mxu0 0
      %7385 = vmatmul.mubr.bf16.gmra.mrb[0].mxu0 %v7266
      %v7386 = vpop.f32.mrb[0].mxu0
      %v7387 = vadd.f32 0.0, %v7386
      %v7388 = vpop.f32.mrb[0].mxu0
      %v7389 = vpop.f32.mrb[0].mxu0
      %v7390 = vadd.f32 0.0, %v7389
      %v7391 = vpop.f32.mrb[0].mxu0
      %7392 = vmatprep.mubr.bf16.mxu0 0
      %7393 = vmatmul.mubr.bf16.gmra.mrb[0].mxu0 %v7269
      %v7394 = vpop.f32.mrb[0].mxu0
      %v7395 = vadd.f32 0.0, %v7394
      %v7396 = vpop.f32.mrb[0].mxu0
      %v7397 = vpop.f32.mrb[0].mxu0
      %v7398 = vadd.f32 0.0, %v7397
      %v7399 = vpop.f32.mrb[0].mxu0
      %7400 = vmatprep.mubr.bf16.mxu0 0
      %7401 = vmatmul.mubr.bf16.gmra.mrb[0].mxu0 %v7272
      %v7402 = vpop.f32.mrb[0].mxu0
      %v7403 = vadd.f32 0.0, %v7402
      %v7404 = vpop.f32.mrb[0].mxu0
      %v7405 = vpop.f32.mrb[0].mxu0
      %v7406 = vadd.f32 0.0, %v7405
      %v7407 = vpop.f32.mrb[0].mxu0
      %7408 = vmatprep.mubr.bf16.mxu0 0
      %7409 = vmatmul.mubr.bf16.gmra.mrb[0].mxu0 %v7275
      %v7410 = vpop.f32.mrb[0].mxu0
      %v7411 = vadd.f32 0.0, %v7410
      %v7412 = vpop.f32.mrb[0].mxu0
      %v7413 = vpop.f32.mrb[0].mxu0
      %v7414 = vadd.f32 0.0, %v7413
      %v7415 = vpop.f32.mrb[0].mxu0
      %7416 = vmatprep.mubr.bf16.mxu0 0
      %7417 = vmatmul.mubr.bf16.gmra.mrb[0].mxu0 %v7278
      %v7418 = vpop.f32.mrb[0].mxu0
      %v7419 = vadd.f32 0.0, %v7418
      %v7420 = vpop.f32.mrb[0].mxu0
      %v7421 = vpop.f32.mrb[0].mxu0
      %v7422 = vadd.f32 0.0, %v7421
      %v7423 = vpop.f32.mrb[0].mxu0
      %7424 = vmatprep.mubr.bf16.mxu0 0
      %7425 = vmatmul.mubr.bf16.gmra.mrb[0].mxu0 %v7281
      %v7426 = vpop.f32.mrb[0].mxu0
      %v7427 = vadd.f32 0.0, %v7426
      %v7428 = vpop.f32.mrb[0].mxu0
      %v7429 = vpop.f32.mrb[0].mxu0
      %v7430 = vadd.f32 0.0, %v7429
      %v7431 = vpop.f32.mrb[0].mxu0
      %7432 = vmatprep.mubr.bf16.mxu0 0
      %7433 = vmatmul.mubr.bf16.gmra.mrb[0].mxu0 %v7284
      %v7434 = vpop.f32.mrb[0].mxu0
      %v7435 = vadd.f32 0.0, %v7434
      %v7436 = vpop.f32.mrb[0].mxu0
      %v7437 = vpop.f32.mrb[0].mxu0
      %v7438 = vadd.f32 0.0, %v7437
      %v7439 = vpop.f32.mrb[0].mxu0
      %7440 = vmatprep.mubr.bf16.mxu0 0
      %7441 = vmatmul.mubr.bf16.gmra.mrb[0].mxu0 %v7287
      %v7442 = vpop.f32.mrb[0].mxu0
      %v7443 = vadd.f32 0.0, %v7442
      %v7444 = vpop.f32.mrb[0].mxu0
      %v7445 = vpop.f32.mrb[0].mxu0
      %v7446 = vadd.f32 0.0, %v7445
      %v7447 = vpop.f32.mrb[0].mxu0
      %7448 = vmatprep.mubr.bf16.mxu0 0
      %7449 = vmatmul.mubr.bf16.gmra.mrb[0].mxu0 %v7290
      %v7450 = vpop.f32.mrb[0].mxu0
      %v7451 = vadd.f32 0.0, %v7450
      %v7452 = vpop.f32.mrb[0].mxu0
      %v7453 = vpop.f32.mrb[0].mxu0
      %v7454 = vadd.f32 0.0, %v7453
      %v7455 = vpop.f32.mrb[0].mxu0
      %7456 = vmatprep.mubr.bf16.mxu0 0
      %7457 = vmatmul.mubr.bf16.gmra.mrb[0].mxu0 %v7293
      %v7458 = vpop.f32.mrb[0].mxu0
      %v7459 = vadd.f32 0.0, %v7458
      %v7460 = vpop.f32.mrb[0].mxu0
      %v7461 = vpop.f32.mrb[0].mxu0
      %v7462 = vadd.f32 0.0, %v7461
      %v7463 = vpop.f32.mrb[0].mxu0
      %7464 = vmatprep.mubr.bf16.mxu0 0
      %7465 = vmatmul.mubr.bf16.gmra.mrb[0].mxu0 %v7296
      %v7466 = vpop.f32.mrb[0].mxu0
      %v7467 = vadd.f32 0.0, %v7466
      %v7468 = vpop.f32.mrb[0].mxu0
      %v7469 = vpop.f32.mrb[0].mxu0
      %v7470 = vadd.f32 0.0, %v7469
      %v7471 = vpop.f32.mrb[0].mxu0
      %7472 = vmatprep.mubr.bf16.mxu0 0
      %7473 = vmatmul.mubr.bf16.gmra.mrb[0].mxu0 %v7299
      %v7474 = vpop.f32.mrb[0].mxu0
      %v7475 = vadd.f32 0.0, %v7474
      %v7476 = vpop.f32.mrb[0].mxu0
      %v7477 = vpop.f32.mrb[0].mxu0
      %v7478 = vadd.f32 0.0, %v7477
      %v7479 = vpop.f32.mrb[0].mxu0
      %7480 = vdwg.mxu0
      %v7481 = vadd.f32 %v7042, %v7339
      %v7482 = vadd.f32 %v7043, %v7342
      %v7483 = vadd.f32 %v7044, %v7347
      %v7484 = vadd.f32 %v7045, %v7350
      %v7485 = vadd.f32 %v7046, %v7355
      %v7486 = vadd.f32 %v7047, %v7358
      %v7487 = vadd.f32 %v7048, %v7363
      %v7488 = vadd.f32 %v7049, %v7366
      %v7489 = vadd.f32 %v7050, %v7371
      %v7490 = vadd.f32 %v7051, %v7374
      %v7491 = vadd.f32 %v7052, %v7379
      %v7492 = vadd.f32 %v7053, %v7382
      %v7493 = vadd.f32 %v7054, %v7387
      %v7494 = vadd.f32 %v7055, %v7390
      %v7495 = vadd.f32 %v7056, %v7395
      %v7496 = vadd.f32 %v7057, %v7398
      %v7497 = vadd.f32 %v7058, %v7403
      %v7498 = vadd.f32 %v7059, %v7406
      %v7499 = vadd.f32 %v7060, %v7411
      %v7500 = vadd.f32 %v7061, %v7414
      %v7501 = vadd.f32 %v7062, %v7419
      %v7502 = vadd.f32 %v7063, %v7422
      %v7503 = vadd.f32 %v7064, %v7427
      %v7504 = vadd.f32 %v7065, %v7430
      %v7505 = vadd.f32 %v7066, %v7435
      %v7506 = vadd.f32 %v7067, %v7438
      %v7507 = vadd.f32 %v7068, %v7443
      %v7508 = vadd.f32 %v7069, %v7446
      %v7509 = vadd.f32 %v7070, %v7451
      %v7510 = vadd.f32 %v7071, %v7454
      %v7511 = vadd.f32 %v7072, %v7459
      %v7512 = vadd.f32 %v7073, %v7462
      %v7513 = vadd.f32 %v7074, %v7467
      %v7514 = vadd.f32 %v7075, %v7470
      %v7515 = vadd.f32 %v7076, %v7475
      %v7516 = vadd.f32 %v7077, %v7478
      %v7517 = vld [vmem:[#allocation2 + $0x18] sm:$0xfe]
      %s7518 = scalar_lea.vmem %s2, 28
      %v7519 = vld [vmem:[%s7518] sm:$0xf]
      %v7539 = vrot.slane %v7517, 1
      %v7540 = vrot.slane %v7079, 1
      %v7541 = vsel %vm3999, %v7539, %v7540
      %v7542 = vrot.slane %v7080, 1
      %v7543 = vsel %vm3999, %v7540, %v7542
      %v7544 = vrot.slane %v7081, 1
      %v7545 = vsel %vm3999, %v7542, %v7544
      %v7546 = vrot.slane %v7082, 1
      %v7547 = vsel %vm3999, %v7544, %v7546
      %v7548 = vrot.slane %v7083, 1
      %v7549 = vsel %vm3999, %v7546, %v7548
      %v7550 = vrot.slane %v7084, 1
      %v7551 = vsel %vm3999, %v7548, %v7550
      %v7552 = vrot.slane %v7085, 1
      %v7553 = vsel %vm3999, %v7550, %v7552
      %v7554 = vrot.slane %v7086, 1
      %v7555 = vsel %vm3999, %v7552, %v7554
      %v7556 = vrot.slane %v7087, 1
      %v7557 = vsel %vm3999, %v7554, %v7556
      %v7558 = vrot.slane %v7088, 1
      %v7559 = vsel %vm3999, %v7556, %v7558
      %v7560 = vrot.slane %v7089, 1
      %v7561 = vsel %vm3999, %v7558, %v7560
      %v7562 = vrot.slane %v7090, 1
      %v7563 = vsel %vm3999, %v7560, %v7562
      %v7564 = vrot.slane %v7091, 1
      %v7565 = vsel %vm3999, %v7562, %v7564
      %v7566 = vrot.slane %v7092, 1
      %v7567 = vsel %vm3999, %v7564, %v7566
      %v7568 = vrot.slane %v7093, 1
      %v7569 = vsel %vm3999, %v7566, %v7568
      %v7570 = vrot.slane %v7094, 1
      %v7571 = vsel %vm3999, %v7568, %v7570
      %v7572 = vrot.slane %v7095, 1
      %v7573 = vsel %vm3999, %v7570, %v7572
      %v7574 = vrot.slane %v7096, 1
      %v7575 = vsel %vm3999, %v7572, %v7574
      %v7577 = vsel %vm199, %v7541, 0
      %v7580 = vsel %vm199, %v7543, 0
      %v7583 = vsel %vm199, %v7545, 0
      %v7586 = vsel %vm199, %v7547, 0
      %v7589 = vsel %vm199, %v7549, 0
      %v7592 = vsel %vm199, %v7551, 0
      %v7595 = vsel %vm199, %v7553, 0
      %v7598 = vsel %vm199, %v7555, 0
      %v7601 = vsel %vm199, %v7557, 0
      %v7604 = vsel %vm199, %v7559, 0
      %v7607 = vsel %vm199, %v7561, 0
      %v7610 = vsel %vm199, %v7563, 0
      %v7613 = vsel %vm199, %v7565, 0
      %v7616 = vsel %vm199, %v7567, 0
      %v7619 = vsel %vm199, %v7569, 0
      %v7622 = vsel %vm199, %v7571, 0
      %v7625 = vsel %vm199, %v7573, 0
      %v7628 = vsel %vm199, %v7575, 0
      %v7631 = vsel %vm1079, %v7519, 0
      %7633 = vmatprep.subr.bf16.mxu0 0
      %7634 = vmatpush1.bf16.msra.mxu0 %v7631
      %7635 = vmatprep.subr.bf16.mxu0 0
      %7636 = vmatpush1.bf16.msra.mxu0 0
      %7637 = vmatprep.subr.bf16.mxu0 0
      %7638 = vmatpush1.bf16.msra.mxu0 0
      %7639 = vmatprep.subr.bf16.mxu0 0
      %7640 = vmatpush1.bf16.msra.mxu0 0
      %7641 = vmatprep.subr.bf16.mxu0 0
      %7642 = vmatpush1.bf16.msra.mxu0 0
      %7643 = vmatprep.subr.bf16.mxu0 0
      %7644 = vmatpush1.bf16.msra.mxu0 0
      %7645 = vmatprep.subr.bf16.mxu0 0
      %7646 = vmatpush1.bf16.msra.mxu0 0
      %7647 = vmatprep.subr.bf16.mxu0 0
      %7648 = vmatpush1.bf16.msra.mxu0 0
      %7649 = vmatprep.subr.bf16.mxu0 0
      %7650 = vmatpush1.bf16.msra.mxu0 0
      %7651 = vmatprep.subr.bf16.mxu0 0
      %7652 = vmatpush1.bf16.msra.mxu0 0
      %7653 = vmatprep.subr.bf16.mxu0 0
      %7654 = vmatpush1.bf16.msra.mxu0 0
      %7655 = vmatprep.subr.bf16.mxu0 0
      %7656 = vmatpush1.bf16.msra.mxu0 0
      %7657 = vmatprep.subr.bf16.mxu0 0
      %7658 = vmatpush1.bf16.msra.mxu0 0
      %7659 = vmatprep.subr.bf16.mxu0 0
      %7660 = vmatpush1.bf16.msra.mxu0 0
      %7661 = vmatprep.subr.bf16.mxu0 0
      %7662 = vmatpush1.bf16.msra.mxu0 0
      %7663 = vmatprep.subr.bf16.mxu0 0
      %7664 = vmatpush1.bf16.msra.mxu0 0
      %7665 = vmatprep.mubr.bf16.mxu0 0
      %7666 = vmatmul.mubr.bf16.gmra.mrb[0].mxu0 %v7577
      %v7667 = vpop.f32.mrb[0].mxu0
      %v7668 = vadd.f32 0.0, %v7667
      %v7669 = vpop.f32.mrb[0].mxu0
      %v7670 = vpop.f32.mrb[0].mxu0
      %v7671 = vadd.f32 0.0, %v7670
      %v7672 = vpop.f32.mrb[0].mxu0
      %7673 = vmatprep.mubr.bf16.mxu0 0
      %7674 = vmatmul.mubr.bf16.gmra.mrb[0].mxu0 %v7580
      %v7675 = vpop.f32.mrb[0].mxu0
      %v7676 = vadd.f32 0.0, %v7675
      %v7677 = vpop.f32.mrb[0].mxu0
      %v7678 = vpop.f32.mrb[0].mxu0
      %v7679 = vadd.f32 0.0, %v7678
      %v7680 = vpop.f32.mrb[0].mxu0
      %7681 = vmatprep.mubr.bf16.mxu0 0
      %7682 = vmatmul.mubr.bf16.gmra.mrb[0].mxu0 %v7583
      %v7683 = vpop.f32.mrb[0].mxu0
      %v7684 = vadd.f32 0.0, %v7683
      %v7685 = vpop.f32.mrb[0].mxu0
      %v7686 = vpop.f32.mrb[0].mxu0
      %v7687 = vadd.f32 0.0, %v7686
      %v7688 = vpop.f32.mrb[0].mxu0
      %7689 = vmatprep.mubr.bf16.mxu0 0
      %7690 = vmatmul.mubr.bf16.gmra.mrb[0].mxu0 %v7586
      %v7691 = vpop.f32.mrb[0].mxu0
      %v7692 = vadd.f32 0.0, %v7691
      %v7693 = vpop.f32.mrb[0].mxu0
      %v7694 = vpop.f32.mrb[0].mxu0
      %v7695 = vadd.f32 0.0, %v7694
      %v7696 = vpop.f32.mrb[0].mxu0
      %7697 = vmatprep.mubr.bf16.mxu0 0
      %7698 = vmatmul.mubr.bf16.gmra.mrb[0].mxu0 %v7589
      %v7699 = vpop.f32.mrb[0].mxu0
      %v7700 = vadd.f32 0.0, %v7699
      %v7701 = vpop.f32.mrb[0].mxu0
      %v7702 = vpop.f32.mrb[0].mxu0
      %v7703 = vadd.f32 0.0, %v7702
      %v7704 = vpop.f32.mrb[0].mxu0
      %7705 = vmatprep.mubr.bf16.mxu0 0
      %7706 = vmatmul.mubr.bf16.gmra.mrb[0].mxu0 %v7592
      %v7707 = vpop.f32.mrb[0].mxu0
      %v7708 = vadd.f32 0.0, %v7707
      %v7709 = vpop.f32.mrb[0].mxu0
      %v7710 = vpop.f32.mrb[0].mxu0
      %v7711 = vadd.f32 0.0, %v7710
      %v7712 = vpop.f32.mrb[0].mxu0
      %7713 = vmatprep.mubr.bf16.mxu0 0
      %7714 = vmatmul.mubr.bf16.gmra.mrb[0].mxu0 %v7595
      %v7715 = vpop.f32.mrb[0].mxu0
      %v7716 = vadd.f32 0.0, %v7715
      %v7717 = vpop.f32.mrb[0].mxu0
      %v7718 = vpop.f32.mrb[0].mxu0
      %v7719 = vadd.f32 0.0, %v7718
      %v7720 = vpop.f32.mrb[0].mxu0
      %7721 = vmatprep.mubr.bf16.mxu0 0
      %7722 = vmatmul.mubr.bf16.gmra.mrb[0].mxu0 %v7598
      %v7723 = vpop.f32.mrb[0].mxu0
      %v7724 = vadd.f32 0.0, %v7723
      %v7725 = vpop.f32.mrb[0].mxu0
      %v7726 = vpop.f32.mrb[0].mxu0
      %v7727 = vadd.f32 0.0, %v7726
      %v7728 = vpop.f32.mrb[0].mxu0
      %7729 = vmatprep.mubr.bf16.mxu0 0
      %7730 = vmatmul.mubr.bf16.gmra.mrb[0].mxu0 %v7601
      %v7731 = vpop.f32.mrb[0].mxu0
      %v7732 = vadd.f32 0.0, %v7731
      %v7733 = vpop.f32.mrb[0].mxu0
      %v7734 = vpop.f32.mrb[0].mxu0
      %v7735 = vadd.f32 0.0, %v7734
      %v7736 = vpop.f32.mrb[0].mxu0
      %7737 = vmatprep.mubr.bf16.mxu0 0
      %7738 = vmatmul.mubr.bf16.gmra.mrb[0].mxu0 %v7604
      %v7739 = vpop.f32.mrb[0].mxu0
      %v7740 = vadd.f32 0.0, %v7739
      %v7741 = vpop.f32.mrb[0].mxu0
      %v7742 = vpop.f32.mrb[0].mxu0
      %v7743 = vadd.f32 0.0, %v7742
      %v7744 = vpop.f32.mrb[0].mxu0
      %7745 = vmatprep.mubr.bf16.mxu0 0
      %7746 = vmatmul.mubr.bf16.gmra.mrb[0].mxu0 %v7607
      %v7747 = vpop.f32.mrb[0].mxu0
      %v7748 = vadd.f32 0.0, %v7747
      %v7749 = vpop.f32.mrb[0].mxu0
      %v7750 = vpop.f32.mrb[0].mxu0
      %v7751 = vadd.f32 0.0, %v7750
      %v7752 = vpop.f32.mrb[0].mxu0
      %7753 = vmatprep.mubr.bf16.mxu0 0
      %7754 = vmatmul.mubr.bf16.gmra.mrb[0].mxu0 %v7610
      %v7755 = vpop.f32.mrb[0].mxu0
      %v7756 = vadd.f32 0.0, %v7755
      %v7757 = vpop.f32.mrb[0].mxu0
      %v7758 = vpop.f32.mrb[0].mxu0
      %v7759 = vadd.f32 0.0, %v7758
      %v7760 = vpop.f32.mrb[0].mxu0
      %7761 = vmatprep.mubr.bf16.mxu0 0
      %7762 = vmatmul.mubr.bf16.gmra.mrb[0].mxu0 %v7613
      %v7763 = vpop.f32.mrb[0].mxu0
      %v7764 = vadd.f32 0.0, %v7763
      %v7765 = vpop.f32.mrb[0].mxu0
      %v7766 = vpop.f32.mrb[0].mxu0
      %v7767 = vadd.f32 0.0, %v7766
      %v7768 = vpop.f32.mrb[0].mxu0
      %7769 = vmatprep.mubr.bf16.mxu0 0
      %7770 = vmatmul.mubr.bf16.gmra.mrb[0].mxu0 %v7616
      %v7771 = vpop.f32.mrb[0].mxu0
      %v7772 = vadd.f32 0.0, %v7771
      %v7773 = vpop.f32.mrb[0].mxu0
      %v7774 = vpop.f32.mrb[0].mxu0
      %v7775 = vadd.f32 0.0, %v7774
      %v7776 = vpop.f32.mrb[0].mxu0
      %7777 = vmatprep.mubr.bf16.mxu0 0
      %7778 = vmatmul.mubr.bf16.gmra.mrb[0].mxu0 %v7619
      %v7779 = vpop.f32.mrb[0].mxu0
      %v7780 = vadd.f32 0.0, %v7779
      %v7781 = vpop.f32.mrb[0].mxu0
      %v7782 = vpop.f32.mrb[0].mxu0
      %v7783 = vadd.f32 0.0, %v7782
      %v7784 = vpop.f32.mrb[0].mxu0
      %7785 = vmatprep.mubr.bf16.mxu0 0
      %7786 = vmatmul.mubr.bf16.gmra.mrb[0].mxu0 %v7622
      %v7787 = vpop.f32.mrb[0].mxu0
      %v7788 = vadd.f32 0.0, %v7787
      %v7789 = vpop.f32.mrb[0].mxu0
      %v7790 = vpop.f32.mrb[0].mxu0
      %v7791 = vadd.f32 0.0, %v7790
      %v7792 = vpop.f32.mrb[0].mxu0
      %7793 = vmatprep.mubr.bf16.mxu0 0
      %7794 = vmatmul.mubr.bf16.gmra.mrb[0].mxu0 %v7625
      %v7795 = vpop.f32.mrb[0].mxu0
      %v7796 = vadd.f32 0.0, %v7795
      %v7797 = vpop.f32.mrb[0].mxu0
      %v7798 = vpop.f32.mrb[0].mxu0
      %v7799 = vadd.f32 0.0, %v7798
      %v7800 = vpop.f32.mrb[0].mxu0
      %7801 = vmatprep.mubr.bf16.mxu0 0
      %7802 = vmatmul.mubr.bf16.gmra.mrb[0].mxu0 %v7628
      %v7803 = vpop.f32.mrb[0].mxu0
      %v7804 = vadd.f32 0.0, %v7803
      %v7805 = vpop.f32.mrb[0].mxu0
      %v7806 = vpop.f32.mrb[0].mxu0
      %v7807 = vadd.f32 0.0, %v7806
      %v7808 = vpop.f32.mrb[0].mxu0
      %7809 = vdwg.mxu0
      %v7810 = vadd.f32 %v7481, %v7668
      %v7811 = vadd.f32 %v7482, %v7671
      %v7812 = vadd.f32 %v7483, %v7676
      %v7813 = vadd.f32 %v7484, %v7679
      %v7814 = vadd.f32 %v7485, %v7684
      %v7815 = vadd.f32 %v7486, %v7687
      %v7816 = vadd.f32 %v7487, %v7692
      %v7817 = vadd.f32 %v7488, %v7695
      %v7818 = vadd.f32 %v7489, %v7700
      %v7819 = vadd.f32 %v7490, %v7703
      %v7820 = vadd.f32 %v7491, %v7708
      %v7821 = vadd.f32 %v7492, %v7711
      %v7822 = vadd.f32 %v7493, %v7716
      %v7823 = vadd.f32 %v7494, %v7719
      %v7824 = vadd.f32 %v7495, %v7724
      %v7825 = vadd.f32 %v7496, %v7727
      %v7826 = vadd.f32 %v7497, %v7732
      %v7827 = vadd.f32 %v7498, %v7735
      %v7828 = vadd.f32 %v7499, %v7740
      %v7829 = vadd.f32 %v7500, %v7743
      %v7830 = vadd.f32 %v7501, %v7748
      %v7831 = vadd.f32 %v7502, %v7751
      %v7832 = vadd.f32 %v7503, %v7756
      %v7833 = vadd.f32 %v7504, %v7759
      %v7834 = vadd.f32 %v7505, %v7764
      %v7835 = vadd.f32 %v7506, %v7767
      %v7836 = vadd.f32 %v7507, %v7772
      %v7837 = vadd.f32 %v7508, %v7775
      %v7838 = vadd.f32 %v7509, %v7780
      %v7839 = vadd.f32 %v7510, %v7783
      %v7840 = vadd.f32 %v7511, %v7788
      %v7841 = vadd.f32 %v7512, %v7791
      %v7842 = vadd.f32 %v7513, %v7796
      %v7843 = vadd.f32 %v7514, %v7799
      %v7844 = vadd.f32 %v7515, %v7804
      %v7845 = vadd.f32 %v7516, %v7807
      %v7846 = vld [vmem:[#allocation2 + $0xa8] sm:$0x3]
      %s7847 = scalar_lea.vmem %s2, 32
      %v7848 = vld [vmem:[%s7847] sm:$0xf]
      %v7850 = vshrl.u32 %v7517, 16
      %v7852 = vrot.slane %v7850, 1
      %v7853 = vshll.u32 %v7517, 16
      %v7855 = vrot.slane %v7853, 2
      %v7856 = vor.u32 %v7852, %v7855
      %v7857 = vrot.slane %v7111, 1
      %v7858 = vrot.slane %v7107, 2
      %v7859 = vor.u32 %v7857, %v7858
      %v7860 = vsel %vm4313, %v7856, %v7859
      %v7861 = vrot.slane %v7119, 1
      %v7862 = vrot.slane %v7115, 2
      %v7863 = vor.u32 %v7861, %v7862
      %v7864 = vsel %vm4313, %v7859, %v7863
      %v7865 = vrot.slane %v7127, 1
      %v7866 = vrot.slane %v7123, 2
      %v7867 = vor.u32 %v7865, %v7866
      %v7868 = vsel %vm4313, %v7863, %v7867
      %v7869 = vrot.slane %v7135, 1
      %v7870 = vrot.slane %v7131, 2
      %v7871 = vor.u32 %v7869, %v7870
      %v7872 = vsel %vm4313, %v7867, %v7871
      %v7873 = vrot.slane %v7143, 1
      %v7874 = vrot.slane %v7139, 2
      %v7875 = vor.u32 %v7873, %v7874
      %v7876 = vsel %vm4313, %v7871, %v7875
      %v7877 = vrot.slane %v7151, 1
      %v7878 = vrot.slane %v7147, 2
      %v7879 = vor.u32 %v7877, %v7878
      %v7880 = vsel %vm4313, %v7875, %v7879
      %v7881 = vrot.slane %v7159, 1
      %v7882 = vrot.slane %v7155, 2
      %v7883 = vor.u32 %v7881, %v7882
      %v7884 = vsel %vm4313, %v7879, %v7883
      %v7885 = vrot.slane %v7167, 1
      %v7886 = vrot.slane %v7163, 2
      %v7887 = vor.u32 %v7885, %v7886
      %v7888 = vsel %vm4313, %v7883, %v7887
      %v7889 = vrot.slane %v7175, 1
      %v7890 = vrot.slane %v7171, 2
      %v7891 = vor.u32 %v7889, %v7890
      %v7892 = vsel %vm4313, %v7887, %v7891
      %v7893 = vrot.slane %v7183, 1
      %v7894 = vrot.slane %v7179, 2
      %v7895 = vor.u32 %v7893, %v7894
      %v7896 = vsel %vm4313, %v7891, %v7895
      %v7897 = vrot.slane %v7191, 1
      %v7898 = vrot.slane %v7187, 2
      %v7899 = vor.u32 %v7897, %v7898
      %v7900 = vsel %vm4313, %v7895, %v7899
      %v7901 = vrot.slane %v7199, 1
      %v7902 = vrot.slane %v7195, 2
      %v7903 = vor.u32 %v7901, %v7902
      %v7904 = vsel %vm4313, %v7899, %v7903
      %v7905 = vrot.slane %v7207, 1
      %v7906 = vrot.slane %v7203, 2
      %v7907 = vor.u32 %v7905, %v7906
      %v7908 = vsel %vm4313, %v7903, %v7907
      %v7909 = vrot.slane %v7215, 1
      %v7910 = vrot.slane %v7211, 2
      %v7911 = vor.u32 %v7909, %v7910
      %v7912 = vsel %vm4313, %v7907, %v7911
      %v7913 = vrot.slane %v7223, 1
      %v7914 = vrot.slane %v7219, 2
      %v7915 = vor.u32 %v7913, %v7914
      %v7916 = vsel %vm4313, %v7911, %v7915
      %v7917 = vrot.slane %v7231, 1
      %v7918 = vrot.slane %v7227, 2
      %v7919 = vor.u32 %v7917, %v7918
      %v7920 = vsel %vm4313, %v7915, %v7919
      %v7921 = vrot.slane %v7239, 1
      %v7922 = vrot.slane %v7235, 2
      %v7923 = vor.u32 %v7921, %v7922
      %v7924 = vsel %vm4313, %v7919, %v7923
      %v7926 = vshrl.u32 %v7846, 16
      %v7928 = vrot.slane %v7926, 1
      %v7929 = vshll.u32 %v7846, 16
      %v7931 = vrot.slane %v7929, 2
      %v7932 = vor.u32 %v7928, %v7931
      %v7933 = vsel %vm4313, %v7923, %v7932
      %v7935 = vsel %vm199, %v7860, 0
      %v7938 = vsel %vm199, %v7864, 0
      %v7941 = vsel %vm199, %v7868, 0
      %v7944 = vsel %vm199, %v7872, 0
      %v7947 = vsel %vm199, %v7876, 0
      %v7950 = vsel %vm199, %v7880, 0
      %v7953 = vsel %vm199, %v7884, 0
      %v7956 = vsel %vm199, %v7888, 0
      %v7959 = vsel %vm199, %v7892, 0
      %v7962 = vsel %vm199, %v7896, 0
      %v7965 = vsel %vm199, %v7900, 0
      %v7968 = vsel %vm199, %v7904, 0
      %v7971 = vsel %vm199, %v7908, 0
      %v7974 = vsel %vm199, %v7912, 0
      %v7977 = vsel %vm199, %v7916, 0
      %v7980 = vsel %vm199, %v7920, 0
      %v7983 = vsel %vm199, %v7924, 0
      %v7986 = vsel %vm199, %v7933, 0
      %v7989 = vsel %vm1079, %v7848, 0
      %7991 = vmatprep.subr.bf16.mxu0 0
      %7992 = vmatpush1.bf16.msra.mxu0 %v7989
      %7993 = vmatprep.subr.bf16.mxu0 0
      %7994 = vmatpush1.bf16.msra.mxu0 0
      %7995 = vmatprep.subr.bf16.mxu0 0
      %7996 = vmatpush1.bf16.msra.mxu0 0
      %7997 = vmatprep.subr.bf16.mxu0 0
      %7998 = vmatpush1.bf16.msra.mxu0 0
      %7999 = vmatprep.subr.bf16.mxu0 0
      %8000 = vmatpush1.bf16.msra.mxu0 0
      %8001 = vmatprep.subr.bf16.mxu0 0
      %8002 = vmatpush1.bf16.msra.mxu0 0
      %8003 = vmatprep.subr.bf16.mxu0 0
      %8004 = vmatpush1.bf16.msra.mxu0 0
      %8005 = vmatprep.subr.bf16.mxu0 0
      %8006 = vmatpush1.bf16.msra.mxu0 0
      %8007 = vmatprep.subr.bf16.mxu0 0
      %8008 = vmatpush1.bf16.msra.mxu0 0
      %8009 = vmatprep.subr.bf16.mxu0 0
      %8010 = vmatpush1.bf16.msra.mxu0 0
      %8011 = vmatprep.subr.bf16.mxu0 0
      %8012 = vmatpush1.bf16.msra.mxu0 0
      %8013 = vmatprep.subr.bf16.mxu0 0
      %8014 = vmatpush1.bf16.msra.mxu0 0
      %8015 = vmatprep.subr.bf16.mxu0 0
      %8016 = vmatpush1.bf16.msra.mxu0 0
      %8017 = vmatprep.subr.bf16.mxu0 0
      %8018 = vmatpush1.bf16.msra.mxu0 0
      %8019 = vmatprep.subr.bf16.mxu0 0
      %8020 = vmatpush1.bf16.msra.mxu0 0
      %8021 = vmatprep.subr.bf16.mxu0 0
      %8022 = vmatpush1.bf16.msra.mxu0 0
      %8023 = vmatprep.mubr.bf16.mxu0 0
      %8024 = vmatmul.mubr.bf16.gmra.mrb[0].mxu0 %v7935
      %v8025 = vpop.f32.mrb[0].mxu0
      %v8026 = vadd.f32 0.0, %v8025
      %v8027 = vpop.f32.mrb[0].mxu0
      %v8028 = vpop.f32.mrb[0].mxu0
      %v8029 = vadd.f32 0.0, %v8028
      %v8030 = vpop.f32.mrb[0].mxu0
      %8031 = vmatprep.mubr.bf16.mxu0 0
      %8032 = vmatmul.mubr.bf16.gmra.mrb[0].mxu0 %v7938
      %v8033 = vpop.f32.mrb[0].mxu0
      %v8034 = vadd.f32 0.0, %v8033
      %v8035 = vpop.f32.mrb[0].mxu0
      %v8036 = vpop.f32.mrb[0].mxu0
      %v8037 = vadd.f32 0.0, %v8036
      %v8038 = vpop.f32.mrb[0].mxu0
      %8039 = vmatprep.mubr.bf16.mxu0 0
      %8040 = vmatmul.mubr.bf16.gmra.mrb[0].mxu0 %v7941
      %v8041 = vpop.f32.mrb[0].mxu0
      %v8042 = vadd.f32 0.0, %v8041
      %v8043 = vpop.f32.mrb[0].mxu0
      %v8044 = vpop.f32.mrb[0].mxu0
      %v8045 = vadd.f32 0.0, %v8044
      %v8046 = vpop.f32.mrb[0].mxu0
      %8047 = vmatprep.mubr.bf16.mxu0 0
      %8048 = vmatmul.mubr.bf16.gmra.mrb[0].mxu0 %v7944
      %v8049 = vpop.f32.mrb[0].mxu0
      %v8050 = vadd.f32 0.0, %v8049
      %v8051 = vpop.f32.mrb[0].mxu0
      %v8052 = vpop.f32.mrb[0].mxu0
      %v8053 = vadd.f32 0.0, %v8052
      %v8054 = vpop.f32.mrb[0].mxu0
      %8055 = vmatprep.mubr.bf16.mxu0 0
      %8056 = vmatmul.mubr.bf16.gmra.mrb[0].mxu0 %v7947
      %v8057 = vpop.f32.mrb[0].mxu0
      %v8058 = vadd.f32 0.0, %v8057
      %v8059 = vpop.f32.mrb[0].mxu0
      %v8060 = vpop.f32.mrb[0].mxu0
      %v8061 = vadd.f32 0.0, %v8060
      %v8062 = vpop.f32.mrb[0].mxu0
      %8063 = vmatprep.mubr.bf16.mxu0 0
      %8064 = vmatmul.mubr.bf16.gmra.mrb[0].mxu0 %v7950
      %v8065 = vpop.f32.mrb[0].mxu0
      %v8066 = vadd.f32 0.0, %v8065
      %v8067 = vpop.f32.mrb[0].mxu0
      %v8068 = vpop.f32.mrb[0].mxu0
      %v8069 = vadd.f32 0.0, %v8068
      %v8070 = vpop.f32.mrb[0].mxu0
      %8071 = vmatprep.mubr.bf16.mxu0 0
      %8072 = vmatmul.mubr.bf16.gmra.mrb[0].mxu0 %v7953
      %v8073 = vpop.f32.mrb[0].mxu0
      %v8074 = vadd.f32 0.0, %v8073
      %v8075 = vpop.f32.mrb[0].mxu0
      %v8076 = vpop.f32.mrb[0].mxu0
      %v8077 = vadd.f32 0.0, %v8076
      %v8078 = vpop.f32.mrb[0].mxu0
      %8079 = vmatprep.mubr.bf16.mxu0 0
      %8080 = vmatmul.mubr.bf16.gmra.mrb[0].mxu0 %v7956
      %v8081 = vpop.f32.mrb[0].mxu0
      %v8082 = vadd.f32 0.0, %v8081
      %v8083 = vpop.f32.mrb[0].mxu0
      %v8084 = vpop.f32.mrb[0].mxu0
      %v8085 = vadd.f32 0.0, %v8084
      %v8086 = vpop.f32.mrb[0].mxu0
      %8087 = vmatprep.mubr.bf16.mxu0 0
      %8088 = vmatmul.mubr.bf16.gmra.mrb[0].mxu0 %v7959
      %v8089 = vpop.f32.mrb[0].mxu0
      %v8090 = vadd.f32 0.0, %v8089
      %v8091 = vpop.f32.mrb[0].mxu0
      %v8092 = vpop.f32.mrb[0].mxu0
      %v8093 = vadd.f32 0.0, %v8092
      %v8094 = vpop.f32.mrb[0].mxu0
      %8095 = vmatprep.mubr.bf16.mxu0 0
      %8096 = vmatmul.mubr.bf16.gmra.mrb[0].mxu0 %v7962
      %v8097 = vpop.f32.mrb[0].mxu0
      %v8098 = vadd.f32 0.0, %v8097
      %v8099 = vpop.f32.mrb[0].mxu0
      %v8100 = vpop.f32.mrb[0].mxu0
      %v8101 = vadd.f32 0.0, %v8100
      %v8102 = vpop.f32.mrb[0].mxu0
      %8103 = vmatprep.mubr.bf16.mxu0 0
      %8104 = vmatmul.mubr.bf16.gmra.mrb[0].mxu0 %v7965
      %v8105 = vpop.f32.mrb[0].mxu0
      %v8106 = vadd.f32 0.0, %v8105
      %v8107 = vpop.f32.mrb[0].mxu0
      %v8108 = vpop.f32.mrb[0].mxu0
      %v8109 = vadd.f32 0.0, %v8108
      %v8110 = vpop.f32.mrb[0].mxu0
      %8111 = vmatprep.mubr.bf16.mxu0 0
      %8112 = vmatmul.mubr.bf16.gmra.mrb[0].mxu0 %v7968
      %v8113 = vpop.f32.mrb[0].mxu0
      %v8114 = vadd.f32 0.0, %v8113
      %v8115 = vpop.f32.mrb[0].mxu0
      %v8116 = vpop.f32.mrb[0].mxu0
      %v8117 = vadd.f32 0.0, %v8116
      %v8118 = vpop.f32.mrb[0].mxu0
      %8119 = vmatprep.mubr.bf16.mxu0 0
      %8120 = vmatmul.mubr.bf16.gmra.mrb[0].mxu0 %v7971
      %v8121 = vpop.f32.mrb[0].mxu0
      %v8122 = vadd.f32 0.0, %v8121
      %v8123 = vpop.f32.mrb[0].mxu0
      %v8124 = vpop.f32.mrb[0].mxu0
      %v8125 = vadd.f32 0.0, %v8124
      %v8126 = vpop.f32.mrb[0].mxu0
      %8127 = vmatprep.mubr.bf16.mxu0 0
      %8128 = vmatmul.mubr.bf16.gmra.mrb[0].mxu0 %v7974
      %v8129 = vpop.f32.mrb[0].mxu0
      %v8130 = vadd.f32 0.0, %v8129
      %v8131 = vpop.f32.mrb[0].mxu0
      %v8132 = vpop.f32.mrb[0].mxu0
      %v8133 = vadd.f32 0.0, %v8132
      %v8134 = vpop.f32.mrb[0].mxu0
      %8135 = vmatprep.mubr.bf16.mxu0 0
      %8136 = vmatmul.mubr.bf16.gmra.mrb[0].mxu0 %v7977
      %v8137 = vpop.f32.mrb[0].mxu0
      %v8138 = vadd.f32 0.0, %v8137
      %v8139 = vpop.f32.mrb[0].mxu0
      %v8140 = vpop.f32.mrb[0].mxu0
      %v8141 = vadd.f32 0.0, %v8140
      %v8142 = vpop.f32.mrb[0].mxu0
      %8143 = vmatprep.mubr.bf16.mxu0 0
      %8144 = vmatmul.mubr.bf16.gmra.mrb[0].mxu0 %v7980
      %v8145 = vpop.f32.mrb[0].mxu0
      %v8146 = vadd.f32 0.0, %v8145
      %v8147 = vpop.f32.mrb[0].mxu0
      %v8148 = vpop.f32.mrb[0].mxu0
      %v8149 = vadd.f32 0.0, %v8148
      %v8150 = vpop.f32.mrb[0].mxu0
      %8151 = vmatprep.mubr.bf16.mxu0 0
      %8152 = vmatmul.mubr.bf16.gmra.mrb[0].mxu0 %v7983
      %v8153 = vpop.f32.mrb[0].mxu0
      %v8154 = vadd.f32 0.0, %v8153
      %v8155 = vpop.f32.mrb[0].mxu0
      %v8156 = vpop.f32.mrb[0].mxu0
      %v8157 = vadd.f32 0.0, %v8156
      %v8158 = vpop.f32.mrb[0].mxu0
      %8159 = vmatprep.mubr.bf16.mxu0 0
      %8160 = vmatmul.mubr.bf16.gmra.mrb[0].mxu0 %v7986
      %v8161 = vpop.f32.mrb[0].mxu0
      %v8162 = vadd.f32 0.0, %v8161
      %v8163 = vpop.f32.mrb[0].mxu0
      %v8164 = vpop.f32.mrb[0].mxu0
      %v8165 = vadd.f32 0.0, %v8164
      %v8166 = vpop.f32.mrb[0].mxu0
      %8167 = vdwg.mxu0
      %v8168 = vadd.f32 %v7810, %v8026
      %v8169 = vadd.f32 %v7811, %v8029
      %v8170 = vadd.f32 %v7812, %v8034
      %v8171 = vadd.f32 %v7813, %v8037
      %v8172 = vadd.f32 %v7814, %v8042
      %v8173 = vadd.f32 %v7815, %v8045
      %v8174 = vadd.f32 %v7816, %v8050
      %v8175 = vadd.f32 %v7817, %v8053
      %v8176 = vadd.f32 %v7818, %v8058
      %v8177 = vadd.f32 %v7819, %v8061
      %v8178 = vadd.f32 %v7820, %v8066
      %v8179 = vadd.f32 %v7821, %v8069
      %v8180 = vadd.f32 %v7822, %v8074
      %v8181 = vadd.f32 %v7823, %v8077
      %v8182 = vadd.f32 %v7824, %v8082
      %v8183 = vadd.f32 %v7825, %v8085
      %v8184 = vadd.f32 %v7826, %v8090
      %v8185 = vadd.f32 %v7827, %v8093
      %v8186 = vadd.f32 %v7828, %v8098
      %v8187 = vadd.f32 %v7829, %v8101
      %v8188 = vadd.f32 %v7830, %v8106
      %v8189 = vadd.f32 %v7831, %v8109
      %v8190 = vadd.f32 %v7832, %v8114
      %v8191 = vadd.f32 %v7833, %v8117
      %v8192 = vadd.f32 %v7834, %v8122
      %v8193 = vadd.f32 %v7835, %v8125
      %v8194 = vadd.f32 %v7836, %v8130
      %v8195 = vadd.f32 %v7837, %v8133
      %v8196 = vadd.f32 %v7838, %v8138
      %v8197 = vadd.f32 %v7839, %v8141
      %v8198 = vadd.f32 %v7840, %v8146
      %v8199 = vadd.f32 %v7841, %v8149
      %v8200 = vadd.f32 %v7842, %v8154
      %v8201 = vadd.f32 %v7843, %v8157
      %v8202 = vadd.f32 %v7844, %v8162
      %v8203 = vadd.f32 %v7845, %v8165
      %v8204 = vld [vmem:[%s192 + $0x10] sm:$0xf]
      %v8205 = vld [vmem:[%s192 + $0x14] sm:$0xf]
      %v8206 = vld [vmem:[%s192 + $0x18] sm:$0xf]
      %v8207 = vld [vmem:[%s192 + $0x1c] sm:$0xf]
      %v8208 = vld [vmem:[%s192 + $0x20] sm:$0xf]
      %v8209 = vld [vmem:[%s192 + $0x24] sm:$0xf]
      %v8210 = vld [vmem:[%s192 + $0x28] sm:$0xf]
      %v8211 = vld [vmem:[%s192 + $0x2c] sm:$0xf]
      %v8212 = vld [vmem:[%s192 + $0x30] sm:$0xf]
      %v8213 = vld [vmem:[%s192 + $0x34] sm:$0xf]
      %v8214 = vld [vmem:[%s192 + $0x38] sm:$0xf]
      %v8215 = vld [vmem:[%s192 + $0x3c] sm:$0xf]
      %v8216 = vld [vmem:[%s192 + $0x40] sm:$0xf]
      %v8217 = vld [vmem:[%s192 + $0x44] sm:$0xf]
      %v8218 = vld [vmem:[%s192 + $0x48] sm:$0xf]
      %v8219 = vld [vmem:[%s192 + $0x4c] sm:$0xf]
      %v8220 = vld [vmem:[%s192 + $0x50] sm:$0xf]
      %v8221 = vld [vmem:[%s192 + $0x54] sm:$0xf]
      %v8222 = vld [vmem:[%s192 + $0x58] sm:$0xf]
      %v8223 = vld [vmem:[%s192 + $0x5c] sm:$0xf]
      %v8224 = vld [vmem:[%s192 + $0x60] sm:$0xf]
      %v8225 = vld [vmem:[%s192 + $0x64] sm:$0xf]
      %v8226 = vld [vmem:[%s192 + $0x68] sm:$0xf]
      %v8227 = vld [vmem:[%s192 + $0x6c] sm:$0xf]
      %v8228 = vld [vmem:[%s192 + $0x70] sm:$0xf]
      %v8229 = vld [vmem:[%s192 + $0x74] sm:$0xf]
      %v8230 = vld [vmem:[%s192 + $0x78] sm:$0xf]
      %v8231 = vld [vmem:[%s192 + $0x7c] sm:$0xf]
      %v8232 = vld [vmem:[%s192 + $0x80] sm:$0xf]
      %v8233 = vld [vmem:[%s192 + $0x84] sm:$0xf]
      %v8234 = vld [vmem:[%s192 + $0x88] sm:$0xf]
      %v8235 = vld [vmem:[%s192 + $0x8c] sm:$0xf]
      %v8236 = vld [vmem:[%s192 + $0x90] sm:$0xf]
      %v8237 = vld [vmem:[%s192 + $0x94] sm:$0xf]
      %v8238 = vld [vmem:[%s192 + $0x98] sm:$0xf]
      %v8239 = vld [vmem:[%s192 + $0x9c] sm:$0xf]
      %v8240 = vunpack.c.l.bf16 %v8204
      %v8241 = vunpack.c.l.bf16 %v8205
      %v8242 = vunpack.c.l.bf16 %v8206
      %v8243 = vunpack.c.l.bf16 %v8207
      %v8244 = vunpack.c.l.bf16 %v8208
      %v8245 = vunpack.c.l.bf16 %v8209
      %v8246 = vunpack.c.l.bf16 %v8210
      %v8247 = vunpack.c.l.bf16 %v8211
      %v8248 = vunpack.c.l.bf16 %v8212
      %v8249 = vunpack.c.l.bf16 %v8213
      %v8250 = vunpack.c.l.bf16 %v8214
      %v8251 = vunpack.c.l.bf16 %v8215
      %v8252 = vunpack.c.l.bf16 %v8216
      %v8253 = vunpack.c.l.bf16 %v8217
      %v8254 = vunpack.c.l.bf16 %v8218
      %v8255 = vunpack.c.l.bf16 %v8219
      %v8256 = vunpack.c.l.bf16 %v8220
      %v8257 = vunpack.c.l.bf16 %v8221
      %v8258 = vunpack.c.l.bf16 %v8222
      %v8259 = vunpack.c.l.bf16 %v8223
      %v8260 = vunpack.c.l.bf16 %v8224
      %v8261 = vunpack.c.l.bf16 %v8225
      %v8262 = vunpack.c.l.bf16 %v8226
      %v8263 = vunpack.c.l.bf16 %v8227
      %v8264 = vunpack.c.l.bf16 %v8228
      %v8265 = vunpack.c.l.bf16 %v8229
      %v8266 = vunpack.c.l.bf16 %v8230
      %v8267 = vunpack.c.l.bf16 %v8231
      %v8268 = vunpack.c.l.bf16 %v8232
      %v8269 = vunpack.c.l.bf16 %v8233
      %v8270 = vunpack.c.l.bf16 %v8234
      %v8271 = vunpack.c.l.bf16 %v8235
      %v8272 = vunpack.c.l.bf16 %v8236
      %v8273 = vunpack.c.l.bf16 %v8237
      %v8274 = vunpack.c.l.bf16 %v8238
      %v8275 = vunpack.c.l.bf16 %v8239
      %v8276 = vld [vmem:[%s3 + $0x1] sm:$0x1]
      %v8277 = vlaneseq
      %v8278 = vshrl.u32 %v8277, 7
      %v8279 = vsub.s32 0, %v8278
      %v8280 = vrot.slane %v8276, %v8279
      %v8281 = vadd.f32 %v8168, %v8280
      %v8282 = vadd.f32 %v8169, %v8280
      %v8283 = vadd.f32 %v8170, %v8280
      %v8284 = vadd.f32 %v8171, %v8280
      %v8285 = vadd.f32 %v8172, %v8280
      %v8286 = vadd.f32 %v8173, %v8280
      %v8287 = vadd.f32 %v8174, %v8280
      %v8288 = vadd.f32 %v8175, %v8280
      %v8289 = vadd.f32 %v8176, %v8280
      %v8290 = vadd.f32 %v8177, %v8280
      %v8291 = vadd.f32 %v8178, %v8280
      %v8292 = vadd.f32 %v8179, %v8280
      %v8293 = vadd.f32 %v8180, %v8280
      %v8294 = vadd.f32 %v8181, %v8280
      %v8295 = vadd.f32 %v8182, %v8280
      %v8296 = vadd.f32 %v8183, %v8280
      %v8297 = vadd.f32 %v8184, %v8280
      %v8298 = vadd.f32 %v8185, %v8280
      %v8299 = vadd.f32 %v8186, %v8280
      %v8300 = vadd.f32 %v8187, %v8280
      %v8301 = vadd.f32 %v8188, %v8280
      %v8302 = vadd.f32 %v8189, %v8280
      %v8303 = vadd.f32 %v8190, %v8280
      %v8304 = vadd.f32 %v8191, %v8280
      %v8305 = vadd.f32 %v8192, %v8280
      %v8306 = vadd.f32 %v8193, %v8280
      %v8307 = vadd.f32 %v8194, %v8280
      %v8308 = vadd.f32 %v8195, %v8280
      %v8309 = vadd.f32 %v8196, %v8280
      %v8310 = vadd.f32 %v8197, %v8280
      %v8311 = vadd.f32 %v8198, %v8280
      %v8312 = vadd.f32 %v8199, %v8280
      %v8313 = vadd.f32 %v8200, %v8280
      %v8314 = vadd.f32 %v8201, %v8280
      %v8315 = vadd.f32 %v8202, %v8280
      %v8316 = vadd.f32 %v8203, %v8280
      %v8317 = vadd.f32 %v8281, %v8240
      %v8318 = vadd.f32 %v8282, %v8241
      %v8319 = vadd.f32 %v8283, %v8242
      %v8320 = vadd.f32 %v8284, %v8243
      %v8321 = vadd.f32 %v8285, %v8244
      %v8322 = vadd.f32 %v8286, %v8245
      %v8323 = vadd.f32 %v8287, %v8246
      %v8324 = vadd.f32 %v8288, %v8247
      %v8325 = vadd.f32 %v8289, %v8248
      %v8326 = vadd.f32 %v8290, %v8249
      %v8327 = vadd.f32 %v8291, %v8250
      %v8328 = vadd.f32 %v8292, %v8251
      %v8329 = vadd.f32 %v8293, %v8252
      %v8330 = vadd.f32 %v8294, %v8253
      %v8331 = vadd.f32 %v8295, %v8254
      %v8332 = vadd.f32 %v8296, %v8255
      %v8333 = vadd.f32 %v8297, %v8256
      %v8334 = vadd.f32 %v8298, %v8257
      %v8335 = vadd.f32 %v8299, %v8258
      %v8336 = vadd.f32 %v8300, %v8259
      %v8337 = vadd.f32 %v8301, %v8260
      %v8338 = vadd.f32 %v8302, %v8261
      %v8339 = vadd.f32 %v8303, %v8262
      %v8340 = vadd.f32 %v8304, %v8263
      %v8341 = vadd.f32 %v8305, %v8264
      %v8342 = vadd.f32 %v8306, %v8265
      %v8343 = vadd.f32 %v8307, %v8266
      %v8344 = vadd.f32 %v8308, %v8267
      %v8345 = vadd.f32 %v8309, %v8268
      %v8346 = vadd.f32 %v8310, %v8269
      %v8347 = vadd.f32 %v8311, %v8270
      %v8348 = vadd.f32 %v8312, %v8271
      %v8349 = vadd.f32 %v8313, %v8272
      %v8350 = vadd.f32 %v8314, %v8273
      %v8351 = vadd.f32 %v8315, %v8274
      %v8352 = vadd.f32 %v8316, %v8275
      %v8353 = vmax.f32 %v8317, 0.0
      %v8354 = vmax.f32 %v8318, 0.0
      %v8355 = vmax.f32 %v8319, 0.0
      %v8356 = vmax.f32 %v8320, 0.0
      %v8357 = vmax.f32 %v8321, 0.0
      %v8358 = vmax.f32 %v8322, 0.0
      %v8359 = vmax.f32 %v8323, 0.0
      %v8360 = vmax.f32 %v8324, 0.0
      %v8361 = vmax.f32 %v8325, 0.0
      %v8362 = vmax.f32 %v8326, 0.0
      %v8363 = vmax.f32 %v8327, 0.0
      %v8364 = vmax.f32 %v8328, 0.0
      %v8365 = vmax.f32 %v8329, 0.0
      %v8366 = vmax.f32 %v8330, 0.0
      %v8367 = vmax.f32 %v8331, 0.0
      %v8368 = vmax.f32 %v8332, 0.0
      %v8369 = vmax.f32 %v8333, 0.0
      %v8370 = vmax.f32 %v8334, 0.0
      %v8371 = vmax.f32 %v8335, 0.0
      %v8372 = vmax.f32 %v8336, 0.0
      %v8373 = vmax.f32 %v8337, 0.0
      %v8374 = vmax.f32 %v8338, 0.0
      %v8375 = vmax.f32 %v8339, 0.0
      %v8376 = vmax.f32 %v8340, 0.0
      %v8377 = vmax.f32 %v8341, 0.0
      %v8378 = vmax.f32 %v8342, 0.0
      %v8379 = vmax.f32 %v8343, 0.0
      %v8380 = vmax.f32 %v8344, 0.0
      %v8381 = vmax.f32 %v8345, 0.0
      %v8382 = vmax.f32 %v8346, 0.0
      %v8383 = vmax.f32 %v8347, 0.0
      %v8384 = vmax.f32 %v8348, 0.0
      %v8385 = vmax.f32 %v8349, 0.0
      %v8386 = vmax.f32 %v8350, 0.0
      %v8387 = vmax.f32 %v8351, 0.0
      %v8388 = vmax.f32 %v8352, 0.0
      %8389 = vst.msk [vmem:[%s197] sm:$0xff] %vm199, %v8353
      %8390 = vst.msk [vmem:[%s197 + $0x8] sm:$0xff] %vm199, %v8354
      %8391 = vst.msk [vmem:[%s197 + $0x10] sm:$0xff] %vm199, %v8355
      %8392 = vst.msk [vmem:[%s197 + $0x18] sm:$0xff] %vm199, %v8356
      %8393 = vst.msk [vmem:[%s197 + $0x20] sm:$0xff] %vm199, %v8357
      %8394 = vst.msk [vmem:[%s197 + $0x28] sm:$0xff] %vm199, %v8358
      %8395 = vst.msk [vmem:[%s197 + $0x30] sm:$0xff] %vm199, %v8359
      %8396 = vst.msk [vmem:[%s197 + $0x38] sm:$0xff] %vm199, %v8360
      %8397 = vst.msk [vmem:[%s197 + $0x40] sm:$0xff] %vm199, %v8361
      %8398 = vst.msk [vmem:[%s197 + $0x48] sm:$0xff] %vm199, %v8362
      %8399 = vst.msk [vmem:[%s197 + $0x50] sm:$0xff] %vm199, %v8363
      %8400 = vst.msk [vmem:[%s197 + $0x58] sm:$0xff] %vm199, %v8364
      %8401 = vst.msk [vmem:[%s197 + $0x60] sm:$0xff] %vm199, %v8365
      %8402 = vst.msk [vmem:[%s197 + $0x68] sm:$0xff] %vm199, %v8366
      %8403 = vst.msk [vmem:[%s197 + $0x70] sm:$0xff] %vm199, %v8367
      %8404 = vst.msk [vmem:[%s197 + $0x78] sm:$0xff] %vm199, %v8368
      %8405 = vst.msk [vmem:[%s197 + $0x80] sm:$0xff] %vm199, %v8369
      %8406 = vst.msk [vmem:[%s197 + $0x88] sm:$0xff] %vm199, %v8370
      %8407 = vst.msk [vmem:[%s197 + $0x90] sm:$0xff] %vm199, %v8371
      %8408 = vst.msk [vmem:[%s197 + $0x98] sm:$0xff] %vm199, %v8372
      %8409 = vst.msk [vmem:[%s197 + $0xa0] sm:$0xff] %vm199, %v8373
      %8410 = vst.msk [vmem:[%s197 + $0xa8] sm:$0xff] %vm199, %v8374
      %8411 = vst.msk [vmem:[%s197 + $0xb0] sm:$0xff] %vm199, %v8375
      %8412 = vst.msk [vmem:[%s197 + $0xb8] sm:$0xff] %vm199, %v8376
      %8413 = vst.msk [vmem:[%s197 + $0xc0] sm:$0xff] %vm199, %v8377
      %8414 = vst.msk [vmem:[%s197 + $0xc8] sm:$0xff] %vm199, %v8378
      %8415 = vst.msk [vmem:[%s197 + $0xd0] sm:$0xff] %vm199, %v8379
      %8416 = vst.msk [vmem:[%s197 + $0xd8] sm:$0xff] %vm199, %v8380
      %8417 = vst.msk [vmem:[%s197 + $0xe0] sm:$0xff] %vm199, %v8381
      %8418 = vst.msk [vmem:[%s197 + $0xe8] sm:$0xff] %vm199, %v8382
      %8419 = vst.msk [vmem:[%s197 + $0xf0] sm:$0xff] %vm199, %v8383
      %8420 = vst.msk [vmem:[%s197 + $0xf8] sm:$0xff] %vm199, %v8384
      %8421 = vst.msk [vmem:[%s197 + $0x100] sm:$0xff] %vm199, %v8385
      %8422 = vst.msk [vmem:[%s197 + $0x108] sm:$0xff] %vm199, %v8386
      %8423 = vst.msk [vmem:[%s197 + $0x110] sm:$0xff] %vm199, %v8387
      %8424 = vst.msk [vmem:[%s197 + $0x118] sm:$0xff] %vm199, %v8388
      %p8425 = scmp.lt.s32.totalorder %s15, 1
      %s8426 = scalar_select %p8425, %s15, 1
      %s8427 = smul.addr %s8426, 36
      %s8428 = smul.addr %s8427, 8
      %s8429 = scalar_lea.vmem %s4, %s8428
      // Predicated region
      $region37: #{tpu_custom_call.1} parent=35 // pred_check
        %p8430 = pneg %p122
      $region38: #{tpu_custom_call.1} parent=35 // pred_check_branch
        %8432 = sbr.rel (%p8430) target = $region40
      $region39: #{tpu_custom_call.1} parent=35 // pred_region
        _
      $region40: #{tpu_custom_call.1} parent=35 // pred_fallthru
        _
    $region36: #{tpu_custom_call.1} parent=5 // pred_fallthru
      _
    %p8433 = scmp.le.s32.totalorder 2, %s10
    // Predicated region
    $region41: #{tpu_custom_call.1} parent=5 // pred_check
      %p8434 = pneg %p8433
    $region42: #{tpu_custom_call.1} parent=5 // pred_check_branch
      %8436 = sbr.rel (%p8434) target = $region44
    $region43: #{tpu_custom_call.1} parent=5 // pred_region
      %s8437 = ssub.s32 %s10, 2
      // Predicated region
      $region45: #{tpu_custom_call.1} parent=43 // pred_check
        %p8438 = pneg %p128
      $region46: #{tpu_custom_call.1} parent=43 // pred_check_branch
        %8440 = sbr.rel (%p8438) target = $region48
      $region47: #{tpu_custom_call.1} parent=43 // pred_region
        %p8441 = scmp.lt.s32.totalorder %s16, 1
        %s8442 = scalar_select %p8441, %s16, 1
        %s8443 = smul.addr %s8442, 36
        %s8444 = smul.addr %s8443, 8
        %s8445 = scalar_lea.vmem %s4, %s8444
      $region48: #{tpu_custom_call.1} parent=43 // pred_fallthru
        _
    $region44: #{tpu_custom_call.1} parent=5 // pred_fallthru
      _
  $region6: #{tpu_custom_call.1} parent=0 // loop_footer
    %s14 = sadd.s32 1, %s10
  $region7: #{tpu_custom_call.1} parent=0 // loop_footer_branch
    %9 = sbr.rel target = $region3
  $region8: #{tpu_custom_call.1} parent=0 // loop_exit
    _

</llo_original>
